<compile_context>
chip_gen: v7x
topology: tpu7x:2x2x1
jax: 0.10.0
libtpu: 0.0.40
codegen_flags: <defaults>
</compile_context>

<pallas_src>
import functools

import jax
import jax.numpy as jnp
from jax import lax
from jax.experimental import pallas as pl
from jax.experimental.pallas import tpu as pltpu


_LPAD = 8                          # sublane-aligned horizontal halo in the act scratch
_LANES = 128
_SQRT_HALF = 0.7071067811865476
_TILE_VMEM_BUDGET = 12 * 1024 * 1024   # per-step footprint target for tile sizing
_VMEM_LIMIT = 32 * 1024 * 1024         # explicit scoped-VMEM limit (safe on v5e..v7x)


def _erf_approx(x):
    """erf via Abramowitz & Stegun 7.1.26 (|err| < 1.5e-7 ~= f32 eps).

    Only mul/add/exp/where/reciprocal, all of which lower on the TPU VPU/EUP."""
    p = 0.3275911
    a1, a2, a3, a4, a5 = (0.254829592, -0.284496736, 1.421413741,
                          -1.453152027, 1.061405429)
    s = jnp.where(x < 0.0, -1.0, 1.0)
    z = jnp.abs(x)
    t = pl.reciprocal(1.0 + p * z, approx=True)     # EUP vrcp (free slot)
    poly = ((((a5 * t + a4) * t + a3) * t + a2) * t + a1) * t
    return s * (1.0 - poly * jnp.exp(-(z * z)))


def _gelu_exact(x):
    """Exact (erf-based) GELU, matching torch.nn.GELU()'s default."""
    return 0.5 * x * (1.0 + _erf_approx(x * _SQRT_HALF))


def _cab_conv_kernel(x_ref, w1_ref, b1_ref, w2_ref, b2_ref,
                     y_ref, sum_ref, p1_ref, mpad_ref, acc_ref,
                     *, TH, W, C, Cmid, n_tiles):
    f32 = jnp.float32
    bf16 = jnp.bfloat16
    t = pl.program_id(1)
    FH = TH + 2                       # conv1 frame: tile rows + 1 halo row each side

    # ---- Stage 1: 3x3 conv (C -> Cmid) as one K-fused MXU dot (K = 9*C). ----
    # Pack the 9 shifted taps into a lane-aligned fused LHS (offsets k*128).
    for dh in range(3):
        for dw in range(3):
            tap = dh * 3 + dw
            p1_ref[:, :, pl.ds(tap * C, C)] = x_ref[
                0, 0, pl.ds(dh, FH), pl.ds(dw, W), :]
    pre1 = jnp.dot(p1_ref[...].reshape(FH * W, 9 * C), w1_ref[...],
                   preferred_element_type=f32)
    act1 = _gelu_exact(pre1 + b1_ref[...])                      # (FH*W, Cmid) f32

    # ---- Stage 2 input: horizontally padded activation, bf16 in VMEM. ------
    # Only the halo strips get zeroed; the interior is fully overwritten.
    zero_strip = jnp.zeros((FH, _LPAD, Cmid), bf16)
    mpad_ref[:, pl.ds(0, _LPAD), :] = zero_strip
    mpad_ref[:, pl.ds(_LPAD + W, _LPAD), :] = zero_strip
    mpad_ref[:, pl.ds(_LPAD, W), :] = act1.reshape(FH, W, Cmid).astype(bf16)

    # conv2's vertical zero padding lives at the image top/bottom only.
    zero_row = jnp.zeros((1, W + 2 * _LPAD, Cmid), bf16)

    @pl.when(t == 0)
    def _():
        mpad_ref[pl.ds(0, 1), :, :] = zero_row

    @pl.when(t == n_tiles - 1)
    def _():
        mpad_ref[pl.ds(FH - 1, 1), :, :] = zero_row

    # ---- Stage 2: 3x3 conv (Cmid -> C), accumulated in a VMEM f32 scratch. --
    # TODO(synk): K-fuse conv2's 9 taps (K=9*Cmid=378) once the lane-misaligned
    # packing of 42-wide channel groups is worth the relayout cost (v6e/v7x).
    for dh in range(3):
        for dw in range(3):
            tap = dh * 3 + dw
            patch = mpad_ref[pl.ds(dh, TH), pl.ds(_LPAD - 1 + dw, W), :]
            contrib = jnp.dot(patch.reshape(TH * W, Cmid), w2_ref[tap],
                              preferred_element_type=f32)
            if tap == 0:
                acc_ref[...] = contrib
            else:
                acc_ref[...] += contrib

    y = acc_ref[...] + b2_ref[...]                               # (TH*W, C) f32
    y_ref[...] = y.reshape(1, TH, W, C).astype(y_ref.dtype)

    # Per-image channel sums for the global average pool (resident accumulator).
    @pl.when(t == 0)
    def _():
        sum_ref[...] = jnp.zeros_like(sum_ref)

    sum_ref[...] += jnp.sum(y, axis=0, keepdims=True).reshape(1, 1, C)


def _cab_scale_kernel(y_ref, sum_ref, wa1_ref, ba1_ref, wa2_ref, ba2_ref,
                      o_ref, *, inv_hw):
    # Channel-attention MLP on the VPU (broadcast-mul + reduce; no M=1 MXU dots).
    pooled = sum_ref[0] * inv_hw                                 # (1, C)
    h = jnp.sum(pooled * wa1_ref[...], axis=1, keepdims=True) + ba1_ref[...]
    h = jnp.maximum(h, 0.0)                                      # (Csq, 1)
    logits = jnp.sum(h * wa2_ref[...], axis=0, keepdims=True) + ba2_ref[...]
    scale = 1.0 / (1.0 + jnp.exp(-logits))                       # (1, C)
    o_ref[...] = (y_ref[...] * scale).astype(o_ref.dtype)


def _conv_tile_vmem_bytes(TH, W, C, Cmid):
    """Rough per-grid-step VMEM footprint of the conv kernel (bytes)."""
    cmid_pad = -(-Cmid // _LANES) * _LANES
    fh = TH + 2
    n = 2 * (TH + 4) * (W + 2) * C * 2              # x block (bf16, double buffered)
    n += fh * W * 9 * C * 2                         # K-fused conv1 patches (bf16)
    n += fh * (W + 2 * _LPAD) * cmid_pad * 2        # padded conv1 activation (bf16)
    n += TH * W * C * 4                             # conv2 accumulator (f32)
    n += 2 * TH * W * C * 4                         # y output block (f32, dbl buf)
    n += 2 * (9 * C + 9 * C) * cmid_pad * 2         # conv weights (buffered)
    return n


def _pick_tile_h(H, W, C, Cmid, budget=_TILE_VMEM_BUDGET):
    divs = [d for d in range(1, H + 1) if H % d == 0]
    fitting = [d for d in divs if _conv_tile_vmem_bytes(d, W, C, Cmid) <= budget]
    if not fitting:
        return 1
    # Prefer >=2 row tiles per image so the input DMA pipelines with compute.
    pipelined = [d for d in fitting if H // d >= 2]
    return max(pipelined) if pipelined else max(fitting)


def cab_forward(x_nchw, params, *, tile_h=None):
    """CAB forward pass.  x_nchw: (B, C, H, W) float32 -> (B, C, H, W)."""
    w1, b1, w2, b2, wa1, ba1, wa2, ba2 = params
    B, C, H, W = x_nchw.shape
    Cmid = w1.shape[0]
    Csq = wa1.shape[0]
    assert C % _LANES == 0, "num_feat must be a multiple of 128 (lane-dense)"
    assert W % 8 == 0, "W must be a multiple of 8 (sublane tile)"

    TH = _pick_tile_h(H, W, C, Cmid) if tile_h is None else tile_h
    assert H % TH == 0, "tile height must divide H"
    n_tiles = H // TH

    f32, bf16 = jnp.float32, jnp.bfloat16

    # NHWC, bf16 conv data path.  The 2-row / 1-col halo needed by the fused
    # conv1->conv2 row tile is prepared here so each tile is a plain BlockSpec
    # block (no manual DMA); the overlap costs ~(1 + 4/TH) input duplication.
    x_nhwc = jnp.transpose(x_nchw, (0, 2, 3, 1)).astype(bf16)
    x_pad = jnp.pad(x_nhwc, ((0, 0), (2, 2), (1, 1), (0, 0)))
    bands = [lax.slice_in_dim(x_pad, t * TH, t * TH + TH + 4, axis=1)
             for t in range(n_tiles)]
    x_tiles = jnp.stack(bands, axis=1)             # (B, n_tiles, TH+4, W+2, C)

    # Weight repacking (trace-time, tiny).
    w1_f = jnp.transpose(w1, (2, 3, 1, 0)).reshape(9 * C, Cmid).astype(bf16)
    w2_t = jnp.transpose(w2, (2, 3, 1, 0)).reshape(9, Cmid, C).astype(bf16)
    b1_r = b1.reshape(1, Cmid).astype(f32)
    b2_r = b2.reshape(1, C).astype(f32)
    wa1_m = wa1.reshape(Csq, C).astype(f32)                      # (Csq, C)
    ba1_r = ba1.reshape(Csq, 1).astype(f32)
    wa2_m = jnp.transpose(wa2.reshape(C, Csq)).astype(f32)       # (Csq, C)
    ba2_r = ba2.reshape(1, C).astype(f32)

    conv_kernel = functools.partial(_cab_conv_kernel, TH=TH, W=W, C=C,
                                    Cmid=Cmid, n_tiles=n_tiles)
    y, sums = pl.pallas_call(
        conv_kernel,
        grid=(B, n_tiles),
        out_shape=(jax.ShapeDtypeStruct((B, H, W, C), f32),
                   jax.ShapeDtypeStruct((B, 1, C), f32)),
        in_specs=[
            pl.BlockSpec((1, 1, TH + 4, W + 2, C),
                         lambda b, t: (b, t, 0, 0, 0)),
            pl.BlockSpec((9 * C, Cmid), lambda b, t: (0, 0)),
            pl.BlockSpec((1, Cmid), lambda b, t: (0, 0)),
            pl.BlockSpec((9, Cmid, C), lambda b, t: (0, 0, 0)),
            pl.BlockSpec((1, C), lambda b, t: (0, 0)),
        ],
        out_specs=(
            pl.BlockSpec((1, TH, W, C), lambda b, t: (b, t, 0, 0)),
            pl.BlockSpec((1, 1, C), lambda b, t: (b, 0, 0)),
        ),
        scratch_shapes=[
            pltpu.VMEM((TH + 2, W, 9 * C), bf16),            # conv1 fused LHS
            pltpu.VMEM((TH + 2, W + 2 * _LPAD, Cmid), bf16),  # padded activation
            pltpu.VMEM((TH * W, C), f32),                     # conv2 accumulator
        ],
        compiler_params=pltpu.CompilerParams(
            dimension_semantics=("parallel", "arbitrary"),
            vmem_limit_bytes=_VMEM_LIMIT),
    )(x_tiles, w1_f, b1_r, w2_t, b2_r)

    scale_kernel = functools.partial(_cab_scale_kernel, inv_hw=1.0 / (H * W))
    out = pl.pallas_call(
        scale_kernel,
        grid=(B, n_tiles),
        out_shape=jax.ShapeDtypeStruct((B, H, W, C), f32),
        in_specs=[
            pl.BlockSpec((1, TH, W, C), lambda b, t: (b, t, 0, 0)),
            pl.BlockSpec((1, 1, C), lambda b, t: (b, 0, 0)),
            pl.BlockSpec((Csq, C), lambda b, t: (0, 0)),
            pl.BlockSpec((Csq, 1), lambda b, t: (0, 0)),
            pl.BlockSpec((Csq, C), lambda b, t: (0, 0)),
            pl.BlockSpec((1, C), lambda b, t: (0, 0)),
        ],
        out_specs=pl.BlockSpec((1, TH, W, C), lambda b, t: (b, t, 0, 0)),
        compiler_params=pltpu.CompilerParams(
            dimension_semantics=("parallel", "parallel"),
            vmem_limit_bytes=_VMEM_LIMIT),
    )(y, sums, wa1_m, ba1_r, wa2_m, ba2_r)

    # NHWC -> NCHW to match the PyTorch interface.
    return jnp.transpose(out, (0, 3, 1, 2)).astype(x_nchw.dtype)


def cab_reference(x_nchw, params):
    """Pure-XLA f32 reference (exact erf GELU), for the self-check."""
    w1, b1, w2, b2, wa1, ba1, wa2, ba2 = params
    dn = ("NCHW", "OIHW", "NCHW")
    y = lax.conv_general_dilated(x_nchw, w1, (1, 1), "SAME",
                                 dimension_numbers=dn)
    y = y + b1[None, :, None, None]
    y = 0.5 * y * (1.0 + lax.erf(y * _SQRT_HALF))
    y = lax.conv_general_dilated(y, w2, (1, 1), "SAME",
                                 dimension_numbers=dn)
    y = y + b2[None, :, None, None]
    pooled = jnp.mean(y, axis=(2, 3), keepdims=True)
    a = lax.conv_general_dilated(pooled, wa1, (1, 1), "VALID",
                                 dimension_numbers=dn)
    a = jnp.maximum(a + ba1[None, :, None, None], 0.0)
    a = lax.conv_general_dilated(a, wa2, (1, 1), "VALID",
                                 dimension_numbers=dn)
    a = jax.nn.sigmoid(a + ba2[None, :, None, None])
    return y * a


if __name__ == "__main__":
    key = jax.random.PRNGKey(0)
    B, num_feat, H, W = 2, 128, 16, 16      # lane-dense channel count
    compress_ratio, squeeze_factor = 3, 30
    Cmid = num_feat // compress_ratio        # 42
    Csq = num_feat // squeeze_factor         # 4

    ks = jax.random.split(key, 9)
    x = jax.random.normal(ks[0], (B, num_feat, H, W), dtype=jnp.float32)

    def conv_w(k, cout, cin, kh, kw):
        fan_in = cin * kh * kw
        return (jax.random.normal(k, (cout, cin, kh, kw), dtype=jnp.float32)
                * (1.0 / fan_in ** 0.5))

    w1 = conv_w(ks[1], Cmid, num_feat, 3, 3)
    b1 = 0.1 * jax.random.normal(ks[2], (Cmid,), dtype=jnp.float32)
    w2 = conv_w(ks[3], num_feat, Cmid, 3, 3)
    b2 = 0.1 * jax.random.normal(ks[4], (num_feat,), dtype=jnp.float32)
    wa1 = conv_w(ks[5], Csq, num_feat, 1, 1)
    ba1 = 0.1 * jax.random.normal(ks[6], (Csq,), dtype=jnp.float32)
    wa2 = conv_w(ks[7], num_feat, Csq, 1, 1)
    ba2 = 0.1 * jax.random.normal(ks[8], (num_feat,), dtype=jnp.float32)
    params = (w1, b1, w2, b2, wa1, ba1, wa2, ba2)

    # tile_h=8 -> 2 row tiles per image, exercising the tiled pipeline.
    fwd = jax.jit(lambda xx, pp: cab_forward(xx, pp, tile_h=8))
    out = jax.block_until_ready(fwd(x, params))
    assert out.shape == (B, num_feat, H, W)

    ref = cab_reference(x, params)
    # bf16 MXU operands with f32 accumulation -> loosened tolerance.
    max_abs_err = float(jnp.max(jnp.abs(out - ref)))
    assert jnp.allclose(out, ref, rtol=3e-2, atol=3e-2), (
        f"mismatch vs XLA reference, max abs err = {max_abs_err}")

    print("KERNEL_OK")
</pallas_src>

<mosaic_0001>
module attributes {stable_mosaic.version = 11 : i64} {
  func.func @_cab_conv_kernel(%arg0: i32, %arg1: i32, %arg2: memref<1x1x12x18x128xbf16, #tpu.memory_space<vmem>>, %arg3: memref<1152x42xbf16, #tpu.memory_space<vmem>>, %arg4: memref<1x42xf32, #tpu.memory_space<vmem>>, %arg5: memref<9x42x128xbf16, #tpu.memory_space<vmem>>, %arg6: memref<1x128xf32, #tpu.memory_space<vmem>>, %arg7: memref<1x8x16x128xf32, #tpu.memory_space<vmem>>, %arg8: memref<1x1x128xf32, #tpu.memory_space<vmem>>, %arg9: memref<10x16x1152xbf16, #tpu.memory_space<vmem>>, %arg10: memref<10x32x42xbf16, #tpu.memory_space<vmem>>, %arg11: memref<128x128xf32, #tpu.memory_space<vmem>>) attributes {dimension_semantics = [#tpu.dimension_semantics<parallel>, #tpu.dimension_semantics<arbitrary>], iteration_bounds = array<i64: 2, 2>, scalar_prefetch = 0 : i64, scratch_operands = 3 : i64, tpu.core_type = #tpu.core_type<tc>, window_params = [{transform_indices = @transform_0, window_bounds = array<i64: 1, 1, 12, 18, 128>}, {pipeline_mode = #tpu.pipeline_mode<synchronous>, transform_indices = @transform_1, window_bounds = array<i64: 1152, 42>}, {pipeline_mode = #tpu.pipeline_mode<synchronous>, transform_indices = @transform_2, window_bounds = array<i64: 1, 42>}, {pipeline_mode = #tpu.pipeline_mode<synchronous>, transform_indices = @transform_3, window_bounds = array<i64: 9, 42, 128>}, {pipeline_mode = #tpu.pipeline_mode<synchronous>, transform_indices = @transform_4, window_bounds = array<i64: 1, 128>}, {transform_indices = @transform_5, window_bounds = array<i64: 1, 8, 16, 128>}, {transform_indices = @transform_6, window_bounds = array<i64: 1, 1, 128>}]} {
    %c0 = arith.constant 0 : index
    %c0_0 = arith.constant 0 : index
    %c0_1 = arith.constant 0 : index
    %c0_2 = arith.constant 0 : index
    %c0_3 = arith.constant 0 : index
    %0 = vector.load %arg2[%c0, %c0_0, %c0_1, %c0_2, %c0_3] : memref<1x1x12x18x128xbf16, #tpu.memory_space<vmem>>, vector<1x1x10x16x128xbf16>
    %1 = vector.shape_cast %0 : vector<1x1x10x16x128xbf16> to vector<10x16x128xbf16>
    %c0_4 = arith.constant 0 : index
    %c0_5 = arith.constant 0 : index
    %c0_6 = arith.constant 0 : index
    %2 = vector.load %arg9[%c0_4, %c0_5, %c0_6] : memref<10x16x1152xbf16, #tpu.memory_space<vmem>>, vector<10x16x128xbf16>
    tpu.vector_store %arg9[%c0_4, %c0_5, %c0_6], %1 {strides = array<i32>} : memref<10x16x1152xbf16, #tpu.memory_space<vmem>>, vector<10x16x128xbf16>,
    %c0_7 = arith.constant 0 : index
    %c0_8 = arith.constant 0 : index
    %c0_9 = arith.constant 0 : index
    %c1 = arith.constant 1 : index
    %c0_10 = arith.constant 0 : index
    %3 = vector.load %arg2[%c0_7, %c0_8, %c0_9, %c1, %c0_10] : memref<1x1x12x18x128xbf16, #tpu.memory_space<vmem>>, vector<1x1x10x16x128xbf16>
    %4 = vector.shape_cast %3 : vector<1x1x10x16x128xbf16> to vector<10x16x128xbf16>
    %c0_11 = arith.constant 0 : index
    %c0_12 = arith.constant 0 : index
    %c128 = arith.constant 128 : index
    %5 = vector.load %arg9[%c0_11, %c0_12, %c128] : memref<10x16x1152xbf16, #tpu.memory_space<vmem>>, vector<10x16x128xbf16>
    tpu.vector_store %arg9[%c0_11, %c0_12, %c128], %4 {strides = array<i32>} : memref<10x16x1152xbf16, #tpu.memory_space<vmem>>, vector<10x16x128xbf16>,
    %c0_13 = arith.constant 0 : index
    %c0_14 = arith.constant 0 : index
    %c0_15 = arith.constant 0 : index
    %c2 = arith.constant 2 : index
    %c0_16 = arith.constant 0 : index
    %6 = vector.load %arg2[%c0_13, %c0_14, %c0_15, %c2, %c0_16] : memref<1x1x12x18x128xbf16, #tpu.memory_space<vmem>>, vector<1x1x10x16x128xbf16>
    %7 = vector.shape_cast %6 : vector<1x1x10x16x128xbf16> to vector<10x16x128xbf16>
    %c0_17 = arith.constant 0 : index
    %c0_18 = arith.constant 0 : index
    %c256 = arith.constant 256 : index
    %8 = vector.load %arg9[%c0_17, %c0_18, %c256] : memref<10x16x1152xbf16, #tpu.memory_space<vmem>>, vector<10x16x128xbf16>
    tpu.vector_store %arg9[%c0_17, %c0_18, %c256], %7 {strides = array<i32>} : memref<10x16x1152xbf16, #tpu.memory_space<vmem>>, vector<10x16x128xbf16>,
    %c0_19 = arith.constant 0 : index
    %c0_20 = arith.constant 0 : index
    %c1_21 = arith.constant 1 : index
    %c0_22 = arith.constant 0 : index
    %c0_23 = arith.constant 0 : index
    %9 = vector.load %arg2[%c0_19, %c0_20, %c1_21, %c0_22, %c0_23] : memref<1x1x12x18x128xbf16, #tpu.memory_space<vmem>>, vector<1x1x10x16x128xbf16>
    %10 = vector.shape_cast %9 : vector<1x1x10x16x128xbf16> to vector<10x16x128xbf16>
    %c0_24 = arith.constant 0 : index
    %c0_25 = arith.constant 0 : index
    %c384 = arith.constant 384 : index
    %11 = vector.load %arg9[%c0_24, %c0_25, %c384] : memref<10x16x1152xbf16, #tpu.memory_space<vmem>>, vector<10x16x128xbf16>
    tpu.vector_store %arg9[%c0_24, %c0_25, %c384], %10 {strides = array<i32>} : memref<10x16x1152xbf16, #tpu.memory_space<vmem>>, vector<10x16x128xbf16>,
    %c0_26 = arith.constant 0 : index
    %c0_27 = arith.constant 0 : index
    %c1_28 = arith.constant 1 : index
    %c1_29 = arith.constant 1 : index
    %c0_30 = arith.constant 0 : index
    %12 = vector.load %arg2[%c0_26, %c0_27, %c1_28, %c1_29, %c0_30] : memref<1x1x12x18x128xbf16, #tpu.memory_space<vmem>>, vector<1x1x10x16x128xbf16>
    %13 = vector.shape_cast %12 : vector<1x1x10x16x128xbf16> to vector<10x16x128xbf16>
    %c0_31 = arith.constant 0 : index
    %c0_32 = arith.constant 0 : index
    %c512 = arith.constant 512 : index
    %14 = vector.load %arg9[%c0_31, %c0_32, %c512] : memref<10x16x1152xbf16, #tpu.memory_space<vmem>>, vector<10x16x128xbf16>
    tpu.vector_store %arg9[%c0_31, %c0_32, %c512], %13 {strides = array<i32>} : memref<10x16x1152xbf16, #tpu.memory_space<vmem>>, vector<10x16x128xbf16>,
    %c0_33 = arith.constant 0 : index
    %c0_34 = arith.constant 0 : index
    %c1_35 = arith.constant 1 : index
    %c2_36 = arith.constant 2 : index
    %c0_37 = arith.constant 0 : index
    %15 = vector.load %arg2[%c0_33, %c0_34, %c1_35, %c2_36, %c0_37] : memref<1x1x12x18x128xbf16, #tpu.memory_space<vmem>>, vector<1x1x10x16x128xbf16>
    %16 = vector.shape_cast %15 : vector<1x1x10x16x128xbf16> to vector<10x16x128xbf16>
    %c0_38 = arith.constant 0 : index
    %c0_39 = arith.constant 0 : index
    %c640 = arith.constant 640 : index
    %17 = vector.load %arg9[%c0_38, %c0_39, %c640] : memref<10x16x1152xbf16, #tpu.memory_space<vmem>>, vector<10x16x128xbf16>
    tpu.vector_store %arg9[%c0_38, %c0_39, %c640], %16 {strides = array<i32>} : memref<10x16x1152xbf16, #tpu.memory_space<vmem>>, vector<10x16x128xbf16>,
    %c0_40 = arith.constant 0 : index
    %c0_41 = arith.constant 0 : index
    %c2_42 = arith.constant 2 : index
    %c0_43 = arith.constant 0 : index
    %c0_44 = arith.constant 0 : index
    %18 = vector.load %arg2[%c0_40, %c0_41, %c2_42, %c0_43, %c0_44] : memref<1x1x12x18x128xbf16, #tpu.memory_space<vmem>>, vector<1x1x10x16x128xbf16>
    %19 = vector.shape_cast %18 : vector<1x1x10x16x128xbf16> to vector<10x16x128xbf16>
    %c0_45 = arith.constant 0 : index
    %c0_46 = arith.constant 0 : index
    %c768 = arith.constant 768 : index
    %20 = vector.load %arg9[%c0_45, %c0_46, %c768] : memref<10x16x1152xbf16, #tpu.memory_space<vmem>>, vector<10x16x128xbf16>
    tpu.vector_store %arg9[%c0_45, %c0_46, %c768], %19 {strides = array<i32>} : memref<10x16x1152xbf16, #tpu.memory_space<vmem>>, vector<10x16x128xbf16>,
    %c0_47 = arith.constant 0 : index
    %c0_48 = arith.constant 0 : index
    %c2_49 = arith.constant 2 : index
    %c1_50 = arith.constant 1 : index
    %c0_51 = arith.constant 0 : index
    %21 = vector.load %arg2[%c0_47, %c0_48, %c2_49, %c1_50, %c0_51] : memref<1x1x12x18x128xbf16, #tpu.memory_space<vmem>>, vector<1x1x10x16x128xbf16>
    %22 = vector.shape_cast %21 : vector<1x1x10x16x128xbf16> to vector<10x16x128xbf16>
    %c0_52 = arith.constant 0 : index
    %c0_53 = arith.constant 0 : index
    %c896 = arith.constant 896 : index
    %23 = vector.load %arg9[%c0_52, %c0_53, %c896] : memref<10x16x1152xbf16, #tpu.memory_space<vmem>>, vector<10x16x128xbf16>
    tpu.vector_store %arg9[%c0_52, %c0_53, %c896], %22 {strides = array<i32>} : memref<10x16x1152xbf16, #tpu.memory_space<vmem>>, vector<10x16x128xbf16>,
    %c0_54 = arith.constant 0 : index
    %c0_55 = arith.constant 0 : index
    %c2_56 = arith.constant 2 : index
    %c2_57 = arith.constant 2 : index
    %c0_58 = arith.constant 0 : index
    %24 = vector.load %arg2[%c0_54, %c0_55, %c2_56, %c2_57, %c0_58] : memref<1x1x12x18x128xbf16, #tpu.memory_space<vmem>>, vector<1x1x10x16x128xbf16>
    %25 = vector.shape_cast %24 : vector<1x1x10x16x128xbf16> to vector<10x16x128xbf16>
    %c0_59 = arith.constant 0 : index
    %c0_60 = arith.constant 0 : index
    %c1024 = arith.constant 1024 : index
    %26 = vector.load %arg9[%c0_59, %c0_60, %c1024] : memref<10x16x1152xbf16, #tpu.memory_space<vmem>>, vector<10x16x128xbf16>
    tpu.vector_store %arg9[%c0_59, %c0_60, %c1024], %25 {strides = array<i32>} : memref<10x16x1152xbf16, #tpu.memory_space<vmem>>, vector<10x16x128xbf16>,
    %c0_61 = arith.constant 0 : index
    %c0_62 = arith.constant 0 : index
    %c0_63 = arith.constant 0 : index
    %27 = vector.load %arg9[%c0_61, %c0_62, %c0_63] : memref<10x16x1152xbf16, #tpu.memory_space<vmem>>, vector<10x16x1152xbf16>
    %28 = vector.shape_cast %27 : vector<10x16x1152xbf16> to vector<160x1152xbf16>
    %c0_64 = arith.constant 0 : index
    %c0_65 = arith.constant 0 : index
    %29 = vector.load %arg3[%c0_64, %c0_65] : memref<1152x42xbf16, #tpu.memory_space<vmem>>, vector<1152x42xbf16>
    %cst = arith.constant dense<0.000000e+00> : vector<160x42xf32>
    %30 = tpu.matmul %28, %29, %cst {dimension_numbers = #tpu.dot_dimension_numbers<[1], [0], [0], [1], [0, 0, 1, 1], [], []>} : vector<160x1152xbf16>, vector<1152x42xbf16>, vector<160x42xf32> -> vector<160x42xf32>
    %c0_66 = arith.constant 0 : index
    %c0_67 = arith.constant 0 : index
    %31 = vector.load %arg4[%c0_66, %c0_67] : memref<1x42xf32, #tpu.memory_space<vmem>>, vector<1x42xf32>
    %32 = vector.broadcast %31 : vector<1x42xf32> to vector<160x42xf32>
    %33 = arith.addf %30, %32 : vector<160x42xf32>
    %cst_68 = arith.constant 5.000000e-01 : f32
    %34 = vector.broadcast %cst_68 : f32 to vector<160x42xf32>
    %35 = arith.mulf %34, %33 : vector<160x42xf32>
    %cst_69 = arith.constant 0.707106769 : f32
    %36 = vector.broadcast %cst_69 : f32 to vector<160x42xf32>
    %37 = arith.mulf %33, %36 : vector<160x42xf32>
    %cst_70 = arith.constant 0.000000e+00 : f32
    %38 = vector.broadcast %cst_70 : f32 to vector<160x42xf32>
    %39 = arith.cmpf olt, %37, %38 : vector<160x42xf32>
    %cst_71 = arith.constant -1.000000e+00 : f32
    %cst_72 = arith.constant 1.000000e+00 : f32
    %40 = vector.broadcast %cst_71 : f32 to vector<160x42xf32>
    %41 = vector.broadcast %cst_72 : f32 to vector<160x42xf32>
    %42 = arith.select %39, %40, %41 : vector<160x42xi1>, vector<160x42xf32>
    %43 = math.absf %37 : vector<160x42xf32>
    %cst_73 = arith.constant 0.327591091 : f32
    %44 = vector.broadcast %cst_73 : f32 to vector<160x42xf32>
    %45 = arith.mulf %44, %43 : vector<160x42xf32>
    %cst_74 = arith.constant 1.000000e+00 : f32
    %46 = vector.broadcast %cst_74 : f32 to vector<160x42xf32>
    %47 = arith.addf %46, %45 : vector<160x42xf32>
    %48 = tpu.reciprocal %47 {approx = true} : vector<160x42xf32> -> vector<160x42xf32>
    %cst_75 = arith.constant 1.06140542 : f32
    %49 = vector.broadcast %cst_75 : f32 to vector<160x42xf32>
    %50 = arith.mulf %49, %48 : vector<160x42xf32>
    %cst_76 = arith.constant -1.45315206 : f32
    %51 = vector.broadcast %cst_76 : f32 to vector<160x42xf32>
    %52 = arith.addf %50, %51 : vector<160x42xf32>
    %53 = arith.mulf %52, %48 : vector<160x42xf32>
    %cst_77 = arith.constant 1.42141378 : f32
    %54 = vector.broadcast %cst_77 : f32 to vector<160x42xf32>
    %55 = arith.addf %53, %54 : vector<160x42xf32>
    %56 = arith.mulf %55, %48 : vector<160x42xf32>
    %cst_78 = arith.constant -0.284496725 : f32
    %57 = vector.broadcast %cst_78 : f32 to vector<160x42xf32>
    %58 = arith.addf %56, %57 : vector<160x42xf32>
    %59 = arith.mulf %58, %48 : vector<160x42xf32>
    %cst_79 = arith.constant 0.254829586 : f32
    %60 = vector.broadcast %cst_79 : f32 to vector<160x42xf32>
    %61 = arith.addf %59, %60 : vector<160x42xf32>
    %62 = arith.mulf %61, %48 : vector<160x42xf32>
    %63 = arith.mulf %43, %43 : vector<160x42xf32>
    %cst_80 = arith.constant 0.000000e+00 : f32
    %64 = vector.broadcast %cst_80 : f32 to vector<160x42xf32>
    %65 = arith.subf %64, %63 : vector<160x42xf32>
    %66 = math.exp %65 : vector<160x42xf32>
    %67 = arith.mulf %62, %66 : vector<160x42xf32>
    %cst_81 = arith.constant 1.000000e+00 : f32
    %68 = vector.broadcast %cst_81 : f32 to vector<160x42xf32>
    %69 = arith.subf %68, %67 : vector<160x42xf32>
    %70 = arith.mulf %42, %69 : vector<160x42xf32>
    %cst_82 = arith.constant 1.000000e+00 : f32
    %71 = vector.broadcast %cst_82 : f32 to vector<160x42xf32>
    %72 = arith.addf %71, %70 : vector<160x42xf32>
    %73 = arith.mulf %35, %72 : vector<160x42xf32>
    %cst_83 = arith.constant 0.000000e+00 : bf16
    %74 = vector.broadcast %cst_83 : bf16 to vector<10x8x42xbf16>
    %c0_84 = arith.constant 0 : index
    %c0_85 = arith.constant 0 : index
    %c0_86 = arith.constant 0 : index
    %75 = vector.load %arg10[%c0_84, %c0_85, %c0_86] : memref<10x32x42xbf16, #tpu.memory_space<vmem>>, vector<10x8x42xbf16>
    tpu.vector_store %arg10[%c0_84, %c0_85, %c0_86], %74 {strides = array<i32>} : memref<10x32x42xbf16, #tpu.memory_space<vmem>>, vector<10x8x42xbf16>,
    %c0_87 = arith.constant 0 : index
    %c24 = arith.constant 24 : index
    %c0_88 = arith.constant 0 : index
    %76 = vector.load %arg10[%c0_87, %c24, %c0_88] : memref<10x32x42xbf16, #tpu.memory_space<vmem>>, vector<10x8x42xbf16>
    tpu.vector_store %arg10[%c0_87, %c24, %c0_88], %74 {strides = array<i32>} : memref<10x32x42xbf16, #tpu.memory_space<vmem>>, vector<10x8x42xbf16>,
    %77 = vector.shape_cast %73 : vector<160x42xf32> to vector<10x16x42xf32>
    %78 = arith.truncf %77 : vector<10x16x42xf32> to vector<10x16x42xbf16>
    %c0_89 = arith.constant 0 : index
    %c8 = arith.constant 8 : index
    %c0_90 = arith.constant 0 : index
    %79 = vector.load %arg10[%c0_89, %c8, %c0_90] : memref<10x32x42xbf16, #tpu.memory_space<vmem>>, vector<10x16x42xbf16>
    tpu.vector_store %arg10[%c0_89, %c8, %c0_90], %78 {strides = array<i32>} : memref<10x32x42xbf16, #tpu.memory_space<vmem>>, vector<10x16x42xbf16>,
    %cst_91 = arith.constant 0.000000e+00 : bf16
    %80 = vector.broadcast %cst_91 : bf16 to vector<1x32x42xbf16>
    %c0_i32 = arith.constant 0 : i32
    %81 = arith.cmpi eq, %arg1, %c0_i32 : i32
    %82 = arith.extui %81 : i1 to i32
    %c0_i32_92 = arith.constant 0 : i32
    %83 = arith.cmpi ne, %82, %c0_i32_92 : i32
    scf.if %83 {
      %c0_202 = arith.constant 0 : index
      %c0_203 = arith.constant 0 : index
      %c0_204 = arith.constant 0 : index
      %172 = vector.load %arg10[%c0_202, %c0_203, %c0_204] : memref<10x32x42xbf16, #tpu.memory_space<vmem>>, vector<1x32x42xbf16>
      tpu.vector_store %arg10[%c0_202, %c0_203, %c0_204], %80 {strides = array<i32>} : memref<10x32x42xbf16, #tpu.memory_space<vmem>>, vector<1x32x42xbf16>,
    } else {
    }
    %c1_i32 = arith.constant 1 : i32
    %84 = arith.cmpi eq, %arg1, %c1_i32 : i32
    %85 = arith.extui %84 : i1 to i32
    %c0_i32_93 = arith.constant 0 : i32
    %86 = arith.cmpi ne, %85, %c0_i32_93 : i32
    scf.if %86 {
      %c9_202 = arith.constant 9 : index
      %c0_203 = arith.constant 0 : index
      %c0_204 = arith.constant 0 : index
      %172 = vector.load %arg10[%c9_202, %c0_203, %c0_204] : memref<10x32x42xbf16, #tpu.memory_space<vmem>>, vector<1x32x42xbf16>
      tpu.vector_store %arg10[%c9_202, %c0_203, %c0_204], %80 {strides = array<i32>} : memref<10x32x42xbf16, #tpu.memory_space<vmem>>, vector<1x32x42xbf16>,
    } else {
    }
    %c0_94 = arith.constant 0 : index
    %c7 = arith.constant 7 : index
    %c0_95 = arith.constant 0 : index
    %87 = vector.load %arg10[%c0_94, %c7, %c0_95] : memref<10x32x42xbf16, #tpu.memory_space<vmem>>, vector<8x16x42xbf16>
    %88 = vector.shape_cast %87 : vector<8x16x42xbf16> to vector<128x42xbf16>
    %c0_96 = arith.constant 0 : index
    %c0_97 = arith.constant 0 : index
    %c0_98 = arith.constant 0 : index
    %89 = vector.load %arg5[%c0_96, %c0_97, %c0_98] : memref<9x42x128xbf16, #tpu.memory_space<vmem>>, vector<1x42x128xbf16>
    %90 = vector.shape_cast %89 : vector<1x42x128xbf16> to vector<42x128xbf16>
    %cst_99 = arith.constant dense<0.000000e+00> : vector<128x128xf32>
    %91 = tpu.matmul %88, %90, %cst_99 {dimension_numbers = #tpu.dot_dimension_numbers<[1], [0], [0], [1], [0, 0, 1, 1], [], []>} : vector<128x42xbf16>, vector<42x128xbf16>, vector<128x128xf32> -> vector<128x128xf32>
    %c0_100 = arith.constant 0 : index
    %c0_101 = arith.constant 0 : index
    %92 = vector.load %arg11[%c0_100, %c0_101] : memref<128x128xf32, #tpu.memory_space<vmem>>, vector<128x128xf32>
    tpu.vector_store %arg11[%c0_100, %c0_101], %91 {strides = array<i32>} : memref<128x128xf32, #tpu.memory_space<vmem>>, vector<128x128xf32>,
    %c0_102 = arith.constant 0 : index
    %c8_103 = arith.constant 8 : index
    %c0_104 = arith.constant 0 : index
    %93 = vector.load %arg10[%c0_102, %c8_103, %c0_104] : memref<10x32x42xbf16, #tpu.memory_space<vmem>>, vector<8x16x42xbf16>
    %94 = vector.shape_cast %93 : vector<8x16x42xbf16> to vector<128x42xbf16>
    %c1_105 = arith.constant 1 : index
    %c0_106 = arith.constant 0 : index
    %c0_107 = arith.constant 0 : index
    %95 = vector.load %arg5[%c1_105, %c0_106, %c0_107] : memref<9x42x128xbf16, #tpu.memory_space<vmem>>, vector<1x42x128xbf16>
    %96 = vector.shape_cast %95 : vector<1x42x128xbf16> to vector<42x128xbf16>
    %cst_108 = arith.constant dense<0.000000e+00> : vector<128x128xf32>
    %97 = tpu.matmul %94, %96, %cst_108 {dimension_numbers = #tpu.dot_dimension_numbers<[1], [0], [0], [1], [0, 0, 1, 1], [], []>} : vector<128x42xbf16>, vector<42x128xbf16>, vector<128x128xf32> -> vector<128x128xf32>
    %c0_109 = arith.constant 0 : index
    %c0_110 = arith.constant 0 : index
    %98 = vector.load %arg11[%c0_109, %c0_110] : memref<128x128xf32, #tpu.memory_space<vmem>>, vector<128x128xf32>
    %99 = arith.addf %98, %97 : vector<128x128xf32>
    %c0_111 = arith.constant 0 : index
    %c0_112 = arith.constant 0 : index
    %100 = vector.load %arg11[%c0_111, %c0_112] : memref<128x128xf32, #tpu.memory_space<vmem>>, vector<128x128xf32>
    tpu.vector_store %arg11[%c0_111, %c0_112], %99 {strides = array<i32>} : memref<128x128xf32, #tpu.memory_space<vmem>>, vector<128x128xf32>,
    %c0_113 = arith.constant 0 : index
    %c9 = arith.constant 9 : index
    %c0_114 = arith.constant 0 : index
    %101 = vector.load %arg10[%c0_113, %c9, %c0_114] : memref<10x32x42xbf16, #tpu.memory_space<vmem>>, vector<8x16x42xbf16>
    %102 = vector.shape_cast %101 : vector<8x16x42xbf16> to vector<128x42xbf16>
    %c2_115 = arith.constant 2 : index
    %c0_116 = arith.constant 0 : index
    %c0_117 = arith.constant 0 : index
    %103 = vector.load %arg5[%c2_115, %c0_116, %c0_117] : memref<9x42x128xbf16, #tpu.memory_space<vmem>>, vector<1x42x128xbf16>
    %104 = vector.shape_cast %103 : vector<1x42x128xbf16> to vector<42x128xbf16>
    %cst_118 = arith.constant dense<0.000000e+00> : vector<128x128xf32>
    %105 = tpu.matmul %102, %104, %cst_118 {dimension_numbers = #tpu.dot_dimension_numbers<[1], [0], [0], [1], [0, 0, 1, 1], [], []>} : vector<128x42xbf16>, vector<42x128xbf16>, vector<128x128xf32> -> vector<128x128xf32>
    %c0_119 = arith.constant 0 : index
    %c0_120 = arith.constant 0 : index
    %106 = vector.load %arg11[%c0_119, %c0_120] : memref<128x128xf32, #tpu.memory_space<vmem>>, vector<128x128xf32>
    %107 = arith.addf %106, %105 : vector<128x128xf32>
    %c0_121 = arith.constant 0 : index
    %c0_122 = arith.constant 0 : index
    %108 = vector.load %arg11[%c0_121, %c0_122] : memref<128x128xf32, #tpu.memory_space<vmem>>, vector<128x128xf32>
    tpu.vector_store %arg11[%c0_121, %c0_122], %107 {strides = array<i32>} : memref<128x128xf32, #tpu.memory_space<vmem>>, vector<128x128xf32>,
    %c1_123 = arith.constant 1 : index
    %c7_124 = arith.constant 7 : index
    %c0_125 = arith.constant 0 : index
    %109 = vector.load %arg10[%c1_123, %c7_124, %c0_125] : memref<10x32x42xbf16, #tpu.memory_space<vmem>>, vector<8x16x42xbf16>
    %110 = vector.shape_cast %109 : vector<8x16x42xbf16> to vector<128x42xbf16>
    %c3 = arith.constant 3 : index
    %c0_126 = arith.constant 0 : index
    %c0_127 = arith.constant 0 : index
    %111 = vector.load %arg5[%c3, %c0_126, %c0_127] : memref<9x42x128xbf16, #tpu.memory_space<vmem>>, vector<1x42x128xbf16>
    %112 = vector.shape_cast %111 : vector<1x42x128xbf16> to vector<42x128xbf16>
    %cst_128 = arith.constant dense<0.000000e+00> : vector<128x128xf32>
    %113 = tpu.matmul %110, %112, %cst_128 {dimension_numbers = #tpu.dot_dimension_numbers<[1], [0], [0], [1], [0, 0, 1, 1], [], []>} : vector<128x42xbf16>, vector<42x128xbf16>, vector<128x128xf32> -> vector<128x128xf32>
    %c0_129 = arith.constant 0 : index
    %c0_130 = arith.constant 0 : index
    %114 = vector.load %arg11[%c0_129, %c0_130] : memref<128x128xf32, #tpu.memory_space<vmem>>, vector<128x128xf32>
    %115 = arith.addf %114, %113 : vector<128x128xf32>
    %c0_131 = arith.constant 0 : index
    %c0_132 = arith.constant 0 : index
    %116 = vector.load %arg11[%c0_131, %c0_132] : memref<128x128xf32, #tpu.memory_space<vmem>>, vector<128x128xf32>
    tpu.vector_store %arg11[%c0_131, %c0_132], %115 {strides = array<i32>} : memref<128x128xf32, #tpu.memory_space<vmem>>, vector<128x128xf32>,
    %c1_133 = arith.constant 1 : index
    %c8_134 = arith.constant 8 : index
    %c0_135 = arith.constant 0 : index
    %117 = vector.load %arg10[%c1_133, %c8_134, %c0_135] : memref<10x32x42xbf16, #tpu.memory_space<vmem>>, vector<8x16x42xbf16>
    %118 = vector.shape_cast %117 : vector<8x16x42xbf16> to vector<128x42xbf16>
    %c4 = arith.constant 4 : index
    %c0_136 = arith.constant 0 : index
    %c0_137 = arith.constant 0 : index
    %119 = vector.load %arg5[%c4, %c0_136, %c0_137] : memref<9x42x128xbf16, #tpu.memory_space<vmem>>, vector<1x42x128xbf16>
    %120 = vector.shape_cast %119 : vector<1x42x128xbf16> to vector<42x128xbf16>
    %cst_138 = arith.constant dense<0.000000e+00> : vector<128x128xf32>
    %121 = tpu.matmul %118, %120, %cst_138 {dimension_numbers = #tpu.dot_dimension_numbers<[1], [0], [0], [1], [0, 0, 1, 1], [], []>} : vector<128x42xbf16>, vector<42x128xbf16>, vector<128x128xf32> -> vector<128x128xf32>
    %c0_139 = arith.constant 0 : index
    %c0_140 = arith.constant 0 : index
    %122 = vector.load %arg11[%c0_139, %c0_140] : memref<128x128xf32, #tpu.memory_space<vmem>>, vector<128x128xf32>
    %123 = arith.addf %122, %121 : vector<128x128xf32>
    %c0_141 = arith.constant 0 : index
    %c0_142 = arith.constant 0 : index
    %124 = vector.load %arg11[%c0_141, %c0_142] : memref<128x128xf32, #tpu.memory_space<vmem>>, vector<128x128xf32>
    tpu.vector_store %arg11[%c0_141, %c0_142], %123 {strides = array<i32>} : memref<128x128xf32, #tpu.memory_space<vmem>>, vector<128x128xf32>,
    %c1_143 = arith.constant 1 : index
    %c9_144 = arith.constant 9 : index
    %c0_145 = arith.constant 0 : index
    %125 = vector.load %arg10[%c1_143, %c9_144, %c0_145] : memref<10x32x42xbf16, #tpu.memory_space<vmem>>, vector<8x16x42xbf16>
    %126 = vector.shape_cast %125 : vector<8x16x42xbf16> to vector<128x42xbf16>
    %c5 = arith.constant 5 : index
    %c0_146 = arith.constant 0 : index
    %c0_147 = arith.constant 0 : index
    %127 = vector.load %arg5[%c5, %c0_146, %c0_147] : memref<9x42x128xbf16, #tpu.memory_space<vmem>>, vector<1x42x128xbf16>
    %128 = vector.shape_cast %127 : vector<1x42x128xbf16> to vector<42x128xbf16>
    %cst_148 = arith.constant dense<0.000000e+00> : vector<128x128xf32>
    %129 = tpu.matmul %126, %128, %cst_148 {dimension_numbers = #tpu.dot_dimension_numbers<[1], [0], [0], [1], [0, 0, 1, 1], [], []>} : vector<128x42xbf16>, vector<42x128xbf16>, vector<128x128xf32> -> vector<128x128xf32>
    %c0_149 = arith.constant 0 : index
    %c0_150 = arith.constant 0 : index
    %130 = vector.load %arg11[%c0_149, %c0_150] : memref<128x128xf32, #tpu.memory_space<vmem>>, vector<128x128xf32>
    %131 = arith.addf %130, %129 : vector<128x128xf32>
    %c0_151 = arith.constant 0 : index
    %c0_152 = arith.constant 0 : index
    %132 = vector.load %arg11[%c0_151, %c0_152] : memref<128x128xf32, #tpu.memory_space<vmem>>, vector<128x128xf32>
    tpu.vector_store %arg11[%c0_151, %c0_152], %131 {strides = array<i32>} : memref<128x128xf32, #tpu.memory_space<vmem>>, vector<128x128xf32>,
    %c2_153 = arith.constant 2 : index
    %c7_154 = arith.constant 7 : index
    %c0_155 = arith.constant 0 : index
    %133 = vector.load %arg10[%c2_153, %c7_154, %c0_155] : memref<10x32x42xbf16, #tpu.memory_space<vmem>>, vector<8x16x42xbf16>
    %134 = vector.shape_cast %133 : vector<8x16x42xbf16> to vector<128x42xbf16>
    %c6 = arith.constant 6 : index
    %c0_156 = arith.constant 0 : index
    %c0_157 = arith.constant 0 : index
    %135 = vector.load %arg5[%c6, %c0_156, %c0_157] : memref<9x42x128xbf16, #tpu.memory_space<vmem>>, vector<1x42x128xbf16>
    %136 = vector.shape_cast %135 : vector<1x42x128xbf16> to vector<42x128xbf16>
    %cst_158 = arith.constant dense<0.000000e+00> : vector<128x128xf32>
    %137 = tpu.matmul %134, %136, %cst_158 {dimension_numbers = #tpu.dot_dimension_numbers<[1], [0], [0], [1], [0, 0, 1, 1], [], []>} : vector<128x42xbf16>, vector<42x128xbf16>, vector<128x128xf32> -> vector<128x128xf32>
    %c0_159 = arith.constant 0 : index
    %c0_160 = arith.constant 0 : index
    %138 = vector.load %arg11[%c0_159, %c0_160] : memref<128x128xf32, #tpu.memory_space<vmem>>, vector<128x128xf32>
    %139 = arith.addf %138, %137 : vector<128x128xf32>
    %c0_161 = arith.constant 0 : index
    %c0_162 = arith.constant 0 : index
    %140 = vector.load %arg11[%c0_161, %c0_162] : memref<128x128xf32, #tpu.memory_space<vmem>>, vector<128x128xf32>
    tpu.vector_store %arg11[%c0_161, %c0_162], %139 {strides = array<i32>} : memref<128x128xf32, #tpu.memory_space<vmem>>, vector<128x128xf32>,
    %c2_163 = arith.constant 2 : index
    %c8_164 = arith.constant 8 : index
    %c0_165 = arith.constant 0 : index
    %141 = vector.load %arg10[%c2_163, %c8_164, %c0_165] : memref<10x32x42xbf16, #tpu.memory_space<vmem>>, vector<8x16x42xbf16>
    %142 = vector.shape_cast %141 : vector<8x16x42xbf16> to vector<128x42xbf16>
    %c7_166 = arith.constant 7 : index
    %c0_167 = arith.constant 0 : index
    %c0_168 = arith.constant 0 : index
    %143 = vector.load %arg5[%c7_166, %c0_167, %c0_168] : memref<9x42x128xbf16, #tpu.memory_space<vmem>>, vector<1x42x128xbf16>
    %144 = vector.shape_cast %143 : vector<1x42x128xbf16> to vector<42x128xbf16>
    %cst_169 = arith.constant dense<0.000000e+00> : vector<128x128xf32>
    %145 = tpu.matmul %142, %144, %cst_169 {dimension_numbers = #tpu.dot_dimension_numbers<[1], [0], [0], [1], [0, 0, 1, 1], [], []>} : vector<128x42xbf16>, vector<42x128xbf16>, vector<128x128xf32> -> vector<128x128xf32>
    %c0_170 = arith.constant 0 : index
    %c0_171 = arith.constant 0 : index
    %146 = vector.load %arg11[%c0_170, %c0_171] : memref<128x128xf32, #tpu.memory_space<vmem>>, vector<128x128xf32>
    %147 = arith.addf %146, %145 : vector<128x128xf32>
    %c0_172 = arith.constant 0 : index
    %c0_173 = arith.constant 0 : index
    %148 = vector.load %arg11[%c0_172, %c0_173] : memref<128x128xf32, #tpu.memory_space<vmem>>, vector<128x128xf32>
    tpu.vector_store %arg11[%c0_172, %c0_173], %147 {strides = array<i32>} : memref<128x128xf32, #tpu.memory_space<vmem>>, vector<128x128xf32>,
    %c2_174 = arith.constant 2 : index
    %c9_175 = arith.constant 9 : index
    %c0_176 = arith.constant 0 : index
    %149 = vector.load %arg10[%c2_174, %c9_175, %c0_176] : memref<10x32x42xbf16, #tpu.memory_space<vmem>>, vector<8x16x42xbf16>
    %150 = vector.shape_cast %149 : vector<8x16x42xbf16> to vector<128x42xbf16>
    %c8_177 = arith.constant 8 : index
    %c0_178 = arith.constant 0 : index
    %c0_179 = arith.constant 0 : index
    %151 = vector.load %arg5[%c8_177, %c0_178, %c0_179] : memref<9x42x128xbf16, #tpu.memory_space<vmem>>, vector<1x42x128xbf16>
    %152 = vector.shape_cast %151 : vector<1x42x128xbf16> to vector<42x128xbf16>
    %cst_180 = arith.constant dense<0.000000e+00> : vector<128x128xf32>
    %153 = tpu.matmul %150, %152, %cst_180 {dimension_numbers = #tpu.dot_dimension_numbers<[1], [0], [0], [1], [0, 0, 1, 1], [], []>} : vector<128x42xbf16>, vector<42x128xbf16>, vector<128x128xf32> -> vector<128x128xf32>
    %c0_181 = arith.constant 0 : index
    %c0_182 = arith.constant 0 : index
    %154 = vector.load %arg11[%c0_181, %c0_182] : memref<128x128xf32, #tpu.memory_space<vmem>>, vector<128x128xf32>
    %155 = arith.addf %154, %153 : vector<128x128xf32>
    %c0_183 = arith.constant 0 : index
    %c0_184 = arith.constant 0 : index
    %156 = vector.load %arg11[%c0_183, %c0_184] : memref<128x128xf32, #tpu.memory_space<vmem>>, vector<128x128xf32>
    tpu.vector_store %arg11[%c0_183, %c0_184], %155 {strides = array<i32>} : memref<128x128xf32, #tpu.memory_space<vmem>>, vector<128x128xf32>,
    %c0_185 = arith.constant 0 : index
    %c0_186 = arith.constant 0 : index
    %157 = vector.load %arg11[%c0_185, %c0_186] : memref<128x128xf32, #tpu.memory_space<vmem>>, vector<128x128xf32>
    %c0_187 = arith.constant 0 : index
    %c0_188 = arith.constant 0 : index
    %158 = vector.load %arg6[%c0_187, %c0_188] : memref<1x128xf32, #tpu.memory_space<vmem>>, vector<1x128xf32>
    %159 = vector.broadcast %158 : vector<1x128xf32> to vector<128x128xf32>
    %160 = arith.addf %157, %159 : vector<128x128xf32>
    %161 = vector.shape_cast %160 : vector<128x128xf32> to vector<1x8x16x128xf32>
    %c0_189 = arith.constant 0 : index
    %c0_190 = arith.constant 0 : index
    %c0_191 = arith.constant 0 : index
    %c0_192 = arith.constant 0 : index
    %162 = vector.load %arg7[%c0_189, %c0_190, %c0_191, %c0_192] : memref<1x8x16x128xf32, #tpu.memory_space<vmem>>, vector<1x8x16x128xf32>
    tpu.vector_store %arg7[%c0_189, %c0_190, %c0_191, %c0_192], %161 {strides = array<i32>} : memref<1x8x16x128xf32, #tpu.memory_space<vmem>>, vector<1x8x16x128xf32>,
    %c0_i32_193 = arith.constant 0 : i32
    %163 = arith.cmpi eq, %arg1, %c0_i32_193 : i32
    %164 = arith.extui %163 : i1 to i32
    %c0_i32_194 = arith.constant 0 : i32
    %165 = arith.cmpi ne, %164, %c0_i32_194 : i32
    scf.if %165 {
      %cst_202 = arith.constant 0.000000e+00 : f32
      %172 = vector.broadcast %cst_202 : f32 to vector<1x1x128xf32>
      %c0_203 = arith.constant 0 : index
      %c0_204 = arith.constant 0 : index
      %c0_205 = arith.constant 0 : index
      %173 = vector.load %arg8[%c0_203, %c0_204, %c0_205] : memref<1x1x128xf32, #tpu.memory_space<vmem>>, vector<1x1x128xf32>
      tpu.vector_store %arg8[%c0_203, %c0_204, %c0_205], %172 {strides = array<i32>} : memref<1x1x128xf32, #tpu.memory_space<vmem>>, vector<1x1x128xf32>,
    } else {
    }
    %c0_195 = arith.constant 0 : index
    %c0_196 = arith.constant 0 : index
    %c0_197 = arith.constant 0 : index
    %166 = vector.load %arg8[%c0_195, %c0_196, %c0_197] : memref<1x1x128xf32, #tpu.memory_space<vmem>>, vector<1x1x128xf32>
    %cst_198 = arith.constant dense<0.000000e+00> : vector<128xf32>
    %167 = vector.multi_reduction <add>, %160, %cst_198 [0] : vector<128x128xf32> to vector<128xf32>
    %168 = vector.shape_cast %167 : vector<128xf32> to vector<1x128xf32>
    %169 = vector.shape_cast %168 : vector<1x128xf32> to vector<1x1x128xf32>
    %170 = arith.addf %166, %169 : vector<1x1x128xf32>
    %c0_199 = arith.constant 0 : index
    %c0_200 = arith.constant 0 : index
    %c0_201 = arith.constant 0 : index
    %171 = vector.load %arg8[%c0_199, %c0_200, %c0_201] : memref<1x1x128xf32, #tpu.memory_space<vmem>>, vector<1x1x128xf32>
    tpu.vector_store %arg8[%c0_199, %c0_200, %c0_201], %170 {strides = array<i32>} : memref<1x1x128xf32, #tpu.memory_space<vmem>>, vector<1x1x128xf32>,
    return
  }
  func.func @transform_0(%arg0: i32, %arg1: i32) -> (i32, i32, i32, i32, i32) {
    %c0_i32 = arith.constant 0 : i32
    %c0_i32_0 = arith.constant 0 : i32
    %c0_i32_1 = arith.constant 0 : i32
    %c0_i32_2 = arith.constant 0 : i32
    return %arg0, %arg1, %c0_i32, %c0_i32_0, %c0_i32_1 : i32, i32, i32, i32, i32
  }
  func.func @transform_1(%arg0: i32, %arg1: i32) -> (i32, i32) {
    %c0_i32 = arith.constant 0 : i32
    %c0_i32_0 = arith.constant 0 : i32
    %c0_i32_1 = arith.constant 0 : i32
    return %c0_i32, %c0_i32_0 : i32, i32
  }
  func.func @transform_2(%arg0: i32, %arg1: i32) -> (i32, i32) {
    %c0_i32 = arith.constant 0 : i32
    %c0_i32_0 = arith.constant 0 : i32
    %c0_i32_1 = arith.constant 0 : i32
    return %c0_i32, %c0_i32_0 : i32, i32
  }
  func.func @transform_3(%arg0: i32, %arg1: i32) -> (i32, i32, i32) {
    %c0_i32 = arith.constant 0 : i32
    %c0_i32_0 = arith.constant 0 : i32
    %c0_i32_1 = arith.constant 0 : i32
    %c0_i32_2 = arith.constant 0 : i32
    return %c0_i32, %c0_i32_0, %c0_i32_1 : i32, i32, i32
  }
  func.func @transform_4(%arg0: i32, %arg1: i32) -> (i32, i32) {
    %c0_i32 = arith.constant 0 : i32
    %c0_i32_0 = arith.constant 0 : i32
    %c0_i32_1 = arith.constant 0 : i32
    return %c0_i32, %c0_i32_0 : i32, i32
  }
  func.func @transform_5(%arg0: i32, %arg1: i32) -> (i32, i32, i32, i32) {
    %c0_i32 = arith.constant 0 : i32
    %c0_i32_0 = arith.constant 0 : i32
    %c0_i32_1 = arith.constant 0 : i32
    return %arg0, %arg1, %c0_i32, %c0_i32_0 : i32, i32, i32, i32
  }
  func.func @transform_6(%arg0: i32, %arg1: i32) -> (i32, i32, i32) {
    %c0_i32 = arith.constant 0 : i32
    %c0_i32_0 = arith.constant 0 : i32
    %c0_i32_1 = arith.constant 0 : i32
    return %arg0, %c0_i32, %c0_i32_0 : i32, i32, i32
  }
}

module attributes {stable_mosaic.version = 11 : i64} {
  func.func @_cab_scale_kernel(%arg0: i32, %arg1: i32, %arg2: memref<1x8x16x128xf32, #tpu.memory_space<vmem>>, %arg3: memref<1x1x128xf32, #tpu.memory_space<vmem>>, %arg4: memref<4x128xf32, #tpu.memory_space<vmem>>, %arg5: memref<4x1xf32, #tpu.memory_space<vmem>>, %arg6: memref<4x128xf32, #tpu.memory_space<vmem>>, %arg7: memref<1x128xf32, #tpu.memory_space<vmem>>, %arg8: memref<1x8x16x128xf32, #tpu.memory_space<vmem>>) attributes {dimension_semantics = [#tpu.dimension_semantics<parallel>, #tpu.dimension_semantics<parallel>], iteration_bounds = array<i64: 2, 2>, scalar_prefetch = 0 : i64, scratch_operands = 0 : i64, tpu.core_type = #tpu.core_type<tc>, window_params = [{transform_indices = @transform_0, window_bounds = array<i64: 1, 8, 16, 128>}, {transform_indices = @transform_1, window_bounds = array<i64: 1, 1, 128>}, {pipeline_mode = #tpu.pipeline_mode<synchronous>, transform_indices = @transform_2, window_bounds = array<i64: 4, 128>}, {pipeline_mode = #tpu.pipeline_mode<synchronous>, transform_indices = @transform_3, window_bounds = array<i64: 4, 1>}, {pipeline_mode = #tpu.pipeline_mode<synchronous>, transform_indices = @transform_4, window_bounds = array<i64: 4, 128>}, {pipeline_mode = #tpu.pipeline_mode<synchronous>, transform_indices = @transform_5, window_bounds = array<i64: 1, 128>}, {transform_indices = @transform_6, window_bounds = array<i64: 1, 8, 16, 128>}]} {
    %c0 = arith.constant 0 : index
    %c0_0 = arith.constant 0 : index
    %c0_1 = arith.constant 0 : index
    %0 = vector.load %arg3[%c0, %c0_0, %c0_1] : memref<1x1x128xf32, #tpu.memory_space<vmem>>, vector<1x1x128xf32>
    %1 = vector.shape_cast %0 : vector<1x1x128xf32> to vector<1x128xf32>
    %cst = arith.constant 3.906250e-03 : f32
    %2 = vector.broadcast %cst : f32 to vector<1x128xf32>
    %3 = arith.mulf %1, %2 : vector<1x128xf32>
    %c0_2 = arith.constant 0 : index
    %c0_3 = arith.constant 0 : index
    %4 = vector.load %arg4[%c0_2, %c0_3] : memref<4x128xf32, #tpu.memory_space<vmem>>, vector<4x128xf32>
    %5 = vector.broadcast %3 : vector<1x128xf32> to vector<4x128xf32>
    %6 = arith.mulf %5, %4 : vector<4x128xf32>
    %cst_4 = arith.constant dense<0.000000e+00> : vector<4xf32>
    %7 = vector.multi_reduction <add>, %6, %cst_4 [1] : vector<4x128xf32> to vector<4xf32>
    %8 = vector.shape_cast %7 : vector<4xf32> to vector<4x1xf32>
    %c0_5 = arith.constant 0 : index
    %c0_6 = arith.constant 0 : index
    %9 = vector.load %arg5[%c0_5, %c0_6] : memref<4x1xf32, #tpu.memory_space<vmem>>, vector<4x1xf32>
    %10 = arith.addf %8, %9 : vector<4x1xf32>
    %cst_7 = arith.constant 0.000000e+00 : f32
    %11 = vector.broadcast %cst_7 : f32 to vector<4x1xf32>
    %12 = arith.maximumf %10, %11 : vector<4x1xf32>
    %c0_8 = arith.constant 0 : index
    %c0_9 = arith.constant 0 : index
    %13 = vector.load %arg6[%c0_8, %c0_9] : memref<4x128xf32, #tpu.memory_space<vmem>>, vector<4x128xf32>
    %14 = vector.broadcast %12 : vector<4x1xf32> to vector<4x128xf32>
    %15 = arith.mulf %14, %13 : vector<4x128xf32>
    %cst_10 = arith.constant dense<0.000000e+00> : vector<128xf32>
    %16 = vector.multi_reduction <add>, %15, %cst_10 [0] : vector<4x128xf32> to vector<128xf32>
    %17 = vector.shape_cast %16 : vector<128xf32> to vector<1x128xf32>
    %c0_11 = arith.constant 0 : index
    %c0_12 = arith.constant 0 : index
    %18 = vector.load %arg7[%c0_11, %c0_12] : memref<1x128xf32, #tpu.memory_space<vmem>>, vector<1x128xf32>
    %19 = arith.addf %17, %18 : vector<1x128xf32>
    %cst_13 = arith.constant 0.000000e+00 : f32
    %20 = vector.broadcast %cst_13 : f32 to vector<1x128xf32>
    %21 = arith.subf %20, %19 : vector<1x128xf32>
    %22 = math.exp %21 : vector<1x128xf32>
    %cst_14 = arith.constant 1.000000e+00 : f32
    %23 = vector.broadcast %cst_14 : f32 to vector<1x128xf32>
    %24 = arith.addf %23, %22 : vector<1x128xf32>
    %cst_15 = arith.constant 1.000000e+00 : f32
    %25 = vector.broadcast %cst_15 : f32 to vector<1x128xf32>
    %26 = arith.divf %25, %24 : vector<1x128xf32>
    %c0_16 = arith.constant 0 : index
    %c0_17 = arith.constant 0 : index
    %c0_18 = arith.constant 0 : index
    %c0_19 = arith.constant 0 : index
    %27 = vector.load %arg2[%c0_16, %c0_17, %c0_18, %c0_19] : memref<1x8x16x128xf32, #tpu.memory_space<vmem>>, vector<1x8x16x128xf32>
    %28 = vector.shape_cast %26 : vector<1x128xf32> to vector<1x1x1x128xf32>
    %29 = vector.broadcast %28 : vector<1x1x1x128xf32> to vector<1x8x16x128xf32>
    %30 = arith.mulf %27, %29 : vector<1x8x16x128xf32>
    %c0_20 = arith.constant 0 : index
    %c0_21 = arith.constant 0 : index
    %c0_22 = arith.constant 0 : index
    %c0_23 = arith.constant 0 : index
    %31 = vector.load %arg8[%c0_20, %c0_21, %c0_22, %c0_23] : memref<1x8x16x128xf32, #tpu.memory_space<vmem>>, vector<1x8x16x128xf32>
    tpu.vector_store %arg8[%c0_20, %c0_21, %c0_22, %c0_23], %30 {strides = array<i32>} : memref<1x8x16x128xf32, #tpu.memory_space<vmem>>, vector<1x8x16x128xf32>,
    return
  }
  func.func @transform_0(%arg0: i32, %arg1: i32) -> (i32, i32, i32, i32) {
    %c0_i32 = arith.constant 0 : i32
    %c0_i32_0 = arith.constant 0 : i32
    %c0_i32_1 = arith.constant 0 : i32
    return %arg0, %arg1, %c0_i32, %c0_i32_0 : i32, i32, i32, i32
  }
  func.func @transform_1(%arg0: i32, %arg1: i32) -> (i32, i32, i32) {
    %c0_i32 = arith.constant 0 : i32
    %c0_i32_0 = arith.constant 0 : i32
    %c0_i32_1 = arith.constant 0 : i32
    return %arg0, %c0_i32, %c0_i32_0 : i32, i32, i32
  }
  func.func @transform_2(%arg0: i32, %arg1: i32) -> (i32, i32) {
    %c0_i32 = arith.constant 0 : i32
    %c0_i32_0 = arith.constant 0 : i32
    %c0_i32_1 = arith.constant 0 : i32
    return %c0_i32, %c0_i32_0 : i32, i32
  }
  func.func @transform_3(%arg0: i32, %arg1: i32) -> (i32, i32) {
    %c0_i32 = arith.constant 0 : i32
    %c0_i32_0 = arith.constant 0 : i32
    %c0_i32_1 = arith.constant 0 : i32
    return %c0_i32, %c0_i32_0 : i32, i32
  }
  func.func @transform_4(%arg0: i32, %arg1: i32) -> (i32, i32) {
    %c0_i32 = arith.constant 0 : i32
    %c0_i32_0 = arith.constant 0 : i32
    %c0_i32_1 = arith.constant 0 : i32
    return %c0_i32, %c0_i32_0 : i32, i32
  }
  func.func @transform_5(%arg0: i32, %arg1: i32) -> (i32, i32) {
    %c0_i32 = arith.constant 0 : i32
    %c0_i32_0 = arith.constant 0 : i32
    %c0_i32_1 = arith.constant 0 : i32
    return %c0_i32, %c0_i32_0 : i32, i32
  }
  func.func @transform_6(%arg0: i32, %arg1: i32) -> (i32, i32, i32, i32) {
    %c0_i32 = arith.constant 0 : i32
    %c0_i32_0 = arith.constant 0 : i32
    %c0_i32_1 = arith.constant 0 : i32
    return %arg0, %arg1, %c0_i32, %c0_i32_0 : i32, i32, i32, i32
  }
}

</mosaic_0001>

<llo_original>
// kernel: _lambda_.3
$region0: #{_lambda_.3}
  #allocation0 [shape = 'u32[]', space=smem, size = 0x4, offset = 0x4, fixed_abs, tag = 'smem constant byte address 0x4 - core index']
  #allocation1 [shape = 'u32[144,128]{1,0:T(1,128)}', space=vmem, size = 0x12000, scoped, tag = 'internal scratch']
  %s0 = inlined_call_operand.vmem [shape: f32[2,16,16,128], index: 0, kind: input, shape index: {}]
  %s1 = inlined_call_operand.vmem [shape: f32[2,1,128], index: 1, kind: input, shape index: {}]
  %s2 = inlined_call_operand.vmem [shape: f32[4,128], index: 2, kind: input, shape index: {}]
  %s3 = inlined_call_operand.vmem [shape: f32[4,1], index: 3, kind: input, shape index: {}]
  %s4 = inlined_call_operand.vmem [shape: f32[4,128], index: 4, kind: input, shape index: {}]
  %s5 = inlined_call_operand.vmem [shape: f32[1,128], index: 5, kind: input, shape index: {}]
  %s6 = inlined_call_operand.hbm [shape: f32[2,16,16,128], index: 6, kind: output, shape index: {}]
  %s7 = sld [smem:[#allocation0]]
  $region57: #{_lambda_.3} parent=0
    _
  %s9 = ssub.s32 1, %s7
  %s10 = scalar_select 0, %s9, %s7
  $region1: #{_lambda_.3} parent=0
    #allocation2 [shape = 'u8[131072]{0}', space=vmem, size = 0x20000, scoped, tag = 'output window, operand 0']
    #allocation3 [shape = 's32[2]{0}', space=sflag, size = 0x8, scoped, tag = 'scoped memory for _lambda_.3']
    %11 = vsyncpa [#allocation3], 0
    %s12 = scalar_lea.sflag [#allocation3], 1
    %13 = vsyncpa %s12, 0
    loop: start=0, step=1, limit=6
    $region2: #{_lambda_.3} parent=1 // loop_pre_header
      _
    $region3: #{_lambda_.3} parent=1 // loop_header
      %s15 = sphi 0, %s19
      %p16 = scmp.ge.s32.totalorder %s15, 6
      %s22 = sphi 0, %s34
      %s23 = sphi 0, %s30
      %s24 = sphi 0, %s22
      %s25 = sphi 0, %s23
      %s26 = sphi 0, %s24
      %s27 = sphi 0, %s25
      %s39 = sphi 0, %s41
      %s42 = sphi 0, %s39
      %s43 = sphi 0, %s42
      %s59 = sphi 0, %s43
      %s65 = sphi 0, %s67
      %s68 = sphi 0, %s65
      %s69 = sphi 0, %s68
      %s85 = sphi 0, %s69
      %s89 = sphi 0, %s89
      %s91 = sphi 0, %s89
      %s92 = sphi 0, %s91
      %s106 = sphi 0, %s92
      %s110 = sphi 0, %s110
      %s112 = sphi 0, %s110
      %s113 = sphi 0, %s112
      %s127 = sphi 0, %s113
      %s131 = sphi 0, %s131
      %s133 = sphi 0, %s131
      %s134 = sphi 0, %s133
      %s148 = sphi 0, %s134
      %s152 = sphi 0, %s152
      %s154 = sphi 0, %s152
      %s155 = sphi 0, %s154
      %s169 = sphi 0, %s155
      %s177 = sphi 0, %s179
      %s180 = sphi 0, %s177
      %s181 = sphi 0, %s180
      %s197 = sphi 0, %s181
    $region4: #{_lambda_.3} parent=1 // loop_header_branch
      %18 = sbr.rel (%p16) target = $region8
    $region5: #{_lambda_.3} parent=1 // loop_body
      %s20 = ssub.s32 %s15, 1
      %s21 = ssub.s32 %s15, 2
      %s28 = sadd.s32 1, %s23
      %p29 = scmp.ge.s32.totalorder %s28, 2
      %s30 = scalar_select %p29, 0, %s28
      %s31 = sadd.s32 1, %s22
      %s32 = scalar_select %p29, %s31, %s22
      %p33 = scmp.ge.s32.totalorder %s32, 2
      %s34 = scalar_select %p33, 0, %s32
      %s35 = ssub.s32 %s22, %s34
      %s36 = ssub.s32 %s23, %s30
      %s37 = sor.u32 %s35, %s36
      %p38 = scmp.eq.s32.totalorder %s37, 0
      %s40 = sadd.s32 %s39, 1
      %s41 = scalar_select %p38, %s39, %s40
      %p44 = pneg %p38
      %p45 = scmp.eq.s32.totalorder %s15, 3
      %p46 = por %p44, %p45
      %p47 = scmp.ne.s32.totalorder %s39, %s42
      %p48 = scmp.eq.s32.totalorder %s15, 0
      %p49 = por %p47, %p48
      %p50 = scmp.ne.s32.totalorder %s39, %s42
      %p51 = scmp.eq.s32.totalorder %s20, 3
      %p52 = por %p50, %p51
      %p53 = scmp.ne.s32.totalorder %s42, %s43
      %p54 = scmp.eq.s32.totalorder %s20, 0
      %p55 = por %p53, %p54
      %p56 = scmp.ne.s32.totalorder %s42, %s43
      %p57 = scmp.eq.s32.totalorder %s21, 3
      %p58 = por %p56, %p57
      %p60 = scmp.ne.s32.totalorder %s43, %s59
      %p61 = scmp.eq.s32.totalorder %s21, 0
      %p62 = por %p60, %p61
      %s63 = ssub.s32 %s22, %s34
      %p64 = scmp.eq.s32.totalorder %s63, 0
      %s66 = sadd.s32 %s65, 1
      %s67 = scalar_select %p64, %s65, %s66
      %p70 = pneg %p64
      %p71 = scmp.eq.s32.totalorder %s15, 3
      %p72 = por %p70, %p71
      %p73 = scmp.ne.s32.totalorder %s65, %s68
      %p74 = scmp.eq.s32.totalorder %s15, 0
      %p75 = por %p73, %p74
      %p76 = scmp.ne.s32.totalorder %s65, %s68
      %p77 = scmp.eq.s32.totalorder %s20, 3
      %p78 = por %p76, %p77
      %p79 = scmp.ne.s32.totalorder %s68, %s69
      %p80 = scmp.eq.s32.totalorder %s20, 0
      %p81 = por %p79, %p80
      %p82 = scmp.ne.s32.totalorder %s68, %s69
      %p83 = scmp.eq.s32.totalorder %s21, 3
      %p84 = por %p82, %p83
      %p86 = scmp.ne.s32.totalorder %s69, %s85
      %p87 = scmp.eq.s32.totalorder %s21, 0
      %p88 = por %p86, %p87
      %s90 = sadd.s32 %s89, 1
      %p93 = scmp.eq.s32.totalorder %s15, 3
      %p94 = scmp.ne.s32.totalorder %s89, %s91
      %p95 = scmp.eq.s32.totalorder %s15, 0
      %p96 = por %p94, %p95
      %p97 = scmp.ne.s32.totalorder %s89, %s91
      %p98 = scmp.eq.s32.totalorder %s20, 3
      %p99 = por %p97, %p98
      %p100 = scmp.ne.s32.totalorder %s91, %s92
      %p101 = scmp.eq.s32.totalorder %s20, 0
      %p102 = por %p100, %p101
      %p103 = scmp.ne.s32.totalorder %s91, %s92
      %p104 = scmp.eq.s32.totalorder %s21, 3
      %p105 = por %p103, %p104
      %p107 = scmp.ne.s32.totalorder %s92, %s106
      %p108 = scmp.eq.s32.totalorder %s21, 0
      %p109 = por %p107, %p108
      %s111 = sadd.s32 %s110, 1
      %p114 = scmp.eq.s32.totalorder %s15, 3
      %p115 = scmp.ne.s32.totalorder %s110, %s112
      %p116 = scmp.eq.s32.totalorder %s15, 0
      %p117 = por %p115, %p116
      %p118 = scmp.ne.s32.totalorder %s110, %s112
      %p119 = scmp.eq.s32.totalorder %s20, 3
      %p120 = por %p118, %p119
      %p121 = scmp.ne.s32.totalorder %s112, %s113
      %p122 = scmp.eq.s32.totalorder %s20, 0
      %p123 = por %p121, %p122
      %p124 = scmp.ne.s32.totalorder %s112, %s113
      %p125 = scmp.eq.s32.totalorder %s21, 3
      %p126 = por %p124, %p125
      %p128 = scmp.ne.s32.totalorder %s113, %s127
      %p129 = scmp.eq.s32.totalorder %s21, 0
      %p130 = por %p128, %p129
      %s132 = sadd.s32 %s131, 1
      %p135 = scmp.eq.s32.totalorder %s15, 3
      %p136 = scmp.ne.s32.totalorder %s131, %s133
      %p137 = scmp.eq.s32.totalorder %s15, 0
      %p138 = por %p136, %p137
      %p139 = scmp.ne.s32.totalorder %s131, %s133
      %p140 = scmp.eq.s32.totalorder %s20, 3
      %p141 = por %p139, %p140
      %p142 = scmp.ne.s32.totalorder %s133, %s134
      %p143 = scmp.eq.s32.totalorder %s20, 0
      %p144 = por %p142, %p143
      %p145 = scmp.ne.s32.totalorder %s133, %s134
      %p146 = scmp.eq.s32.totalorder %s21, 3
      %p147 = por %p145, %p146
      %p149 = scmp.ne.s32.totalorder %s134, %s148
      %p150 = scmp.eq.s32.totalorder %s21, 0
      %p151 = por %p149, %p150
      %s153 = sadd.s32 %s152, 1
      %p156 = scmp.eq.s32.totalorder %s15, 3
      %p157 = scmp.ne.s32.totalorder %s152, %s154
      %p158 = scmp.eq.s32.totalorder %s15, 0
      %p159 = por %p157, %p158
      %p160 = scmp.ne.s32.totalorder %s152, %s154
      %p161 = scmp.eq.s32.totalorder %s20, 3
      %p162 = por %p160, %p161
      %p163 = scmp.ne.s32.totalorder %s154, %s155
      %p164 = scmp.eq.s32.totalorder %s20, 0
      %p165 = por %p163, %p164
      %p166 = scmp.ne.s32.totalorder %s154, %s155
      %p167 = scmp.eq.s32.totalorder %s21, 3
      %p168 = por %p166, %p167
      %p170 = scmp.ne.s32.totalorder %s155, %s169
      %p171 = scmp.eq.s32.totalorder %s21, 0
      %p172 = por %p170, %p171
      %s173 = ssub.s32 %s22, %s34
      %s174 = ssub.s32 %s23, %s30
      %s175 = sor.u32 %s173, %s174
      %p176 = scmp.eq.s32.totalorder %s175, 0
      %s178 = sadd.s32 %s177, 1
      %s179 = scalar_select %p176, %s177, %s178
      %p182 = pneg %p176
      %p183 = scmp.eq.s32.totalorder %s15, 3
      %p184 = por %p182, %p183
      %p185 = scmp.ne.s32.totalorder %s177, %s180
      %p186 = scmp.eq.s32.totalorder %s15, 0
      %p187 = por %p185, %p186
      %p188 = scmp.ne.s32.totalorder %s177, %s180
      %p189 = scmp.eq.s32.totalorder %s20, 3
      %p190 = por %p188, %p189
      %p191 = scmp.ne.s32.totalorder %s180, %s181
      %p192 = scmp.eq.s32.totalorder %s20, 0
      %p193 = por %p191, %p192
      %p194 = scmp.ne.s32.totalorder %s180, %s181
      %p195 = scmp.eq.s32.totalorder %s21, 3
      %p196 = por %p194, %p195
      %p198 = scmp.ne.s32.totalorder %s181, %s197
      %p199 = scmp.eq.s32.totalorder %s21, 0
      %p200 = por %p198, %p199
      %p201 = scmp.le.s32.totalorder 1, %s15
      %p202 = scmp.lt.s32.totalorder %s15, 5
      %p203 = pnand %p201, %p202
      %p204 = pneg %p203
      // Predicated region
      $region9: #{_lambda_.3} parent=5 // pred_check
        _
      $region10: #{_lambda_.3} parent=5 // pred_check_branch
        %206 = sbr.rel (%p203) target = $region12
      $region11: #{_lambda_.3} parent=5 // pred_region
        %s207 = ssub.s32 %s15, 1
        // Predicated region
        $region13: #{_lambda_.3} parent=11 // pred_check
          %p208 = pneg %p102
        $region14: #{_lambda_.3} parent=11 // pred_check_branch
          %210 = sbr.rel (%p208) target = $region16
        $region15: #{_lambda_.3} parent=11 // pred_region
          _
        $region16: #{_lambda_.3} parent=11 // pred_fallthru
          _
        // Predicated region
        $region17: #{_lambda_.3} parent=11 // pred_check
          %p211 = pneg %p123
        $region18: #{_lambda_.3} parent=11 // pred_check_branch
          %213 = sbr.rel (%p211) target = $region20
        $region19: #{_lambda_.3} parent=11 // pred_region
          _
        $region20: #{_lambda_.3} parent=11 // pred_fallthru
          _
        // Predicated region
        $region21: #{_lambda_.3} parent=11 // pred_check
          %p214 = pneg %p144
        $region22: #{_lambda_.3} parent=11 // pred_check_branch
          %216 = sbr.rel (%p214) target = $region24
        $region23: #{_lambda_.3} parent=11 // pred_region
          _
        $region24: #{_lambda_.3} parent=11 // pred_fallthru
          _
        // Predicated region
        $region25: #{_lambda_.3} parent=11 // pred_check
          %p217 = pneg %p165
        $region26: #{_lambda_.3} parent=11 // pred_check_branch
          %219 = sbr.rel (%p217) target = $region28
        $region27: #{_lambda_.3} parent=11 // pred_region
          _
        $region28: #{_lambda_.3} parent=11 // pred_fallthru
          _
      $region12: #{_lambda_.3} parent=5 // pred_fallthru
        _
      %p220 = scmp.lt.s32.totalorder %s15, 4
      // Predicated region
      $region29: #{_lambda_.3} parent=5 // pred_check
        %p221 = pneg %p220
      $region30: #{_lambda_.3} parent=5 // pred_check_branch
        %223 = sbr.rel (%p221) target = $region32
      $region31: #{_lambda_.3} parent=5 // pred_region
        // Predicated region
        $region33: #{_lambda_.3} parent=31 // pred_check
          %p224 = pneg %p49
        $region34: #{_lambda_.3} parent=31 // pred_check_branch
          %226 = sbr.rel (%p224) target = $region36
        $region35: #{_lambda_.3} parent=31 // pred_region
          %s227 = smul.u32 8, %s23
          %p228 = scmp.lt.s32.totalorder %s22, 1
          %s229 = scalar_select %p228, %s22, 1
          %p230 = scmp.lt.s32.totalorder %s227, 15
          %s231 = scalar_select %p230, %s227, 15
          %s232 = smul.addr %s231, 2
          %s233 = smul.addr %s229, 32
          %s234 = sadd.s32 %s232, %s233
          %s235 = smul.addr %s234, 8
          %s236 = scalar_lea.vmem %s0, %s235
          %s237 = smul.u32 8, %s23
        $region36: #{_lambda_.3} parent=31 // pred_fallthru
          _
        // Predicated region
        $region37: #{_lambda_.3} parent=31 // pred_check
          %p238 = pneg %p75
        $region38: #{_lambda_.3} parent=31 // pred_check_branch
          %240 = sbr.rel (%p238) target = $region40
        $region39: #{_lambda_.3} parent=31 // pred_region
          %p241 = scmp.lt.s32.totalorder %s22, 1
          %s242 = scalar_select %p241, %s22, 1
          %s243 = scalar_lea.vmem %s1, %s242
        $region40: #{_lambda_.3} parent=31 // pred_fallthru
          _
      $region32: #{_lambda_.3} parent=5 // pred_fallthru
        _
      %p244 = scmp.le.s32.totalorder 1, %s15
      %p245 = scmp.lt.s32.totalorder %s15, 5
      %p246 = pnand %p244, %p245
      %p247 = pneg %p246
      // Predicated region
      $region41: #{_lambda_.3} parent=5 // pred_check
        _
      $region42: #{_lambda_.3} parent=5 // pred_check_branch
        %249 = sbr.rel (%p246) target = $region44
      $region43: #{_lambda_.3} parent=5 // pred_region
        %s250 = ssub.s32 %s15, 1
        %s251 = smul.u32 8, %s25
        %p252 = scmp.lt.s32.totalorder %s24, 1
        %s253 = scalar_select %p252, %s24, 1
        %p254 = scmp.lt.s32.totalorder %s251, 15
        %s255 = scalar_select %p254, %s251, 15
        %s256 = smul.addr %s255, 2
        %s257 = smul.addr %s253, 32
        %s258 = sadd.s32 %s256, %s257
        %s259 = smul.addr %s258, 8
        %s260 = scalar_lea.vmem %s0, %s259
        %p261 = pneg %p55
        %p262 = pneg %p52
        %p263 = scmp.lt.s32.totalorder %s24, 1
        %s264 = scalar_select %p263, %s24, 1
        %s265 = scalar_lea.vmem %s1, %s264
        %p266 = pneg %p81
        %p267 = pneg %p78
        %p268 = pneg %p102
        %p269 = pneg %p99
        %p270 = pneg %p123
        %p271 = pneg %p120
        %p272 = pneg %p144
        %p273 = pneg %p141
        %p274 = pneg %p165
        %p275 = pneg %p162
        %p276 = pneg %p193
        %p277 = pneg %p190
        %s278 = sand.u32 %s180, 1
        %s279 = scalar_lea.sflag [#allocation3], %s278
        %s280 = sand.u32 %s180, 1
        %s281 = smul.addr %s280, 128
        %s282 = scalar_lea.vmem [#allocation2], %s281
        %s283 = smul.u32 8, %s25
        %p284 = scmp.lt.s32.totalorder %s24, 1
        %s285 = scalar_select %p284, %s24, 1
        %p286 = scmp.lt.s32.totalorder %s283, 15
        %s287 = scalar_select %p286, %s283, 15
        %s288 = smul.addr %s287, 2
        %s289 = smul.addr %s285, 32
        %s290 = sadd.s32 %s288, %s289
        %s291 = smul.addr %s290, 8
        %s292 = scalar_lea.vmem %s0, %s291
        %s293 = smul.u32 8, %s25
        %p294 = scmp.lt.s32.totalorder %s24, 1
        %s295 = scalar_select %p294, %s24, 1
        %s296 = scalar_lea.vmem %s1, %s295
        %s297 = smul.u32 8, %s25
        %v298 = vld [vmem:[%s296] sm:$0x1]
        %v299 = vmul.f32 %v298, 0.00390625
        %v300 = vld [vmem:[%s2] sm:$0xf]
        %v302 = vlaneseq
        %v303 = vshrl.u32 %v302, 7
        %v304 = vsub.s32 0, %v303
        %v305 = vrot.slane %v299, %v304
        %v307 = vmul.f32 %v305, %v300
        %vm308 = vcmask 1043456
        %v309 = vsel %vm308, %v307, 0.0
        %310 = vadd.xlane.f32.xlu0 %v309
        %v311 = vpop.xlane.xlu0 %310
        %v312 = vld [vmem:[%s3] sm:$0xf]
        %v313 = vadd.f32 %v311, %v312
        %v314 = vmax.f32 %v313, 0.0
        %v315 = vld [vmem:[%s4] sm:$0xf]
        %317 = vset.pattern.permute.xlu0 0
        %318 = vperm.xlu0 %317, %v314
        %v319 = vpop.permute.xlu0 %318
        %v321 = vmul.f32 %v319, %v315
        %v322 = vsel %vm308, %v321, 0.0
        %v323 = vrot.slane %v322, 4
        %v324 = vadd.f32 %v322, %v323
        %v325 = vrot.slane %v324, 2
        %v326 = vadd.f32 %v324, %v325
        %v327 = vrot.slane %v326, 1
        %v328 = vadd.f32 %v326, %v327
        %v329 = vld [vmem:[%s5] sm:$0x1]
        %v330 = vadd.f32 %v328, %v329
        %v331 = vsub.f32 0.0, %v330
        %v332 = vmul.f32 %v331, 1.442695
        %v333 = vpow.pop %v332
        %v334 = vadd.f32 %v333, 1.0
        %v335 = vrcp.pop %v334
        %v336 = vmul.f32 1.0, %v335
        %v337 = vld [vmem:[%s292] sm:$0xff]
        %v338 = vld [vmem:[%s292 + $0x8] sm:$0xff]
        %v339 = vld [vmem:[%s292 + $0x10] sm:$0xff]
        %v340 = vld [vmem:[%s292 + $0x18] sm:$0xff]
        %v341 = vld [vmem:[%s292 + $0x20] sm:$0xff]
        %v342 = vld [vmem:[%s292 + $0x28] sm:$0xff]
        %v343 = vld [vmem:[%s292 + $0x30] sm:$0xff]
        %v344 = vld [vmem:[%s292 + $0x38] sm:$0xff]
        %v345 = vld [vmem:[%s292 + $0x40] sm:$0xff]
        %v346 = vld [vmem:[%s292 + $0x48] sm:$0xff]
        %v347 = vld [vmem:[%s292 + $0x50] sm:$0xff]
        %v348 = vld [vmem:[%s292 + $0x58] sm:$0xff]
        %v349 = vld [vmem:[%s292 + $0x60] sm:$0xff]
        %v350 = vld [vmem:[%s292 + $0x68] sm:$0xff]
        %v351 = vld [vmem:[%s292 + $0x70] sm:$0xff]
        %v352 = vld [vmem:[%s292 + $0x78] sm:$0xff]
        %v353 = vlaneseq
        %v354 = vshrl.u32 %v353, 7
        %v355 = vsub.s32 0, %v354
        %v356 = vrot.slane %v336, %v355
        %v357 = vmul.f32 %v337, %v356
        %v358 = vmul.f32 %v338, %v356
        %v359 = vmul.f32 %v339, %v356
        %v360 = vmul.f32 %v340, %v356
        %v361 = vmul.f32 %v341, %v356
        %v362 = vmul.f32 %v342, %v356
        %v363 = vmul.f32 %v343, %v356
        %v364 = vmul.f32 %v344, %v356
        %v365 = vmul.f32 %v345, %v356
        %v366 = vmul.f32 %v346, %v356
        %v367 = vmul.f32 %v347, %v356
        %v368 = vmul.f32 %v348, %v356
        %v369 = vmul.f32 %v349, %v356
        %v370 = vmul.f32 %v350, %v356
        %v371 = vmul.f32 %v351, %v356
        %v372 = vmul.f32 %v352, %v356
        %373 = vst [vmem:[%s282] sm:$0xff] %v357
        %374 = vst [vmem:[%s282 + $0x8] sm:$0xff] %v358
        %375 = vst [vmem:[%s282 + $0x10] sm:$0xff] %v359
        %376 = vst [vmem:[%s282 + $0x18] sm:$0xff] %v360
        %377 = vst [vmem:[%s282 + $0x20] sm:$0xff] %v361
        %378 = vst [vmem:[%s282 + $0x28] sm:$0xff] %v362
        %379 = vst [vmem:[%s282 + $0x30] sm:$0xff] %v363
        %380 = vst [vmem:[%s282 + $0x38] sm:$0xff] %v364
        %381 = vst [vmem:[%s282 + $0x40] sm:$0xff] %v365
        %382 = vst [vmem:[%s282 + $0x48] sm:$0xff] %v366
        %383 = vst [vmem:[%s282 + $0x50] sm:$0xff] %v367
        %384 = vst [vmem:[%s282 + $0x58] sm:$0xff] %v368
        %385 = vst [vmem:[%s282 + $0x60] sm:$0xff] %v369
        %386 = vst [vmem:[%s282 + $0x68] sm:$0xff] %v370
        %387 = vst [vmem:[%s282 + $0x70] sm:$0xff] %v371
        %388 = vst [vmem:[%s282 + $0x78] sm:$0xff] %v372
        %s389 = sand.u32 %s180, 1
        %s390 = scalar_lea.sflag [#allocation3], %s389
        %s391 = sand.u32 %s180, 1
        %s392 = smul.addr %s391, 128
        %s393 = scalar_lea.vmem [#allocation2], %s392
        // Predicated region
        $region45: #{_lambda_.3} parent=43 // pred_check
          %p394 = pneg %p190
        $region46: #{_lambda_.3} parent=43 // pred_check_branch
          %396 = sbr.rel (%p394) target = $region48
        $region47: #{_lambda_.3} parent=43 // pred_region
          %s397 = smul.u32 8, %s25
          %s399 = ssub.s32 2048, 2048
          %400 = vsyncadd %s390, %s399
          %s401 = smul.addr %s397, 2
          %s402 = smul.addr %s24, 32
          %s403 = sadd.s32 %s401, %s402
          %s404 = smul.addr %s403, 128
          %s405 = scalar_lea.hbm %s6, %s404
          %s406 = sshll.u32 %s393, 4
          %s407 = int_to_ptr.vmem [resolvable:$true] %s406
          %412 = dma.vmem_to_hbm [thread:$0]  %s407, 2048, %s405, %s390, 128, 128, 8
        $region48: #{_lambda_.3} parent=43 // pred_fallthru
          _
      $region44: #{_lambda_.3} parent=5 // pred_fallthru
        _
      %p413 = scmp.le.s32.totalorder 2, %s15
      // Predicated region
      $region49: #{_lambda_.3} parent=5 // pred_check
        %p414 = pneg %p413
      $region50: #{_lambda_.3} parent=5 // pred_check_branch
        %416 = sbr.rel (%p414) target = $region52
      $region51: #{_lambda_.3} parent=5 // pred_region
        %s417 = ssub.s32 %s15, 2
        // Predicated region
        $region53: #{_lambda_.3} parent=51 // pred_check
          %p418 = pneg %p196
        $region54: #{_lambda_.3} parent=51 // pred_check_branch
          %420 = sbr.rel (%p418) target = $region56
        $region55: #{_lambda_.3} parent=51 // pred_region
          %s421 = sand.u32 %s181, 1
          %s422 = scalar_lea.sflag [#allocation3], %s421
          %s423 = sand.u32 %s181, 1
          %s424 = smul.addr %s423, 128
          %s425 = scalar_lea.vmem [#allocation2], %s424
          %426 = dma.done %s422, 2048
        $region56: #{_lambda_.3} parent=51 // pred_fallthru
          _
      $region52: #{_lambda_.3} parent=5 // pred_fallthru
        _
    $region6: #{_lambda_.3} parent=1 // loop_footer
      %s19 = sadd.s32 1, %s15
    $region7: #{_lambda_.3} parent=1 // loop_footer_branch
      %14 = sbr.rel target = $region3
    $region8: #{_lambda_.3} parent=1 // loop_exit
      _
    %427 = vsyncpa [#allocation3], 1
    %s428 = scalar_lea.sflag [#allocation3], 1
    %429 = vsyncpa %s428, 1

// kernel: _lambda_.2
$region0: #{_lambda_.2}
  #allocation0 [shape = 'u32[]', space=smem, size = 0x4, offset = 0x4, fixed_abs, tag = 'smem constant byte address 0x4 - core index']
  #allocation1 [shape = 'u32[144,128]{1,0:T(1,128)}', space=vmem, size = 0x12000, scoped, tag = 'internal scratch']
  #allocation2 [shape = 'bf16[10,16,1152]{2,1,0:T(16,128)(2,1)}', space=vmem, size = 0x5a000, scoped, tag = 'scratch operand']
  #allocation3 [shape = 'bf16[10,32,42]{2,1,0:T(16,128)(2,1)}', space=vmem, size = 0x14000, scoped, tag = 'scratch operand']
  #allocation4 [shape = 'f32[128,128]{1,0:T(8,128)}', space=vmem, size = 0x10000, scoped, tag = 'scratch operand']
  %s0 = inlined_call_operand.vmem [shape: bf16[2,2,12,18,128], index: 0, kind: input, shape index: {}]
  %s1 = inlined_call_operand.vmem [shape: bf16[1152,42], index: 1, kind: input, shape index: {}]
  %s2 = inlined_call_operand.vmem [shape: f32[1,42], index: 2, kind: input, shape index: {}]
  %s3 = inlined_call_operand.vmem [shape: bf16[9,42,128], index: 3, kind: input, shape index: {}]
  %s4 = inlined_call_operand.vmem [shape: f32[1,128], index: 4, kind: input, shape index: {}]
  %s5 = inlined_call_operand.vmem [shape: f32[2,16,16,128], index: 5, kind: output, shape index: {0}]
  %s6 = inlined_call_operand.vmem [shape: f32[2,1,128], index: 6, kind: output, shape index: {1}]
  %7 = xla_tuple %s5, %s6
  %s8 = sld [smem:[#allocation0]]
  $region73: #{_lambda_.2} parent=0
    _
  %s10 = ssub.s32 1, %s8
  %s11 = scalar_select 0, %s10, %s8
  loop: start=0, step=1, limit=6
  $region2: #{_lambda_.2} parent=0 // loop_pre_header
    _
  $region3: #{_lambda_.2} parent=0 // loop_header
    %s13 = sphi 0, %s17
    %p14 = scmp.ge.s32.totalorder %s13, 6
    %s20 = sphi 0, %s32
    %s21 = sphi 0, %s28
    %s22 = sphi 0, %s20
    %s23 = sphi 0, %s21
    %s24 = sphi 0, %s22
    %s25 = sphi 0, %s23
    %s37 = sphi 0, %s39
    %s40 = sphi 0, %s37
    %s41 = sphi 0, %s40
    %s57 = sphi 0, %s41
    %s61 = sphi 0, %s61
    %s63 = sphi 0, %s61
    %s64 = sphi 0, %s63
    %s78 = sphi 0, %s64
    %s82 = sphi 0, %s82
    %s84 = sphi 0, %s82
    %s85 = sphi 0, %s84
    %s99 = sphi 0, %s85
    %s103 = sphi 0, %s103
    %s105 = sphi 0, %s103
    %s106 = sphi 0, %s105
    %s120 = sphi 0, %s106
    %s124 = sphi 0, %s124
    %s126 = sphi 0, %s124
    %s127 = sphi 0, %s126
    %s141 = sphi 0, %s127
    %s149 = sphi 0, %s151
    %s152 = sphi 0, %s149
    %s153 = sphi 0, %s152
    %s169 = sphi 0, %s153
    %s175 = sphi 0, %s177
    %s178 = sphi 0, %s175
    %s179 = sphi 0, %s178
    %s195 = sphi 0, %s179
  $region4: #{_lambda_.2} parent=0 // loop_header_branch
    %16 = sbr.rel (%p14) target = $region8
  $region5: #{_lambda_.2} parent=0 // loop_body
    %s18 = ssub.s32 %s13, 1
    %s19 = ssub.s32 %s13, 2
    %s26 = sadd.s32 1, %s21
    %p27 = scmp.ge.s32.totalorder %s26, 2
    %s28 = scalar_select %p27, 0, %s26
    %s29 = sadd.s32 1, %s20
    %s30 = scalar_select %p27, %s29, %s20
    %p31 = scmp.ge.s32.totalorder %s30, 2
    %s32 = scalar_select %p31, 0, %s30
    %s33 = ssub.s32 %s20, %s32
    %s34 = ssub.s32 %s21, %s28
    %s35 = sor.u32 %s33, %s34
    %p36 = scmp.eq.s32.totalorder %s35, 0
    %s38 = sadd.s32 %s37, 1
    %s39 = scalar_select %p36, %s37, %s38
    %p42 = pneg %p36
    %p43 = scmp.eq.s32.totalorder %s13, 3
    %p44 = por %p42, %p43
    %p45 = scmp.ne.s32.totalorder %s37, %s40
    %p46 = scmp.eq.s32.totalorder %s13, 0
    %p47 = por %p45, %p46
    %p48 = scmp.ne.s32.totalorder %s37, %s40
    %p49 = scmp.eq.s32.totalorder %s18, 3
    %p50 = por %p48, %p49
    %p51 = scmp.ne.s32.totalorder %s40, %s41
    %p52 = scmp.eq.s32.totalorder %s18, 0
    %p53 = por %p51, %p52
    %p54 = scmp.ne.s32.totalorder %s40, %s41
    %p55 = scmp.eq.s32.totalorder %s19, 3
    %p56 = por %p54, %p55
    %p58 = scmp.ne.s32.totalorder %s41, %s57
    %p59 = scmp.eq.s32.totalorder %s19, 0
    %p60 = por %p58, %p59
    %s62 = sadd.s32 %s61, 1
    %p65 = scmp.eq.s32.totalorder %s13, 3
    %p66 = scmp.ne.s32.totalorder %s61, %s63
    %p67 = scmp.eq.s32.totalorder %s13, 0
    %p68 = por %p66, %p67
    %p69 = scmp.ne.s32.totalorder %s61, %s63
    %p70 = scmp.eq.s32.totalorder %s18, 3
    %p71 = por %p69, %p70
    %p72 = scmp.ne.s32.totalorder %s63, %s64
    %p73 = scmp.eq.s32.totalorder %s18, 0
    %p74 = por %p72, %p73
    %p75 = scmp.ne.s32.totalorder %s63, %s64
    %p76 = scmp.eq.s32.totalorder %s19, 3
    %p77 = por %p75, %p76
    %p79 = scmp.ne.s32.totalorder %s64, %s78
    %p80 = scmp.eq.s32.totalorder %s19, 0
    %p81 = por %p79, %p80
    %s83 = sadd.s32 %s82, 1
    %p86 = scmp.eq.s32.totalorder %s13, 3
    %p87 = scmp.ne.s32.totalorder %s82, %s84
    %p88 = scmp.eq.s32.totalorder %s13, 0
    %p89 = por %p87, %p88
    %p90 = scmp.ne.s32.totalorder %s82, %s84
    %p91 = scmp.eq.s32.totalorder %s18, 3
    %p92 = por %p90, %p91
    %p93 = scmp.ne.s32.totalorder %s84, %s85
    %p94 = scmp.eq.s32.totalorder %s18, 0
    %p95 = por %p93, %p94
    %p96 = scmp.ne.s32.totalorder %s84, %s85
    %p97 = scmp.eq.s32.totalorder %s19, 3
    %p98 = por %p96, %p97
    %p100 = scmp.ne.s32.totalorder %s85, %s99
    %p101 = scmp.eq.s32.totalorder %s19, 0
    %p102 = por %p100, %p101
    %s104 = sadd.s32 %s103, 1
    %p107 = scmp.eq.s32.totalorder %s13, 3
    %p108 = scmp.ne.s32.totalorder %s103, %s105
    %p109 = scmp.eq.s32.totalorder %s13, 0
    %p110 = por %p108, %p109
    %p111 = scmp.ne.s32.totalorder %s103, %s105
    %p112 = scmp.eq.s32.totalorder %s18, 3
    %p113 = por %p111, %p112
    %p114 = scmp.ne.s32.totalorder %s105, %s106
    %p115 = scmp.eq.s32.totalorder %s18, 0
    %p116 = por %p114, %p115
    %p117 = scmp.ne.s32.totalorder %s105, %s106
    %p118 = scmp.eq.s32.totalorder %s19, 3
    %p119 = por %p117, %p118
    %p121 = scmp.ne.s32.totalorder %s106, %s120
    %p122 = scmp.eq.s32.totalorder %s19, 0
    %p123 = por %p121, %p122
    %s125 = sadd.s32 %s124, 1
    %p128 = scmp.eq.s32.totalorder %s13, 3
    %p129 = scmp.ne.s32.totalorder %s124, %s126
    %p130 = scmp.eq.s32.totalorder %s13, 0
    %p131 = por %p129, %p130
    %p132 = scmp.ne.s32.totalorder %s124, %s126
    %p133 = scmp.eq.s32.totalorder %s18, 3
    %p134 = por %p132, %p133
    %p135 = scmp.ne.s32.totalorder %s126, %s127
    %p136 = scmp.eq.s32.totalorder %s18, 0
    %p137 = por %p135, %p136
    %p138 = scmp.ne.s32.totalorder %s126, %s127
    %p139 = scmp.eq.s32.totalorder %s19, 3
    %p140 = por %p138, %p139
    %p142 = scmp.ne.s32.totalorder %s127, %s141
    %p143 = scmp.eq.s32.totalorder %s19, 0
    %p144 = por %p142, %p143
    %s145 = ssub.s32 %s20, %s32
    %s146 = ssub.s32 %s21, %s28
    %s147 = sor.u32 %s145, %s146
    %p148 = scmp.eq.s32.totalorder %s147, 0
    %s150 = sadd.s32 %s149, 1
    %s151 = scalar_select %p148, %s149, %s150
    %p154 = pneg %p148
    %p155 = scmp.eq.s32.totalorder %s13, 3
    %p156 = por %p154, %p155
    %p157 = scmp.ne.s32.totalorder %s149, %s152
    %p158 = scmp.eq.s32.totalorder %s13, 0
    %p159 = por %p157, %p158
    %p160 = scmp.ne.s32.totalorder %s149, %s152
    %p161 = scmp.eq.s32.totalorder %s18, 3
    %p162 = por %p160, %p161
    %p163 = scmp.ne.s32.totalorder %s152, %s153
    %p164 = scmp.eq.s32.totalorder %s18, 0
    %p165 = por %p163, %p164
    %p166 = scmp.ne.s32.totalorder %s152, %s153
    %p167 = scmp.eq.s32.totalorder %s19, 3
    %p168 = por %p166, %p167
    %p170 = scmp.ne.s32.totalorder %s153, %s169
    %p171 = scmp.eq.s32.totalorder %s19, 0
    %p172 = por %p170, %p171
    %s173 = ssub.s32 %s20, %s32
    %p174 = scmp.eq.s32.totalorder %s173, 0
    %s176 = sadd.s32 %s175, 1
    %s177 = scalar_select %p174, %s175, %s176
    %p180 = pneg %p174
    %p181 = scmp.eq.s32.totalorder %s13, 3
    %p182 = por %p180, %p181
    %p183 = scmp.ne.s32.totalorder %s175, %s178
    %p184 = scmp.eq.s32.totalorder %s13, 0
    %p185 = por %p183, %p184
    %p186 = scmp.ne.s32.totalorder %s175, %s178
    %p187 = scmp.eq.s32.totalorder %s18, 3
    %p188 = por %p186, %p187
    %p189 = scmp.ne.s32.totalorder %s178, %s179
    %p190 = scmp.eq.s32.totalorder %s18, 0
    %p191 = por %p189, %p190
    %p192 = scmp.ne.s32.totalorder %s178, %s179
    %p193 = scmp.eq.s32.totalorder %s19, 3
    %p194 = por %p192, %p193
    %p196 = scmp.ne.s32.totalorder %s179, %s195
    %p197 = scmp.eq.s32.totalorder %s19, 0
    %p198 = por %p196, %p197
    %p199 = scmp.le.s32.totalorder 1, %s13
    %p200 = scmp.lt.s32.totalorder %s13, 5
    %p201 = pnand %p199, %p200
    %p202 = pneg %p201
    // Predicated region
    $region9: #{_lambda_.2} parent=5 // pred_check
      _
    $region10: #{_lambda_.2} parent=5 // pred_check_branch
      %204 = sbr.rel (%p201) target = $region12
    $region11: #{_lambda_.2} parent=5 // pred_region
      %s205 = ssub.s32 %s13, 1
      // Predicated region
      $region13: #{_lambda_.2} parent=11 // pred_check
        %p206 = pneg %p74
      $region14: #{_lambda_.2} parent=11 // pred_check_branch
        %208 = sbr.rel (%p206) target = $region16
      $region15: #{_lambda_.2} parent=11 // pred_region
        _
      $region16: #{_lambda_.2} parent=11 // pred_fallthru
        _
      // Predicated region
      $region17: #{_lambda_.2} parent=11 // pred_check
        %p209 = pneg %p95
      $region18: #{_lambda_.2} parent=11 // pred_check_branch
        %211 = sbr.rel (%p209) target = $region20
      $region19: #{_lambda_.2} parent=11 // pred_region
        _
      $region20: #{_lambda_.2} parent=11 // pred_fallthru
        _
      // Predicated region
      $region21: #{_lambda_.2} parent=11 // pred_check
        %p212 = pneg %p116
      $region22: #{_lambda_.2} parent=11 // pred_check_branch
        %214 = sbr.rel (%p212) target = $region24
      $region23: #{_lambda_.2} parent=11 // pred_region
        _
      $region24: #{_lambda_.2} parent=11 // pred_fallthru
        _
      // Predicated region
      $region25: #{_lambda_.2} parent=11 // pred_check
        %p215 = pneg %p137
      $region26: #{_lambda_.2} parent=11 // pred_check_branch
        %217 = sbr.rel (%p215) target = $region28
      $region27: #{_lambda_.2} parent=11 // pred_region
        _
      $region28: #{_lambda_.2} parent=11 // pred_fallthru
        _
    $region12: #{_lambda_.2} parent=5 // pred_fallthru
      _
    %p218 = scmp.lt.s32.totalorder %s13, 4
    // Predicated region
    $region29: #{_lambda_.2} parent=5 // pred_check
      %p219 = pneg %p218
    $region30: #{_lambda_.2} parent=5 // pred_check_branch
      %221 = sbr.rel (%p219) target = $region32
    $region31: #{_lambda_.2} parent=5 // pred_region
      // Predicated region
      $region33: #{_lambda_.2} parent=31 // pred_check
        %p222 = pneg %p47
      $region34: #{_lambda_.2} parent=31 // pred_check_branch
        %224 = sbr.rel (%p222) target = $region36
      $region35: #{_lambda_.2} parent=31 // pred_region
        %p225 = scmp.lt.s32.totalorder %s20, 1
        %s226 = scalar_select %p225, %s20, 1
        %p227 = scmp.lt.s32.totalorder %s21, 1
        %s228 = scalar_select %p227, %s21, 1
        %s229 = smul.addr %s228, 36
        %s230 = smul.addr %s226, 72
        %s231 = sadd.s32 %s229, %s230
        %s232 = smul.addr %s231, 4
        %s233 = scalar_lea.vmem %s0, %s232
      $region36: #{_lambda_.2} parent=31 // pred_fallthru
        _
    $region32: #{_lambda_.2} parent=5 // pred_fallthru
      _
    %p234 = scmp.le.s32.totalorder 1, %s13
    %p235 = scmp.lt.s32.totalorder %s13, 5
    %p236 = pnand %p234, %p235
    %p237 = pneg %p236
    // Predicated region
    $region37: #{_lambda_.2} parent=5 // pred_check
      _
    $region38: #{_lambda_.2} parent=5 // pred_check_branch
      %239 = sbr.rel (%p236) target = $region40
    $region39: #{_lambda_.2} parent=5 // pred_region
      %s240 = ssub.s32 %s13, 1
      %p241 = scmp.lt.s32.totalorder %s22, 1
      %s242 = scalar_select %p241, %s22, 1
      %p243 = scmp.lt.s32.totalorder %s23, 1
      %s244 = scalar_select %p243, %s23, 1
      %s245 = smul.addr %s244, 36
      %s246 = smul.addr %s242, 72
      %s247 = sadd.s32 %s245, %s246
      %s248 = smul.addr %s247, 4
      %s249 = scalar_lea.vmem %s0, %s248
      %p250 = pneg %p53
      %p251 = pneg %p50
      %p252 = pneg %p74
      %p253 = pneg %p71
      %p254 = pneg %p95
      %p255 = pneg %p92
      %p256 = pneg %p116
      %p257 = pneg %p113
      %p258 = pneg %p137
      %p259 = pneg %p134
      %p260 = pneg %p165
      %p261 = pneg %p162
      %s262 = smul.u32 8, %s23
      %p263 = scmp.lt.s32.totalorder %s22, 1
      %s264 = scalar_select %p263, %s22, 1
      %p265 = scmp.lt.s32.totalorder %s262, 15
      %s266 = scalar_select %p265, %s262, 15
      %s267 = smul.addr %s266, 2
      %s268 = smul.addr %s264, 32
      %s269 = sadd.s32 %s267, %s268
      %s270 = smul.addr %s269, 8
      %s271 = scalar_lea.vmem %s5, %s270
      %p272 = pneg %p191
      %p273 = pneg %p188
      %p274 = scmp.lt.s32.totalorder %s22, 1
      %s275 = scalar_select %p274, %s22, 1
      %s276 = scalar_lea.vmem %s6, %s275
      %p277 = scmp.lt.s32.totalorder %s22, 1
      %s278 = scalar_select %p277, %s22, 1
      %p279 = scmp.lt.s32.totalorder %s23, 1
      %s280 = scalar_select %p279, %s23, 1
      %s281 = smul.addr %s280, 36
      %s282 = smul.addr %s278, 72
      %s283 = sadd.s32 %s281, %s282
      %s284 = smul.addr %s283, 4
      %s285 = scalar_lea.vmem %s0, %s284
      %s286 = smul.u32 8, %s23
      %p287 = scmp.lt.s32.totalorder %s22, 1
      %s288 = scalar_select %p287, %s22, 1
      %p289 = scmp.lt.s32.totalorder %s286, 15
      %s290 = scalar_select %p289, %s286, 15
      %s291 = smul.addr %s290, 2
      %s292 = smul.addr %s288, 32
      %s293 = sadd.s32 %s291, %s292
      %s294 = smul.addr %s293, 8
      %s295 = scalar_lea.vmem %s5, %s294
      %s296 = smul.u32 8, %s23
      %p297 = scmp.lt.s32.totalorder %s22, 1
      %s298 = scalar_select %p297, %s22, 1
      %s299 = scalar_lea.vmem %s6, %s298
      %v301 = vld [vmem:[%s285] sm:$0xf]
      %v302 = vld [vmem:[%s285 + $0x4] sm:$0xf]
      %v303 = vld [vmem:[%s285 + $0xc] sm:$0xf]
      %v304 = vld [vmem:[%s285 + $0x10] sm:$0xf]
      %v305 = vld [vmem:[%s285 + $0x18] sm:$0xf]
      %v306 = vld [vmem:[%s285 + $0x1c] sm:$0xf]
      %v307 = vld [vmem:[%s285 + $0x24] sm:$0xf]
      %v308 = vld [vmem:[%s285 + $0x28] sm:$0xf]
      %v309 = vld [vmem:[%s285 + $0x30] sm:$0xf]
      %v310 = vld [vmem:[%s285 + $0x34] sm:$0xf]
      %v311 = vld [vmem:[%s285 + $0x3c] sm:$0xf]
      %v312 = vld [vmem:[%s285 + $0x40] sm:$0xf]
      %v313 = vld [vmem:[%s285 + $0x48] sm:$0xf]
      %v314 = vld [vmem:[%s285 + $0x4c] sm:$0xf]
      %v315 = vld [vmem:[%s285 + $0x54] sm:$0xf]
      %v316 = vld [vmem:[%s285 + $0x58] sm:$0xf]
      %v317 = vld [vmem:[%s285 + $0x60] sm:$0xf]
      %v318 = vld [vmem:[%s285 + $0x64] sm:$0xf]
      %v319 = vld [vmem:[%s285 + $0x6c] sm:$0xf]
      %v320 = vld [vmem:[%s285 + $0x70] sm:$0xf]
      %v341 = vunpack.c.l.b16 %v301
      %v342 = vunpack.c.l.b16 %v302
      %v343 = vunpack.c.l.b16 %v303
      %v344 = vunpack.c.l.b16 %v304
      %v345 = vunpack.c.l.b16 %v305
      %v346 = vunpack.c.l.b16 %v306
      %v347 = vunpack.c.l.b16 %v307
      %v348 = vunpack.c.l.b16 %v308
      %v349 = vunpack.c.l.b16 %v309
      %v350 = vunpack.c.l.b16 %v310
      %v351 = vunpack.c.l.b16 %v311
      %v352 = vunpack.c.l.b16 %v312
      %v353 = vunpack.c.l.b16 %v313
      %v354 = vunpack.c.l.b16 %v314
      %v355 = vunpack.c.l.b16 %v315
      %v356 = vunpack.c.l.b16 %v316
      %v357 = vunpack.c.l.b16 %v317
      %v358 = vunpack.c.l.b16 %v318
      %v359 = vunpack.c.l.b16 %v319
      %v360 = vunpack.c.l.b16 %v320
      %v361 = vpack.c.b16 %v342, %v341
      %v362 = vpack.c.b16 %v344, %v343
      %v363 = vpack.c.b16 %v346, %v345
      %v364 = vpack.c.b16 %v348, %v347
      %v365 = vpack.c.b16 %v350, %v349
      %v366 = vpack.c.b16 %v352, %v351
      %v367 = vpack.c.b16 %v354, %v353
      %v368 = vpack.c.b16 %v356, %v355
      %v369 = vpack.c.b16 %v358, %v357
      %v370 = vpack.c.b16 %v360, %v359
      %381 = vst [vmem:[#allocation2] sm:$0xff] %v361
      %382 = vst [vmem:[#allocation2 + $0x48] sm:$0xff] %v362
      %383 = vst [vmem:[#allocation2 + $0x90] sm:$0xff] %v363
      %384 = vst [vmem:[#allocation2 + $0xd8] sm:$0xff] %v364
      %385 = vst [vmem:[#allocation2 + $0x120] sm:$0xff] %v365
      %386 = vst [vmem:[#allocation2 + $0x168] sm:$0xff] %v366
      %387 = vst [vmem:[#allocation2 + $0x1b0] sm:$0xff] %v367
      %388 = vst [vmem:[#allocation2 + $0x1f8] sm:$0xff] %v368
      %389 = vst [vmem:[#allocation2 + $0x240] sm:$0xff] %v369
      %390 = vst [vmem:[#allocation2 + $0x288] sm:$0xff] %v370
      %v391 = vld [vmem:[%s285] sm:$0xf]
      %v392 = vld [vmem:[%s285 + $0x4] sm:$0xf]
      %v393 = vld [vmem:[%s285 + $0x8] sm:$0x1]
      %v394 = vld [vmem:[%s285 + $0xc] sm:$0xf]
      %v395 = vld [vmem:[%s285 + $0x10] sm:$0xf]
      %v396 = vld [vmem:[%s285 + $0x14] sm:$0x1]
      %v397 = vld [vmem:[%s285 + $0x18] sm:$0xf]
      %v398 = vld [vmem:[%s285 + $0x1c] sm:$0xf]
      %v399 = vld [vmem:[%s285 + $0x20] sm:$0x1]
      %v400 = vld [vmem:[%s285 + $0x24] sm:$0xf]
      %v401 = vld [vmem:[%s285 + $0x28] sm:$0xf]
      %v402 = vld [vmem:[%s285 + $0x2c] sm:$0x1]
      %v403 = vld [vmem:[%s285 + $0x30] sm:$0xf]
      %v404 = vld [vmem:[%s285 + $0x34] sm:$0xf]
      %v405 = vld [vmem:[%s285 + $0x38] sm:$0x1]
      %v406 = vld [vmem:[%s285 + $0x3c] sm:$0xf]
      %v407 = vld [vmem:[%s285 + $0x40] sm:$0xf]
      %v408 = vld [vmem:[%s285 + $0x44] sm:$0x1]
      %v409 = vld [vmem:[%s285 + $0x48] sm:$0xf]
      %v410 = vld [vmem:[%s285 + $0x4c] sm:$0xf]
      %v411 = vld [vmem:[%s285 + $0x50] sm:$0x1]
      %v412 = vld [vmem:[%s285 + $0x54] sm:$0xf]
      %v413 = vld [vmem:[%s285 + $0x58] sm:$0xf]
      %v414 = vld [vmem:[%s285 + $0x5c] sm:$0x1]
      %v415 = vld [vmem:[%s285 + $0x60] sm:$0xf]
      %v416 = vld [vmem:[%s285 + $0x64] sm:$0xf]
      %v417 = vld [vmem:[%s285 + $0x68] sm:$0x1]
      %v418 = vld [vmem:[%s285 + $0x6c] sm:$0xf]
      %v419 = vld [vmem:[%s285 + $0x70] sm:$0xf]
      %v420 = vld [vmem:[%s285 + $0x74] sm:$0x1]
      %v451 = vunpack.c.l.b16 %v391
      %v452 = vunpack.c.l.b16 %v392
      %v453 = vunpack.c.l.b16 %v393
      %v454 = vunpack.c.l.b16 %v394
      %v455 = vunpack.c.l.b16 %v395
      %v456 = vunpack.c.l.b16 %v396
      %v457 = vunpack.c.l.b16 %v397
      %v458 = vunpack.c.l.b16 %v398
      %v459 = vunpack.c.l.b16 %v399
      %v460 = vunpack.c.l.b16 %v400
      %v461 = vunpack.c.l.b16 %v401
      %v462 = vunpack.c.l.b16 %v402
      %v463 = vunpack.c.l.b16 %v403
      %v464 = vunpack.c.l.b16 %v404
      %v465 = vunpack.c.l.b16 %v405
      %v466 = vunpack.c.l.b16 %v406
      %v467 = vunpack.c.l.b16 %v407
      %v468 = vunpack.c.l.b16 %v408
      %v469 = vunpack.c.l.b16 %v409
      %v470 = vunpack.c.l.b16 %v410
      %v471 = vunpack.c.l.b16 %v411
      %v472 = vunpack.c.l.b16 %v412
      %v473 = vunpack.c.l.b16 %v413
      %v474 = vunpack.c.l.b16 %v414
      %v475 = vunpack.c.l.b16 %v415
      %v476 = vunpack.c.l.b16 %v416
      %v477 = vunpack.c.l.b16 %v417
      %v478 = vunpack.c.l.b16 %v418
      %v479 = vunpack.c.l.b16 %v419
      %v480 = vunpack.c.l.b16 %v420
      %v481 = vpack.c.b16 %v452, %v451
      %v482 = vpack.c.b16 %v453, %v453
      %v483 = vpack.c.b16 %v455, %v454
      %v484 = vpack.c.b16 %v456, %v456
      %v485 = vpack.c.b16 %v458, %v457
      %v486 = vpack.c.b16 %v459, %v459
      %v487 = vpack.c.b16 %v461, %v460
      %v488 = vpack.c.b16 %v462, %v462
      %v489 = vpack.c.b16 %v464, %v463
      %v490 = vpack.c.b16 %v465, %v465
      %v491 = vpack.c.b16 %v467, %v466
      %v492 = vpack.c.b16 %v468, %v468
      %v493 = vpack.c.b16 %v470, %v469
      %v494 = vpack.c.b16 %v471, %v471
      %v495 = vpack.c.b16 %v473, %v472
      %v496 = vpack.c.b16 %v474, %v474
      %v497 = vpack.c.b16 %v476, %v475
      %v498 = vpack.c.b16 %v477, %v477
      %v499 = vpack.c.b16 %v479, %v478
      %v500 = vpack.c.b16 %v480, %v480
      %vm501 = vsmask.f32 7424
      %v503 = vshrl.u32 %v481, 16
      %v505 = vshll.u32 %v481, 16
      %v507 = vrot.slane %v505, 1
      %v508 = vor.u32 %v503, %v507
      %v510 = vshll.u32 %v482, 16
      %v512 = vrot.slane %v510, 1
      %v513 = vsel %vm501, %v508, %v512
      %v515 = vshrl.u32 %v483, 16
      %v517 = vshll.u32 %v483, 16
      %v519 = vrot.slane %v517, 1
      %v520 = vor.u32 %v515, %v519
      %v522 = vshll.u32 %v484, 16
      %v524 = vrot.slane %v522, 1
      %v525 = vsel %vm501, %v520, %v524
      %v527 = vshrl.u32 %v485, 16
      %v529 = vshll.u32 %v485, 16
      %v531 = vrot.slane %v529, 1
      %v532 = vor.u32 %v527, %v531
      %v534 = vshll.u32 %v486, 16
      %v536 = vrot.slane %v534, 1
      %v537 = vsel %vm501, %v532, %v536
      %v539 = vshrl.u32 %v487, 16
      %v541 = vshll.u32 %v487, 16
      %v543 = vrot.slane %v541, 1
      %v544 = vor.u32 %v539, %v543
      %v546 = vshll.u32 %v488, 16
      %v548 = vrot.slane %v546, 1
      %v549 = vsel %vm501, %v544, %v548
      %v551 = vshrl.u32 %v489, 16
      %v553 = vshll.u32 %v489, 16
      %v555 = vrot.slane %v553, 1
      %v556 = vor.u32 %v551, %v555
      %v558 = vshll.u32 %v490, 16
      %v560 = vrot.slane %v558, 1
      %v561 = vsel %vm501, %v556, %v560
      %v563 = vshrl.u32 %v491, 16
      %v565 = vshll.u32 %v491, 16
      %v567 = vrot.slane %v565, 1
      %v568 = vor.u32 %v563, %v567
      %v570 = vshll.u32 %v492, 16
      %v572 = vrot.slane %v570, 1
      %v573 = vsel %vm501, %v568, %v572
      %v575 = vshrl.u32 %v493, 16
      %v577 = vshll.u32 %v493, 16
      %v579 = vrot.slane %v577, 1
      %v580 = vor.u32 %v575, %v579
      %v582 = vshll.u32 %v494, 16
      %v584 = vrot.slane %v582, 1
      %v585 = vsel %vm501, %v580, %v584
      %v587 = vshrl.u32 %v495, 16
      %v589 = vshll.u32 %v495, 16
      %v591 = vrot.slane %v589, 1
      %v592 = vor.u32 %v587, %v591
      %v594 = vshll.u32 %v496, 16
      %v596 = vrot.slane %v594, 1
      %v597 = vsel %vm501, %v592, %v596
      %v599 = vshrl.u32 %v497, 16
      %v601 = vshll.u32 %v497, 16
      %v603 = vrot.slane %v601, 1
      %v604 = vor.u32 %v599, %v603
      %v606 = vshll.u32 %v498, 16
      %v608 = vrot.slane %v606, 1
      %v609 = vsel %vm501, %v604, %v608
      %v611 = vshrl.u32 %v499, 16
      %v613 = vshll.u32 %v499, 16
      %v615 = vrot.slane %v613, 1
      %v616 = vor.u32 %v611, %v615
      %v618 = vshll.u32 %v500, 16
      %v620 = vrot.slane %v618, 1
      %v621 = vsel %vm501, %v616, %v620
      %632 = vst [vmem:[#allocation2 + $0x8] sm:$0xff] %v513
      %633 = vst [vmem:[#allocation2 + $0x50] sm:$0xff] %v525
      %634 = vst [vmem:[#allocation2 + $0x98] sm:$0xff] %v537
      %635 = vst [vmem:[#allocation2 + $0xe0] sm:$0xff] %v549
      %636 = vst [vmem:[#allocation2 + $0x128] sm:$0xff] %v561
      %637 = vst [vmem:[#allocation2 + $0x170] sm:$0xff] %v573
      %638 = vst [vmem:[#allocation2 + $0x1b8] sm:$0xff] %v585
      %639 = vst [vmem:[#allocation2 + $0x200] sm:$0xff] %v597
      %640 = vst [vmem:[#allocation2 + $0x248] sm:$0xff] %v609
      %641 = vst [vmem:[#allocation2 + $0x290] sm:$0xff] %v621
      %v642 = vld [vmem:[%s285] sm:$0xe]
      %v643 = vld [vmem:[%s285 + $0x4] sm:$0xf]
      %v644 = vld [vmem:[%s285 + $0x8] sm:$0x1]
      %v645 = vld [vmem:[%s285 + $0xc] sm:$0xe]
      %v646 = vld [vmem:[%s285 + $0x10] sm:$0xf]
      %v647 = vld [vmem:[%s285 + $0x14] sm:$0x1]
      %v648 = vld [vmem:[%s285 + $0x18] sm:$0xe]
      %v649 = vld [vmem:[%s285 + $0x1c] sm:$0xf]
      %v650 = vld [vmem:[%s285 + $0x20] sm:$0x1]
      %v651 = vld [vmem:[%s285 + $0x24] sm:$0xe]
      %v652 = vld [vmem:[%s285 + $0x28] sm:$0xf]
      %v653 = vld [vmem:[%s285 + $0x2c] sm:$0x1]
      %v654 = vld [vmem:[%s285 + $0x30] sm:$0xe]
      %v655 = vld [vmem:[%s285 + $0x34] sm:$0xf]
      %v656 = vld [vmem:[%s285 + $0x38] sm:$0x1]
      %v657 = vld [vmem:[%s285 + $0x3c] sm:$0xe]
      %v658 = vld [vmem:[%s285 + $0x40] sm:$0xf]
      %v659 = vld [vmem:[%s285 + $0x44] sm:$0x1]
      %v660 = vld [vmem:[%s285 + $0x48] sm:$0xe]
      %v661 = vld [vmem:[%s285 + $0x4c] sm:$0xf]
      %v662 = vld [vmem:[%s285 + $0x50] sm:$0x1]
      %v663 = vld [vmem:[%s285 + $0x54] sm:$0xe]
      %v664 = vld [vmem:[%s285 + $0x58] sm:$0xf]
      %v665 = vld [vmem:[%s285 + $0x5c] sm:$0x1]
      %v666 = vld [vmem:[%s285 + $0x60] sm:$0xe]
      %v667 = vld [vmem:[%s285 + $0x64] sm:$0xf]
      %v668 = vld [vmem:[%s285 + $0x68] sm:$0x1]
      %v669 = vld [vmem:[%s285 + $0x6c] sm:$0xe]
      %v670 = vld [vmem:[%s285 + $0x70] sm:$0xf]
      %v671 = vld [vmem:[%s285 + $0x74] sm:$0x1]
      %v702 = vunpack.c.l.b16 %v642
      %v703 = vunpack.c.l.b16 %v643
      %v704 = vunpack.c.l.b16 %v644
      %v705 = vunpack.c.l.b16 %v645
      %v706 = vunpack.c.l.b16 %v646
      %v707 = vunpack.c.l.b16 %v647
      %v708 = vunpack.c.l.b16 %v648
      %v709 = vunpack.c.l.b16 %v649
      %v710 = vunpack.c.l.b16 %v650
      %v711 = vunpack.c.l.b16 %v651
      %v712 = vunpack.c.l.b16 %v652
      %v713 = vunpack.c.l.b16 %v653
      %v714 = vunpack.c.l.b16 %v654
      %v715 = vunpack.c.l.b16 %v655
      %v716 = vunpack.c.l.b16 %v656
      %v717 = vunpack.c.l.b16 %v657
      %v718 = vunpack.c.l.b16 %v658
      %v719 = vunpack.c.l.b16 %v659
      %v720 = vunpack.c.l.b16 %v660
      %v721 = vunpack.c.l.b16 %v661
      %v722 = vunpack.c.l.b16 %v662
      %v723 = vunpack.c.l.b16 %v663
      %v724 = vunpack.c.l.b16 %v664
      %v725 = vunpack.c.l.b16 %v665
      %v726 = vunpack.c.l.b16 %v666
      %v727 = vunpack.c.l.b16 %v667
      %v728 = vunpack.c.l.b16 %v668
      %v729 = vunpack.c.l.b16 %v669
      %v730 = vunpack.c.l.b16 %v670
      %v731 = vunpack.c.l.b16 %v671
      %v732 = vpack.c.b16 %v703, %v702
      %v733 = vpack.c.b16 %v704, %v704
      %v734 = vpack.c.b16 %v706, %v705
      %v735 = vpack.c.b16 %v707, %v707
      %v736 = vpack.c.b16 %v709, %v708
      %v737 = vpack.c.b16 %v710, %v710
      %v738 = vpack.c.b16 %v712, %v711
      %v739 = vpack.c.b16 %v713, %v713
      %v740 = vpack.c.b16 %v715, %v714
      %v741 = vpack.c.b16 %v716, %v716
      %v742 = vpack.c.b16 %v718, %v717
      %v743 = vpack.c.b16 %v719, %v719
      %v744 = vpack.c.b16 %v721, %v720
      %v745 = vpack.c.b16 %v722, %v722
      %v746 = vpack.c.b16 %v724, %v723
      %v747 = vpack.c.b16 %v725, %v725
      %v748 = vpack.c.b16 %v727, %v726
      %v749 = vpack.c.b16 %v728, %v728
      %v750 = vpack.c.b16 %v730, %v729
      %v751 = vpack.c.b16 %v731, %v731
      %vm752 = vcmask 1046528
      %v753 = vrot.slane %v732, 1
      %v754 = vrot.slane %v733, 1
      %v755 = vsel %vm752, %v753, %v754
      %v756 = vrot.slane %v734, 1
      %v757 = vrot.slane %v735, 1
      %v758 = vsel %vm752, %v756, %v757
      %v759 = vrot.slane %v736, 1
      %v760 = vrot.slane %v737, 1
      %v761 = vsel %vm752, %v759, %v760
      %v762 = vrot.slane %v738, 1
      %v763 = vrot.slane %v739, 1
      %v764 = vsel %vm752, %v762, %v763
      %v765 = vrot.slane %v740, 1
      %v766 = vrot.slane %v741, 1
      %v767 = vsel %vm752, %v765, %v766
      %v768 = vrot.slane %v742, 1
      %v769 = vrot.slane %v743, 1
      %v770 = vsel %vm752, %v768, %v769
      %v771 = vrot.slane %v744, 1
      %v772 = vrot.slane %v745, 1
      %v773 = vsel %vm752, %v771, %v772
      %v774 = vrot.slane %v746, 1
      %v775 = vrot.slane %v747, 1
      %v776 = vsel %vm752, %v774, %v775
      %v777 = vrot.slane %v748, 1
      %v778 = vrot.slane %v749, 1
      %v779 = vsel %vm752, %v777, %v778
      %v780 = vrot.slane %v750, 1
      %v781 = vrot.slane %v751, 1
      %v782 = vsel %vm752, %v780, %v781
      %793 = vst [vmem:[#allocation2 + $0x10] sm:$0xff] %v755
      %794 = vst [vmem:[#allocation2 + $0x58] sm:$0xff] %v758
      %795 = vst [vmem:[#allocation2 + $0xa0] sm:$0xff] %v761
      %796 = vst [vmem:[#allocation2 + $0xe8] sm:$0xff] %v764
      %797 = vst [vmem:[#allocation2 + $0x130] sm:$0xff] %v767
      %798 = vst [vmem:[#allocation2 + $0x178] sm:$0xff] %v770
      %799 = vst [vmem:[#allocation2 + $0x1c0] sm:$0xff] %v773
      %800 = vst [vmem:[#allocation2 + $0x208] sm:$0xff] %v776
      %801 = vst [vmem:[#allocation2 + $0x250] sm:$0xff] %v779
      %802 = vst [vmem:[#allocation2 + $0x298] sm:$0xff] %v782
      %s803 = scalar_lea.vmem %s285, 12
      %v804 = vld [vmem:[%s803] sm:$0xf]
      %v805 = vld [vmem:[%s803 + $0x4] sm:$0xf]
      %v806 = vld [vmem:[%s803 + $0xc] sm:$0xf]
      %v807 = vld [vmem:[%s803 + $0x10] sm:$0xf]
      %v808 = vld [vmem:[%s803 + $0x18] sm:$0xf]
      %v809 = vld [vmem:[%s803 + $0x1c] sm:$0xf]
      %v810 = vld [vmem:[%s803 + $0x24] sm:$0xf]
      %v811 = vld [vmem:[%s803 + $0x28] sm:$0xf]
      %v812 = vld [vmem:[%s803 + $0x30] sm:$0xf]
      %v813 = vld [vmem:[%s803 + $0x34] sm:$0xf]
      %v814 = vld [vmem:[%s803 + $0x3c] sm:$0xf]
      %v815 = vld [vmem:[%s803 + $0x40] sm:$0xf]
      %v816 = vld [vmem:[%s803 + $0x48] sm:$0xf]
      %v817 = vld [vmem:[%s803 + $0x4c] sm:$0xf]
      %v818 = vld [vmem:[%s803 + $0x54] sm:$0xf]
      %v819 = vld [vmem:[%s803 + $0x58] sm:$0xf]
      %v820 = vld [vmem:[%s803 + $0x60] sm:$0xf]
      %v821 = vld [vmem:[%s803 + $0x64] sm:$0xf]
      %v822 = vld [vmem:[%s803 + $0x6c] sm:$0xf]
      %v823 = vld [vmem:[%s803 + $0x70] sm:$0xf]
      %v844 = vunpack.c.l.b16 %v804
      %v845 = vunpack.c.l.b16 %v805
      %v846 = vunpack.c.l.b16 %v806
      %v847 = vunpack.c.l.b16 %v807
      %v848 = vunpack.c.l.b16 %v808
      %v849 = vunpack.c.l.b16 %v809
      %v850 = vunpack.c.l.b16 %v810
      %v851 = vunpack.c.l.b16 %v811
      %v852 = vunpack.c.l.b16 %v812
      %v853 = vunpack.c.l.b16 %v813
      %v854 = vunpack.c.l.b16 %v814
      %v855 = vunpack.c.l.b16 %v815
      %v856 = vunpack.c.l.b16 %v816
      %v857 = vunpack.c.l.b16 %v817
      %v858 = vunpack.c.l.b16 %v818
      %v859 = vunpack.c.l.b16 %v819
      %v860 = vunpack.c.l.b16 %v820
      %v861 = vunpack.c.l.b16 %v821
      %v862 = vunpack.c.l.b16 %v822
      %v863 = vunpack.c.l.b16 %v823
      %v864 = vpack.c.b16 %v845, %v844
      %v865 = vpack.c.b16 %v847, %v846
      %v866 = vpack.c.b16 %v849, %v848
      %v867 = vpack.c.b16 %v851, %v850
      %v868 = vpack.c.b16 %v853, %v852
      %v869 = vpack.c.b16 %v855, %v854
      %v870 = vpack.c.b16 %v857, %v856
      %v871 = vpack.c.b16 %v859, %v858
      %v872 = vpack.c.b16 %v861, %v860
      %v873 = vpack.c.b16 %v863, %v862
      %884 = vst [vmem:[#allocation2 + $0x18] sm:$0xff] %v864
      %885 = vst [vmem:[#allocation2 + $0x60] sm:$0xff] %v865
      %886 = vst [vmem:[#allocation2 + $0xa8] sm:$0xff] %v866
      %887 = vst [vmem:[#allocation2 + $0xf0] sm:$0xff] %v867
      %888 = vst [vmem:[#allocation2 + $0x138] sm:$0xff] %v868
      %889 = vst [vmem:[#allocation2 + $0x180] sm:$0xff] %v869
      %890 = vst [vmem:[#allocation2 + $0x1c8] sm:$0xff] %v870
      %891 = vst [vmem:[#allocation2 + $0x210] sm:$0xff] %v871
      %892 = vst [vmem:[#allocation2 + $0x258] sm:$0xff] %v872
      %893 = vst [vmem:[#allocation2 + $0x2a0] sm:$0xff] %v873
      %v894 = vld [vmem:[%s803] sm:$0xf]
      %v895 = vld [vmem:[%s803 + $0x4] sm:$0xf]
      %v896 = vld [vmem:[%s803 + $0x8] sm:$0x1]
      %v897 = vld [vmem:[%s803 + $0xc] sm:$0xf]
      %v898 = vld [vmem:[%s803 + $0x10] sm:$0xf]
      %v899 = vld [vmem:[%s803 + $0x14] sm:$0x1]
      %v900 = vld [vmem:[%s803 + $0x18] sm:$0xf]
      %v901 = vld [vmem:[%s803 + $0x1c] sm:$0xf]
      %v902 = vld [vmem:[%s803 + $0x20] sm:$0x1]
      %v903 = vld [vmem:[%s803 + $0x24] sm:$0xf]
      %v904 = vld [vmem:[%s803 + $0x28] sm:$0xf]
      %v905 = vld [vmem:[%s803 + $0x2c] sm:$0x1]
      %v906 = vld [vmem:[%s803 + $0x30] sm:$0xf]
      %v907 = vld [vmem:[%s803 + $0x34] sm:$0xf]
      %v908 = vld [vmem:[%s803 + $0x38] sm:$0x1]
      %v909 = vld [vmem:[%s803 + $0x3c] sm:$0xf]
      %v910 = vld [vmem:[%s803 + $0x40] sm:$0xf]
      %v911 = vld [vmem:[%s803 + $0x44] sm:$0x1]
      %v912 = vld [vmem:[%s803 + $0x48] sm:$0xf]
      %v913 = vld [vmem:[%s803 + $0x4c] sm:$0xf]
      %v914 = vld [vmem:[%s803 + $0x50] sm:$0x1]
      %v915 = vld [vmem:[%s803 + $0x54] sm:$0xf]
      %v916 = vld [vmem:[%s803 + $0x58] sm:$0xf]
      %v917 = vld [vmem:[%s803 + $0x5c] sm:$0x1]
      %v918 = vld [vmem:[%s803 + $0x60] sm:$0xf]
      %v919 = vld [vmem:[%s803 + $0x64] sm:$0xf]
      %v920 = vld [vmem:[%s803 + $0x68] sm:$0x1]
      %v921 = vld [vmem:[%s803 + $0x6c] sm:$0xf]
      %v922 = vld [vmem:[%s803 + $0x70] sm:$0xf]
      %v923 = vld [vmem:[%s803 + $0x74] sm:$0x1]
      %v954 = vunpack.c.l.b16 %v894
      %v955 = vunpack.c.l.b16 %v895
      %v956 = vunpack.c.l.b16 %v896
      %v957 = vunpack.c.l.b16 %v897
      %v958 = vunpack.c.l.b16 %v898
      %v959 = vunpack.c.l.b16 %v899
      %v960 = vunpack.c.l.b16 %v900
      %v961 = vunpack.c.l.b16 %v901
      %v962 = vunpack.c.l.b16 %v902
      %v963 = vunpack.c.l.b16 %v903
      %v964 = vunpack.c.l.b16 %v904
      %v965 = vunpack.c.l.b16 %v905
      %v966 = vunpack.c.l.b16 %v906
      %v967 = vunpack.c.l.b16 %v907
      %v968 = vunpack.c.l.b16 %v908
      %v969 = vunpack.c.l.b16 %v909
      %v970 = vunpack.c.l.b16 %v910
      %v971 = vunpack.c.l.b16 %v911
      %v972 = vunpack.c.l.b16 %v912
      %v973 = vunpack.c.l.b16 %v913
      %v974 = vunpack.c.l.b16 %v914
      %v975 = vunpack.c.l.b16 %v915
      %v976 = vunpack.c.l.b16 %v916
      %v977 = vunpack.c.l.b16 %v917
      %v978 = vunpack.c.l.b16 %v918
      %v979 = vunpack.c.l.b16 %v919
      %v980 = vunpack.c.l.b16 %v920
      %v981 = vunpack.c.l.b16 %v921
      %v982 = vunpack.c.l.b16 %v922
      %v983 = vunpack.c.l.b16 %v923
      %v984 = vpack.c.b16 %v955, %v954
      %v985 = vpack.c.b16 %v956, %v956
      %v986 = vpack.c.b16 %v958, %v957
      %v987 = vpack.c.b16 %v959, %v959
      %v988 = vpack.c.b16 %v961, %v960
      %v989 = vpack.c.b16 %v962, %v962
      %v990 = vpack.c.b16 %v964, %v963
      %v991 = vpack.c.b16 %v965, %v965
      %v992 = vpack.c.b16 %v967, %v966
      %v993 = vpack.c.b16 %v968, %v968
      %v994 = vpack.c.b16 %v970, %v969
      %v995 = vpack.c.b16 %v971, %v971
      %v996 = vpack.c.b16 %v973, %v972
      %v997 = vpack.c.b16 %v974, %v974
      %v998 = vpack.c.b16 %v976, %v975
      %v999 = vpack.c.b16 %v977, %v977
      %v1000 = vpack.c.b16 %v979, %v978
      %v1001 = vpack.c.b16 %v980, %v980
      %v1002 = vpack.c.b16 %v982, %v981
      %v1003 = vpack.c.b16 %v983, %v983
      %v1005 = vshrl.u32 %v984, 16
      %v1007 = vshll.u32 %v984, 16
      %v1009 = vrot.slane %v1007, 1
      %v1010 = vor.u32 %v1005, %v1009
      %v1012 = vshll.u32 %v985, 16
      %v1014 = vrot.slane %v1012, 1
      %v1015 = vsel %vm501, %v1010, %v1014
      %v1017 = vshrl.u32 %v986, 16
      %v1019 = vshll.u32 %v986, 16
      %v1021 = vrot.slane %v1019, 1
      %v1022 = vor.u32 %v1017, %v1021
      %v1024 = vshll.u32 %v987, 16
      %v1026 = vrot.slane %v1024, 1
      %v1027 = vsel %vm501, %v1022, %v1026
      %v1029 = vshrl.u32 %v988, 16
      %v1031 = vshll.u32 %v988, 16
      %v1033 = vrot.slane %v1031, 1
      %v1034 = vor.u32 %v1029, %v1033
      %v1036 = vshll.u32 %v989, 16
      %v1038 = vrot.slane %v1036, 1
      %v1039 = vsel %vm501, %v1034, %v1038
      %v1041 = vshrl.u32 %v990, 16
      %v1043 = vshll.u32 %v990, 16
      %v1045 = vrot.slane %v1043, 1
      %v1046 = vor.u32 %v1041, %v1045
      %v1048 = vshll.u32 %v991, 16
      %v1050 = vrot.slane %v1048, 1
      %v1051 = vsel %vm501, %v1046, %v1050
      %v1053 = vshrl.u32 %v992, 16
      %v1055 = vshll.u32 %v992, 16
      %v1057 = vrot.slane %v1055, 1
      %v1058 = vor.u32 %v1053, %v1057
      %v1060 = vshll.u32 %v993, 16
      %v1062 = vrot.slane %v1060, 1
      %v1063 = vsel %vm501, %v1058, %v1062
      %v1065 = vshrl.u32 %v994, 16
      %v1067 = vshll.u32 %v994, 16
      %v1069 = vrot.slane %v1067, 1
      %v1070 = vor.u32 %v1065, %v1069
      %v1072 = vshll.u32 %v995, 16
      %v1074 = vrot.slane %v1072, 1
      %v1075 = vsel %vm501, %v1070, %v1074
      %v1077 = vshrl.u32 %v996, 16
      %v1079 = vshll.u32 %v996, 16
      %v1081 = vrot.slane %v1079, 1
      %v1082 = vor.u32 %v1077, %v1081
      %v1084 = vshll.u32 %v997, 16
      %v1086 = vrot.slane %v1084, 1
      %v1087 = vsel %vm501, %v1082, %v1086
      %v1089 = vshrl.u32 %v998, 16
      %v1091 = vshll.u32 %v998, 16
      %v1093 = vrot.slane %v1091, 1
      %v1094 = vor.u32 %v1089, %v1093
      %v1096 = vshll.u32 %v999, 16
      %v1098 = vrot.slane %v1096, 1
      %v1099 = vsel %vm501, %v1094, %v1098
      %v1101 = vshrl.u32 %v1000, 16
      %v1103 = vshll.u32 %v1000, 16
      %v1105 = vrot.slane %v1103, 1
      %v1106 = vor.u32 %v1101, %v1105
      %v1108 = vshll.u32 %v1001, 16
      %v1110 = vrot.slane %v1108, 1
      %v1111 = vsel %vm501, %v1106, %v1110
      %v1113 = vshrl.u32 %v1002, 16
      %v1115 = vshll.u32 %v1002, 16
      %v1117 = vrot.slane %v1115, 1
      %v1118 = vor.u32 %v1113, %v1117
      %v1120 = vshll.u32 %v1003, 16
      %v1122 = vrot.slane %v1120, 1
      %v1123 = vsel %vm501, %v1118, %v1122
      %1134 = vst [vmem:[#allocation2 + $0x20] sm:$0xff] %v1015
      %1135 = vst [vmem:[#allocation2 + $0x68] sm:$0xff] %v1027
      %1136 = vst [vmem:[#allocation2 + $0xb0] sm:$0xff] %v1039
      %1137 = vst [vmem:[#allocation2 + $0xf8] sm:$0xff] %v1051
      %1138 = vst [vmem:[#allocation2 + $0x140] sm:$0xff] %v1063
      %1139 = vst [vmem:[#allocation2 + $0x188] sm:$0xff] %v1075
      %1140 = vst [vmem:[#allocation2 + $0x1d0] sm:$0xff] %v1087
      %1141 = vst [vmem:[#allocation2 + $0x218] sm:$0xff] %v1099
      %1142 = vst [vmem:[#allocation2 + $0x260] sm:$0xff] %v1111
      %1143 = vst [vmem:[#allocation2 + $0x2a8] sm:$0xff] %v1123
      %v1144 = vld [vmem:[%s803] sm:$0xe]
      %v1145 = vld [vmem:[%s803 + $0x4] sm:$0xf]
      %v1146 = vld [vmem:[%s803 + $0x8] sm:$0x1]
      %v1147 = vld [vmem:[%s803 + $0xc] sm:$0xe]
      %v1148 = vld [vmem:[%s803 + $0x10] sm:$0xf]
      %v1149 = vld [vmem:[%s803 + $0x14] sm:$0x1]
      %v1150 = vld [vmem:[%s803 + $0x18] sm:$0xe]
      %v1151 = vld [vmem:[%s803 + $0x1c] sm:$0xf]
      %v1152 = vld [vmem:[%s803 + $0x20] sm:$0x1]
      %v1153 = vld [vmem:[%s803 + $0x24] sm:$0xe]
      %v1154 = vld [vmem:[%s803 + $0x28] sm:$0xf]
      %v1155 = vld [vmem:[%s803 + $0x2c] sm:$0x1]
      %v1156 = vld [vmem:[%s803 + $0x30] sm:$0xe]
      %v1157 = vld [vmem:[%s803 + $0x34] sm:$0xf]
      %v1158 = vld [vmem:[%s803 + $0x38] sm:$0x1]
      %v1159 = vld [vmem:[%s803 + $0x3c] sm:$0xe]
      %v1160 = vld [vmem:[%s803 + $0x40] sm:$0xf]
      %v1161 = vld [vmem:[%s803 + $0x44] sm:$0x1]
      %v1162 = vld [vmem:[%s803 + $0x48] sm:$0xe]
      %v1163 = vld [vmem:[%s803 + $0x4c] sm:$0xf]
      %v1164 = vld [vmem:[%s803 + $0x50] sm:$0x1]
      %v1165 = vld [vmem:[%s803 + $0x54] sm:$0xe]
      %v1166 = vld [vmem:[%s803 + $0x58] sm:$0xf]
      %v1167 = vld [vmem:[%s803 + $0x5c] sm:$0x1]
      %v1168 = vld [vmem:[%s803 + $0x60] sm:$0xe]
      %v1169 = vld [vmem:[%s803 + $0x64] sm:$0xf]
      %v1170 = vld [vmem:[%s803 + $0x68] sm:$0x1]
      %v1171 = vld [vmem:[%s803 + $0x6c] sm:$0xe]
      %v1172 = vld [vmem:[%s803 + $0x70] sm:$0xf]
      %v1173 = vld [vmem:[%s803 + $0x74] sm:$0x1]
      %v1204 = vunpack.c.l.b16 %v1144
      %v1205 = vunpack.c.l.b16 %v1145
      %v1206 = vunpack.c.l.b16 %v1146
      %v1207 = vunpack.c.l.b16 %v1147
      %v1208 = vunpack.c.l.b16 %v1148
      %v1209 = vunpack.c.l.b16 %v1149
      %v1210 = vunpack.c.l.b16 %v1150
      %v1211 = vunpack.c.l.b16 %v1151
      %v1212 = vunpack.c.l.b16 %v1152
      %v1213 = vunpack.c.l.b16 %v1153
      %v1214 = vunpack.c.l.b16 %v1154
      %v1215 = vunpack.c.l.b16 %v1155
      %v1216 = vunpack.c.l.b16 %v1156
      %v1217 = vunpack.c.l.b16 %v1157
      %v1218 = vunpack.c.l.b16 %v1158
      %v1219 = vunpack.c.l.b16 %v1159
      %v1220 = vunpack.c.l.b16 %v1160
      %v1221 = vunpack.c.l.b16 %v1161
      %v1222 = vunpack.c.l.b16 %v1162
      %v1223 = vunpack.c.l.b16 %v1163
      %v1224 = vunpack.c.l.b16 %v1164
      %v1225 = vunpack.c.l.b16 %v1165
      %v1226 = vunpack.c.l.b16 %v1166
      %v1227 = vunpack.c.l.b16 %v1167
      %v1228 = vunpack.c.l.b16 %v1168
      %v1229 = vunpack.c.l.b16 %v1169
      %v1230 = vunpack.c.l.b16 %v1170
      %v1231 = vunpack.c.l.b16 %v1171
      %v1232 = vunpack.c.l.b16 %v1172
      %v1233 = vunpack.c.l.b16 %v1173
      %v1234 = vpack.c.b16 %v1205, %v1204
      %v1235 = vpack.c.b16 %v1206, %v1206
      %v1236 = vpack.c.b16 %v1208, %v1207
      %v1237 = vpack.c.b16 %v1209, %v1209
      %v1238 = vpack.c.b16 %v1211, %v1210
      %v1239 = vpack.c.b16 %v1212, %v1212
      %v1240 = vpack.c.b16 %v1214, %v1213
      %v1241 = vpack.c.b16 %v1215, %v1215
      %v1242 = vpack.c.b16 %v1217, %v1216
      %v1243 = vpack.c.b16 %v1218, %v1218
      %v1244 = vpack.c.b16 %v1220, %v1219
      %v1245 = vpack.c.b16 %v1221, %v1221
      %v1246 = vpack.c.b16 %v1223, %v1222
      %v1247 = vpack.c.b16 %v1224, %v1224
      %v1248 = vpack.c.b16 %v1226, %v1225
      %v1249 = vpack.c.b16 %v1227, %v1227
      %v1250 = vpack.c.b16 %v1229, %v1228
      %v1251 = vpack.c.b16 %v1230, %v1230
      %v1252 = vpack.c.b16 %v1232, %v1231
      %v1253 = vpack.c.b16 %v1233, %v1233
      %v1254 = vrot.slane %v1234, 1
      %v1255 = vrot.slane %v1235, 1
      %v1256 = vsel %vm752, %v1254, %v1255
      %v1257 = vrot.slane %v1236, 1
      %v1258 = vrot.slane %v1237, 1
      %v1259 = vsel %vm752, %v1257, %v1258
      %v1260 = vrot.slane %v1238, 1
      %v1261 = vrot.slane %v1239, 1
      %v1262 = vsel %vm752, %v1260, %v1261
      %v1263 = vrot.slane %v1240, 1
      %v1264 = vrot.slane %v1241, 1
      %v1265 = vsel %vm752, %v1263, %v1264
      %v1266 = vrot.slane %v1242, 1
      %v1267 = vrot.slane %v1243, 1
      %v1268 = vsel %vm752, %v1266, %v1267
      %v1269 = vrot.slane %v1244, 1
      %v1270 = vrot.slane %v1245, 1
      %v1271 = vsel %vm752, %v1269, %v1270
      %v1272 = vrot.slane %v1246, 1
      %v1273 = vrot.slane %v1247, 1
      %v1274 = vsel %vm752, %v1272, %v1273
      %v1275 = vrot.slane %v1248, 1
      %v1276 = vrot.slane %v1249, 1
      %v1277 = vsel %vm752, %v1275, %v1276
      %v1278 = vrot.slane %v1250, 1
      %v1279 = vrot.slane %v1251, 1
      %v1280 = vsel %vm752, %v1278, %v1279
      %v1281 = vrot.slane %v1252, 1
      %v1282 = vrot.slane %v1253, 1
      %v1283 = vsel %vm752, %v1281, %v1282
      %1294 = vst [vmem:[#allocation2 + $0x28] sm:$0xff] %v1256
      %1295 = vst [vmem:[#allocation2 + $0x70] sm:$0xff] %v1259
      %1296 = vst [vmem:[#allocation2 + $0xb8] sm:$0xff] %v1262
      %1297 = vst [vmem:[#allocation2 + $0x100] sm:$0xff] %v1265
      %1298 = vst [vmem:[#allocation2 + $0x148] sm:$0xff] %v1268
      %1299 = vst [vmem:[#allocation2 + $0x190] sm:$0xff] %v1271
      %1300 = vst [vmem:[#allocation2 + $0x1d8] sm:$0xff] %v1274
      %1301 = vst [vmem:[#allocation2 + $0x220] sm:$0xff] %v1277
      %1302 = vst [vmem:[#allocation2 + $0x268] sm:$0xff] %v1280
      %1303 = vst [vmem:[#allocation2 + $0x2b0] sm:$0xff] %v1283
      %s1304 = scalar_lea.vmem %s285, 24
      %v1305 = vld [vmem:[%s1304] sm:$0xf]
      %v1306 = vld [vmem:[%s1304 + $0x4] sm:$0xf]
      %v1307 = vld [vmem:[%s1304 + $0xc] sm:$0xf]
      %v1308 = vld [vmem:[%s1304 + $0x10] sm:$0xf]
      %v1309 = vld [vmem:[%s1304 + $0x18] sm:$0xf]
      %v1310 = vld [vmem:[%s1304 + $0x1c] sm:$0xf]
      %v1311 = vld [vmem:[%s1304 + $0x24] sm:$0xf]
      %v1312 = vld [vmem:[%s1304 + $0x28] sm:$0xf]
      %v1313 = vld [vmem:[%s1304 + $0x30] sm:$0xf]
      %v1314 = vld [vmem:[%s1304 + $0x34] sm:$0xf]
      %v1315 = vld [vmem:[%s1304 + $0x3c] sm:$0xf]
      %v1316 = vld [vmem:[%s1304 + $0x40] sm:$0xf]
      %v1317 = vld [vmem:[%s1304 + $0x48] sm:$0xf]
      %v1318 = vld [vmem:[%s1304 + $0x4c] sm:$0xf]
      %v1319 = vld [vmem:[%s1304 + $0x54] sm:$0xf]
      %v1320 = vld [vmem:[%s1304 + $0x58] sm:$0xf]
      %v1321 = vld [vmem:[%s1304 + $0x60] sm:$0xf]
      %v1322 = vld [vmem:[%s1304 + $0x64] sm:$0xf]
      %v1323 = vld [vmem:[%s1304 + $0x6c] sm:$0xf]
      %v1324 = vld [vmem:[%s1304 + $0x70] sm:$0xf]
      %v1345 = vunpack.c.l.b16 %v1305
      %v1346 = vunpack.c.l.b16 %v1306
      %v1347 = vunpack.c.l.b16 %v1307
      %v1348 = vunpack.c.l.b16 %v1308
      %v1349 = vunpack.c.l.b16 %v1309
      %v1350 = vunpack.c.l.b16 %v1310
      %v1351 = vunpack.c.l.b16 %v1311
      %v1352 = vunpack.c.l.b16 %v1312
      %v1353 = vunpack.c.l.b16 %v1313
      %v1354 = vunpack.c.l.b16 %v1314
      %v1355 = vunpack.c.l.b16 %v1315
      %v1356 = vunpack.c.l.b16 %v1316
      %v1357 = vunpack.c.l.b16 %v1317
      %v1358 = vunpack.c.l.b16 %v1318
      %v1359 = vunpack.c.l.b16 %v1319
      %v1360 = vunpack.c.l.b16 %v1320
      %v1361 = vunpack.c.l.b16 %v1321
      %v1362 = vunpack.c.l.b16 %v1322
      %v1363 = vunpack.c.l.b16 %v1323
      %v1364 = vunpack.c.l.b16 %v1324
      %v1365 = vpack.c.b16 %v1346, %v1345
      %v1366 = vpack.c.b16 %v1348, %v1347
      %v1367 = vpack.c.b16 %v1350, %v1349
      %v1368 = vpack.c.b16 %v1352, %v1351
      %v1369 = vpack.c.b16 %v1354, %v1353
      %v1370 = vpack.c.b16 %v1356, %v1355
      %v1371 = vpack.c.b16 %v1358, %v1357
      %v1372 = vpack.c.b16 %v1360, %v1359
      %v1373 = vpack.c.b16 %v1362, %v1361
      %v1374 = vpack.c.b16 %v1364, %v1363
      %1385 = vst [vmem:[#allocation2 + $0x30] sm:$0xff] %v1365
      %1386 = vst [vmem:[#allocation2 + $0x78] sm:$0xff] %v1366
      %1387 = vst [vmem:[#allocation2 + $0xc0] sm:$0xff] %v1367
      %1388 = vst [vmem:[#allocation2 + $0x108] sm:$0xff] %v1368
      %1389 = vst [vmem:[#allocation2 + $0x150] sm:$0xff] %v1369
      %1390 = vst [vmem:[#allocation2 + $0x198] sm:$0xff] %v1370
      %1391 = vst [vmem:[#allocation2 + $0x1e0] sm:$0xff] %v1371
      %1392 = vst [vmem:[#allocation2 + $0x228] sm:$0xff] %v1372
      %1393 = vst [vmem:[#allocation2 + $0x270] sm:$0xff] %v1373
      %1394 = vst [vmem:[#allocation2 + $0x2b8] sm:$0xff] %v1374
      %v1395 = vld [vmem:[%s1304] sm:$0xf]
      %v1396 = vld [vmem:[%s1304 + $0x4] sm:$0xf]
      %v1397 = vld [vmem:[%s1304 + $0x8] sm:$0x1]
      %v1398 = vld [vmem:[%s1304 + $0xc] sm:$0xf]
      %v1399 = vld [vmem:[%s1304 + $0x10] sm:$0xf]
      %v1400 = vld [vmem:[%s1304 + $0x14] sm:$0x1]
      %v1401 = vld [vmem:[%s1304 + $0x18] sm:$0xf]
      %v1402 = vld [vmem:[%s1304 + $0x1c] sm:$0xf]
      %v1403 = vld [vmem:[%s1304 + $0x20] sm:$0x1]
      %v1404 = vld [vmem:[%s1304 + $0x24] sm:$0xf]
      %v1405 = vld [vmem:[%s1304 + $0x28] sm:$0xf]
      %v1406 = vld [vmem:[%s1304 + $0x2c] sm:$0x1]
      %v1407 = vld [vmem:[%s1304 + $0x30] sm:$0xf]
      %v1408 = vld [vmem:[%s1304 + $0x34] sm:$0xf]
      %v1409 = vld [vmem:[%s1304 + $0x38] sm:$0x1]
      %v1410 = vld [vmem:[%s1304 + $0x3c] sm:$0xf]
      %v1411 = vld [vmem:[%s1304 + $0x40] sm:$0xf]
      %v1412 = vld [vmem:[%s1304 + $0x44] sm:$0x1]
      %v1413 = vld [vmem:[%s1304 + $0x48] sm:$0xf]
      %v1414 = vld [vmem:[%s1304 + $0x4c] sm:$0xf]
      %v1415 = vld [vmem:[%s1304 + $0x50] sm:$0x1]
      %v1416 = vld [vmem:[%s1304 + $0x54] sm:$0xf]
      %v1417 = vld [vmem:[%s1304 + $0x58] sm:$0xf]
      %v1418 = vld [vmem:[%s1304 + $0x5c] sm:$0x1]
      %v1419 = vld [vmem:[%s1304 + $0x60] sm:$0xf]
      %v1420 = vld [vmem:[%s1304 + $0x64] sm:$0xf]
      %v1421 = vld [vmem:[%s1304 + $0x68] sm:$0x1]
      %v1422 = vld [vmem:[%s1304 + $0x6c] sm:$0xf]
      %v1423 = vld [vmem:[%s1304 + $0x70] sm:$0xf]
      %v1424 = vld [vmem:[%s1304 + $0x74] sm:$0x1]
      %v1455 = vunpack.c.l.b16 %v1395
      %v1456 = vunpack.c.l.b16 %v1396
      %v1457 = vunpack.c.l.b16 %v1397
      %v1458 = vunpack.c.l.b16 %v1398
      %v1459 = vunpack.c.l.b16 %v1399
      %v1460 = vunpack.c.l.b16 %v1400
      %v1461 = vunpack.c.l.b16 %v1401
      %v1462 = vunpack.c.l.b16 %v1402
      %v1463 = vunpack.c.l.b16 %v1403
      %v1464 = vunpack.c.l.b16 %v1404
      %v1465 = vunpack.c.l.b16 %v1405
      %v1466 = vunpack.c.l.b16 %v1406
      %v1467 = vunpack.c.l.b16 %v1407
      %v1468 = vunpack.c.l.b16 %v1408
      %v1469 = vunpack.c.l.b16 %v1409
      %v1470 = vunpack.c.l.b16 %v1410
      %v1471 = vunpack.c.l.b16 %v1411
      %v1472 = vunpack.c.l.b16 %v1412
      %v1473 = vunpack.c.l.b16 %v1413
      %v1474 = vunpack.c.l.b16 %v1414
      %v1475 = vunpack.c.l.b16 %v1415
      %v1476 = vunpack.c.l.b16 %v1416
      %v1477 = vunpack.c.l.b16 %v1417
      %v1478 = vunpack.c.l.b16 %v1418
      %v1479 = vunpack.c.l.b16 %v1419
      %v1480 = vunpack.c.l.b16 %v1420
      %v1481 = vunpack.c.l.b16 %v1421
      %v1482 = vunpack.c.l.b16 %v1422
      %v1483 = vunpack.c.l.b16 %v1423
      %v1484 = vunpack.c.l.b16 %v1424
      %v1485 = vpack.c.b16 %v1456, %v1455
      %v1486 = vpack.c.b16 %v1457, %v1457
      %v1487 = vpack.c.b16 %v1459, %v1458
      %v1488 = vpack.c.b16 %v1460, %v1460
      %v1489 = vpack.c.b16 %v1462, %v1461
      %v1490 = vpack.c.b16 %v1463, %v1463
      %v1491 = vpack.c.b16 %v1465, %v1464
      %v1492 = vpack.c.b16 %v1466, %v1466
      %v1493 = vpack.c.b16 %v1468, %v1467
      %v1494 = vpack.c.b16 %v1469, %v1469
      %v1495 = vpack.c.b16 %v1471, %v1470
      %v1496 = vpack.c.b16 %v1472, %v1472
      %v1497 = vpack.c.b16 %v1474, %v1473
      %v1498 = vpack.c.b16 %v1475, %v1475
      %v1499 = vpack.c.b16 %v1477, %v1476
      %v1500 = vpack.c.b16 %v1478, %v1478
      %v1501 = vpack.c.b16 %v1480, %v1479
      %v1502 = vpack.c.b16 %v1481, %v1481
      %v1503 = vpack.c.b16 %v1483, %v1482
      %v1504 = vpack.c.b16 %v1484, %v1484
      %v1506 = vshrl.u32 %v1485, 16
      %v1508 = vshll.u32 %v1485, 16
      %v1510 = vrot.slane %v1508, 1
      %v1511 = vor.u32 %v1506, %v1510
      %v1513 = vshll.u32 %v1486, 16
      %v1515 = vrot.slane %v1513, 1
      %v1516 = vsel %vm501, %v1511, %v1515
      %v1518 = vshrl.u32 %v1487, 16
      %v1520 = vshll.u32 %v1487, 16
      %v1522 = vrot.slane %v1520, 1
      %v1523 = vor.u32 %v1518, %v1522
      %v1525 = vshll.u32 %v1488, 16
      %v1527 = vrot.slane %v1525, 1
      %v1528 = vsel %vm501, %v1523, %v1527
      %v1530 = vshrl.u32 %v1489, 16
      %v1532 = vshll.u32 %v1489, 16
      %v1534 = vrot.slane %v1532, 1
      %v1535 = vor.u32 %v1530, %v1534
      %v1537 = vshll.u32 %v1490, 16
      %v1539 = vrot.slane %v1537, 1
      %v1540 = vsel %vm501, %v1535, %v1539
      %v1542 = vshrl.u32 %v1491, 16
      %v1544 = vshll.u32 %v1491, 16
      %v1546 = vrot.slane %v1544, 1
      %v1547 = vor.u32 %v1542, %v1546
      %v1549 = vshll.u32 %v1492, 16
      %v1551 = vrot.slane %v1549, 1
      %v1552 = vsel %vm501, %v1547, %v1551
      %v1554 = vshrl.u32 %v1493, 16
      %v1556 = vshll.u32 %v1493, 16
      %v1558 = vrot.slane %v1556, 1
      %v1559 = vor.u32 %v1554, %v1558
      %v1561 = vshll.u32 %v1494, 16
      %v1563 = vrot.slane %v1561, 1
      %v1564 = vsel %vm501, %v1559, %v1563
      %v1566 = vshrl.u32 %v1495, 16
      %v1568 = vshll.u32 %v1495, 16
      %v1570 = vrot.slane %v1568, 1
      %v1571 = vor.u32 %v1566, %v1570
      %v1573 = vshll.u32 %v1496, 16
      %v1575 = vrot.slane %v1573, 1
      %v1576 = vsel %vm501, %v1571, %v1575
      %v1578 = vshrl.u32 %v1497, 16
      %v1580 = vshll.u32 %v1497, 16
      %v1582 = vrot.slane %v1580, 1
      %v1583 = vor.u32 %v1578, %v1582
      %v1585 = vshll.u32 %v1498, 16
      %v1587 = vrot.slane %v1585, 1
      %v1588 = vsel %vm501, %v1583, %v1587
      %v1590 = vshrl.u32 %v1499, 16
      %v1592 = vshll.u32 %v1499, 16
      %v1594 = vrot.slane %v1592, 1
      %v1595 = vor.u32 %v1590, %v1594
      %v1597 = vshll.u32 %v1500, 16
      %v1599 = vrot.slane %v1597, 1
      %v1600 = vsel %vm501, %v1595, %v1599
      %v1602 = vshrl.u32 %v1501, 16
      %v1604 = vshll.u32 %v1501, 16
      %v1606 = vrot.slane %v1604, 1
      %v1607 = vor.u32 %v1602, %v1606
      %v1609 = vshll.u32 %v1502, 16
      %v1611 = vrot.slane %v1609, 1
      %v1612 = vsel %vm501, %v1607, %v1611
      %v1614 = vshrl.u32 %v1503, 16
      %v1616 = vshll.u32 %v1503, 16
      %v1618 = vrot.slane %v1616, 1
      %v1619 = vor.u32 %v1614, %v1618
      %v1621 = vshll.u32 %v1504, 16
      %v1623 = vrot.slane %v1621, 1
      %v1624 = vsel %vm501, %v1619, %v1623
      %1635 = vst [vmem:[#allocation2 + $0x38] sm:$0xff] %v1516
      %1636 = vst [vmem:[#allocation2 + $0x80] sm:$0xff] %v1528
      %1637 = vst [vmem:[#allocation2 + $0xc8] sm:$0xff] %v1540
      %1638 = vst [vmem:[#allocation2 + $0x110] sm:$0xff] %v1552
      %1639 = vst [vmem:[#allocation2 + $0x158] sm:$0xff] %v1564
      %1640 = vst [vmem:[#allocation2 + $0x1a0] sm:$0xff] %v1576
      %1641 = vst [vmem:[#allocation2 + $0x1e8] sm:$0xff] %v1588
      %1642 = vst [vmem:[#allocation2 + $0x230] sm:$0xff] %v1600
      %1643 = vst [vmem:[#allocation2 + $0x278] sm:$0xff] %v1612
      %1644 = vst [vmem:[#allocation2 + $0x2c0] sm:$0xff] %v1624
      %v1645 = vld [vmem:[%s1304] sm:$0xe]
      %v1646 = vld [vmem:[%s1304 + $0x4] sm:$0xf]
      %v1647 = vld [vmem:[%s1304 + $0x8] sm:$0x1]
      %v1648 = vld [vmem:[%s1304 + $0xc] sm:$0xe]
      %v1649 = vld [vmem:[%s1304 + $0x10] sm:$0xf]
      %v1650 = vld [vmem:[%s1304 + $0x14] sm:$0x1]
      %v1651 = vld [vmem:[%s1304 + $0x18] sm:$0xe]
      %v1652 = vld [vmem:[%s1304 + $0x1c] sm:$0xf]
      %v1653 = vld [vmem:[%s1304 + $0x20] sm:$0x1]
      %v1654 = vld [vmem:[%s1304 + $0x24] sm:$0xe]
      %v1655 = vld [vmem:[%s1304 + $0x28] sm:$0xf]
      %v1656 = vld [vmem:[%s1304 + $0x2c] sm:$0x1]
      %v1657 = vld [vmem:[%s1304 + $0x30] sm:$0xe]
      %v1658 = vld [vmem:[%s1304 + $0x34] sm:$0xf]
      %v1659 = vld [vmem:[%s1304 + $0x38] sm:$0x1]
      %v1660 = vld [vmem:[%s1304 + $0x3c] sm:$0xe]
      %v1661 = vld [vmem:[%s1304 + $0x40] sm:$0xf]
      %v1662 = vld [vmem:[%s1304 + $0x44] sm:$0x1]
      %v1663 = vld [vmem:[%s1304 + $0x48] sm:$0xe]
      %v1664 = vld [vmem:[%s1304 + $0x4c] sm:$0xf]
      %v1665 = vld [vmem:[%s1304 + $0x50] sm:$0x1]
      %v1666 = vld [vmem:[%s1304 + $0x54] sm:$0xe]
      %v1667 = vld [vmem:[%s1304 + $0x58] sm:$0xf]
      %v1668 = vld [vmem:[%s1304 + $0x5c] sm:$0x1]
      %v1669 = vld [vmem:[%s1304 + $0x60] sm:$0xe]
      %v1670 = vld [vmem:[%s1304 + $0x64] sm:$0xf]
      %v1671 = vld [vmem:[%s1304 + $0x68] sm:$0x1]
      %v1672 = vld [vmem:[%s1304 + $0x6c] sm:$0xe]
      %v1673 = vld [vmem:[%s1304 + $0x70] sm:$0xf]
      %v1674 = vld [vmem:[%s1304 + $0x74] sm:$0x1]
      %v1705 = vunpack.c.l.b16 %v1645
      %v1706 = vunpack.c.l.b16 %v1646
      %v1707 = vunpack.c.l.b16 %v1647
      %v1708 = vunpack.c.l.b16 %v1648
      %v1709 = vunpack.c.l.b16 %v1649
      %v1710 = vunpack.c.l.b16 %v1650
      %v1711 = vunpack.c.l.b16 %v1651
      %v1712 = vunpack.c.l.b16 %v1652
      %v1713 = vunpack.c.l.b16 %v1653
      %v1714 = vunpack.c.l.b16 %v1654
      %v1715 = vunpack.c.l.b16 %v1655
      %v1716 = vunpack.c.l.b16 %v1656
      %v1717 = vunpack.c.l.b16 %v1657
      %v1718 = vunpack.c.l.b16 %v1658
      %v1719 = vunpack.c.l.b16 %v1659
      %v1720 = vunpack.c.l.b16 %v1660
      %v1721 = vunpack.c.l.b16 %v1661
      %v1722 = vunpack.c.l.b16 %v1662
      %v1723 = vunpack.c.l.b16 %v1663
      %v1724 = vunpack.c.l.b16 %v1664
      %v1725 = vunpack.c.l.b16 %v1665
      %v1726 = vunpack.c.l.b16 %v1666
      %v1727 = vunpack.c.l.b16 %v1667
      %v1728 = vunpack.c.l.b16 %v1668
      %v1729 = vunpack.c.l.b16 %v1669
      %v1730 = vunpack.c.l.b16 %v1670
      %v1731 = vunpack.c.l.b16 %v1671
      %v1732 = vunpack.c.l.b16 %v1672
      %v1733 = vunpack.c.l.b16 %v1673
      %v1734 = vunpack.c.l.b16 %v1674
      %v1735 = vpack.c.b16 %v1706, %v1705
      %v1736 = vpack.c.b16 %v1707, %v1707
      %v1737 = vpack.c.b16 %v1709, %v1708
      %v1738 = vpack.c.b16 %v1710, %v1710
      %v1739 = vpack.c.b16 %v1712, %v1711
      %v1740 = vpack.c.b16 %v1713, %v1713
      %v1741 = vpack.c.b16 %v1715, %v1714
      %v1742 = vpack.c.b16 %v1716, %v1716
      %v1743 = vpack.c.b16 %v1718, %v1717
      %v1744 = vpack.c.b16 %v1719, %v1719
      %v1745 = vpack.c.b16 %v1721, %v1720
      %v1746 = vpack.c.b16 %v1722, %v1722
      %v1747 = vpack.c.b16 %v1724, %v1723
      %v1748 = vpack.c.b16 %v1725, %v1725
      %v1749 = vpack.c.b16 %v1727, %v1726
      %v1750 = vpack.c.b16 %v1728, %v1728
      %v1751 = vpack.c.b16 %v1730, %v1729
      %v1752 = vpack.c.b16 %v1731, %v1731
      %v1753 = vpack.c.b16 %v1733, %v1732
      %v1754 = vpack.c.b16 %v1734, %v1734
      %v1755 = vrot.slane %v1735, 1
      %v1756 = vrot.slane %v1736, 1
      %v1757 = vsel %vm752, %v1755, %v1756
      %v1758 = vrot.slane %v1737, 1
      %v1759 = vrot.slane %v1738, 1
      %v1760 = vsel %vm752, %v1758, %v1759
      %v1761 = vrot.slane %v1739, 1
      %v1762 = vrot.slane %v1740, 1
      %v1763 = vsel %vm752, %v1761, %v1762
      %v1764 = vrot.slane %v1741, 1
      %v1765 = vrot.slane %v1742, 1
      %v1766 = vsel %vm752, %v1764, %v1765
      %v1767 = vrot.slane %v1743, 1
      %v1768 = vrot.slane %v1744, 1
      %v1769 = vsel %vm752, %v1767, %v1768
      %v1770 = vrot.slane %v1745, 1
      %v1771 = vrot.slane %v1746, 1
      %v1772 = vsel %vm752, %v1770, %v1771
      %v1773 = vrot.slane %v1747, 1
      %v1774 = vrot.slane %v1748, 1
      %v1775 = vsel %vm752, %v1773, %v1774
      %v1776 = vrot.slane %v1749, 1
      %v1777 = vrot.slane %v1750, 1
      %v1778 = vsel %vm752, %v1776, %v1777
      %v1779 = vrot.slane %v1751, 1
      %v1780 = vrot.slane %v1752, 1
      %v1781 = vsel %vm752, %v1779, %v1780
      %v1782 = vrot.slane %v1753, 1
      %v1783 = vrot.slane %v1754, 1
      %v1784 = vsel %vm752, %v1782, %v1783
      %1795 = vst [vmem:[#allocation2 + $0x40] sm:$0xff] %v1757
      %1796 = vst [vmem:[#allocation2 + $0x88] sm:$0xff] %v1760
      %1797 = vst [vmem:[#allocation2 + $0xd0] sm:$0xff] %v1763
      %1798 = vst [vmem:[#allocation2 + $0x118] sm:$0xff] %v1766
      %1799 = vst [vmem:[#allocation2 + $0x160] sm:$0xff] %v1769
      %1800 = vst [vmem:[#allocation2 + $0x1a8] sm:$0xff] %v1772
      %1801 = vst [vmem:[#allocation2 + $0x1f0] sm:$0xff] %v1775
      %1802 = vst [vmem:[#allocation2 + $0x238] sm:$0xff] %v1778
      %1803 = vst [vmem:[#allocation2 + $0x280] sm:$0xff] %v1781
      %1804 = vst [vmem:[#allocation2 + $0x2c8] sm:$0xff] %v1784
      %v1805 = vld [vmem:[#allocation2] sm:$0xff]
      %v1806 = vld [vmem:[#allocation2 + $0x8] sm:$0xff]
      %v1807 = vld [vmem:[#allocation2 + $0x10] sm:$0xff]
      %v1808 = vld [vmem:[#allocation2 + $0x18] sm:$0xff]
      %v1809 = vld [vmem:[#allocation2 + $0x20] sm:$0xff]
      %v1810 = vld [vmem:[#allocation2 + $0x28] sm:$0xff]
      %v1811 = vld [vmem:[#allocation2 + $0x30] sm:$0xff]
      %v1812 = vld [vmem:[#allocation2 + $0x38] sm:$0xff]
      %v1813 = vld [vmem:[#allocation2 + $0x40] sm:$0xff]
      %v1814 = vld [vmem:[#allocation2 + $0x48] sm:$0xff]
      %v1815 = vld [vmem:[#allocation2 + $0x50] sm:$0xff]
      %v1816 = vld [vmem:[#allocation2 + $0x58] sm:$0xff]
      %v1817 = vld [vmem:[#allocation2 + $0x60] sm:$0xff]
      %v1818 = vld [vmem:[#allocation2 + $0x68] sm:$0xff]
      %v1819 = vld [vmem:[#allocation2 + $0x70] sm:$0xff]
      %v1820 = vld [vmem:[#allocation2 + $0x78] sm:$0xff]
      %v1821 = vld [vmem:[#allocation2 + $0x80] sm:$0xff]
      %v1822 = vld [vmem:[#allocation2 + $0x88] sm:$0xff]
      %v1823 = vld [vmem:[#allocation2 + $0x90] sm:$0xff]
      %v1824 = vld [vmem:[#allocation2 + $0x98] sm:$0xff]
      %v1825 = vld [vmem:[#allocation2 + $0xa0] sm:$0xff]
      %v1826 = vld [vmem:[#allocation2 + $0xa8] sm:$0xff]
      %v1827 = vld [vmem:[#allocation2 + $0xb0] sm:$0xff]
      %v1828 = vld [vmem:[#allocation2 + $0xb8] sm:$0xff]
      %v1829 = vld [vmem:[#allocation2 + $0xc0] sm:$0xff]
      %v1830 = vld [vmem:[#allocation2 + $0xc8] sm:$0xff]
      %v1831 = vld [vmem:[#allocation2 + $0xd0] sm:$0xff]
      %v1832 = vld [vmem:[#allocation2 + $0xd8] sm:$0xff]
      %v1833 = vld [vmem:[#allocation2 + $0xe0] sm:$0xff]
      %v1834 = vld [vmem:[#allocation2 + $0xe8] sm:$0xff]
      %v1835 = vld [vmem:[#allocation2 + $0xf0] sm:$0xff]
      %v1836 = vld [vmem:[#allocation2 + $0xf8] sm:$0xff]
      %v1837 = vld [vmem:[#allocation2 + $0x100] sm:$0xff]
      %v1838 = vld [vmem:[#allocation2 + $0x108] sm:$0xff]
      %v1839 = vld [vmem:[#allocation2 + $0x110] sm:$0xff]
      %v1840 = vld [vmem:[#allocation2 + $0x118] sm:$0xff]
      %v1841 = vld [vmem:[#allocation2 + $0x120] sm:$0xff]
      %v1842 = vld [vmem:[#allocation2 + $0x128] sm:$0xff]
      %v1843 = vld [vmem:[#allocation2 + $0x130] sm:$0xff]
      %v1844 = vld [vmem:[#allocation2 + $0x138] sm:$0xff]
      %v1845 = vld [vmem:[#allocation2 + $0x140] sm:$0xff]
      %v1846 = vld [vmem:[#allocation2 + $0x148] sm:$0xff]
      %v1847 = vld [vmem:[#allocation2 + $0x150] sm:$0xff]
      %v1848 = vld [vmem:[#allocation2 + $0x158] sm:$0xff]
      %v1849 = vld [vmem:[#allocation2 + $0x160] sm:$0xff]
      %v1850 = vld [vmem:[#allocation2 + $0x168] sm:$0xff]
      %v1851 = vld [vmem:[#allocation2 + $0x170] sm:$0xff]
      %v1852 = vld [vmem:[#allocation2 + $0x178] sm:$0xff]
      %v1853 = vld [vmem:[#allocation2 + $0x180] sm:$0xff]
      %v1854 = vld [vmem:[#allocation2 + $0x188] sm:$0xff]
      %v1855 = vld [vmem:[#allocation2 + $0x190] sm:$0xff]
      %v1856 = vld [vmem:[#allocation2 + $0x198] sm:$0xff]
      %v1857 = vld [vmem:[#allocation2 + $0x1a0] sm:$0xff]
      %v1858 = vld [vmem:[#allocation2 + $0x1a8] sm:$0xff]
      %v1859 = vld [vmem:[#allocation2 + $0x1b0] sm:$0xff]
      %v1860 = vld [vmem:[#allocation2 + $0x1b8] sm:$0xff]
      %v1861 = vld [vmem:[#allocation2 + $0x1c0] sm:$0xff]
      %v1862 = vld [vmem:[#allocation2 + $0x1c8] sm:$0xff]
      %v1863 = vld [vmem:[#allocation2 + $0x1d0] sm:$0xff]
      %v1864 = vld [vmem:[#allocation2 + $0x1d8] sm:$0xff]
      %v1865 = vld [vmem:[#allocation2 + $0x1e0] sm:$0xff]
      %v1866 = vld [vmem:[#allocation2 + $0x1e8] sm:$0xff]
      %v1867 = vld [vmem:[#allocation2 + $0x1f0] sm:$0xff]
      %v1868 = vld [vmem:[#allocation2 + $0x1f8] sm:$0xff]
      %v1869 = vld [vmem:[#allocation2 + $0x200] sm:$0xff]
      %v1870 = vld [vmem:[#allocation2 + $0x208] sm:$0xff]
      %v1871 = vld [vmem:[#allocation2 + $0x210] sm:$0xff]
      %v1872 = vld [vmem:[#allocation2 + $0x218] sm:$0xff]
      %v1873 = vld [vmem:[#allocation2 + $0x220] sm:$0xff]
      %v1874 = vld [vmem:[#allocation2 + $0x228] sm:$0xff]
      %v1875 = vld [vmem:[#allocation2 + $0x230] sm:$0xff]
      %v1876 = vld [vmem:[#allocation2 + $0x238] sm:$0xff]
      %v1877 = vld [vmem:[#allocation2 + $0x240] sm:$0xff]
      %v1878 = vld [vmem:[#allocation2 + $0x248] sm:$0xff]
      %v1879 = vld [vmem:[#allocation2 + $0x250] sm:$0xff]
      %v1880 = vld [vmem:[#allocation2 + $0x258] sm:$0xff]
      %v1881 = vld [vmem:[#allocation2 + $0x260] sm:$0xff]
      %v1882 = vld [vmem:[#allocation2 + $0x268] sm:$0xff]
      %v1883 = vld [vmem:[#allocation2 + $0x270] sm:$0xff]
      %v1884 = vld [vmem:[#allocation2 + $0x278] sm:$0xff]
      %v1885 = vld [vmem:[#allocation2 + $0x280] sm:$0xff]
      %v1886 = vld [vmem:[#allocation2 + $0x288] sm:$0xff]
      %v1887 = vld [vmem:[#allocation2 + $0x290] sm:$0xff]
      %v1888 = vld [vmem:[#allocation2 + $0x298] sm:$0xff]
      %v1889 = vld [vmem:[#allocation2 + $0x2a0] sm:$0xff]
      %v1890 = vld [vmem:[#allocation2 + $0x2a8] sm:$0xff]
      %v1891 = vld [vmem:[#allocation2 + $0x2b0] sm:$0xff]
      %v1892 = vld [vmem:[#allocation2 + $0x2b8] sm:$0xff]
      %v1893 = vld [vmem:[#allocation2 + $0x2c0] sm:$0xff]
      %v1894 = vld [vmem:[#allocation2 + $0x2c8] sm:$0xff]
      %v1895 = vld [vmem:[%s1] sm:$0xf]
      %v1896 = vld [vmem:[%s1 + $0x4] sm:$0xf]
      %v1897 = vld [vmem:[%s1 + $0x8] sm:$0xf]
      %v1898 = vld [vmem:[%s1 + $0xc] sm:$0xf]
      %v1899 = vld [vmem:[%s1 + $0x10] sm:$0xf]
      %v1900 = vld [vmem:[%s1 + $0x14] sm:$0xf]
      %v1901 = vld [vmem:[%s1 + $0x18] sm:$0xf]
      %v1902 = vld [vmem:[%s1 + $0x1c] sm:$0xf]
      %v1903 = vld [vmem:[%s1 + $0x20] sm:$0xf]
      %v1904 = vld [vmem:[%s1 + $0x24] sm:$0xf]
      %v1905 = vld [vmem:[%s1 + $0x28] sm:$0xf]
      %v1906 = vld [vmem:[%s1 + $0x2c] sm:$0xf]
      %v1907 = vld [vmem:[%s1 + $0x30] sm:$0xf]
      %v1908 = vld [vmem:[%s1 + $0x34] sm:$0xf]
      %v1909 = vld [vmem:[%s1 + $0x38] sm:$0xf]
      %v1910 = vld [vmem:[%s1 + $0x3c] sm:$0xf]
      %v1911 = vld [vmem:[%s1 + $0x40] sm:$0xf]
      %v1912 = vld [vmem:[%s1 + $0x44] sm:$0xf]
      %v1913 = vld [vmem:[%s1 + $0x48] sm:$0xf]
      %v1914 = vld [vmem:[%s1 + $0x4c] sm:$0xf]
      %v1915 = vld [vmem:[%s1 + $0x50] sm:$0xf]
      %v1916 = vld [vmem:[%s1 + $0x54] sm:$0xf]
      %v1917 = vld [vmem:[%s1 + $0x58] sm:$0xf]
      %v1918 = vld [vmem:[%s1 + $0x5c] sm:$0xf]
      %v1919 = vld [vmem:[%s1 + $0x60] sm:$0xf]
      %v1920 = vld [vmem:[%s1 + $0x64] sm:$0xf]
      %v1921 = vld [vmem:[%s1 + $0x68] sm:$0xf]
      %v1922 = vld [vmem:[%s1 + $0x6c] sm:$0xf]
      %v1923 = vld [vmem:[%s1 + $0x70] sm:$0xf]
      %v1924 = vld [vmem:[%s1 + $0x74] sm:$0xf]
      %v1925 = vld [vmem:[%s1 + $0x78] sm:$0xf]
      %v1926 = vld [vmem:[%s1 + $0x7c] sm:$0xf]
      %v1927 = vld [vmem:[%s1 + $0x80] sm:$0xf]
      %v1928 = vld [vmem:[%s1 + $0x84] sm:$0xf]
      %v1929 = vld [vmem:[%s1 + $0x88] sm:$0xf]
      %v1930 = vld [vmem:[%s1 + $0x8c] sm:$0xf]
      %v1931 = vld [vmem:[%s1 + $0x90] sm:$0xf]
      %v1932 = vld [vmem:[%s1 + $0x94] sm:$0xf]
      %v1933 = vld [vmem:[%s1 + $0x98] sm:$0xf]
      %v1934 = vld [vmem:[%s1 + $0x9c] sm:$0xf]
      %v1935 = vld [vmem:[%s1 + $0xa0] sm:$0xf]
      %v1936 = vld [vmem:[%s1 + $0xa4] sm:$0xf]
      %v1937 = vld [vmem:[%s1 + $0xa8] sm:$0xf]
      %v1938 = vld [vmem:[%s1 + $0xac] sm:$0xf]
      %v1939 = vld [vmem:[%s1 + $0xb0] sm:$0xf]
      %v1940 = vld [vmem:[%s1 + $0xb4] sm:$0xf]
      %v1941 = vld [vmem:[%s1 + $0xb8] sm:$0xf]
      %v1942 = vld [vmem:[%s1 + $0xbc] sm:$0xf]
      %v1943 = vld [vmem:[%s1 + $0xc0] sm:$0xf]
      %v1944 = vld [vmem:[%s1 + $0xc4] sm:$0xf]
      %v1945 = vld [vmem:[%s1 + $0xc8] sm:$0xf]
      %v1946 = vld [vmem:[%s1 + $0xcc] sm:$0xf]
      %v1947 = vld [vmem:[%s1 + $0xd0] sm:$0xf]
      %v1948 = vld [vmem:[%s1 + $0xd4] sm:$0xf]
      %v1949 = vld [vmem:[%s1 + $0xd8] sm:$0xf]
      %v1950 = vld [vmem:[%s1 + $0xdc] sm:$0xf]
      %v1951 = vld [vmem:[%s1 + $0xe0] sm:$0xf]
      %v1952 = vld [vmem:[%s1 + $0xe4] sm:$0xf]
      %v1953 = vld [vmem:[%s1 + $0xe8] sm:$0xf]
      %v1954 = vld [vmem:[%s1 + $0xec] sm:$0xf]
      %v1955 = vld [vmem:[%s1 + $0xf0] sm:$0xf]
      %v1956 = vld [vmem:[%s1 + $0xf4] sm:$0xf]
      %v1957 = vld [vmem:[%s1 + $0xf8] sm:$0xf]
      %v1958 = vld [vmem:[%s1 + $0xfc] sm:$0xf]
      %v1959 = vld [vmem:[%s1 + $0x100] sm:$0xf]
      %v1960 = vld [vmem:[%s1 + $0x104] sm:$0xf]
      %v1961 = vld [vmem:[%s1 + $0x108] sm:$0xf]
      %v1962 = vld [vmem:[%s1 + $0x10c] sm:$0xf]
      %v1963 = vld [vmem:[%s1 + $0x110] sm:$0xf]
      %v1964 = vld [vmem:[%s1 + $0x114] sm:$0xf]
      %v1965 = vld [vmem:[%s1 + $0x118] sm:$0xf]
      %v1966 = vld [vmem:[%s1 + $0x11c] sm:$0xf]
      %v1967 = vld [vmem:[%s1 + $0x120] sm:$0xf]
      %v1968 = vld [vmem:[%s1 + $0x124] sm:$0xf]
      %v1969 = vld [vmem:[%s1 + $0x128] sm:$0xf]
      %v1970 = vld [vmem:[%s1 + $0x12c] sm:$0xf]
      %v1971 = vld [vmem:[%s1 + $0x130] sm:$0xf]
      %v1972 = vld [vmem:[%s1 + $0x134] sm:$0xf]
      %v1973 = vld [vmem:[%s1 + $0x138] sm:$0xf]
      %v1974 = vld [vmem:[%s1 + $0x13c] sm:$0xf]
      %v1975 = vld [vmem:[%s1 + $0x140] sm:$0xf]
      %v1976 = vld [vmem:[%s1 + $0x144] sm:$0xf]
      %v1977 = vld [vmem:[%s1 + $0x148] sm:$0xf]
      %v1978 = vld [vmem:[%s1 + $0x14c] sm:$0xf]
      %v1979 = vld [vmem:[%s1 + $0x150] sm:$0xf]
      %v1980 = vld [vmem:[%s1 + $0x154] sm:$0xf]
      %v1981 = vld [vmem:[%s1 + $0x158] sm:$0xf]
      %v1982 = vld [vmem:[%s1 + $0x15c] sm:$0xf]
      %v1983 = vld [vmem:[%s1 + $0x160] sm:$0xf]
      %v1984 = vld [vmem:[%s1 + $0x164] sm:$0xf]
      %v1985 = vld [vmem:[%s1 + $0x168] sm:$0xf]
      %v1986 = vld [vmem:[%s1 + $0x16c] sm:$0xf]
      %v1987 = vld [vmem:[%s1 + $0x170] sm:$0xf]
      %v1988 = vld [vmem:[%s1 + $0x174] sm:$0xf]
      %v1989 = vld [vmem:[%s1 + $0x178] sm:$0xf]
      %v1990 = vld [vmem:[%s1 + $0x17c] sm:$0xf]
      %v1991 = vld [vmem:[%s1 + $0x180] sm:$0xf]
      %v1992 = vld [vmem:[%s1 + $0x184] sm:$0xf]
      %v1993 = vld [vmem:[%s1 + $0x188] sm:$0xf]
      %v1994 = vld [vmem:[%s1 + $0x18c] sm:$0xf]
      %v1995 = vld [vmem:[%s1 + $0x190] sm:$0xf]
      %v1996 = vld [vmem:[%s1 + $0x194] sm:$0xf]
      %v1997 = vld [vmem:[%s1 + $0x198] sm:$0xf]
      %v1998 = vld [vmem:[%s1 + $0x19c] sm:$0xf]
      %v1999 = vld [vmem:[%s1 + $0x1a0] sm:$0xf]
      %v2000 = vld [vmem:[%s1 + $0x1a4] sm:$0xf]
      %v2001 = vld [vmem:[%s1 + $0x1a8] sm:$0xf]
      %v2002 = vld [vmem:[%s1 + $0x1ac] sm:$0xf]
      %v2003 = vld [vmem:[%s1 + $0x1b0] sm:$0xf]
      %v2004 = vld [vmem:[%s1 + $0x1b4] sm:$0xf]
      %v2005 = vld [vmem:[%s1 + $0x1b8] sm:$0xf]
      %v2006 = vld [vmem:[%s1 + $0x1bc] sm:$0xf]
      %v2007 = vld [vmem:[%s1 + $0x1c0] sm:$0xf]
      %v2008 = vld [vmem:[%s1 + $0x1c4] sm:$0xf]
      %v2009 = vld [vmem:[%s1 + $0x1c8] sm:$0xf]
      %v2010 = vld [vmem:[%s1 + $0x1cc] sm:$0xf]
      %v2011 = vld [vmem:[%s1 + $0x1d0] sm:$0xf]
      %v2012 = vld [vmem:[%s1 + $0x1d4] sm:$0xf]
      %v2013 = vld [vmem:[%s1 + $0x1d8] sm:$0xf]
      %v2014 = vld [vmem:[%s1 + $0x1dc] sm:$0xf]
      %v2015 = vld [vmem:[%s1 + $0x1e0] sm:$0xf]
      %v2016 = vld [vmem:[%s1 + $0x1e4] sm:$0xf]
      %v2017 = vld [vmem:[%s1 + $0x1e8] sm:$0xf]
      %v2018 = vld [vmem:[%s1 + $0x1ec] sm:$0xf]
      %v2019 = vld [vmem:[%s1 + $0x1f0] sm:$0xf]
      %v2020 = vld [vmem:[%s1 + $0x1f4] sm:$0xf]
      %v2021 = vld [vmem:[%s1 + $0x1f8] sm:$0xf]
      %v2022 = vld [vmem:[%s1 + $0x1fc] sm:$0xf]
      %v2023 = vld [vmem:[%s1 + $0x200] sm:$0xf]
      %v2024 = vld [vmem:[%s1 + $0x204] sm:$0xf]
      %v2025 = vld [vmem:[%s1 + $0x208] sm:$0xf]
      %v2026 = vld [vmem:[%s1 + $0x20c] sm:$0xf]
      %v2027 = vld [vmem:[%s1 + $0x210] sm:$0xf]
      %v2028 = vld [vmem:[%s1 + $0x214] sm:$0xf]
      %v2029 = vld [vmem:[%s1 + $0x218] sm:$0xf]
      %v2030 = vld [vmem:[%s1 + $0x21c] sm:$0xf]
      %v2031 = vld [vmem:[%s1 + $0x220] sm:$0xf]
      %v2032 = vld [vmem:[%s1 + $0x224] sm:$0xf]
      %v2033 = vld [vmem:[%s1 + $0x228] sm:$0xf]
      %v2034 = vld [vmem:[%s1 + $0x22c] sm:$0xf]
      %v2035 = vld [vmem:[%s1 + $0x230] sm:$0xf]
      %v2036 = vld [vmem:[%s1 + $0x234] sm:$0xf]
      %v2037 = vld [vmem:[%s1 + $0x238] sm:$0xf]
      %v2038 = vld [vmem:[%s1 + $0x23c] sm:$0xf]
      %v2039 = vld [vmem:[%s2] sm:$0x1]
      %v2041 = vlaneseq
      %v2042 = vshrl.u32 %v2041, 7
      %v2043 = vsub.s32 0, %v2042
      %v2044 = vrot.slane %v2039, %v2043
      %v2190 = vunpack.c.l.b16 %v1895
      %v2191 = vunpack.c.l.b16 %v1896
      %v2192 = vunpack.c.l.b16 %v1897
      %v2193 = vunpack.c.l.b16 %v1898
      %v2194 = vunpack.c.l.b16 %v1899
      %v2195 = vunpack.c.l.b16 %v1900
      %v2196 = vunpack.c.l.b16 %v1901
      %v2197 = vunpack.c.l.b16 %v1902
      %v2198 = vunpack.c.l.b16 %v1903
      %v2199 = vunpack.c.l.b16 %v1904
      %v2200 = vunpack.c.l.b16 %v1905
      %v2201 = vunpack.c.l.b16 %v1906
      %v2202 = vunpack.c.l.b16 %v1907
      %v2203 = vunpack.c.l.b16 %v1908
      %v2204 = vunpack.c.l.b16 %v1909
      %v2205 = vunpack.c.l.b16 %v1910
      %v2206 = vunpack.c.l.b16 %v1911
      %v2207 = vunpack.c.l.b16 %v1912
      %v2208 = vunpack.c.l.b16 %v1913
      %v2209 = vunpack.c.l.b16 %v1914
      %v2210 = vunpack.c.l.b16 %v1915
      %v2211 = vunpack.c.l.b16 %v1916
      %v2212 = vunpack.c.l.b16 %v1917
      %v2213 = vunpack.c.l.b16 %v1918
      %v2214 = vunpack.c.l.b16 %v1919
      %v2215 = vunpack.c.l.b16 %v1920
      %v2216 = vunpack.c.l.b16 %v1921
      %v2217 = vunpack.c.l.b16 %v1922
      %v2218 = vunpack.c.l.b16 %v1923
      %v2219 = vunpack.c.l.b16 %v1924
      %v2220 = vunpack.c.l.b16 %v1925
      %v2221 = vunpack.c.l.b16 %v1926
      %v2222 = vunpack.c.l.b16 %v1927
      %v2223 = vunpack.c.l.b16 %v1928
      %v2224 = vunpack.c.l.b16 %v1929
      %v2225 = vunpack.c.l.b16 %v1930
      %v2226 = vunpack.c.l.b16 %v1931
      %v2227 = vunpack.c.l.b16 %v1932
      %v2228 = vunpack.c.l.b16 %v1933
      %v2229 = vunpack.c.l.b16 %v1934
      %v2230 = vunpack.c.l.b16 %v1935
      %v2231 = vunpack.c.l.b16 %v1936
      %v2232 = vunpack.c.l.b16 %v1937
      %v2233 = vunpack.c.l.b16 %v1938
      %v2234 = vunpack.c.l.b16 %v1939
      %v2235 = vunpack.c.l.b16 %v1940
      %v2236 = vunpack.c.l.b16 %v1941
      %v2237 = vunpack.c.l.b16 %v1942
      %v2238 = vunpack.c.l.b16 %v1943
      %v2239 = vunpack.c.l.b16 %v1944
      %v2240 = vunpack.c.l.b16 %v1945
      %v2241 = vunpack.c.l.b16 %v1946
      %v2242 = vunpack.c.l.b16 %v1947
      %v2243 = vunpack.c.l.b16 %v1948
      %v2244 = vunpack.c.l.b16 %v1949
      %v2245 = vunpack.c.l.b16 %v1950
      %v2246 = vunpack.c.l.b16 %v1951
      %v2247 = vunpack.c.l.b16 %v1952
      %v2248 = vunpack.c.l.b16 %v1953
      %v2249 = vunpack.c.l.b16 %v1954
      %v2250 = vunpack.c.l.b16 %v1955
      %v2251 = vunpack.c.l.b16 %v1956
      %v2252 = vunpack.c.l.b16 %v1957
      %v2253 = vunpack.c.l.b16 %v1958
      %v2254 = vunpack.c.l.b16 %v1959
      %v2255 = vunpack.c.l.b16 %v1960
      %v2256 = vunpack.c.l.b16 %v1961
      %v2257 = vunpack.c.l.b16 %v1962
      %v2258 = vunpack.c.l.b16 %v1963
      %v2259 = vunpack.c.l.b16 %v1964
      %v2260 = vunpack.c.l.b16 %v1965
      %v2261 = vunpack.c.l.b16 %v1966
      %v2262 = vunpack.c.l.b16 %v1967
      %v2263 = vunpack.c.l.b16 %v1968
      %v2264 = vunpack.c.l.b16 %v1969
      %v2265 = vunpack.c.l.b16 %v1970
      %v2266 = vunpack.c.l.b16 %v1971
      %v2267 = vunpack.c.l.b16 %v1972
      %v2268 = vunpack.c.l.b16 %v1973
      %v2269 = vunpack.c.l.b16 %v1974
      %v2270 = vunpack.c.l.b16 %v1975
      %v2271 = vunpack.c.l.b16 %v1976
      %v2272 = vunpack.c.l.b16 %v1977
      %v2273 = vunpack.c.l.b16 %v1978
      %v2274 = vunpack.c.l.b16 %v1979
      %v2275 = vunpack.c.l.b16 %v1980
      %v2276 = vunpack.c.l.b16 %v1981
      %v2277 = vunpack.c.l.b16 %v1982
      %v2278 = vunpack.c.l.b16 %v1983
      %v2279 = vunpack.c.l.b16 %v1984
      %v2280 = vunpack.c.l.b16 %v1985
      %v2281 = vunpack.c.l.b16 %v1986
      %v2282 = vunpack.c.l.b16 %v1987
      %v2283 = vunpack.c.l.b16 %v1988
      %v2284 = vunpack.c.l.b16 %v1989
      %v2285 = vunpack.c.l.b16 %v1990
      %v2286 = vunpack.c.l.b16 %v1991
      %v2287 = vunpack.c.l.b16 %v1992
      %v2288 = vunpack.c.l.b16 %v1993
      %v2289 = vunpack.c.l.b16 %v1994
      %v2290 = vunpack.c.l.b16 %v1995
      %v2291 = vunpack.c.l.b16 %v1996
      %v2292 = vunpack.c.l.b16 %v1997
      %v2293 = vunpack.c.l.b16 %v1998
      %v2294 = vunpack.c.l.b16 %v1999
      %v2295 = vunpack.c.l.b16 %v2000
      %v2296 = vunpack.c.l.b16 %v2001
      %v2297 = vunpack.c.l.b16 %v2002
      %v2298 = vunpack.c.l.b16 %v2003
      %v2299 = vunpack.c.l.b16 %v2004
      %v2300 = vunpack.c.l.b16 %v2005
      %v2301 = vunpack.c.l.b16 %v2006
      %v2302 = vunpack.c.l.b16 %v2007
      %v2303 = vunpack.c.l.b16 %v2008
      %v2304 = vunpack.c.l.b16 %v2009
      %v2305 = vunpack.c.l.b16 %v2010
      %v2306 = vunpack.c.l.b16 %v2011
      %v2307 = vunpack.c.l.b16 %v2012
      %v2308 = vunpack.c.l.b16 %v2013
      %v2309 = vunpack.c.l.b16 %v2014
      %v2310 = vunpack.c.l.b16 %v2015
      %v2311 = vunpack.c.l.b16 %v2016
      %v2312 = vunpack.c.l.b16 %v2017
      %v2313 = vunpack.c.l.b16 %v2018
      %v2314 = vunpack.c.l.b16 %v2019
      %v2315 = vunpack.c.l.b16 %v2020
      %v2316 = vunpack.c.l.b16 %v2021
      %v2317 = vunpack.c.l.b16 %v2022
      %v2318 = vunpack.c.l.b16 %v2023
      %v2319 = vunpack.c.l.b16 %v2024
      %v2320 = vunpack.c.l.b16 %v2025
      %v2321 = vunpack.c.l.b16 %v2026
      %v2322 = vunpack.c.l.b16 %v2027
      %v2323 = vunpack.c.l.b16 %v2028
      %v2324 = vunpack.c.l.b16 %v2029
      %v2325 = vunpack.c.l.b16 %v2030
      %v2326 = vunpack.c.l.b16 %v2031
      %v2327 = vunpack.c.l.b16 %v2032
      %v2328 = vunpack.c.l.b16 %v2033
      %v2329 = vunpack.c.l.b16 %v2034
      %v2330 = vunpack.c.l.b16 %v2035
      %v2331 = vunpack.c.l.b16 %v2036
      %v2332 = vunpack.c.l.b16 %v2037
      %v2333 = vunpack.c.l.b16 %v2038
      %v2334 = vpack.c.b16 %v2191, %v2190
      %v2335 = vpack.c.b16 %v2193, %v2192
      %v2336 = vpack.c.b16 %v2195, %v2194
      %v2337 = vpack.c.b16 %v2197, %v2196
      %v2338 = vpack.c.b16 %v2199, %v2198
      %v2339 = vpack.c.b16 %v2201, %v2200
      %v2340 = vpack.c.b16 %v2203, %v2202
      %v2341 = vpack.c.b16 %v2205, %v2204
      %v2342 = vpack.c.b16 %v2207, %v2206
      %v2343 = vpack.c.b16 %v2209, %v2208
      %v2344 = vpack.c.b16 %v2211, %v2210
      %v2345 = vpack.c.b16 %v2213, %v2212
      %v2346 = vpack.c.b16 %v2215, %v2214
      %v2347 = vpack.c.b16 %v2217, %v2216
      %v2348 = vpack.c.b16 %v2219, %v2218
      %v2349 = vpack.c.b16 %v2221, %v2220
      %v2350 = vpack.c.b16 %v2223, %v2222
      %v2351 = vpack.c.b16 %v2225, %v2224
      %v2352 = vpack.c.b16 %v2227, %v2226
      %v2353 = vpack.c.b16 %v2229, %v2228
      %v2354 = vpack.c.b16 %v2231, %v2230
      %v2355 = vpack.c.b16 %v2233, %v2232
      %v2356 = vpack.c.b16 %v2235, %v2234
      %v2357 = vpack.c.b16 %v2237, %v2236
      %v2358 = vpack.c.b16 %v2239, %v2238
      %v2359 = vpack.c.b16 %v2241, %v2240
      %v2360 = vpack.c.b16 %v2243, %v2242
      %v2361 = vpack.c.b16 %v2245, %v2244
      %v2362 = vpack.c.b16 %v2247, %v2246
      %v2363 = vpack.c.b16 %v2249, %v2248
      %v2364 = vpack.c.b16 %v2251, %v2250
      %v2365 = vpack.c.b16 %v2253, %v2252
      %v2366 = vpack.c.b16 %v2255, %v2254
      %v2367 = vpack.c.b16 %v2257, %v2256
      %v2368 = vpack.c.b16 %v2259, %v2258
      %v2369 = vpack.c.b16 %v2261, %v2260
      %v2370 = vpack.c.b16 %v2263, %v2262
      %v2371 = vpack.c.b16 %v2265, %v2264
      %v2372 = vpack.c.b16 %v2267, %v2266
      %v2373 = vpack.c.b16 %v2269, %v2268
      %v2374 = vpack.c.b16 %v2271, %v2270
      %v2375 = vpack.c.b16 %v2273, %v2272
      %v2376 = vpack.c.b16 %v2275, %v2274
      %v2377 = vpack.c.b16 %v2277, %v2276
      %v2378 = vpack.c.b16 %v2279, %v2278
      %v2379 = vpack.c.b16 %v2281, %v2280
      %v2380 = vpack.c.b16 %v2283, %v2282
      %v2381 = vpack.c.b16 %v2285, %v2284
      %v2382 = vpack.c.b16 %v2287, %v2286
      %v2383 = vpack.c.b16 %v2289, %v2288
      %v2384 = vpack.c.b16 %v2291, %v2290
      %v2385 = vpack.c.b16 %v2293, %v2292
      %v2386 = vpack.c.b16 %v2295, %v2294
      %v2387 = vpack.c.b16 %v2297, %v2296
      %v2388 = vpack.c.b16 %v2299, %v2298
      %v2389 = vpack.c.b16 %v2301, %v2300
      %v2390 = vpack.c.b16 %v2303, %v2302
      %v2391 = vpack.c.b16 %v2305, %v2304
      %v2392 = vpack.c.b16 %v2307, %v2306
      %v2393 = vpack.c.b16 %v2309, %v2308
      %v2394 = vpack.c.b16 %v2311, %v2310
      %v2395 = vpack.c.b16 %v2313, %v2312
      %v2396 = vpack.c.b16 %v2315, %v2314
      %v2397 = vpack.c.b16 %v2317, %v2316
      %v2398 = vpack.c.b16 %v2319, %v2318
      %v2399 = vpack.c.b16 %v2321, %v2320
      %v2400 = vpack.c.b16 %v2323, %v2322
      %v2401 = vpack.c.b16 %v2325, %v2324
      %v2402 = vpack.c.b16 %v2327, %v2326
      %v2403 = vpack.c.b16 %v2329, %v2328
      %v2404 = vpack.c.b16 %v2331, %v2330
      %v2405 = vpack.c.b16 %v2333, %v2332
      %2478 = vmatprep.subr.bf16.mxu0 0
      %2479 = vmatpush1.bf16.msra.mxu0 %v2334
      %2480 = vmatprep.subr.bf16.mxu0 0
      %2481 = vmatpush1.bf16.msra.mxu0 %v2335
      %2482 = vmatprep.subr.bf16.mxu0 0
      %2483 = vmatpush1.bf16.msra.mxu0 %v2336
      %2484 = vmatprep.subr.bf16.mxu0 0
      %2485 = vmatpush1.bf16.msra.mxu0 %v2337
      %2486 = vmatprep.subr.bf16.mxu0 0
      %2487 = vmatpush1.bf16.msra.mxu0 %v2338
      %2488 = vmatprep.subr.bf16.mxu0 0
      %2489 = vmatpush1.bf16.msra.mxu0 %v2339
      %2490 = vmatprep.subr.bf16.mxu0 0
      %2491 = vmatpush1.bf16.msra.mxu0 %v2340
      %2492 = vmatprep.subr.bf16.mxu0 0
      %2493 = vmatpush1.bf16.msra.mxu0 %v2341
      %2494 = vmatprep.subr.bf16.mxu0 0
      %2495 = vmatpush1.bf16.msra.mxu0 %v2342
      %2496 = vmatprep.subr.bf16.mxu0 0
      %2497 = vmatpush1.bf16.msra.mxu0 %v2343
      %2498 = vmatprep.subr.bf16.mxu0 0
      %2499 = vmatpush1.bf16.msra.mxu0 %v2344
      %2500 = vmatprep.subr.bf16.mxu0 0
      %2501 = vmatpush1.bf16.msra.mxu0 %v2345
      %2502 = vmatprep.subr.bf16.mxu0 0
      %2503 = vmatpush1.bf16.msra.mxu0 %v2346
      %2504 = vmatprep.subr.bf16.mxu0 0
      %2505 = vmatpush1.bf16.msra.mxu0 %v2347
      %2506 = vmatprep.subr.bf16.mxu0 0
      %2507 = vmatpush1.bf16.msra.mxu0 %v2348
      %2508 = vmatprep.subr.bf16.mxu0 0
      %2509 = vmatpush1.bf16.msra.mxu0 %v2349
      %2510 = vmatprep.mubr.bf16.mxu0 %v1806
      %2511 = vmatmul.mubr.bf16.gmra.mrb[0].mxu0 %v1805
      %v2512 = vpop.f32.mrb[0].mxu0
      %v2513 = vadd.f32 %v2044, %v2512
      %v2514 = vpop.f32.mrb[0].mxu0
      %v2515 = vpop.f32.mrb[0].mxu0
      %v2516 = vadd.f32 %v2044, %v2515
      %v2517 = vpop.f32.mrb[0].mxu0
      %2518 = vmatprep.mubr.bf16.mxu0 %v1815
      %2519 = vmatmul.mubr.bf16.gmra.mrb[0].mxu0 %v1814
      %v2520 = vpop.f32.mrb[0].mxu0
      %v2521 = vadd.f32 %v2044, %v2520
      %v2522 = vpop.f32.mrb[0].mxu0
      %v2523 = vpop.f32.mrb[0].mxu0
      %v2524 = vadd.f32 %v2044, %v2523
      %v2525 = vpop.f32.mrb[0].mxu0
      %2526 = vmatprep.mubr.bf16.mxu0 %v1824
      %2527 = vmatmul.mubr.bf16.gmra.mrb[0].mxu0 %v1823
      %v2528 = vpop.f32.mrb[0].mxu0
      %v2529 = vadd.f32 %v2044, %v2528
      %v2530 = vpop.f32.mrb[0].mxu0
      %v2531 = vpop.f32.mrb[0].mxu0
      %v2532 = vadd.f32 %v2044, %v2531
      %v2533 = vpop.f32.mrb[0].mxu0
      %2534 = vmatprep.mubr.bf16.mxu0 %v1833
      %2535 = vmatmul.mubr.bf16.gmra.mrb[0].mxu0 %v1832
      %v2536 = vpop.f32.mrb[0].mxu0
      %v2537 = vadd.f32 %v2044, %v2536
      %v2538 = vpop.f32.mrb[0].mxu0
      %v2539 = vpop.f32.mrb[0].mxu0
      %v2540 = vadd.f32 %v2044, %v2539
      %v2541 = vpop.f32.mrb[0].mxu0
      %2542 = vmatprep.mubr.bf16.mxu0 %v1842
      %2543 = vmatmul.mubr.bf16.gmra.mrb[0].mxu0 %v1841
      %v2544 = vpop.f32.mrb[0].mxu0
      %v2545 = vadd.f32 %v2044, %v2544
      %v2546 = vpop.f32.mrb[0].mxu0
      %v2547 = vpop.f32.mrb[0].mxu0
      %v2548 = vadd.f32 %v2044, %v2547
      %v2549 = vpop.f32.mrb[0].mxu0
      %2550 = vmatprep.mubr.bf16.mxu0 %v1851
      %2551 = vmatmul.mubr.bf16.gmra.mrb[0].mxu0 %v1850
      %v2552 = vpop.f32.mrb[0].mxu0
      %v2553 = vadd.f32 %v2044, %v2552
      %v2554 = vpop.f32.mrb[0].mxu0
      %v2555 = vpop.f32.mrb[0].mxu0
      %v2556 = vadd.f32 %v2044, %v2555
      %v2557 = vpop.f32.mrb[0].mxu0
      %2558 = vmatprep.mubr.bf16.mxu0 %v1860
      %2559 = vmatmul.mubr.bf16.gmra.mrb[0].mxu0 %v1859
      %v2560 = vpop.f32.mrb[0].mxu0
      %v2561 = vadd.f32 %v2044, %v2560
      %v2562 = vpop.f32.mrb[0].mxu0
      %v2563 = vpop.f32.mrb[0].mxu0
      %v2564 = vadd.f32 %v2044, %v2563
      %v2565 = vpop.f32.mrb[0].mxu0
      %2566 = vmatprep.mubr.bf16.mxu0 %v1869
      %2567 = vmatmul.mubr.bf16.gmra.mrb[0].mxu0 %v1868
      %v2568 = vpop.f32.mrb[0].mxu0
      %v2569 = vadd.f32 %v2044, %v2568
      %v2570 = vpop.f32.mrb[0].mxu0
      %v2571 = vpop.f32.mrb[0].mxu0
      %v2572 = vadd.f32 %v2044, %v2571
      %v2573 = vpop.f32.mrb[0].mxu0
      %2574 = vmatprep.mubr.bf16.mxu0 %v1878
      %2575 = vmatmul.mubr.bf16.gmra.mrb[0].mxu0 %v1877
      %v2576 = vpop.f32.mrb[0].mxu0
      %v2577 = vadd.f32 %v2044, %v2576
      %v2578 = vpop.f32.mrb[0].mxu0
      %v2579 = vpop.f32.mrb[0].mxu0
      %v2580 = vadd.f32 %v2044, %v2579
      %v2581 = vpop.f32.mrb[0].mxu0
      %2582 = vmatprep.mubr.bf16.mxu0 %v1887
      %2583 = vmatmul.mubr.bf16.gmra.mrb[0].mxu0 %v1886
      %v2584 = vpop.f32.mrb[0].mxu0
      %v2585 = vadd.f32 %v2044, %v2584
      %v2586 = vpop.f32.mrb[0].mxu0
      %v2587 = vpop.f32.mrb[0].mxu0
      %v2588 = vadd.f32 %v2044, %v2587
      %v2589 = vpop.f32.mrb[0].mxu0
      %2590 = vdwg.mxu0
      %2591 = vmatprep.subr.bf16.mxu0 0
      %2592 = vmatpush1.bf16.msra.mxu0 %v2350
      %2593 = vmatprep.subr.bf16.mxu0 0
      %2594 = vmatpush1.bf16.msra.mxu0 %v2351
      %2595 = vmatprep.subr.bf16.mxu0 0
      %2596 = vmatpush1.bf16.msra.mxu0 %v2352
      %2597 = vmatprep.subr.bf16.mxu0 0
      %2598 = vmatpush1.bf16.msra.mxu0 %v2353
      %2599 = vmatprep.subr.bf16.mxu0 0
      %2600 = vmatpush1.bf16.msra.mxu0 %v2354
      %2601 = vmatprep.subr.bf16.mxu0 0
      %2602 = vmatpush1.bf16.msra.mxu0 %v2355
      %2603 = vmatprep.subr.bf16.mxu0 0
      %2604 = vmatpush1.bf16.msra.mxu0 %v2356
      %2605 = vmatprep.subr.bf16.mxu0 0
      %2606 = vmatpush1.bf16.msra.mxu0 %v2357
      %2607 = vmatprep.subr.bf16.mxu0 0
      %2608 = vmatpush1.bf16.msra.mxu0 %v2358
      %2609 = vmatprep.subr.bf16.mxu0 0
      %2610 = vmatpush1.bf16.msra.mxu0 %v2359
      %2611 = vmatprep.subr.bf16.mxu0 0
      %2612 = vmatpush1.bf16.msra.mxu0 %v2360
      %2613 = vmatprep.subr.bf16.mxu0 0
      %2614 = vmatpush1.bf16.msra.mxu0 %v2361
      %2615 = vmatprep.subr.bf16.mxu0 0
      %2616 = vmatpush1.bf16.msra.mxu0 %v2362
      %2617 = vmatprep.subr.bf16.mxu0 0
      %2618 = vmatpush1.bf16.msra.mxu0 %v2363
      %2619 = vmatprep.subr.bf16.mxu0 0
      %2620 = vmatpush1.bf16.msra.mxu0 %v2364
      %2621 = vmatprep.subr.bf16.mxu0 0
      %2622 = vmatpush1.bf16.msra.mxu0 %v2365
      %2623 = vmatprep.mubr.bf16.mxu0 %v1808
      %2624 = vmatmul.mubr.bf16.gmra.mrb[0].mxu0 %v1807
      %v2625 = vpop.f32.mrb[0].mxu0
      %v2626 = vadd.f32 %v2513, %v2625
      %v2627 = vpop.f32.mrb[0].mxu0
      %v2628 = vpop.f32.mrb[0].mxu0
      %v2629 = vadd.f32 %v2516, %v2628
      %v2630 = vpop.f32.mrb[0].mxu0
      %2631 = vmatprep.mubr.bf16.mxu0 %v1817
      %2632 = vmatmul.mubr.bf16.gmra.mrb[0].mxu0 %v1816
      %v2633 = vpop.f32.mrb[0].mxu0
      %v2634 = vadd.f32 %v2521, %v2633
      %v2635 = vpop.f32.mrb[0].mxu0
      %v2636 = vpop.f32.mrb[0].mxu0
      %v2637 = vadd.f32 %v2524, %v2636
      %v2638 = vpop.f32.mrb[0].mxu0
      %2639 = vmatprep.mubr.bf16.mxu0 %v1826
      %2640 = vmatmul.mubr.bf16.gmra.mrb[0].mxu0 %v1825
      %v2641 = vpop.f32.mrb[0].mxu0
      %v2642 = vadd.f32 %v2529, %v2641
      %v2643 = vpop.f32.mrb[0].mxu0
      %v2644 = vpop.f32.mrb[0].mxu0
      %v2645 = vadd.f32 %v2532, %v2644
      %v2646 = vpop.f32.mrb[0].mxu0
      %2647 = vmatprep.mubr.bf16.mxu0 %v1835
      %2648 = vmatmul.mubr.bf16.gmra.mrb[0].mxu0 %v1834
      %v2649 = vpop.f32.mrb[0].mxu0
      %v2650 = vadd.f32 %v2537, %v2649
      %v2651 = vpop.f32.mrb[0].mxu0
      %v2652 = vpop.f32.mrb[0].mxu0
      %v2653 = vadd.f32 %v2540, %v2652
      %v2654 = vpop.f32.mrb[0].mxu0
      %2655 = vmatprep.mubr.bf16.mxu0 %v1844
      %2656 = vmatmul.mubr.bf16.gmra.mrb[0].mxu0 %v1843
      %v2657 = vpop.f32.mrb[0].mxu0
      %v2658 = vadd.f32 %v2545, %v2657
      %v2659 = vpop.f32.mrb[0].mxu0
      %v2660 = vpop.f32.mrb[0].mxu0
      %v2661 = vadd.f32 %v2548, %v2660
      %v2662 = vpop.f32.mrb[0].mxu0
      %2663 = vmatprep.mubr.bf16.mxu0 %v1853
      %2664 = vmatmul.mubr.bf16.gmra.mrb[0].mxu0 %v1852
      %v2665 = vpop.f32.mrb[0].mxu0
      %v2666 = vadd.f32 %v2553, %v2665
      %v2667 = vpop.f32.mrb[0].mxu0
      %v2668 = vpop.f32.mrb[0].mxu0
      %v2669 = vadd.f32 %v2556, %v2668
      %v2670 = vpop.f32.mrb[0].mxu0
      %2671 = vmatprep.mubr.bf16.mxu0 %v1862
      %2672 = vmatmul.mubr.bf16.gmra.mrb[0].mxu0 %v1861
      %v2673 = vpop.f32.mrb[0].mxu0
      %v2674 = vadd.f32 %v2561, %v2673
      %v2675 = vpop.f32.mrb[0].mxu0
      %v2676 = vpop.f32.mrb[0].mxu0
      %v2677 = vadd.f32 %v2564, %v2676
      %v2678 = vpop.f32.mrb[0].mxu0
      %2679 = vmatprep.mubr.bf16.mxu0 %v1871
      %2680 = vmatmul.mubr.bf16.gmra.mrb[0].mxu0 %v1870
      %v2681 = vpop.f32.mrb[0].mxu0
      %v2682 = vadd.f32 %v2569, %v2681
      %v2683 = vpop.f32.mrb[0].mxu0
      %v2684 = vpop.f32.mrb[0].mxu0
      %v2685 = vadd.f32 %v2572, %v2684
      %v2686 = vpop.f32.mrb[0].mxu0
      %2687 = vmatprep.mubr.bf16.mxu0 %v1880
      %2688 = vmatmul.mubr.bf16.gmra.mrb[0].mxu0 %v1879
      %v2689 = vpop.f32.mrb[0].mxu0
      %v2690 = vadd.f32 %v2577, %v2689
      %v2691 = vpop.f32.mrb[0].mxu0
      %v2692 = vpop.f32.mrb[0].mxu0
      %v2693 = vadd.f32 %v2580, %v2692
      %v2694 = vpop.f32.mrb[0].mxu0
      %2695 = vmatprep.mubr.bf16.mxu0 %v1889
      %2696 = vmatmul.mubr.bf16.gmra.mrb[0].mxu0 %v1888
      %v2697 = vpop.f32.mrb[0].mxu0
      %v2698 = vadd.f32 %v2585, %v2697
      %v2699 = vpop.f32.mrb[0].mxu0
      %v2700 = vpop.f32.mrb[0].mxu0
      %v2701 = vadd.f32 %v2588, %v2700
      %v2702 = vpop.f32.mrb[0].mxu0
      %2703 = vdwg.mxu0
      %2704 = vmatprep.subr.bf16.mxu0 0
      %2705 = vmatpush1.bf16.msra.mxu0 %v2366
      %2706 = vmatprep.subr.bf16.mxu0 0
      %2707 = vmatpush1.bf16.msra.mxu0 %v2367
      %2708 = vmatprep.subr.bf16.mxu0 0
      %2709 = vmatpush1.bf16.msra.mxu0 %v2368
      %2710 = vmatprep.subr.bf16.mxu0 0
      %2711 = vmatpush1.bf16.msra.mxu0 %v2369
      %2712 = vmatprep.subr.bf16.mxu0 0
      %2713 = vmatpush1.bf16.msra.mxu0 %v2370
      %2714 = vmatprep.subr.bf16.mxu0 0
      %2715 = vmatpush1.bf16.msra.mxu0 %v2371
      %2716 = vmatprep.subr.bf16.mxu0 0
      %2717 = vmatpush1.bf16.msra.mxu0 %v2372
      %2718 = vmatprep.subr.bf16.mxu0 0
      %2719 = vmatpush1.bf16.msra.mxu0 %v2373
      %2720 = vmatprep.subr.bf16.mxu0 0
      %2721 = vmatpush1.bf16.msra.mxu0 %v2374
      %2722 = vmatprep.subr.bf16.mxu0 0
      %2723 = vmatpush1.bf16.msra.mxu0 %v2375
      %2724 = vmatprep.subr.bf16.mxu0 0
      %2725 = vmatpush1.bf16.msra.mxu0 %v2376
      %2726 = vmatprep.subr.bf16.mxu0 0
      %2727 = vmatpush1.bf16.msra.mxu0 %v2377
      %2728 = vmatprep.subr.bf16.mxu0 0
      %2729 = vmatpush1.bf16.msra.mxu0 %v2378
      %2730 = vmatprep.subr.bf16.mxu0 0
      %2731 = vmatpush1.bf16.msra.mxu0 %v2379
      %2732 = vmatprep.subr.bf16.mxu0 0
      %2733 = vmatpush1.bf16.msra.mxu0 %v2380
      %2734 = vmatprep.subr.bf16.mxu0 0
      %2735 = vmatpush1.bf16.msra.mxu0 %v2381
      %2736 = vmatprep.mubr.bf16.mxu0 %v1810
      %2737 = vmatmul.mubr.bf16.gmra.mrb[0].mxu0 %v1809
      %v2738 = vpop.f32.mrb[0].mxu0
      %v2739 = vadd.f32 %v2626, %v2738
      %v2740 = vpop.f32.mrb[0].mxu0
      %v2741 = vpop.f32.mrb[0].mxu0
      %v2742 = vadd.f32 %v2629, %v2741
      %v2743 = vpop.f32.mrb[0].mxu0
      %2744 = vmatprep.mubr.bf16.mxu0 %v1819
      %2745 = vmatmul.mubr.bf16.gmra.mrb[0].mxu0 %v1818
      %v2746 = vpop.f32.mrb[0].mxu0
      %v2747 = vadd.f32 %v2634, %v2746
      %v2748 = vpop.f32.mrb[0].mxu0
      %v2749 = vpop.f32.mrb[0].mxu0
      %v2750 = vadd.f32 %v2637, %v2749
      %v2751 = vpop.f32.mrb[0].mxu0
      %2752 = vmatprep.mubr.bf16.mxu0 %v1828
      %2753 = vmatmul.mubr.bf16.gmra.mrb[0].mxu0 %v1827
      %v2754 = vpop.f32.mrb[0].mxu0
      %v2755 = vadd.f32 %v2642, %v2754
      %v2756 = vpop.f32.mrb[0].mxu0
      %v2757 = vpop.f32.mrb[0].mxu0
      %v2758 = vadd.f32 %v2645, %v2757
      %v2759 = vpop.f32.mrb[0].mxu0
      %2760 = vmatprep.mubr.bf16.mxu0 %v1837
      %2761 = vmatmul.mubr.bf16.gmra.mrb[0].mxu0 %v1836
      %v2762 = vpop.f32.mrb[0].mxu0
      %v2763 = vadd.f32 %v2650, %v2762
      %v2764 = vpop.f32.mrb[0].mxu0
      %v2765 = vpop.f32.mrb[0].mxu0
      %v2766 = vadd.f32 %v2653, %v2765
      %v2767 = vpop.f32.mrb[0].mxu0
      %2768 = vmatprep.mubr.bf16.mxu0 %v1846
      %2769 = vmatmul.mubr.bf16.gmra.mrb[0].mxu0 %v1845
      %v2770 = vpop.f32.mrb[0].mxu0
      %v2771 = vadd.f32 %v2658, %v2770
      %v2772 = vpop.f32.mrb[0].mxu0
      %v2773 = vpop.f32.mrb[0].mxu0
      %v2774 = vadd.f32 %v2661, %v2773
      %v2775 = vpop.f32.mrb[0].mxu0
      %2776 = vmatprep.mubr.bf16.mxu0 %v1855
      %2777 = vmatmul.mubr.bf16.gmra.mrb[0].mxu0 %v1854
      %v2778 = vpop.f32.mrb[0].mxu0
      %v2779 = vadd.f32 %v2666, %v2778
      %v2780 = vpop.f32.mrb[0].mxu0
      %v2781 = vpop.f32.mrb[0].mxu0
      %v2782 = vadd.f32 %v2669, %v2781
      %v2783 = vpop.f32.mrb[0].mxu0
      %2784 = vmatprep.mubr.bf16.mxu0 %v1864
      %2785 = vmatmul.mubr.bf16.gmra.mrb[0].mxu0 %v1863
      %v2786 = vpop.f32.mrb[0].mxu0
      %v2787 = vadd.f32 %v2674, %v2786
      %v2788 = vpop.f32.mrb[0].mxu0
      %v2789 = vpop.f32.mrb[0].mxu0
      %v2790 = vadd.f32 %v2677, %v2789
      %v2791 = vpop.f32.mrb[0].mxu0
      %2792 = vmatprep.mubr.bf16.mxu0 %v1873
      %2793 = vmatmul.mubr.bf16.gmra.mrb[0].mxu0 %v1872
      %v2794 = vpop.f32.mrb[0].mxu0
      %v2795 = vadd.f32 %v2682, %v2794
      %v2796 = vpop.f32.mrb[0].mxu0
      %v2797 = vpop.f32.mrb[0].mxu0
      %v2798 = vadd.f32 %v2685, %v2797
      %v2799 = vpop.f32.mrb[0].mxu0
      %2800 = vmatprep.mubr.bf16.mxu0 %v1882
      %2801 = vmatmul.mubr.bf16.gmra.mrb[0].mxu0 %v1881
      %v2802 = vpop.f32.mrb[0].mxu0
      %v2803 = vadd.f32 %v2690, %v2802
      %v2804 = vpop.f32.mrb[0].mxu0
      %v2805 = vpop.f32.mrb[0].mxu0
      %v2806 = vadd.f32 %v2693, %v2805
      %v2807 = vpop.f32.mrb[0].mxu0
      %2808 = vmatprep.mubr.bf16.mxu0 %v1891
      %2809 = vmatmul.mubr.bf16.gmra.mrb[0].mxu0 %v1890
      %v2810 = vpop.f32.mrb[0].mxu0
      %v2811 = vadd.f32 %v2698, %v2810
      %v2812 = vpop.f32.mrb[0].mxu0
      %v2813 = vpop.f32.mrb[0].mxu0
      %v2814 = vadd.f32 %v2701, %v2813
      %v2815 = vpop.f32.mrb[0].mxu0
      %2816 = vdwg.mxu0
      %2817 = vmatprep.subr.bf16.mxu0 0
      %2818 = vmatpush1.bf16.msra.mxu0 %v2382
      %2819 = vmatprep.subr.bf16.mxu0 0
      %2820 = vmatpush1.bf16.msra.mxu0 %v2383
      %2821 = vmatprep.subr.bf16.mxu0 0
      %2822 = vmatpush1.bf16.msra.mxu0 %v2384
      %2823 = vmatprep.subr.bf16.mxu0 0
      %2824 = vmatpush1.bf16.msra.mxu0 %v2385
      %2825 = vmatprep.subr.bf16.mxu0 0
      %2826 = vmatpush1.bf16.msra.mxu0 %v2386
      %2827 = vmatprep.subr.bf16.mxu0 0
      %2828 = vmatpush1.bf16.msra.mxu0 %v2387
      %2829 = vmatprep.subr.bf16.mxu0 0
      %2830 = vmatpush1.bf16.msra.mxu0 %v2388
      %2831 = vmatprep.subr.bf16.mxu0 0
      %2832 = vmatpush1.bf16.msra.mxu0 %v2389
      %2833 = vmatprep.subr.bf16.mxu0 0
      %2834 = vmatpush1.bf16.msra.mxu0 %v2390
      %2835 = vmatprep.subr.bf16.mxu0 0
      %2836 = vmatpush1.bf16.msra.mxu0 %v2391
      %2837 = vmatprep.subr.bf16.mxu0 0
      %2838 = vmatpush1.bf16.msra.mxu0 %v2392
      %2839 = vmatprep.subr.bf16.mxu0 0
      %2840 = vmatpush1.bf16.msra.mxu0 %v2393
      %2841 = vmatprep.subr.bf16.mxu0 0
      %2842 = vmatpush1.bf16.msra.mxu0 %v2394
      %2843 = vmatprep.subr.bf16.mxu0 0
      %2844 = vmatpush1.bf16.msra.mxu0 %v2395
      %2845 = vmatprep.subr.bf16.mxu0 0
      %2846 = vmatpush1.bf16.msra.mxu0 %v2396
      %2847 = vmatprep.subr.bf16.mxu0 0
      %2848 = vmatpush1.bf16.msra.mxu0 %v2397
      %2849 = vmatprep.mubr.bf16.mxu0 %v1812
      %2850 = vmatmul.mubr.bf16.gmra.mrb[0].mxu0 %v1811
      %v2851 = vpop.f32.mrb[0].mxu0
      %v2852 = vadd.f32 %v2739, %v2851
      %v2853 = vpop.f32.mrb[0].mxu0
      %v2854 = vpop.f32.mrb[0].mxu0
      %v2855 = vadd.f32 %v2742, %v2854
      %v2856 = vpop.f32.mrb[0].mxu0
      %2857 = vmatprep.mubr.bf16.mxu0 %v1821
      %2858 = vmatmul.mubr.bf16.gmra.mrb[0].mxu0 %v1820
      %v2859 = vpop.f32.mrb[0].mxu0
      %v2860 = vadd.f32 %v2747, %v2859
      %v2861 = vpop.f32.mrb[0].mxu0
      %v2862 = vpop.f32.mrb[0].mxu0
      %v2863 = vadd.f32 %v2750, %v2862
      %v2864 = vpop.f32.mrb[0].mxu0
      %2865 = vmatprep.mubr.bf16.mxu0 %v1830
      %2866 = vmatmul.mubr.bf16.gmra.mrb[0].mxu0 %v1829
      %v2867 = vpop.f32.mrb[0].mxu0
      %v2868 = vadd.f32 %v2755, %v2867
      %v2869 = vpop.f32.mrb[0].mxu0
      %v2870 = vpop.f32.mrb[0].mxu0
      %v2871 = vadd.f32 %v2758, %v2870
      %v2872 = vpop.f32.mrb[0].mxu0
      %2873 = vmatprep.mubr.bf16.mxu0 %v1839
      %2874 = vmatmul.mubr.bf16.gmra.mrb[0].mxu0 %v1838
      %v2875 = vpop.f32.mrb[0].mxu0
      %v2876 = vadd.f32 %v2763, %v2875
      %v2877 = vpop.f32.mrb[0].mxu0
      %v2878 = vpop.f32.mrb[0].mxu0
      %v2879 = vadd.f32 %v2766, %v2878
      %v2880 = vpop.f32.mrb[0].mxu0
      %2881 = vmatprep.mubr.bf16.mxu0 %v1848
      %2882 = vmatmul.mubr.bf16.gmra.mrb[0].mxu0 %v1847
      %v2883 = vpop.f32.mrb[0].mxu0
      %v2884 = vadd.f32 %v2771, %v2883
      %v2885 = vpop.f32.mrb[0].mxu0
      %v2886 = vpop.f32.mrb[0].mxu0
      %v2887 = vadd.f32 %v2774, %v2886
      %v2888 = vpop.f32.mrb[0].mxu0
      %2889 = vmatprep.mubr.bf16.mxu0 %v1857
      %2890 = vmatmul.mubr.bf16.gmra.mrb[0].mxu0 %v1856
      %v2891 = vpop.f32.mrb[0].mxu0
      %v2892 = vadd.f32 %v2779, %v2891
      %v2893 = vpop.f32.mrb[0].mxu0
      %v2894 = vpop.f32.mrb[0].mxu0
      %v2895 = vadd.f32 %v2782, %v2894
      %v2896 = vpop.f32.mrb[0].mxu0
      %2897 = vmatprep.mubr.bf16.mxu0 %v1866
      %2898 = vmatmul.mubr.bf16.gmra.mrb[0].mxu0 %v1865
      %v2899 = vpop.f32.mrb[0].mxu0
      %v2900 = vadd.f32 %v2787, %v2899
      %v2901 = vpop.f32.mrb[0].mxu0
      %v2902 = vpop.f32.mrb[0].mxu0
      %v2903 = vadd.f32 %v2790, %v2902
      %v2904 = vpop.f32.mrb[0].mxu0
      %2905 = vmatprep.mubr.bf16.mxu0 %v1875
      %2906 = vmatmul.mubr.bf16.gmra.mrb[0].mxu0 %v1874
      %v2907 = vpop.f32.mrb[0].mxu0
      %v2908 = vadd.f32 %v2795, %v2907
      %v2909 = vpop.f32.mrb[0].mxu0
      %v2910 = vpop.f32.mrb[0].mxu0
      %v2911 = vadd.f32 %v2798, %v2910
      %v2912 = vpop.f32.mrb[0].mxu0
      %2913 = vmatprep.mubr.bf16.mxu0 %v1884
      %2914 = vmatmul.mubr.bf16.gmra.mrb[0].mxu0 %v1883
      %v2915 = vpop.f32.mrb[0].mxu0
      %v2916 = vadd.f32 %v2803, %v2915
      %v2917 = vpop.f32.mrb[0].mxu0
      %v2918 = vpop.f32.mrb[0].mxu0
      %v2919 = vadd.f32 %v2806, %v2918
      %v2920 = vpop.f32.mrb[0].mxu0
      %2921 = vmatprep.mubr.bf16.mxu0 %v1893
      %2922 = vmatmul.mubr.bf16.gmra.mrb[0].mxu0 %v1892
      %v2923 = vpop.f32.mrb[0].mxu0
      %v2924 = vadd.f32 %v2811, %v2923
      %v2925 = vpop.f32.mrb[0].mxu0
      %v2926 = vpop.f32.mrb[0].mxu0
      %v2927 = vadd.f32 %v2814, %v2926
      %v2928 = vpop.f32.mrb[0].mxu0
      %2929 = vdwg.mxu0
      %2930 = vmatprep.subr.bf16.mxu0 0
      %2931 = vmatpush1.bf16.msra.mxu0 %v2398
      %2932 = vmatprep.subr.bf16.mxu0 0
      %2933 = vmatpush1.bf16.msra.mxu0 %v2399
      %2934 = vmatprep.subr.bf16.mxu0 0
      %2935 = vmatpush1.bf16.msra.mxu0 %v2400
      %2936 = vmatprep.subr.bf16.mxu0 0
      %2937 = vmatpush1.bf16.msra.mxu0 %v2401
      %2938 = vmatprep.subr.bf16.mxu0 0
      %2939 = vmatpush1.bf16.msra.mxu0 %v2402
      %2940 = vmatprep.subr.bf16.mxu0 0
      %2941 = vmatpush1.bf16.msra.mxu0 %v2403
      %2942 = vmatprep.subr.bf16.mxu0 0
      %2943 = vmatpush1.bf16.msra.mxu0 %v2404
      %2944 = vmatprep.subr.bf16.mxu0 0
      %2945 = vmatpush1.bf16.msra.mxu0 %v2405
      %2946 = vmatprep.subr.bf16.mxu0 0
      %2947 = vmatpush1.bf16.msra.mxu0 0
      %2948 = vmatprep.subr.bf16.mxu0 0
      %2949 = vmatpush1.bf16.msra.mxu0 0
      %2950 = vmatprep.subr.bf16.mxu0 0
      %2951 = vmatpush1.bf16.msra.mxu0 0
      %2952 = vmatprep.subr.bf16.mxu0 0
      %2953 = vmatpush1.bf16.msra.mxu0 0
      %2954 = vmatprep.subr.bf16.mxu0 0
      %2955 = vmatpush1.bf16.msra.mxu0 0
      %2956 = vmatprep.subr.bf16.mxu0 0
      %2957 = vmatpush1.bf16.msra.mxu0 0
      %2958 = vmatprep.subr.bf16.mxu0 0
      %2959 = vmatpush1.bf16.msra.mxu0 0
      %2960 = vmatprep.subr.bf16.mxu0 0
      %2961 = vmatpush1.bf16.msra.mxu0 0
      %2962 = vmatprep.mubr.bf16.mxu0 0
      %2963 = vmatmul.mubr.bf16.gmra.mrb[0].mxu0 %v1813
      %v2964 = vpop.f32.mrb[0].mxu0
      %v2965 = vadd.f32 %v2852, %v2964
      %v2966 = vpop.f32.mrb[0].mxu0
      %v2967 = vpop.f32.mrb[0].mxu0
      %v2968 = vadd.f32 %v2855, %v2967
      %v2969 = vpop.f32.mrb[0].mxu0
      %2970 = vmatprep.mubr.bf16.mxu0 0
      %2971 = vmatmul.mubr.bf16.gmra.mrb[0].mxu0 %v1822
      %v2972 = vpop.f32.mrb[0].mxu0
      %v2973 = vadd.f32 %v2860, %v2972
      %v2974 = vpop.f32.mrb[0].mxu0
      %v2975 = vpop.f32.mrb[0].mxu0
      %v2976 = vadd.f32 %v2863, %v2975
      %v2977 = vpop.f32.mrb[0].mxu0
      %2978 = vmatprep.mubr.bf16.mxu0 0
      %2979 = vmatmul.mubr.bf16.gmra.mrb[0].mxu0 %v1831
      %v2980 = vpop.f32.mrb[0].mxu0
      %v2981 = vadd.f32 %v2868, %v2980
      %v2982 = vpop.f32.mrb[0].mxu0
      %v2983 = vpop.f32.mrb[0].mxu0
      %v2984 = vadd.f32 %v2871, %v2983
      %v2985 = vpop.f32.mrb[0].mxu0
      %2986 = vmatprep.mubr.bf16.mxu0 0
      %2987 = vmatmul.mubr.bf16.gmra.mrb[0].mxu0 %v1840
      %v2988 = vpop.f32.mrb[0].mxu0
      %v2989 = vadd.f32 %v2876, %v2988
      %v2990 = vpop.f32.mrb[0].mxu0
      %v2991 = vpop.f32.mrb[0].mxu0
      %v2992 = vadd.f32 %v2879, %v2991
      %v2993 = vpop.f32.mrb[0].mxu0
      %2994 = vmatprep.mubr.bf16.mxu0 0
      %2995 = vmatmul.mubr.bf16.gmra.mrb[0].mxu0 %v1849
      %v2996 = vpop.f32.mrb[0].mxu0
      %v2997 = vadd.f32 %v2884, %v2996
      %v2998 = vpop.f32.mrb[0].mxu0
      %v2999 = vpop.f32.mrb[0].mxu0
      %v3000 = vadd.f32 %v2887, %v2999
      %v3001 = vpop.f32.mrb[0].mxu0
      %3002 = vmatprep.mubr.bf16.mxu0 0
      %3003 = vmatmul.mubr.bf16.gmra.mrb[0].mxu0 %v1858
      %v3004 = vpop.f32.mrb[0].mxu0
      %v3005 = vadd.f32 %v2892, %v3004
      %v3006 = vpop.f32.mrb[0].mxu0
      %v3007 = vpop.f32.mrb[0].mxu0
      %v3008 = vadd.f32 %v2895, %v3007
      %v3009 = vpop.f32.mrb[0].mxu0
      %3010 = vmatprep.mubr.bf16.mxu0 0
      %3011 = vmatmul.mubr.bf16.gmra.mrb[0].mxu0 %v1867
      %v3012 = vpop.f32.mrb[0].mxu0
      %v3013 = vadd.f32 %v2900, %v3012
      %v3014 = vpop.f32.mrb[0].mxu0
      %v3015 = vpop.f32.mrb[0].mxu0
      %v3016 = vadd.f32 %v2903, %v3015
      %v3017 = vpop.f32.mrb[0].mxu0
      %3018 = vmatprep.mubr.bf16.mxu0 0
      %3019 = vmatmul.mubr.bf16.gmra.mrb[0].mxu0 %v1876
      %v3020 = vpop.f32.mrb[0].mxu0
      %v3021 = vadd.f32 %v2908, %v3020
      %v3022 = vpop.f32.mrb[0].mxu0
      %v3023 = vpop.f32.mrb[0].mxu0
      %v3024 = vadd.f32 %v2911, %v3023
      %v3025 = vpop.f32.mrb[0].mxu0
      %3026 = vmatprep.mubr.bf16.mxu0 0
      %3027 = vmatmul.mubr.bf16.gmra.mrb[0].mxu0 %v1885
      %v3028 = vpop.f32.mrb[0].mxu0
      %v3029 = vadd.f32 %v2916, %v3028
      %v3030 = vpop.f32.mrb[0].mxu0
      %v3031 = vpop.f32.mrb[0].mxu0
      %v3032 = vadd.f32 %v2919, %v3031
      %v3033 = vpop.f32.mrb[0].mxu0
      %3034 = vmatprep.mubr.bf16.mxu0 0
      %3035 = vmatmul.mubr.bf16.gmra.mrb[0].mxu0 %v1894
      %v3036 = vpop.f32.mrb[0].mxu0
      %v3037 = vadd.f32 %v2924, %v3036
      %v3038 = vpop.f32.mrb[0].mxu0
      %v3039 = vpop.f32.mrb[0].mxu0
      %v3040 = vadd.f32 %v2927, %v3039
      %v3041 = vpop.f32.mrb[0].mxu0
      %3042 = vdwg.mxu0
      %v3043 = vmul.f32 %v2965, 0.5
      %v3044 = vmul.f32 %v2968, 0.5
      %v3045 = vmul.f32 %v2973, 0.5
      %v3046 = vmul.f32 %v2976, 0.5
      %v3047 = vmul.f32 %v2981, 0.5
      %v3048 = vmul.f32 %v2984, 0.5
      %v3049 = vmul.f32 %v2989, 0.5
      %v3050 = vmul.f32 %v2992, 0.5
      %v3051 = vmul.f32 %v2997, 0.5
      %v3052 = vmul.f32 %v3000, 0.5
      %v3053 = vmul.f32 %v3005, 0.5
      %v3054 = vmul.f32 %v3008, 0.5
      %v3055 = vmul.f32 %v3013, 0.5
      %v3056 = vmul.f32 %v3016, 0.5
      %v3057 = vmul.f32 %v3021, 0.5
      %v3058 = vmul.f32 %v3024, 0.5
      %v3059 = vmul.f32 %v3029, 0.5
      %v3060 = vmul.f32 %v3032, 0.5
      %v3061 = vmul.f32 %v3037, 0.5
      %v3062 = vmul.f32 %v3040, 0.5
      %v3063 = vmul.f32 %v2965, 0.70710677
      %v3064 = vmul.f32 %v2968, 0.70710677
      %v3065 = vmul.f32 %v2973, 0.70710677
      %v3066 = vmul.f32 %v2976, 0.70710677
      %v3067 = vmul.f32 %v2981, 0.70710677
      %v3068 = vmul.f32 %v2984, 0.70710677
      %v3069 = vmul.f32 %v2989, 0.70710677
      %v3070 = vmul.f32 %v2992, 0.70710677
      %v3071 = vmul.f32 %v2997, 0.70710677
      %v3072 = vmul.f32 %v3000, 0.70710677
      %v3073 = vmul.f32 %v3005, 0.70710677
      %v3074 = vmul.f32 %v3008, 0.70710677
      %v3075 = vmul.f32 %v3013, 0.70710677
      %v3076 = vmul.f32 %v3016, 0.70710677
      %v3077 = vmul.f32 %v3021, 0.70710677
      %v3078 = vmul.f32 %v3024, 0.70710677
      %v3079 = vmul.f32 %v3029, 0.70710677
      %v3080 = vmul.f32 %v3032, 0.70710677
      %v3081 = vmul.f32 %v3037, 0.70710677
      %v3082 = vmul.f32 %v3040, 0.70710677
      %vm3083 = vcmp.lt.f32.partialorder %v3063, 0.0
      %vm3084 = vcmp.lt.f32.partialorder %v3064, 0.0
      %vm3085 = vcmp.lt.f32.partialorder %v3065, 0.0
      %vm3086 = vcmp.lt.f32.partialorder %v3066, 0.0
      %vm3087 = vcmp.lt.f32.partialorder %v3067, 0.0
      %vm3088 = vcmp.lt.f32.partialorder %v3068, 0.0
      %vm3089 = vcmp.lt.f32.partialorder %v3069, 0.0
      %vm3090 = vcmp.lt.f32.partialorder %v3070, 0.0
      %vm3091 = vcmp.lt.f32.partialorder %v3071, 0.0
      %vm3092 = vcmp.lt.f32.partialorder %v3072, 0.0
      %vm3093 = vcmp.lt.f32.partialorder %v3073, 0.0
      %vm3094 = vcmp.lt.f32.partialorder %v3074, 0.0
      %vm3095 = vcmp.lt.f32.partialorder %v3075, 0.0
      %vm3096 = vcmp.lt.f32.partialorder %v3076, 0.0
      %vm3097 = vcmp.lt.f32.partialorder %v3077, 0.0
      %vm3098 = vcmp.lt.f32.partialorder %v3078, 0.0
      %vm3099 = vcmp.lt.f32.partialorder %v3079, 0.0
      %vm3100 = vcmp.lt.f32.partialorder %v3080, 0.0
      %vm3101 = vcmp.lt.f32.partialorder %v3081, 0.0
      %vm3102 = vcmp.lt.f32.partialorder %v3082, 0.0
      %v3103 = vsel %vm3083, -1.0, 1.0
      %v3104 = vsel %vm3084, -1.0, 1.0
      %v3105 = vsel %vm3085, -1.0, 1.0
      %v3106 = vsel %vm3086, -1.0, 1.0
      %v3107 = vsel %vm3087, -1.0, 1.0
      %v3108 = vsel %vm3088, -1.0, 1.0
      %v3109 = vsel %vm3089, -1.0, 1.0
      %v3110 = vsel %vm3090, -1.0, 1.0
      %v3111 = vsel %vm3091, -1.0, 1.0
      %v3112 = vsel %vm3092, -1.0, 1.0
      %v3113 = vsel %vm3093, -1.0, 1.0
      %v3114 = vsel %vm3094, -1.0, 1.0
      %v3115 = vsel %vm3095, -1.0, 1.0
      %v3116 = vsel %vm3096, -1.0, 1.0
      %v3117 = vsel %vm3097, -1.0, 1.0
      %v3118 = vsel %vm3098, -1.0, 1.0
      %v3119 = vsel %vm3099, -1.0, 1.0
      %v3120 = vsel %vm3100, -1.0, 1.0
      %v3121 = vsel %vm3101, -1.0, 1.0
      %v3122 = vsel %vm3102, -1.0, 1.0
      %v3123 = vand.u32 2147483647, %v3063
      %v3124 = vand.u32 2147483647, %v3064
      %v3125 = vand.u32 2147483647, %v3065
      %v3126 = vand.u32 2147483647, %v3066
      %v3127 = vand.u32 2147483647, %v3067
      %v3128 = vand.u32 2147483647, %v3068
      %v3129 = vand.u32 2147483647, %v3069
      %v3130 = vand.u32 2147483647, %v3070
      %v3131 = vand.u32 2147483647, %v3071
      %v3132 = vand.u32 2147483647, %v3072
      %v3133 = vand.u32 2147483647, %v3073
      %v3134 = vand.u32 2147483647, %v3074
      %v3135 = vand.u32 2147483647, %v3075
      %v3136 = vand.u32 2147483647, %v3076
      %v3137 = vand.u32 2147483647, %v3077
      %v3138 = vand.u32 2147483647, %v3078
      %v3139 = vand.u32 2147483647, %v3079
      %v3140 = vand.u32 2147483647, %v3080
      %v3141 = vand.u32 2147483647, %v3081
      %v3142 = vand.u32 2147483647, %v3082
      %v3143 = vmul.f32 %v3123, 0.3275911
      %v3144 = vmul.f32 %v3124, 0.3275911
      %v3145 = vmul.f32 %v3125, 0.3275911
      %v3146 = vmul.f32 %v3126, 0.3275911
      %v3147 = vmul.f32 %v3127, 0.3275911
      %v3148 = vmul.f32 %v3128, 0.3275911
      %v3149 = vmul.f32 %v3129, 0.3275911
      %v3150 = vmul.f32 %v3130, 0.3275911
      %v3151 = vmul.f32 %v3131, 0.3275911
      %v3152 = vmul.f32 %v3132, 0.3275911
      %v3153 = vmul.f32 %v3133, 0.3275911
      %v3154 = vmul.f32 %v3134, 0.3275911
      %v3155 = vmul.f32 %v3135, 0.3275911
      %v3156 = vmul.f32 %v3136, 0.3275911
      %v3157 = vmul.f32 %v3137, 0.3275911
      %v3158 = vmul.f32 %v3138, 0.3275911
      %v3159 = vmul.f32 %v3139, 0.3275911
      %v3160 = vmul.f32 %v3140, 0.3275911
      %v3161 = vmul.f32 %v3141, 0.3275911
      %v3162 = vmul.f32 %v3142, 0.3275911
      %v3163 = vadd.f32 %v3143, 1.0
      %v3164 = vadd.f32 %v3144, 1.0
      %v3165 = vadd.f32 %v3145, 1.0
      %v3166 = vadd.f32 %v3146, 1.0
      %v3167 = vadd.f32 %v3147, 1.0
      %v3168 = vadd.f32 %v3148, 1.0
      %v3169 = vadd.f32 %v3149, 1.0
      %v3170 = vadd.f32 %v3150, 1.0
      %v3171 = vadd.f32 %v3151, 1.0
      %v3172 = vadd.f32 %v3152, 1.0
      %v3173 = vadd.f32 %v3153, 1.0
      %v3174 = vadd.f32 %v3154, 1.0
      %v3175 = vadd.f32 %v3155, 1.0
      %v3176 = vadd.f32 %v3156, 1.0
      %v3177 = vadd.f32 %v3157, 1.0
      %v3178 = vadd.f32 %v3158, 1.0
      %v3179 = vadd.f32 %v3159, 1.0
      %v3180 = vadd.f32 %v3160, 1.0
      %v3181 = vadd.f32 %v3161, 1.0
      %v3182 = vadd.f32 %v3162, 1.0
      %v3183 = vrcp.pop %v3163
      %v3184 = vrcp.pop %v3164
      %v3185 = vrcp.pop %v3165
      %v3186 = vrcp.pop %v3166
      %v3187 = vrcp.pop %v3167
      %v3188 = vrcp.pop %v3168
      %v3189 = vrcp.pop %v3169
      %v3190 = vrcp.pop %v3170
      %v3191 = vrcp.pop %v3171
      %v3192 = vrcp.pop %v3172
      %v3193 = vrcp.pop %v3173
      %v3194 = vrcp.pop %v3174
      %v3195 = vrcp.pop %v3175
      %v3196 = vrcp.pop %v3176
      %v3197 = vrcp.pop %v3177
      %v3198 = vrcp.pop %v3178
      %v3199 = vrcp.pop %v3179
      %v3200 = vrcp.pop %v3180
      %v3201 = vrcp.pop %v3181
      %v3202 = vrcp.pop %v3182
      %v3203 = vmul.f32 %v3183, 1.0614054
      %v3204 = vmul.f32 %v3184, 1.0614054
      %v3205 = vmul.f32 %v3185, 1.0614054
      %v3206 = vmul.f32 %v3186, 1.0614054
      %v3207 = vmul.f32 %v3187, 1.0614054
      %v3208 = vmul.f32 %v3188, 1.0614054
      %v3209 = vmul.f32 %v3189, 1.0614054
      %v3210 = vmul.f32 %v3190, 1.0614054
      %v3211 = vmul.f32 %v3191, 1.0614054
      %v3212 = vmul.f32 %v3192, 1.0614054
      %v3213 = vmul.f32 %v3193, 1.0614054
      %v3214 = vmul.f32 %v3194, 1.0614054
      %v3215 = vmul.f32 %v3195, 1.0614054
      %v3216 = vmul.f32 %v3196, 1.0614054
      %v3217 = vmul.f32 %v3197, 1.0614054
      %v3218 = vmul.f32 %v3198, 1.0614054
      %v3219 = vmul.f32 %v3199, 1.0614054
      %v3220 = vmul.f32 %v3200, 1.0614054
      %v3221 = vmul.f32 %v3201, 1.0614054
      %v3222 = vmul.f32 %v3202, 1.0614054
      %v3223 = vadd.f32 %v3203, -1.4531521
      %v3224 = vadd.f32 %v3204, -1.4531521
      %v3225 = vadd.f32 %v3205, -1.4531521
      %v3226 = vadd.f32 %v3206, -1.4531521
      %v3227 = vadd.f32 %v3207, -1.4531521
      %v3228 = vadd.f32 %v3208, -1.4531521
      %v3229 = vadd.f32 %v3209, -1.4531521
      %v3230 = vadd.f32 %v3210, -1.4531521
      %v3231 = vadd.f32 %v3211, -1.4531521
      %v3232 = vadd.f32 %v3212, -1.4531521
      %v3233 = vadd.f32 %v3213, -1.4531521
      %v3234 = vadd.f32 %v3214, -1.4531521
      %v3235 = vadd.f32 %v3215, -1.4531521
      %v3236 = vadd.f32 %v3216, -1.4531521
      %v3237 = vadd.f32 %v3217, -1.4531521
      %v3238 = vadd.f32 %v3218, -1.4531521
      %v3239 = vadd.f32 %v3219, -1.4531521
      %v3240 = vadd.f32 %v3220, -1.4531521
      %v3241 = vadd.f32 %v3221, -1.4531521
      %v3242 = vadd.f32 %v3222, -1.4531521
      %v3243 = vmul.f32 %v3223, %v3183
      %v3244 = vmul.f32 %v3224, %v3184
      %v3245 = vmul.f32 %v3225, %v3185
      %v3246 = vmul.f32 %v3226, %v3186
      %v3247 = vmul.f32 %v3227, %v3187
      %v3248 = vmul.f32 %v3228, %v3188
      %v3249 = vmul.f32 %v3229, %v3189
      %v3250 = vmul.f32 %v3230, %v3190
      %v3251 = vmul.f32 %v3231, %v3191
      %v3252 = vmul.f32 %v3232, %v3192
      %v3253 = vmul.f32 %v3233, %v3193
      %v3254 = vmul.f32 %v3234, %v3194
      %v3255 = vmul.f32 %v3235, %v3195
      %v3256 = vmul.f32 %v3236, %v3196
      %v3257 = vmul.f32 %v3237, %v3197
      %v3258 = vmul.f32 %v3238, %v3198
      %v3259 = vmul.f32 %v3239, %v3199
      %v3260 = vmul.f32 %v3240, %v3200
      %v3261 = vmul.f32 %v3241, %v3201
      %v3262 = vmul.f32 %v3242, %v3202
      %v3263 = vadd.f32 %v3243, 1.4214138
      %v3264 = vadd.f32 %v3244, 1.4214138
      %v3265 = vadd.f32 %v3245, 1.4214138
      %v3266 = vadd.f32 %v3246, 1.4214138
      %v3267 = vadd.f32 %v3247, 1.4214138
      %v3268 = vadd.f32 %v3248, 1.4214138
      %v3269 = vadd.f32 %v3249, 1.4214138
      %v3270 = vadd.f32 %v3250, 1.4214138
      %v3271 = vadd.f32 %v3251, 1.4214138
      %v3272 = vadd.f32 %v3252, 1.4214138
      %v3273 = vadd.f32 %v3253, 1.4214138
      %v3274 = vadd.f32 %v3254, 1.4214138
      %v3275 = vadd.f32 %v3255, 1.4214138
      %v3276 = vadd.f32 %v3256, 1.4214138
      %v3277 = vadd.f32 %v3257, 1.4214138
      %v3278 = vadd.f32 %v3258, 1.4214138
      %v3279 = vadd.f32 %v3259, 1.4214138
      %v3280 = vadd.f32 %v3260, 1.4214138
      %v3281 = vadd.f32 %v3261, 1.4214138
      %v3282 = vadd.f32 %v3262, 1.4214138
      %v3283 = vmul.f32 %v3263, %v3183
      %v3284 = vmul.f32 %v3264, %v3184
      %v3285 = vmul.f32 %v3265, %v3185
      %v3286 = vmul.f32 %v3266, %v3186
      %v3287 = vmul.f32 %v3267, %v3187
      %v3288 = vmul.f32 %v3268, %v3188
      %v3289 = vmul.f32 %v3269, %v3189
      %v3290 = vmul.f32 %v3270, %v3190
      %v3291 = vmul.f32 %v3271, %v3191
      %v3292 = vmul.f32 %v3272, %v3192
      %v3293 = vmul.f32 %v3273, %v3193
      %v3294 = vmul.f32 %v3274, %v3194
      %v3295 = vmul.f32 %v3275, %v3195
      %v3296 = vmul.f32 %v3276, %v3196
      %v3297 = vmul.f32 %v3277, %v3197
      %v3298 = vmul.f32 %v3278, %v3198
      %v3299 = vmul.f32 %v3279, %v3199
      %v3300 = vmul.f32 %v3280, %v3200
      %v3301 = vmul.f32 %v3281, %v3201
      %v3302 = vmul.f32 %v3282, %v3202
      %v3303 = vadd.f32 %v3283, -0.28449672
      %v3304 = vadd.f32 %v3284, -0.28449672
      %v3305 = vadd.f32 %v3285, -0.28449672
      %v3306 = vadd.f32 %v3286, -0.28449672
      %v3307 = vadd.f32 %v3287, -0.28449672
      %v3308 = vadd.f32 %v3288, -0.28449672
      %v3309 = vadd.f32 %v3289, -0.28449672
      %v3310 = vadd.f32 %v3290, -0.28449672
      %v3311 = vadd.f32 %v3291, -0.28449672
      %v3312 = vadd.f32 %v3292, -0.28449672
      %v3313 = vadd.f32 %v3293, -0.28449672
      %v3314 = vadd.f32 %v3294, -0.28449672
      %v3315 = vadd.f32 %v3295, -0.28449672
      %v3316 = vadd.f32 %v3296, -0.28449672
      %v3317 = vadd.f32 %v3297, -0.28449672
      %v3318 = vadd.f32 %v3298, -0.28449672
      %v3319 = vadd.f32 %v3299, -0.28449672
      %v3320 = vadd.f32 %v3300, -0.28449672
      %v3321 = vadd.f32 %v3301, -0.28449672
      %v3322 = vadd.f32 %v3302, -0.28449672
      %v3323 = vmul.f32 %v3303, %v3183
      %v3324 = vmul.f32 %v3304, %v3184
      %v3325 = vmul.f32 %v3305, %v3185
      %v3326 = vmul.f32 %v3306, %v3186
      %v3327 = vmul.f32 %v3307, %v3187
      %v3328 = vmul.f32 %v3308, %v3188
      %v3329 = vmul.f32 %v3309, %v3189
      %v3330 = vmul.f32 %v3310, %v3190
      %v3331 = vmul.f32 %v3311, %v3191
      %v3332 = vmul.f32 %v3312, %v3192
      %v3333 = vmul.f32 %v3313, %v3193
      %v3334 = vmul.f32 %v3314, %v3194
      %v3335 = vmul.f32 %v3315, %v3195
      %v3336 = vmul.f32 %v3316, %v3196
      %v3337 = vmul.f32 %v3317, %v3197
      %v3338 = vmul.f32 %v3318, %v3198
      %v3339 = vmul.f32 %v3319, %v3199
      %v3340 = vmul.f32 %v3320, %v3200
      %v3341 = vmul.f32 %v3321, %v3201
      %v3342 = vmul.f32 %v3322, %v3202
      %v3343 = vadd.f32 %v3323, 0.2548296
      %v3344 = vadd.f32 %v3324, 0.2548296
      %v3345 = vadd.f32 %v3325, 0.2548296
      %v3346 = vadd.f32 %v3326, 0.2548296
      %v3347 = vadd.f32 %v3327, 0.2548296
      %v3348 = vadd.f32 %v3328, 0.2548296
      %v3349 = vadd.f32 %v3329, 0.2548296
      %v3350 = vadd.f32 %v3330, 0.2548296
      %v3351 = vadd.f32 %v3331, 0.2548296
      %v3352 = vadd.f32 %v3332, 0.2548296
      %v3353 = vadd.f32 %v3333, 0.2548296
      %v3354 = vadd.f32 %v3334, 0.2548296
      %v3355 = vadd.f32 %v3335, 0.2548296
      %v3356 = vadd.f32 %v3336, 0.2548296
      %v3357 = vadd.f32 %v3337, 0.2548296
      %v3358 = vadd.f32 %v3338, 0.2548296
      %v3359 = vadd.f32 %v3339, 0.2548296
      %v3360 = vadd.f32 %v3340, 0.2548296
      %v3361 = vadd.f32 %v3341, 0.2548296
      %v3362 = vadd.f32 %v3342, 0.2548296
      %v3363 = vmul.f32 %v3343, %v3183
      %v3364 = vmul.f32 %v3344, %v3184
      %v3365 = vmul.f32 %v3345, %v3185
      %v3366 = vmul.f32 %v3346, %v3186
      %v3367 = vmul.f32 %v3347, %v3187
      %v3368 = vmul.f32 %v3348, %v3188
      %v3369 = vmul.f32 %v3349, %v3189
      %v3370 = vmul.f32 %v3350, %v3190
      %v3371 = vmul.f32 %v3351, %v3191
      %v3372 = vmul.f32 %v3352, %v3192
      %v3373 = vmul.f32 %v3353, %v3193
      %v3374 = vmul.f32 %v3354, %v3194
      %v3375 = vmul.f32 %v3355, %v3195
      %v3376 = vmul.f32 %v3356, %v3196
      %v3377 = vmul.f32 %v3357, %v3197
      %v3378 = vmul.f32 %v3358, %v3198
      %v3379 = vmul.f32 %v3359, %v3199
      %v3380 = vmul.f32 %v3360, %v3200
      %v3381 = vmul.f32 %v3361, %v3201
      %v3382 = vmul.f32 %v3362, %v3202
      %v3383 = vmul.f32 %v3123, %v3123
      %v3384 = vmul.f32 %v3124, %v3124
      %v3385 = vmul.f32 %v3125, %v3125
      %v3386 = vmul.f32 %v3126, %v3126
      %v3387 = vmul.f32 %v3127, %v3127
      %v3388 = vmul.f32 %v3128, %v3128
      %v3389 = vmul.f32 %v3129, %v3129
      %v3390 = vmul.f32 %v3130, %v3130
      %v3391 = vmul.f32 %v3131, %v3131
      %v3392 = vmul.f32 %v3132, %v3132
      %v3393 = vmul.f32 %v3133, %v3133
      %v3394 = vmul.f32 %v3134, %v3134
      %v3395 = vmul.f32 %v3135, %v3135
      %v3396 = vmul.f32 %v3136, %v3136
      %v3397 = vmul.f32 %v3137, %v3137
      %v3398 = vmul.f32 %v3138, %v3138
      %v3399 = vmul.f32 %v3139, %v3139
      %v3400 = vmul.f32 %v3140, %v3140
      %v3401 = vmul.f32 %v3141, %v3141
      %v3402 = vmul.f32 %v3142, %v3142
      %v3403 = vsub.f32 0.0, %v3383
      %v3404 = vsub.f32 0.0, %v3384
      %v3405 = vsub.f32 0.0, %v3385
      %v3406 = vsub.f32 0.0, %v3386
      %v3407 = vsub.f32 0.0, %v3387
      %v3408 = vsub.f32 0.0, %v3388
      %v3409 = vsub.f32 0.0, %v3389
      %v3410 = vsub.f32 0.0, %v3390
      %v3411 = vsub.f32 0.0, %v3391
      %v3412 = vsub.f32 0.0, %v3392
      %v3413 = vsub.f32 0.0, %v3393
      %v3414 = vsub.f32 0.0, %v3394
      %v3415 = vsub.f32 0.0, %v3395
      %v3416 = vsub.f32 0.0, %v3396
      %v3417 = vsub.f32 0.0, %v3397
      %v3418 = vsub.f32 0.0, %v3398
      %v3419 = vsub.f32 0.0, %v3399
      %v3420 = vsub.f32 0.0, %v3400
      %v3421 = vsub.f32 0.0, %v3401
      %v3422 = vsub.f32 0.0, %v3402
      %v3423 = vmul.f32 %v3403, 1.442695
      %v3424 = vpow.pop %v3423
      %v3425 = vmul.f32 %v3404, 1.442695
      %v3426 = vpow.pop %v3425
      %v3427 = vmul.f32 %v3405, 1.442695
      %v3428 = vpow.pop %v3427
      %v3429 = vmul.f32 %v3406, 1.442695
      %v3430 = vpow.pop %v3429
      %v3431 = vmul.f32 %v3407, 1.442695
      %v3432 = vpow.pop %v3431
      %v3433 = vmul.f32 %v3408, 1.442695
      %v3434 = vpow.pop %v3433
      %v3435 = vmul.f32 %v3409, 1.442695
      %v3436 = vpow.pop %v3435
      %v3437 = vmul.f32 %v3410, 1.442695
      %v3438 = vpow.pop %v3437
      %v3439 = vmul.f32 %v3411, 1.442695
      %v3440 = vpow.pop %v3439
      %v3441 = vmul.f32 %v3412, 1.442695
      %v3442 = vpow.pop %v3441
      %v3443 = vmul.f32 %v3413, 1.442695
      %v3444 = vpow.pop %v3443
      %v3445 = vmul.f32 %v3414, 1.442695
      %v3446 = vpow.pop %v3445
      %v3447 = vmul.f32 %v3415, 1.442695
      %v3448 = vpow.pop %v3447
      %v3449 = vmul.f32 %v3416, 1.442695
      %v3450 = vpow.pop %v3449
      %v3451 = vmul.f32 %v3417, 1.442695
      %v3452 = vpow.pop %v3451
      %v3453 = vmul.f32 %v3418, 1.442695
      %v3454 = vpow.pop %v3453
      %v3455 = vmul.f32 %v3419, 1.442695
      %v3456 = vpow.pop %v3455
      %v3457 = vmul.f32 %v3420, 1.442695
      %v3458 = vpow.pop %v3457
      %v3459 = vmul.f32 %v3421, 1.442695
      %v3460 = vpow.pop %v3459
      %v3461 = vmul.f32 %v3422, 1.442695
      %v3462 = vpow.pop %v3461
      %v3463 = vmul.f32 %v3363, %v3424
      %v3464 = vmul.f32 %v3364, %v3426
      %v3465 = vmul.f32 %v3365, %v3428
      %v3466 = vmul.f32 %v3366, %v3430
      %v3467 = vmul.f32 %v3367, %v3432
      %v3468 = vmul.f32 %v3368, %v3434
      %v3469 = vmul.f32 %v3369, %v3436
      %v3470 = vmul.f32 %v3370, %v3438
      %v3471 = vmul.f32 %v3371, %v3440
      %v3472 = vmul.f32 %v3372, %v3442
      %v3473 = vmul.f32 %v3373, %v3444
      %v3474 = vmul.f32 %v3374, %v3446
      %v3475 = vmul.f32 %v3375, %v3448
      %v3476 = vmul.f32 %v3376, %v3450
      %v3477 = vmul.f32 %v3377, %v3452
      %v3478 = vmul.f32 %v3378, %v3454
      %v3479 = vmul.f32 %v3379, %v3456
      %v3480 = vmul.f32 %v3380, %v3458
      %v3481 = vmul.f32 %v3381, %v3460
      %v3482 = vmul.f32 %v3382, %v3462
      %v3483 = vsub.f32 1.0, %v3463
      %v3484 = vsub.f32 1.0, %v3464
      %v3485 = vsub.f32 1.0, %v3465
      %v3486 = vsub.f32 1.0, %v3466
      %v3487 = vsub.f32 1.0, %v3467
      %v3488 = vsub.f32 1.0, %v3468
      %v3489 = vsub.f32 1.0, %v3469
      %v3490 = vsub.f32 1.0, %v3470
      %v3491 = vsub.f32 1.0, %v3471
      %v3492 = vsub.f32 1.0, %v3472
      %v3493 = vsub.f32 1.0, %v3473
      %v3494 = vsub.f32 1.0, %v3474
      %v3495 = vsub.f32 1.0, %v3475
      %v3496 = vsub.f32 1.0, %v3476
      %v3497 = vsub.f32 1.0, %v3477
      %v3498 = vsub.f32 1.0, %v3478
      %v3499 = vsub.f32 1.0, %v3479
      %v3500 = vsub.f32 1.0, %v3480
      %v3501 = vsub.f32 1.0, %v3481
      %v3502 = vsub.f32 1.0, %v3482
      %v3503 = vmul.f32 %v3103, %v3483
      %v3504 = vmul.f32 %v3104, %v3484
      %v3505 = vmul.f32 %v3105, %v3485
      %v3506 = vmul.f32 %v3106, %v3486
      %v3507 = vmul.f32 %v3107, %v3487
      %v3508 = vmul.f32 %v3108, %v3488
      %v3509 = vmul.f32 %v3109, %v3489
      %v3510 = vmul.f32 %v3110, %v3490
      %v3511 = vmul.f32 %v3111, %v3491
      %v3512 = vmul.f32 %v3112, %v3492
      %v3513 = vmul.f32 %v3113, %v3493
      %v3514 = vmul.f32 %v3114, %v3494
      %v3515 = vmul.f32 %v3115, %v3495
      %v3516 = vmul.f32 %v3116, %v3496
      %v3517 = vmul.f32 %v3117, %v3497
      %v3518 = vmul.f32 %v3118, %v3498
      %v3519 = vmul.f32 %v3119, %v3499
      %v3520 = vmul.f32 %v3120, %v3500
      %v3521 = vmul.f32 %v3121, %v3501
      %v3522 = vmul.f32 %v3122, %v3502
      %v3523 = vadd.f32 %v3503, 1.0
      %v3524 = vadd.f32 %v3504, 1.0
      %v3525 = vadd.f32 %v3505, 1.0
      %v3526 = vadd.f32 %v3506, 1.0
      %v3527 = vadd.f32 %v3507, 1.0
      %v3528 = vadd.f32 %v3508, 1.0
      %v3529 = vadd.f32 %v3509, 1.0
      %v3530 = vadd.f32 %v3510, 1.0
      %v3531 = vadd.f32 %v3511, 1.0
      %v3532 = vadd.f32 %v3512, 1.0
      %v3533 = vadd.f32 %v3513, 1.0
      %v3534 = vadd.f32 %v3514, 1.0
      %v3535 = vadd.f32 %v3515, 1.0
      %v3536 = vadd.f32 %v3516, 1.0
      %v3537 = vadd.f32 %v3517, 1.0
      %v3538 = vadd.f32 %v3518, 1.0
      %v3539 = vadd.f32 %v3519, 1.0
      %v3540 = vadd.f32 %v3520, 1.0
      %v3541 = vadd.f32 %v3521, 1.0
      %v3542 = vadd.f32 %v3522, 1.0
      %v3543 = vmul.f32 %v3043, %v3523
      %v3544 = vmul.f32 %v3044, %v3524
      %v3545 = vmul.f32 %v3045, %v3525
      %v3546 = vmul.f32 %v3046, %v3526
      %v3547 = vmul.f32 %v3047, %v3527
      %v3548 = vmul.f32 %v3048, %v3528
      %v3549 = vmul.f32 %v3049, %v3529
      %v3550 = vmul.f32 %v3050, %v3530
      %v3551 = vmul.f32 %v3051, %v3531
      %v3552 = vmul.f32 %v3052, %v3532
      %v3553 = vmul.f32 %v3053, %v3533
      %v3554 = vmul.f32 %v3054, %v3534
      %v3555 = vmul.f32 %v3055, %v3535
      %v3556 = vmul.f32 %v3056, %v3536
      %v3557 = vmul.f32 %v3057, %v3537
      %v3558 = vmul.f32 %v3058, %v3538
      %v3559 = vmul.f32 %v3059, %v3539
      %v3560 = vmul.f32 %v3060, %v3540
      %v3561 = vmul.f32 %v3061, %v3541
      %v3562 = vmul.f32 %v3062, %v3542
      %vm3563 = vcmask 338944
      %3564 = vst.msk [vmem:[#allocation3] sm:$0xf] %vm3563, 0
      %3565 = vst.msk [vmem:[#allocation3 + $0x10] sm:$0xf] %vm3563, 0
      %3566 = vst.msk [vmem:[#allocation3 + $0x20] sm:$0xf] %vm3563, 0
      %3567 = vst.msk [vmem:[#allocation3 + $0x30] sm:$0xf] %vm3563, 0
      %3568 = vst.msk [vmem:[#allocation3 + $0x40] sm:$0xf] %vm3563, 0
      %3569 = vst.msk [vmem:[#allocation3 + $0x50] sm:$0xf] %vm3563, 0
      %3570 = vst.msk [vmem:[#allocation3 + $0x60] sm:$0xf] %vm3563, 0
      %3571 = vst.msk [vmem:[#allocation3 + $0x70] sm:$0xf] %vm3563, 0
      %3572 = vst.msk [vmem:[#allocation3 + $0x80] sm:$0xf] %vm3563, 0
      %3573 = vst.msk [vmem:[#allocation3 + $0x90] sm:$0xf] %vm3563, 0
      %vm3574 = vcmask 343044
      %3575 = vst.msk [vmem:[#allocation3 + $0x8] sm:$0xf0] %vm3574, 0
      %3576 = vst.msk [vmem:[#allocation3 + $0x18] sm:$0xf0] %vm3574, 0
      %3577 = vst.msk [vmem:[#allocation3 + $0x28] sm:$0xf0] %vm3574, 0
      %3578 = vst.msk [vmem:[#allocation3 + $0x38] sm:$0xf0] %vm3574, 0
      %3579 = vst.msk [vmem:[#allocation3 + $0x48] sm:$0xf0] %vm3574, 0
      %3580 = vst.msk [vmem:[#allocation3 + $0x58] sm:$0xf0] %vm3574, 0
      %3581 = vst.msk [vmem:[#allocation3 + $0x68] sm:$0xf0] %vm3574, 0
      %3582 = vst.msk [vmem:[#allocation3 + $0x78] sm:$0xf0] %vm3574, 0
      %3583 = vst.msk [vmem:[#allocation3 + $0x88] sm:$0xf0] %vm3574, 0
      %3584 = vst.msk [vmem:[#allocation3 + $0x98] sm:$0xf0] %vm3574, 0
      %v3585 = vpack.c.bf16 %v3544, %v3543
      %v3586 = vpack.c.bf16 %v3546, %v3545
      %v3587 = vpack.c.bf16 %v3548, %v3547
      %v3588 = vpack.c.bf16 %v3550, %v3549
      %v3589 = vpack.c.bf16 %v3552, %v3551
      %v3590 = vpack.c.bf16 %v3554, %v3553
      %v3591 = vpack.c.bf16 %v3556, %v3555
      %v3592 = vpack.c.bf16 %v3558, %v3557
      %v3593 = vpack.c.bf16 %v3560, %v3559
      %v3594 = vpack.c.bf16 %v3562, %v3561
      %v3605 = vrot.slane %v3585, 4
      %v3606 = vrot.slane %v3586, 4
      %v3607 = vrot.slane %v3587, 4
      %v3608 = vrot.slane %v3588, 4
      %v3609 = vrot.slane %v3589, 4
      %v3610 = vrot.slane %v3590, 4
      %v3611 = vrot.slane %v3591, 4
      %v3612 = vrot.slane %v3592, 4
      %v3613 = vrot.slane %v3593, 4
      %v3614 = vrot.slane %v3594, 4
      %3625 = vst.msk [vmem:[#allocation3] sm:$0xf0] %vm3574, %v3605
      %3626 = vst.msk [vmem:[#allocation3 + $0x8] sm:$0xf] %vm3563, %v3605
      %3627 = vst.msk [vmem:[#allocation3 + $0x10] sm:$0xf0] %vm3574, %v3606
      %3628 = vst.msk [vmem:[#allocation3 + $0x18] sm:$0xf] %vm3563, %v3606
      %3629 = vst.msk [vmem:[#allocation3 + $0x20] sm:$0xf0] %vm3574, %v3607
      %3630 = vst.msk [vmem:[#allocation3 + $0x28] sm:$0xf] %vm3563, %v3607
      %3631 = vst.msk [vmem:[#allocation3 + $0x30] sm:$0xf0] %vm3574, %v3608
      %3632 = vst.msk [vmem:[#allocation3 + $0x38] sm:$0xf] %vm3563, %v3608
      %3633 = vst.msk [vmem:[#allocation3 + $0x40] sm:$0xf0] %vm3574, %v3609
      %3634 = vst.msk [vmem:[#allocation3 + $0x48] sm:$0xf] %vm3563, %v3609
      %3635 = vst.msk [vmem:[#allocation3 + $0x50] sm:$0xf0] %vm3574, %v3610
      %3636 = vst.msk [vmem:[#allocation3 + $0x58] sm:$0xf] %vm3563, %v3610
      %3637 = vst.msk [vmem:[#allocation3 + $0x60] sm:$0xf0] %vm3574, %v3611
      %3638 = vst.msk [vmem:[#allocation3 + $0x68] sm:$0xf] %vm3563, %v3611
      %3639 = vst.msk [vmem:[#allocation3 + $0x70] sm:$0xf0] %vm3574, %v3612
      %3640 = vst.msk [vmem:[#allocation3 + $0x78] sm:$0xf] %vm3563, %v3612
      %3641 = vst.msk [vmem:[#allocation3 + $0x80] sm:$0xf0] %vm3574, %v3613
      %3642 = vst.msk [vmem:[#allocation3 + $0x88] sm:$0xf] %vm3563, %v3613
      %3643 = vst.msk [vmem:[#allocation3 + $0x90] sm:$0xf0] %vm3574, %v3614
      %3644 = vst.msk [vmem:[#allocation3 + $0x98] sm:$0xf] %vm3563, %v3614
      %p3645 = scmp.eq.s32.totalorder %s23, 0
      // Predicated region
      $region41: #{_lambda_.2} parent=39 // pred_check
        %p3646 = pneg %p3645
      $region42: #{_lambda_.2} parent=39 // pred_check_branch
        %3648 = sbr.rel (%p3646) target = $region44
      $region43: #{_lambda_.2} parent=39 // pred_region
        %vm3649 = vcmask 343040
        %3650 = vst.msk [vmem:[#allocation3] sm:$0xff] %vm3649, 0
        %3651 = vst.msk [vmem:[#allocation3 + $0x8] sm:$0xff] %vm3649, 0
      $region44: #{_lambda_.2} parent=39 // pred_fallthru
        _
      %p3652 = scmp.eq.s32.totalorder %s23, 1
      // Predicated region
      $region45: #{_lambda_.2} parent=39 // pred_check
        %p3653 = pneg %p3652
      $region46: #{_lambda_.2} parent=39 // pred_check_branch
        %3655 = sbr.rel (%p3653) target = $region48
      $region47: #{_lambda_.2} parent=39 // pred_region
        %s3656 = scalar_lea.vmem [#allocation3], 144
        %vm3657 = vcmask 343040
        %3658 = vst.msk [vmem:[%s3656] sm:$0xff] %vm3657, 0
        %3659 = vst.msk [vmem:[%s3656 + $0x8] sm:$0xff] %vm3657, 0
      $region48: #{_lambda_.2} parent=39 // pred_fallthru
        _
      %v3660 = vld [vmem:[#allocation3] sm:$0xf8]
      %v3661 = vld [vmem:[#allocation3 + $0x8] sm:$0xf]
      %v3662 = vld [vmem:[#allocation3 + $0x10] sm:$0xf8]
      %v3663 = vld [vmem:[#allocation3 + $0x18] sm:$0xf]
      %v3664 = vld [vmem:[#allocation3 + $0x20] sm:$0xf8]
      %v3665 = vld [vmem:[#allocation3 + $0x28] sm:$0xf]
      %v3666 = vld [vmem:[#allocation3 + $0x30] sm:$0xf8]
      %v3667 = vld [vmem:[#allocation3 + $0x38] sm:$0xf]
      %v3668 = vld [vmem:[#allocation3 + $0x40] sm:$0xf8]
      %v3669 = vld [vmem:[#allocation3 + $0x48] sm:$0xf]
      %v3670 = vld [vmem:[#allocation3 + $0x50] sm:$0xf8]
      %v3671 = vld [vmem:[#allocation3 + $0x58] sm:$0xf]
      %v3672 = vld [vmem:[#allocation3 + $0x60] sm:$0xf8]
      %v3673 = vld [vmem:[#allocation3 + $0x68] sm:$0xf]
      %v3674 = vld [vmem:[#allocation3 + $0x70] sm:$0xf8]
      %v3675 = vld [vmem:[#allocation3 + $0x78] sm:$0xf]
      %vm3676 = vsmask.f32 4352
      %v3678 = vshrl.u32 %v3660, 16
      %v3680 = vrot.slane %v3678, 3
      %v3681 = vshll.u32 %v3660, 16
      %v3683 = vrot.slane %v3681, 4
      %v3684 = vor.u32 %v3680, %v3683
      %v3686 = vshrl.u32 %v3661, 16
      %v3688 = vrot.slane %v3686, 3
      %v3689 = vshll.u32 %v3661, 16
      %v3691 = vrot.slane %v3689, 4
      %v3692 = vor.u32 %v3688, %v3691
      %v3693 = vsel %vm3676, %v3684, %v3692
      %v3695 = vshrl.u32 %v3662, 16
      %v3697 = vrot.slane %v3695, 3
      %v3698 = vshll.u32 %v3662, 16
      %v3700 = vrot.slane %v3698, 4
      %v3701 = vor.u32 %v3697, %v3700
      %v3703 = vshrl.u32 %v3663, 16
      %v3705 = vrot.slane %v3703, 3
      %v3706 = vshll.u32 %v3663, 16
      %v3708 = vrot.slane %v3706, 4
      %v3709 = vor.u32 %v3705, %v3708
      %v3710 = vsel %vm3676, %v3701, %v3709
      %v3712 = vshrl.u32 %v3664, 16
      %v3714 = vrot.slane %v3712, 3
      %v3715 = vshll.u32 %v3664, 16
      %v3717 = vrot.slane %v3715, 4
      %v3718 = vor.u32 %v3714, %v3717
      %v3720 = vshrl.u32 %v3665, 16
      %v3722 = vrot.slane %v3720, 3
      %v3723 = vshll.u32 %v3665, 16
      %v3725 = vrot.slane %v3723, 4
      %v3726 = vor.u32 %v3722, %v3725
      %v3727 = vsel %vm3676, %v3718, %v3726
      %v3729 = vshrl.u32 %v3666, 16
      %v3731 = vrot.slane %v3729, 3
      %v3732 = vshll.u32 %v3666, 16
      %v3734 = vrot.slane %v3732, 4
      %v3735 = vor.u32 %v3731, %v3734
      %v3737 = vshrl.u32 %v3667, 16
      %v3739 = vrot.slane %v3737, 3
      %v3740 = vshll.u32 %v3667, 16
      %v3742 = vrot.slane %v3740, 4
      %v3743 = vor.u32 %v3739, %v3742
      %v3744 = vsel %vm3676, %v3735, %v3743
      %v3746 = vshrl.u32 %v3668, 16
      %v3748 = vrot.slane %v3746, 3
      %v3749 = vshll.u32 %v3668, 16
      %v3751 = vrot.slane %v3749, 4
      %v3752 = vor.u32 %v3748, %v3751
      %v3754 = vshrl.u32 %v3669, 16
      %v3756 = vrot.slane %v3754, 3
      %v3757 = vshll.u32 %v3669, 16
      %v3759 = vrot.slane %v3757, 4
      %v3760 = vor.u32 %v3756, %v3759
      %v3761 = vsel %vm3676, %v3752, %v3760
      %v3763 = vshrl.u32 %v3670, 16
      %v3765 = vrot.slane %v3763, 3
      %v3766 = vshll.u32 %v3670, 16
      %v3768 = vrot.slane %v3766, 4
      %v3769 = vor.u32 %v3765, %v3768
      %v3771 = vshrl.u32 %v3671, 16
      %v3773 = vrot.slane %v3771, 3
      %v3774 = vshll.u32 %v3671, 16
      %v3776 = vrot.slane %v3774, 4
      %v3777 = vor.u32 %v3773, %v3776
      %v3778 = vsel %vm3676, %v3769, %v3777
      %v3780 = vshrl.u32 %v3672, 16
      %v3782 = vrot.slane %v3780, 3
      %v3783 = vshll.u32 %v3672, 16
      %v3785 = vrot.slane %v3783, 4
      %v3786 = vor.u32 %v3782, %v3785
      %v3788 = vshrl.u32 %v3673, 16
      %v3790 = vrot.slane %v3788, 3
      %v3791 = vshll.u32 %v3673, 16
      %v3793 = vrot.slane %v3791, 4
      %v3794 = vor.u32 %v3790, %v3793
      %v3795 = vsel %vm3676, %v3786, %v3794
      %v3797 = vshrl.u32 %v3674, 16
      %v3799 = vrot.slane %v3797, 3
      %v3800 = vshll.u32 %v3674, 16
      %v3802 = vrot.slane %v3800, 4
      %v3803 = vor.u32 %v3799, %v3802
      %v3805 = vshrl.u32 %v3675, 16
      %v3807 = vrot.slane %v3805, 3
      %v3808 = vshll.u32 %v3675, 16
      %v3810 = vrot.slane %v3808, 4
      %v3811 = vor.u32 %v3807, %v3810
      %v3812 = vsel %vm3676, %v3803, %v3811
      %v3813 = vld [vmem:[%s3] sm:$0xf]
      %v3814 = vld [vmem:[%s3 + $0x4] sm:$0xf]
      %v3815 = vld [vmem:[%s3 + $0x8] sm:$0xf]
      %v3816 = vld [vmem:[%s3 + $0xc] sm:$0xf]
      %v3817 = vld [vmem:[%s3 + $0x10] sm:$0xf]
      %v3818 = vld [vmem:[%s3 + $0x14] sm:$0x1]
      %v3825 = vunpack.c.l.b16 %v3813
      %v3826 = vunpack.c.l.b16 %v3814
      %v3827 = vunpack.c.l.b16 %v3815
      %v3828 = vunpack.c.l.b16 %v3816
      %v3829 = vunpack.c.l.b16 %v3817
      %v3830 = vunpack.c.l.b16 %v3818
      %v3831 = vpack.c.b16 %v3826, %v3825
      %v3832 = vpack.c.b16 %v3828, %v3827
      %v3833 = vpack.c.b16 %v3830, %v3829
      %vm3836 = vcmask 343040
      %v3838 = vsel %vm3836, %v3693, 0
      %v3841 = vsel %vm3836, %v3710, 0
      %v3844 = vsel %vm3836, %v3727, 0
      %v3847 = vsel %vm3836, %v3744, 0
      %v3850 = vsel %vm3836, %v3761, 0
      %v3853 = vsel %vm3836, %v3778, 0
      %v3856 = vsel %vm3836, %v3795, 0
      %v3859 = vsel %vm3836, %v3812, 0
      %vm3861 = vcmask 1044480
      %v3863 = vsel %vm3861, %v3833, 0
      %3865 = vmatprep.subr.bf16.mxu0 0
      %3866 = vmatpush1.bf16.msra.mxu0 %v3831
      %3867 = vmatprep.subr.bf16.mxu0 0
      %3868 = vmatpush1.bf16.msra.mxu0 %v3832
      %3869 = vmatprep.subr.bf16.mxu0 0
      %3870 = vmatpush1.bf16.msra.mxu0 %v3863
      %3871 = vmatprep.subr.bf16.mxu0 0
      %3872 = vmatpush1.bf16.msra.mxu0 0
      %3873 = vmatprep.subr.bf16.mxu0 0
      %3874 = vmatpush1.bf16.msra.mxu0 0
      %3875 = vmatprep.subr.bf16.mxu0 0
      %3876 = vmatpush1.bf16.msra.mxu0 0
      %3877 = vmatprep.subr.bf16.mxu0 0
      %3878 = vmatpush1.bf16.msra.mxu0 0
      %3879 = vmatprep.subr.bf16.mxu0 0
      %3880 = vmatpush1.bf16.msra.mxu0 0
      %3881 = vmatprep.subr.bf16.mxu0 0
      %3882 = vmatpush1.bf16.msra.mxu0 0
      %3883 = vmatprep.subr.bf16.mxu0 0
      %3884 = vmatpush1.bf16.msra.mxu0 0
      %3885 = vmatprep.subr.bf16.mxu0 0
      %3886 = vmatpush1.bf16.msra.mxu0 0
      %3887 = vmatprep.subr.bf16.mxu0 0
      %3888 = vmatpush1.bf16.msra.mxu0 0
      %3889 = vmatprep.subr.bf16.mxu0 0
      %3890 = vmatpush1.bf16.msra.mxu0 0
      %3891 = vmatprep.subr.bf16.mxu0 0
      %3892 = vmatpush1.bf16.msra.mxu0 0
      %3893 = vmatprep.subr.bf16.mxu0 0
      %3894 = vmatpush1.bf16.msra.mxu0 0
      %3895 = vmatprep.subr.bf16.mxu0 0
      %3896 = vmatpush1.bf16.msra.mxu0 0
      %3897 = vmatprep.mubr.bf16.mxu0 0
      %3898 = vmatmul.mubr.bf16.gmra.mrb[0].mxu0 %v3838
      %v3899 = vpop.f32.mrb[0].mxu0
      %v3900 = vadd.f32 0.0, %v3899
      %v3901 = vpop.f32.mrb[0].mxu0
      %v3902 = vpop.f32.mrb[0].mxu0
      %v3903 = vadd.f32 0.0, %v3902
      %v3904 = vpop.f32.mrb[0].mxu0
      %3905 = vmatprep.mubr.bf16.mxu0 0
      %3906 = vmatmul.mubr.bf16.gmra.mrb[0].mxu0 %v3841
      %v3907 = vpop.f32.mrb[0].mxu0
      %v3908 = vadd.f32 0.0, %v3907
      %v3909 = vpop.f32.mrb[0].mxu0
      %v3910 = vpop.f32.mrb[0].mxu0
      %v3911 = vadd.f32 0.0, %v3910
      %v3912 = vpop.f32.mrb[0].mxu0
      %3913 = vmatprep.mubr.bf16.mxu0 0
      %3914 = vmatmul.mubr.bf16.gmra.mrb[0].mxu0 %v3844
      %v3915 = vpop.f32.mrb[0].mxu0
      %v3916 = vadd.f32 0.0, %v3915
      %v3917 = vpop.f32.mrb[0].mxu0
      %v3918 = vpop.f32.mrb[0].mxu0
      %v3919 = vadd.f32 0.0, %v3918
      %v3920 = vpop.f32.mrb[0].mxu0
      %3921 = vmatprep.mubr.bf16.mxu0 0
      %3922 = vmatmul.mubr.bf16.gmra.mrb[0].mxu0 %v3847
      %v3923 = vpop.f32.mrb[0].mxu0
      %v3924 = vadd.f32 0.0, %v3923
      %v3925 = vpop.f32.mrb[0].mxu0
      %v3926 = vpop.f32.mrb[0].mxu0
      %v3927 = vadd.f32 0.0, %v3926
      %v3928 = vpop.f32.mrb[0].mxu0
      %3929 = vmatprep.mubr.bf16.mxu0 0
      %3930 = vmatmul.mubr.bf16.gmra.mrb[0].mxu0 %v3850
      %v3931 = vpop.f32.mrb[0].mxu0
      %v3932 = vadd.f32 0.0, %v3931
      %v3933 = vpop.f32.mrb[0].mxu0
      %v3934 = vpop.f32.mrb[0].mxu0
      %v3935 = vadd.f32 0.0, %v3934
      %v3936 = vpop.f32.mrb[0].mxu0
      %3937 = vmatprep.mubr.bf16.mxu0 0
      %3938 = vmatmul.mubr.bf16.gmra.mrb[0].mxu0 %v3853
      %v3939 = vpop.f32.mrb[0].mxu0
      %v3940 = vadd.f32 0.0, %v3939
      %v3941 = vpop.f32.mrb[0].mxu0
      %v3942 = vpop.f32.mrb[0].mxu0
      %v3943 = vadd.f32 0.0, %v3942
      %v3944 = vpop.f32.mrb[0].mxu0
      %3945 = vmatprep.mubr.bf16.mxu0 0
      %3946 = vmatmul.mubr.bf16.gmra.mrb[0].mxu0 %v3856
      %v3947 = vpop.f32.mrb[0].mxu0
      %v3948 = vadd.f32 0.0, %v3947
      %v3949 = vpop.f32.mrb[0].mxu0
      %v3950 = vpop.f32.mrb[0].mxu0
      %v3951 = vadd.f32 0.0, %v3950
      %v3952 = vpop.f32.mrb[0].mxu0
      %3953 = vmatprep.mubr.bf16.mxu0 0
      %3954 = vmatmul.mubr.bf16.gmra.mrb[0].mxu0 %v3859
      %v3955 = vpop.f32.mrb[0].mxu0
      %v3956 = vadd.f32 0.0, %v3955
      %v3957 = vpop.f32.mrb[0].mxu0
      %v3958 = vpop.f32.mrb[0].mxu0
      %v3959 = vadd.f32 0.0, %v3958
      %v3960 = vpop.f32.mrb[0].mxu0
      %3961 = vdwg.mxu0
      %3962 = vst [vmem:[#allocation4] sm:$0xff] %v3900
      %3963 = vst [vmem:[#allocation4 + $0x8] sm:$0xff] %v3903
      %3964 = vst [vmem:[#allocation4 + $0x10] sm:$0xff] %v3908
      %3965 = vst [vmem:[#allocation4 + $0x18] sm:$0xff] %v3911
      %3966 = vst [vmem:[#allocation4 + $0x20] sm:$0xff] %v3916
      %3967 = vst [vmem:[#allocation4 + $0x28] sm:$0xff] %v3919
      %3968 = vst [vmem:[#allocation4 + $0x30] sm:$0xff] %v3924
      %3969 = vst [vmem:[#allocation4 + $0x38] sm:$0xff] %v3927
      %3970 = vst [vmem:[#allocation4 + $0x40] sm:$0xff] %v3932
      %3971 = vst [vmem:[#allocation4 + $0x48] sm:$0xff] %v3935
      %3972 = vst [vmem:[#allocation4 + $0x50] sm:$0xff] %v3940
      %3973 = vst [vmem:[#allocation4 + $0x58] sm:$0xff] %v3943
      %3974 = vst [vmem:[#allocation4 + $0x60] sm:$0xff] %v3948
      %3975 = vst [vmem:[#allocation4 + $0x68] sm:$0xff] %v3951
      %3976 = vst [vmem:[#allocation4 + $0x70] sm:$0xff] %v3956
      %3977 = vst [vmem:[#allocation4 + $0x78] sm:$0xff] %v3959
      %v3978 = vld [vmem:[#allocation3] sm:$0xf0]
      %v3979 = vld [vmem:[#allocation3 + $0x8] sm:$0xf]
      %v3980 = vld [vmem:[#allocation3 + $0x10] sm:$0xf0]
      %v3981 = vld [vmem:[#allocation3 + $0x18] sm:$0xf]
      %v3982 = vld [vmem:[#allocation3 + $0x20] sm:$0xf0]
      %v3983 = vld [vmem:[#allocation3 + $0x28] sm:$0xf]
      %v3984 = vld [vmem:[#allocation3 + $0x30] sm:$0xf0]
      %v3985 = vld [vmem:[#allocation3 + $0x38] sm:$0xf]
      %v3986 = vld [vmem:[#allocation3 + $0x40] sm:$0xf0]
      %v3987 = vld [vmem:[#allocation3 + $0x48] sm:$0xf]
      %v3988 = vld [vmem:[#allocation3 + $0x50] sm:$0xf0]
      %v3989 = vld [vmem:[#allocation3 + $0x58] sm:$0xf]
      %v3990 = vld [vmem:[#allocation3 + $0x60] sm:$0xf0]
      %v3991 = vld [vmem:[#allocation3 + $0x68] sm:$0xf]
      %v3992 = vld [vmem:[#allocation3 + $0x70] sm:$0xf0]
      %v3993 = vld [vmem:[#allocation3 + $0x78] sm:$0xf]
      %vm4010 = vcmask 1043456
      %v4011 = vrot.slane %v3978, 4
      %v4012 = vrot.slane %v3979, 4
      %v4013 = vsel %vm4010, %v4011, %v4012
      %v4014 = vrot.slane %v3980, 4
      %v4015 = vrot.slane %v3981, 4
      %v4016 = vsel %vm4010, %v4014, %v4015
      %v4017 = vrot.slane %v3982, 4
      %v4018 = vrot.slane %v3983, 4
      %v4019 = vsel %vm4010, %v4017, %v4018
      %v4020 = vrot.slane %v3984, 4
      %v4021 = vrot.slane %v3985, 4
      %v4022 = vsel %vm4010, %v4020, %v4021
      %v4023 = vrot.slane %v3986, 4
      %v4024 = vrot.slane %v3987, 4
      %v4025 = vsel %vm4010, %v4023, %v4024
      %v4026 = vrot.slane %v3988, 4
      %v4027 = vrot.slane %v3989, 4
      %v4028 = vsel %vm4010, %v4026, %v4027
      %v4029 = vrot.slane %v3990, 4
      %v4030 = vrot.slane %v3991, 4
      %v4031 = vsel %vm4010, %v4029, %v4030
      %v4032 = vrot.slane %v3992, 4
      %v4033 = vrot.slane %v3993, 4
      %v4034 = vsel %vm4010, %v4032, %v4033
      %s4035 = scalar_lea.vmem %s3, 24
      %v4036 = vld [vmem:[%s4035] sm:$0xf]
      %v4037 = vld [vmem:[%s4035 + $0x4] sm:$0xf]
      %v4038 = vld [vmem:[%s4035 + $0x8] sm:$0xf]
      %v4039 = vld [vmem:[%s4035 + $0xc] sm:$0xf]
      %v4040 = vld [vmem:[%s4035 + $0x10] sm:$0xf]
      %v4041 = vld [vmem:[%s4035 + $0x14] sm:$0x1]
      %v4048 = vunpack.c.l.b16 %v4036
      %v4049 = vunpack.c.l.b16 %v4037
      %v4050 = vunpack.c.l.b16 %v4038
      %v4051 = vunpack.c.l.b16 %v4039
      %v4052 = vunpack.c.l.b16 %v4040
      %v4053 = vunpack.c.l.b16 %v4041
      %v4054 = vpack.c.b16 %v4049, %v4048
      %v4055 = vpack.c.b16 %v4051, %v4050
      %v4056 = vpack.c.b16 %v4053, %v4052
      %v4060 = vsel %vm3836, %v4013, 0
      %v4063 = vsel %vm3836, %v4016, 0
      %v4066 = vsel %vm3836, %v4019, 0
      %v4069 = vsel %vm3836, %v4022, 0
      %v4072 = vsel %vm3836, %v4025, 0
      %v4075 = vsel %vm3836, %v4028, 0
      %v4078 = vsel %vm3836, %v4031, 0
      %v4081 = vsel %vm3836, %v4034, 0
      %v4084 = vsel %vm3861, %v4056, 0
      %4086 = vmatprep.subr.bf16.mxu0 0
      %4087 = vmatpush1.bf16.msra.mxu0 %v4054
      %4088 = vmatprep.subr.bf16.mxu0 0
      %4089 = vmatpush1.bf16.msra.mxu0 %v4055
      %4090 = vmatprep.subr.bf16.mxu0 0
      %4091 = vmatpush1.bf16.msra.mxu0 %v4084
      %4092 = vmatprep.subr.bf16.mxu0 0
      %4093 = vmatpush1.bf16.msra.mxu0 0
      %4094 = vmatprep.subr.bf16.mxu0 0
      %4095 = vmatpush1.bf16.msra.mxu0 0
      %4096 = vmatprep.subr.bf16.mxu0 0
      %4097 = vmatpush1.bf16.msra.mxu0 0
      %4098 = vmatprep.subr.bf16.mxu0 0
      %4099 = vmatpush1.bf16.msra.mxu0 0
      %4100 = vmatprep.subr.bf16.mxu0 0
      %4101 = vmatpush1.bf16.msra.mxu0 0
      %4102 = vmatprep.subr.bf16.mxu0 0
      %4103 = vmatpush1.bf16.msra.mxu0 0
      %4104 = vmatprep.subr.bf16.mxu0 0
      %4105 = vmatpush1.bf16.msra.mxu0 0
      %4106 = vmatprep.subr.bf16.mxu0 0
      %4107 = vmatpush1.bf16.msra.mxu0 0
      %4108 = vmatprep.subr.bf16.mxu0 0
      %4109 = vmatpush1.bf16.msra.mxu0 0
      %4110 = vmatprep.subr.bf16.mxu0 0
      %4111 = vmatpush1.bf16.msra.mxu0 0
      %4112 = vmatprep.subr.bf16.mxu0 0
      %4113 = vmatpush1.bf16.msra.mxu0 0
      %4114 = vmatprep.subr.bf16.mxu0 0
      %4115 = vmatpush1.bf16.msra.mxu0 0
      %4116 = vmatprep.subr.bf16.mxu0 0
      %4117 = vmatpush1.bf16.msra.mxu0 0
      %4118 = vmatprep.mubr.bf16.mxu0 0
      %4119 = vmatmul.mubr.bf16.gmra.mrb[0].mxu0 %v4060
      %v4120 = vpop.f32.mrb[0].mxu0
      %v4121 = vadd.f32 0.0, %v4120
      %v4122 = vpop.f32.mrb[0].mxu0
      %v4123 = vpop.f32.mrb[0].mxu0
      %v4124 = vadd.f32 0.0, %v4123
      %v4125 = vpop.f32.mrb[0].mxu0
      %4126 = vmatprep.mubr.bf16.mxu0 0
      %4127 = vmatmul.mubr.bf16.gmra.mrb[0].mxu0 %v4063
      %v4128 = vpop.f32.mrb[0].mxu0
      %v4129 = vadd.f32 0.0, %v4128
      %v4130 = vpop.f32.mrb[0].mxu0
      %v4131 = vpop.f32.mrb[0].mxu0
      %v4132 = vadd.f32 0.0, %v4131
      %v4133 = vpop.f32.mrb[0].mxu0
      %4134 = vmatprep.mubr.bf16.mxu0 0
      %4135 = vmatmul.mubr.bf16.gmra.mrb[0].mxu0 %v4066
      %v4136 = vpop.f32.mrb[0].mxu0
      %v4137 = vadd.f32 0.0, %v4136
      %v4138 = vpop.f32.mrb[0].mxu0
      %v4139 = vpop.f32.mrb[0].mxu0
      %v4140 = vadd.f32 0.0, %v4139
      %v4141 = vpop.f32.mrb[0].mxu0
      %4142 = vmatprep.mubr.bf16.mxu0 0
      %4143 = vmatmul.mubr.bf16.gmra.mrb[0].mxu0 %v4069
      %v4144 = vpop.f32.mrb[0].mxu0
      %v4145 = vadd.f32 0.0, %v4144
      %v4146 = vpop.f32.mrb[0].mxu0
      %v4147 = vpop.f32.mrb[0].mxu0
      %v4148 = vadd.f32 0.0, %v4147
      %v4149 = vpop.f32.mrb[0].mxu0
      %4150 = vmatprep.mubr.bf16.mxu0 0
      %4151 = vmatmul.mubr.bf16.gmra.mrb[0].mxu0 %v4072
      %v4152 = vpop.f32.mrb[0].mxu0
      %v4153 = vadd.f32 0.0, %v4152
      %v4154 = vpop.f32.mrb[0].mxu0
      %v4155 = vpop.f32.mrb[0].mxu0
      %v4156 = vadd.f32 0.0, %v4155
      %v4157 = vpop.f32.mrb[0].mxu0
      %4158 = vmatprep.mubr.bf16.mxu0 0
      %4159 = vmatmul.mubr.bf16.gmra.mrb[0].mxu0 %v4075
      %v4160 = vpop.f32.mrb[0].mxu0
      %v4161 = vadd.f32 0.0, %v4160
      %v4162 = vpop.f32.mrb[0].mxu0
      %v4163 = vpop.f32.mrb[0].mxu0
      %v4164 = vadd.f32 0.0, %v4163
      %v4165 = vpop.f32.mrb[0].mxu0
      %4166 = vmatprep.mubr.bf16.mxu0 0
      %4167 = vmatmul.mubr.bf16.gmra.mrb[0].mxu0 %v4078
      %v4168 = vpop.f32.mrb[0].mxu0
      %v4169 = vadd.f32 0.0, %v4168
      %v4170 = vpop.f32.mrb[0].mxu0
      %v4171 = vpop.f32.mrb[0].mxu0
      %v4172 = vadd.f32 0.0, %v4171
      %v4173 = vpop.f32.mrb[0].mxu0
      %4174 = vmatprep.mubr.bf16.mxu0 0
      %4175 = vmatmul.mubr.bf16.gmra.mrb[0].mxu0 %v4081
      %v4176 = vpop.f32.mrb[0].mxu0
      %v4177 = vadd.f32 0.0, %v4176
      %v4178 = vpop.f32.mrb[0].mxu0
      %v4179 = vpop.f32.mrb[0].mxu0
      %v4180 = vadd.f32 0.0, %v4179
      %v4181 = vpop.f32.mrb[0].mxu0
      %4182 = vdwg.mxu0
      %v4183 = vld [vmem:[#allocation4] sm:$0xff]
      %v4184 = vld [vmem:[#allocation4 + $0x8] sm:$0xff]
      %v4185 = vld [vmem:[#allocation4 + $0x10] sm:$0xff]
      %v4186 = vld [vmem:[#allocation4 + $0x18] sm:$0xff]
      %v4187 = vld [vmem:[#allocation4 + $0x20] sm:$0xff]
      %v4188 = vld [vmem:[#allocation4 + $0x28] sm:$0xff]
      %v4189 = vld [vmem:[#allocation4 + $0x30] sm:$0xff]
      %v4190 = vld [vmem:[#allocation4 + $0x38] sm:$0xff]
      %v4191 = vld [vmem:[#allocation4 + $0x40] sm:$0xff]
      %v4192 = vld [vmem:[#allocation4 + $0x48] sm:$0xff]
      %v4193 = vld [vmem:[#allocation4 + $0x50] sm:$0xff]
      %v4194 = vld [vmem:[#allocation4 + $0x58] sm:$0xff]
      %v4195 = vld [vmem:[#allocation4 + $0x60] sm:$0xff]
      %v4196 = vld [vmem:[#allocation4 + $0x68] sm:$0xff]
      %v4197 = vld [vmem:[#allocation4 + $0x70] sm:$0xff]
      %v4198 = vld [vmem:[#allocation4 + $0x78] sm:$0xff]
      %v4199 = vadd.f32 %v4183, %v4121
      %v4200 = vadd.f32 %v4184, %v4124
      %v4201 = vadd.f32 %v4185, %v4129
      %v4202 = vadd.f32 %v4186, %v4132
      %v4203 = vadd.f32 %v4187, %v4137
      %v4204 = vadd.f32 %v4188, %v4140
      %v4205 = vadd.f32 %v4189, %v4145
      %v4206 = vadd.f32 %v4190, %v4148
      %v4207 = vadd.f32 %v4191, %v4153
      %v4208 = vadd.f32 %v4192, %v4156
      %v4209 = vadd.f32 %v4193, %v4161
      %v4210 = vadd.f32 %v4194, %v4164
      %v4211 = vadd.f32 %v4195, %v4169
      %v4212 = vadd.f32 %v4196, %v4172
      %v4213 = vadd.f32 %v4197, %v4177
      %v4214 = vadd.f32 %v4198, %v4180
      %4215 = vst [vmem:[#allocation4] sm:$0xff] %v4199
      %4216 = vst [vmem:[#allocation4 + $0x8] sm:$0xff] %v4200
      %4217 = vst [vmem:[#allocation4 + $0x10] sm:$0xff] %v4201
      %4218 = vst [vmem:[#allocation4 + $0x18] sm:$0xff] %v4202
      %4219 = vst [vmem:[#allocation4 + $0x20] sm:$0xff] %v4203
      %4220 = vst [vmem:[#allocation4 + $0x28] sm:$0xff] %v4204
      %4221 = vst [vmem:[#allocation4 + $0x30] sm:$0xff] %v4205
      %4222 = vst [vmem:[#allocation4 + $0x38] sm:$0xff] %v4206
      %4223 = vst [vmem:[#allocation4 + $0x40] sm:$0xff] %v4207
      %4224 = vst [vmem:[#allocation4 + $0x48] sm:$0xff] %v4208
      %4225 = vst [vmem:[#allocation4 + $0x50] sm:$0xff] %v4209
      %4226 = vst [vmem:[#allocation4 + $0x58] sm:$0xff] %v4210
      %4227 = vst [vmem:[#allocation4 + $0x60] sm:$0xff] %v4211
      %4228 = vst [vmem:[#allocation4 + $0x68] sm:$0xff] %v4212
      %4229 = vst [vmem:[#allocation4 + $0x70] sm:$0xff] %v4213
      %4230 = vst [vmem:[#allocation4 + $0x78] sm:$0xff] %v4214
      %v4231 = vld [vmem:[#allocation3] sm:$0xf0]
      %v4232 = vld [vmem:[#allocation3 + $0x8] sm:$0x1f]
      %v4233 = vld [vmem:[#allocation3 + $0x10] sm:$0xf0]
      %v4234 = vld [vmem:[#allocation3 + $0x18] sm:$0x1f]
      %v4235 = vld [vmem:[#allocation3 + $0x20] sm:$0xf0]
      %v4236 = vld [vmem:[#allocation3 + $0x28] sm:$0x1f]
      %v4237 = vld [vmem:[#allocation3 + $0x30] sm:$0xf0]
      %v4238 = vld [vmem:[#allocation3 + $0x38] sm:$0x1f]
      %v4239 = vld [vmem:[#allocation3 + $0x40] sm:$0xf0]
      %v4240 = vld [vmem:[#allocation3 + $0x48] sm:$0x1f]
      %v4241 = vld [vmem:[#allocation3 + $0x50] sm:$0xf0]
      %v4242 = vld [vmem:[#allocation3 + $0x58] sm:$0x1f]
      %v4243 = vld [vmem:[#allocation3 + $0x60] sm:$0xf0]
      %v4244 = vld [vmem:[#allocation3 + $0x68] sm:$0x1f]
      %v4245 = vld [vmem:[#allocation3 + $0x70] sm:$0xf0]
      %v4246 = vld [vmem:[#allocation3 + $0x78] sm:$0x1f]
      %vm4247 = vsmask.f32 3328
      %v4249 = vshrl.u32 %v4231, 16
      %v4251 = vrot.slane %v4249, 4
      %v4252 = vshll.u32 %v4231, 16
      %v4254 = vrot.slane %v4252, 5
      %v4255 = vor.u32 %v4251, %v4254
      %v4257 = vshrl.u32 %v4232, 16
      %v4259 = vrot.slane %v4257, 4
      %v4260 = vshll.u32 %v4232, 16
      %v4262 = vrot.slane %v4260, 5
      %v4263 = vor.u32 %v4259, %v4262
      %v4264 = vsel %vm4247, %v4255, %v4263
      %v4266 = vshrl.u32 %v4233, 16
      %v4268 = vrot.slane %v4266, 4
      %v4269 = vshll.u32 %v4233, 16
      %v4271 = vrot.slane %v4269, 5
      %v4272 = vor.u32 %v4268, %v4271
      %v4274 = vshrl.u32 %v4234, 16
      %v4276 = vrot.slane %v4274, 4
      %v4277 = vshll.u32 %v4234, 16
      %v4279 = vrot.slane %v4277, 5
      %v4280 = vor.u32 %v4276, %v4279
      %v4281 = vsel %vm4247, %v4272, %v4280
      %v4283 = vshrl.u32 %v4235, 16
      %v4285 = vrot.slane %v4283, 4
      %v4286 = vshll.u32 %v4235, 16
      %v4288 = vrot.slane %v4286, 5
      %v4289 = vor.u32 %v4285, %v4288
      %v4291 = vshrl.u32 %v4236, 16
      %v4293 = vrot.slane %v4291, 4
      %v4294 = vshll.u32 %v4236, 16
      %v4296 = vrot.slane %v4294, 5
      %v4297 = vor.u32 %v4293, %v4296
      %v4298 = vsel %vm4247, %v4289, %v4297
      %v4300 = vshrl.u32 %v4237, 16
      %v4302 = vrot.slane %v4300, 4
      %v4303 = vshll.u32 %v4237, 16
      %v4305 = vrot.slane %v4303, 5
      %v4306 = vor.u32 %v4302, %v4305
      %v4308 = vshrl.u32 %v4238, 16
      %v4310 = vrot.slane %v4308, 4
      %v4311 = vshll.u32 %v4238, 16
      %v4313 = vrot.slane %v4311, 5
      %v4314 = vor.u32 %v4310, %v4313
      %v4315 = vsel %vm4247, %v4306, %v4314
      %v4317 = vshrl.u32 %v4239, 16
      %v4319 = vrot.slane %v4317, 4
      %v4320 = vshll.u32 %v4239, 16
      %v4322 = vrot.slane %v4320, 5
      %v4323 = vor.u32 %v4319, %v4322
      %v4325 = vshrl.u32 %v4240, 16
      %v4327 = vrot.slane %v4325, 4
      %v4328 = vshll.u32 %v4240, 16
      %v4330 = vrot.slane %v4328, 5
      %v4331 = vor.u32 %v4327, %v4330
      %v4332 = vsel %vm4247, %v4323, %v4331
      %v4334 = vshrl.u32 %v4241, 16
      %v4336 = vrot.slane %v4334, 4
      %v4337 = vshll.u32 %v4241, 16
      %v4339 = vrot.slane %v4337, 5
      %v4340 = vor.u32 %v4336, %v4339
      %v4342 = vshrl.u32 %v4242, 16
      %v4344 = vrot.slane %v4342, 4
      %v4345 = vshll.u32 %v4242, 16
      %v4347 = vrot.slane %v4345, 5
      %v4348 = vor.u32 %v4344, %v4347
      %v4349 = vsel %vm4247, %v4340, %v4348
      %v4351 = vshrl.u32 %v4243, 16
      %v4353 = vrot.slane %v4351, 4
      %v4354 = vshll.u32 %v4243, 16
      %v4356 = vrot.slane %v4354, 5
      %v4357 = vor.u32 %v4353, %v4356
      %v4359 = vshrl.u32 %v4244, 16
      %v4361 = vrot.slane %v4359, 4
      %v4362 = vshll.u32 %v4244, 16
      %v4364 = vrot.slane %v4362, 5
      %v4365 = vor.u32 %v4361, %v4364
      %v4366 = vsel %vm4247, %v4357, %v4365
      %v4368 = vshrl.u32 %v4245, 16
      %v4370 = vrot.slane %v4368, 4
      %v4371 = vshll.u32 %v4245, 16
      %v4373 = vrot.slane %v4371, 5
      %v4374 = vor.u32 %v4370, %v4373
      %v4376 = vshrl.u32 %v4246, 16
      %v4378 = vrot.slane %v4376, 4
      %v4379 = vshll.u32 %v4246, 16
      %v4381 = vrot.slane %v4379, 5
      %v4382 = vor.u32 %v4378, %v4381
      %v4383 = vsel %vm4247, %v4374, %v4382
      %s4384 = scalar_lea.vmem %s3, 48
      %v4385 = vld [vmem:[%s4384] sm:$0xf]
      %v4386 = vld [vmem:[%s4384 + $0x4] sm:$0xf]
      %v4387 = vld [vmem:[%s4384 + $0x8] sm:$0xf]
      %v4388 = vld [vmem:[%s4384 + $0xc] sm:$0xf]
      %v4389 = vld [vmem:[%s4384 + $0x10] sm:$0xf]
      %v4390 = vld [vmem:[%s4384 + $0x14] sm:$0x1]
      %v4397 = vunpack.c.l.b16 %v4385
      %v4398 = vunpack.c.l.b16 %v4386
      %v4399 = vunpack.c.l.b16 %v4387
      %v4400 = vunpack.c.l.b16 %v4388
      %v4401 = vunpack.c.l.b16 %v4389
      %v4402 = vunpack.c.l.b16 %v4390
      %v4403 = vpack.c.b16 %v4398, %v4397
      %v4404 = vpack.c.b16 %v4400, %v4399
      %v4405 = vpack.c.b16 %v4402, %v4401
      %v4409 = vsel %vm3836, %v4264, 0
      %v4412 = vsel %vm3836, %v4281, 0
      %v4415 = vsel %vm3836, %v4298, 0
      %v4418 = vsel %vm3836, %v4315, 0
      %v4421 = vsel %vm3836, %v4332, 0
      %v4424 = vsel %vm3836, %v4349, 0
      %v4427 = vsel %vm3836, %v4366, 0
      %v4430 = vsel %vm3836, %v4383, 0
      %v4433 = vsel %vm3861, %v4405, 0
      %4435 = vmatprep.subr.bf16.mxu0 0
      %4436 = vmatpush1.bf16.msra.mxu0 %v4403
      %4437 = vmatprep.subr.bf16.mxu0 0
      %4438 = vmatpush1.bf16.msra.mxu0 %v4404
      %4439 = vmatprep.subr.bf16.mxu0 0
      %4440 = vmatpush1.bf16.msra.mxu0 %v4433
      %4441 = vmatprep.subr.bf16.mxu0 0
      %4442 = vmatpush1.bf16.msra.mxu0 0
      %4443 = vmatprep.subr.bf16.mxu0 0
      %4444 = vmatpush1.bf16.msra.mxu0 0
      %4445 = vmatprep.subr.bf16.mxu0 0
      %4446 = vmatpush1.bf16.msra.mxu0 0
      %4447 = vmatprep.subr.bf16.mxu0 0
      %4448 = vmatpush1.bf16.msra.mxu0 0
      %4449 = vmatprep.subr.bf16.mxu0 0
      %4450 = vmatpush1.bf16.msra.mxu0 0
      %4451 = vmatprep.subr.bf16.mxu0 0
      %4452 = vmatpush1.bf16.msra.mxu0 0
      %4453 = vmatprep.subr.bf16.mxu0 0
      %4454 = vmatpush1.bf16.msra.mxu0 0
      %4455 = vmatprep.subr.bf16.mxu0 0
      %4456 = vmatpush1.bf16.msra.mxu0 0
      %4457 = vmatprep.subr.bf16.mxu0 0
      %4458 = vmatpush1.bf16.msra.mxu0 0
      %4459 = vmatprep.subr.bf16.mxu0 0
      %4460 = vmatpush1.bf16.msra.mxu0 0
      %4461 = vmatprep.subr.bf16.mxu0 0
      %4462 = vmatpush1.bf16.msra.mxu0 0
      %4463 = vmatprep.subr.bf16.mxu0 0
      %4464 = vmatpush1.bf16.msra.mxu0 0
      %4465 = vmatprep.subr.bf16.mxu0 0
      %4466 = vmatpush1.bf16.msra.mxu0 0
      %4467 = vmatprep.mubr.bf16.mxu0 0
      %4468 = vmatmul.mubr.bf16.gmra.mrb[0].mxu0 %v4409
      %v4469 = vpop.f32.mrb[0].mxu0
      %v4470 = vadd.f32 0.0, %v4469
      %v4471 = vpop.f32.mrb[0].mxu0
      %v4472 = vpop.f32.mrb[0].mxu0
      %v4473 = vadd.f32 0.0, %v4472
      %v4474 = vpop.f32.mrb[0].mxu0
      %4475 = vmatprep.mubr.bf16.mxu0 0
      %4476 = vmatmul.mubr.bf16.gmra.mrb[0].mxu0 %v4412
      %v4477 = vpop.f32.mrb[0].mxu0
      %v4478 = vadd.f32 0.0, %v4477
      %v4479 = vpop.f32.mrb[0].mxu0
      %v4480 = vpop.f32.mrb[0].mxu0
      %v4481 = vadd.f32 0.0, %v4480
      %v4482 = vpop.f32.mrb[0].mxu0
      %4483 = vmatprep.mubr.bf16.mxu0 0
      %4484 = vmatmul.mubr.bf16.gmra.mrb[0].mxu0 %v4415
      %v4485 = vpop.f32.mrb[0].mxu0
      %v4486 = vadd.f32 0.0, %v4485
      %v4487 = vpop.f32.mrb[0].mxu0
      %v4488 = vpop.f32.mrb[0].mxu0
      %v4489 = vadd.f32 0.0, %v4488
      %v4490 = vpop.f32.mrb[0].mxu0
      %4491 = vmatprep.mubr.bf16.mxu0 0
      %4492 = vmatmul.mubr.bf16.gmra.mrb[0].mxu0 %v4418
      %v4493 = vpop.f32.mrb[0].mxu0
      %v4494 = vadd.f32 0.0, %v4493
      %v4495 = vpop.f32.mrb[0].mxu0
      %v4496 = vpop.f32.mrb[0].mxu0
      %v4497 = vadd.f32 0.0, %v4496
      %v4498 = vpop.f32.mrb[0].mxu0
      %4499 = vmatprep.mubr.bf16.mxu0 0
      %4500 = vmatmul.mubr.bf16.gmra.mrb[0].mxu0 %v4421
      %v4501 = vpop.f32.mrb[0].mxu0
      %v4502 = vadd.f32 0.0, %v4501
      %v4503 = vpop.f32.mrb[0].mxu0
      %v4504 = vpop.f32.mrb[0].mxu0
      %v4505 = vadd.f32 0.0, %v4504
      %v4506 = vpop.f32.mrb[0].mxu0
      %4507 = vmatprep.mubr.bf16.mxu0 0
      %4508 = vmatmul.mubr.bf16.gmra.mrb[0].mxu0 %v4424
      %v4509 = vpop.f32.mrb[0].mxu0
      %v4510 = vadd.f32 0.0, %v4509
      %v4511 = vpop.f32.mrb[0].mxu0
      %v4512 = vpop.f32.mrb[0].mxu0
      %v4513 = vadd.f32 0.0, %v4512
      %v4514 = vpop.f32.mrb[0].mxu0
      %4515 = vmatprep.mubr.bf16.mxu0 0
      %4516 = vmatmul.mubr.bf16.gmra.mrb[0].mxu0 %v4427
      %v4517 = vpop.f32.mrb[0].mxu0
      %v4518 = vadd.f32 0.0, %v4517
      %v4519 = vpop.f32.mrb[0].mxu0
      %v4520 = vpop.f32.mrb[0].mxu0
      %v4521 = vadd.f32 0.0, %v4520
      %v4522 = vpop.f32.mrb[0].mxu0
      %4523 = vmatprep.mubr.bf16.mxu0 0
      %4524 = vmatmul.mubr.bf16.gmra.mrb[0].mxu0 %v4430
      %v4525 = vpop.f32.mrb[0].mxu0
      %v4526 = vadd.f32 0.0, %v4525
      %v4527 = vpop.f32.mrb[0].mxu0
      %v4528 = vpop.f32.mrb[0].mxu0
      %v4529 = vadd.f32 0.0, %v4528
      %v4530 = vpop.f32.mrb[0].mxu0
      %4531 = vdwg.mxu0
      %v4532 = vld [vmem:[#allocation4] sm:$0xff]
      %v4533 = vld [vmem:[#allocation4 + $0x8] sm:$0xff]
      %v4534 = vld [vmem:[#allocation4 + $0x10] sm:$0xff]
      %v4535 = vld [vmem:[#allocation4 + $0x18] sm:$0xff]
      %v4536 = vld [vmem:[#allocation4 + $0x20] sm:$0xff]
      %v4537 = vld [vmem:[#allocation4 + $0x28] sm:$0xff]
      %v4538 = vld [vmem:[#allocation4 + $0x30] sm:$0xff]
      %v4539 = vld [vmem:[#allocation4 + $0x38] sm:$0xff]
      %v4540 = vld [vmem:[#allocation4 + $0x40] sm:$0xff]
      %v4541 = vld [vmem:[#allocation4 + $0x48] sm:$0xff]
      %v4542 = vld [vmem:[#allocation4 + $0x50] sm:$0xff]
      %v4543 = vld [vmem:[#allocation4 + $0x58] sm:$0xff]
      %v4544 = vld [vmem:[#allocation4 + $0x60] sm:$0xff]
      %v4545 = vld [vmem:[#allocation4 + $0x68] sm:$0xff]
      %v4546 = vld [vmem:[#allocation4 + $0x70] sm:$0xff]
      %v4547 = vld [vmem:[#allocation4 + $0x78] sm:$0xff]
      %v4548 = vadd.f32 %v4532, %v4470
      %v4549 = vadd.f32 %v4533, %v4473
      %v4550 = vadd.f32 %v4534, %v4478
      %v4551 = vadd.f32 %v4535, %v4481
      %v4552 = vadd.f32 %v4536, %v4486
      %v4553 = vadd.f32 %v4537, %v4489
      %v4554 = vadd.f32 %v4538, %v4494
      %v4555 = vadd.f32 %v4539, %v4497
      %v4556 = vadd.f32 %v4540, %v4502
      %v4557 = vadd.f32 %v4541, %v4505
      %v4558 = vadd.f32 %v4542, %v4510
      %v4559 = vadd.f32 %v4543, %v4513
      %v4560 = vadd.f32 %v4544, %v4518
      %v4561 = vadd.f32 %v4545, %v4521
      %v4562 = vadd.f32 %v4546, %v4526
      %v4563 = vadd.f32 %v4547, %v4529
      %4564 = vst [vmem:[#allocation4] sm:$0xff] %v4548
      %4565 = vst [vmem:[#allocation4 + $0x8] sm:$0xff] %v4549
      %4566 = vst [vmem:[#allocation4 + $0x10] sm:$0xff] %v4550
      %4567 = vst [vmem:[#allocation4 + $0x18] sm:$0xff] %v4551
      %4568 = vst [vmem:[#allocation4 + $0x20] sm:$0xff] %v4552
      %4569 = vst [vmem:[#allocation4 + $0x28] sm:$0xff] %v4553
      %4570 = vst [vmem:[#allocation4 + $0x30] sm:$0xff] %v4554
      %4571 = vst [vmem:[#allocation4 + $0x38] sm:$0xff] %v4555
      %4572 = vst [vmem:[#allocation4 + $0x40] sm:$0xff] %v4556
      %4573 = vst [vmem:[#allocation4 + $0x48] sm:$0xff] %v4557
      %4574 = vst [vmem:[#allocation4 + $0x50] sm:$0xff] %v4558
      %4575 = vst [vmem:[#allocation4 + $0x58] sm:$0xff] %v4559
      %4576 = vst [vmem:[#allocation4 + $0x60] sm:$0xff] %v4560
      %4577 = vst [vmem:[#allocation4 + $0x68] sm:$0xff] %v4561
      %4578 = vst [vmem:[#allocation4 + $0x70] sm:$0xff] %v4562
      %4579 = vst [vmem:[#allocation4 + $0x78] sm:$0xff] %v4563
      %s4580 = scalar_lea.vmem [#allocation3], 16
      %v4581 = vld [vmem:[%s4580] sm:$0xf8]
      %v4582 = vld [vmem:[%s4580 + $0x8] sm:$0xf]
      %v4583 = vld [vmem:[%s4580 + $0x10] sm:$0xf8]
      %v4584 = vld [vmem:[%s4580 + $0x18] sm:$0xf]
      %v4585 = vld [vmem:[%s4580 + $0x20] sm:$0xf8]
      %v4586 = vld [vmem:[%s4580 + $0x28] sm:$0xf]
      %v4587 = vld [vmem:[%s4580 + $0x30] sm:$0xf8]
      %v4588 = vld [vmem:[%s4580 + $0x38] sm:$0xf]
      %v4589 = vld [vmem:[%s4580 + $0x40] sm:$0xf8]
      %v4590 = vld [vmem:[%s4580 + $0x48] sm:$0xf]
      %v4591 = vld [vmem:[%s4580 + $0x50] sm:$0xf8]
      %v4592 = vld [vmem:[%s4580 + $0x58] sm:$0xf]
      %v4593 = vld [vmem:[%s4580 + $0x60] sm:$0xf8]
      %v4594 = vld [vmem:[%s4580 + $0x68] sm:$0xf]
      %v4595 = vld [vmem:[%s4580 + $0x70] sm:$0xf8]
      %v4596 = vld [vmem:[%s4580 + $0x78] sm:$0xf]
      %v4598 = vshrl.u32 %v4581, 16
      %v4600 = vrot.slane %v4598, 3
      %v4601 = vshll.u32 %v4581, 16
      %v4603 = vrot.slane %v4601, 4
      %v4604 = vor.u32 %v4600, %v4603
      %v4606 = vshrl.u32 %v4582, 16
      %v4608 = vrot.slane %v4606, 3
      %v4609 = vshll.u32 %v4582, 16
      %v4611 = vrot.slane %v4609, 4
      %v4612 = vor.u32 %v4608, %v4611
      %v4613 = vsel %vm3676, %v4604, %v4612
      %v4615 = vshrl.u32 %v4583, 16
      %v4617 = vrot.slane %v4615, 3
      %v4618 = vshll.u32 %v4583, 16
      %v4620 = vrot.slane %v4618, 4
      %v4621 = vor.u32 %v4617, %v4620
      %v4623 = vshrl.u32 %v4584, 16
      %v4625 = vrot.slane %v4623, 3
      %v4626 = vshll.u32 %v4584, 16
      %v4628 = vrot.slane %v4626, 4
      %v4629 = vor.u32 %v4625, %v4628
      %v4630 = vsel %vm3676, %v4621, %v4629
      %v4632 = vshrl.u32 %v4585, 16
      %v4634 = vrot.slane %v4632, 3
      %v4635 = vshll.u32 %v4585, 16
      %v4637 = vrot.slane %v4635, 4
      %v4638 = vor.u32 %v4634, %v4637
      %v4640 = vshrl.u32 %v4586, 16
      %v4642 = vrot.slane %v4640, 3
      %v4643 = vshll.u32 %v4586, 16
      %v4645 = vrot.slane %v4643, 4
      %v4646 = vor.u32 %v4642, %v4645
      %v4647 = vsel %vm3676, %v4638, %v4646
      %v4649 = vshrl.u32 %v4587, 16
      %v4651 = vrot.slane %v4649, 3
      %v4652 = vshll.u32 %v4587, 16
      %v4654 = vrot.slane %v4652, 4
      %v4655 = vor.u32 %v4651, %v4654
      %v4657 = vshrl.u32 %v4588, 16
      %v4659 = vrot.slane %v4657, 3
      %v4660 = vshll.u32 %v4588, 16
      %v4662 = vrot.slane %v4660, 4
      %v4663 = vor.u32 %v4659, %v4662
      %v4664 = vsel %vm3676, %v4655, %v4663
      %v4666 = vshrl.u32 %v4589, 16
      %v4668 = vrot.slane %v4666, 3
      %v4669 = vshll.u32 %v4589, 16
      %v4671 = vrot.slane %v4669, 4
      %v4672 = vor.u32 %v4668, %v4671
      %v4674 = vshrl.u32 %v4590, 16
      %v4676 = vrot.slane %v4674, 3
      %v4677 = vshll.u32 %v4590, 16
      %v4679 = vrot.slane %v4677, 4
      %v4680 = vor.u32 %v4676, %v4679
      %v4681 = vsel %vm3676, %v4672, %v4680
      %v4683 = vshrl.u32 %v4591, 16
      %v4685 = vrot.slane %v4683, 3
      %v4686 = vshll.u32 %v4591, 16
      %v4688 = vrot.slane %v4686, 4
      %v4689 = vor.u32 %v4685, %v4688
      %v4691 = vshrl.u32 %v4592, 16
      %v4693 = vrot.slane %v4691, 3
      %v4694 = vshll.u32 %v4592, 16
      %v4696 = vrot.slane %v4694, 4
      %v4697 = vor.u32 %v4693, %v4696
      %v4698 = vsel %vm3676, %v4689, %v4697
      %v4700 = vshrl.u32 %v4593, 16
      %v4702 = vrot.slane %v4700, 3
      %v4703 = vshll.u32 %v4593, 16
      %v4705 = vrot.slane %v4703, 4
      %v4706 = vor.u32 %v4702, %v4705
      %v4708 = vshrl.u32 %v4594, 16
      %v4710 = vrot.slane %v4708, 3
      %v4711 = vshll.u32 %v4594, 16
      %v4713 = vrot.slane %v4711, 4
      %v4714 = vor.u32 %v4710, %v4713
      %v4715 = vsel %vm3676, %v4706, %v4714
      %v4717 = vshrl.u32 %v4595, 16
      %v4719 = vrot.slane %v4717, 3
      %v4720 = vshll.u32 %v4595, 16
      %v4722 = vrot.slane %v4720, 4
      %v4723 = vor.u32 %v4719, %v4722
      %v4725 = vshrl.u32 %v4596, 16
      %v4727 = vrot.slane %v4725, 3
      %v4728 = vshll.u32 %v4596, 16
      %v4730 = vrot.slane %v4728, 4
      %v4731 = vor.u32 %v4727, %v4730
      %v4732 = vsel %vm3676, %v4723, %v4731
      %s4733 = scalar_lea.vmem %s3, 72
      %v4734 = vld [vmem:[%s4733] sm:$0xf]
      %v4735 = vld [vmem:[%s4733 + $0x4] sm:$0xf]
      %v4736 = vld [vmem:[%s4733 + $0x8] sm:$0xf]
      %v4737 = vld [vmem:[%s4733 + $0xc] sm:$0xf]
      %v4738 = vld [vmem:[%s4733 + $0x10] sm:$0xf]
      %v4739 = vld [vmem:[%s4733 + $0x14] sm:$0x1]
      %v4746 = vunpack.c.l.b16 %v4734
      %v4747 = vunpack.c.l.b16 %v4735
      %v4748 = vunpack.c.l.b16 %v4736
      %v4749 = vunpack.c.l.b16 %v4737
      %v4750 = vunpack.c.l.b16 %v4738
      %v4751 = vunpack.c.l.b16 %v4739
      %v4752 = vpack.c.b16 %v4747, %v4746
      %v4753 = vpack.c.b16 %v4749, %v4748
      %v4754 = vpack.c.b16 %v4751, %v4750
      %v4758 = vsel %vm3836, %v4613, 0
      %v4761 = vsel %vm3836, %v4630, 0
      %v4764 = vsel %vm3836, %v4647, 0
      %v4767 = vsel %vm3836, %v4664, 0
      %v4770 = vsel %vm3836, %v4681, 0
      %v4773 = vsel %vm3836, %v4698, 0
      %v4776 = vsel %vm3836, %v4715, 0
      %v4779 = vsel %vm3836, %v4732, 0
      %v4782 = vsel %vm3861, %v4754, 0
      %4784 = vmatprep.subr.bf16.mxu0 0
      %4785 = vmatpush1.bf16.msra.mxu0 %v4752
      %4786 = vmatprep.subr.bf16.mxu0 0
      %4787 = vmatpush1.bf16.msra.mxu0 %v4753
      %4788 = vmatprep.subr.bf16.mxu0 0
      %4789 = vmatpush1.bf16.msra.mxu0 %v4782
      %4790 = vmatprep.subr.bf16.mxu0 0
      %4791 = vmatpush1.bf16.msra.mxu0 0
      %4792 = vmatprep.subr.bf16.mxu0 0
      %4793 = vmatpush1.bf16.msra.mxu0 0
      %4794 = vmatprep.subr.bf16.mxu0 0
      %4795 = vmatpush1.bf16.msra.mxu0 0
      %4796 = vmatprep.subr.bf16.mxu0 0
      %4797 = vmatpush1.bf16.msra.mxu0 0
      %4798 = vmatprep.subr.bf16.mxu0 0
      %4799 = vmatpush1.bf16.msra.mxu0 0
      %4800 = vmatprep.subr.bf16.mxu0 0
      %4801 = vmatpush1.bf16.msra.mxu0 0
      %4802 = vmatprep.subr.bf16.mxu0 0
      %4803 = vmatpush1.bf16.msra.mxu0 0
      %4804 = vmatprep.subr.bf16.mxu0 0
      %4805 = vmatpush1.bf16.msra.mxu0 0
      %4806 = vmatprep.subr.bf16.mxu0 0
      %4807 = vmatpush1.bf16.msra.mxu0 0
      %4808 = vmatprep.subr.bf16.mxu0 0
      %4809 = vmatpush1.bf16.msra.mxu0 0
      %4810 = vmatprep.subr.bf16.mxu0 0
      %4811 = vmatpush1.bf16.msra.mxu0 0
      %4812 = vmatprep.subr.bf16.mxu0 0
      %4813 = vmatpush1.bf16.msra.mxu0 0
      %4814 = vmatprep.subr.bf16.mxu0 0
      %4815 = vmatpush1.bf16.msra.mxu0 0
      %4816 = vmatprep.mubr.bf16.mxu0 0
      %4817 = vmatmul.mubr.bf16.gmra.mrb[0].mxu0 %v4758
      %v4818 = vpop.f32.mrb[0].mxu0
      %v4819 = vadd.f32 0.0, %v4818
      %v4820 = vpop.f32.mrb[0].mxu0
      %v4821 = vpop.f32.mrb[0].mxu0
      %v4822 = vadd.f32 0.0, %v4821
      %v4823 = vpop.f32.mrb[0].mxu0
      %4824 = vmatprep.mubr.bf16.mxu0 0
      %4825 = vmatmul.mubr.bf16.gmra.mrb[0].mxu0 %v4761
      %v4826 = vpop.f32.mrb[0].mxu0
      %v4827 = vadd.f32 0.0, %v4826
      %v4828 = vpop.f32.mrb[0].mxu0
      %v4829 = vpop.f32.mrb[0].mxu0
      %v4830 = vadd.f32 0.0, %v4829
      %v4831 = vpop.f32.mrb[0].mxu0
      %4832 = vmatprep.mubr.bf16.mxu0 0
      %4833 = vmatmul.mubr.bf16.gmra.mrb[0].mxu0 %v4764
      %v4834 = vpop.f32.mrb[0].mxu0
      %v4835 = vadd.f32 0.0, %v4834
      %v4836 = vpop.f32.mrb[0].mxu0
      %v4837 = vpop.f32.mrb[0].mxu0
      %v4838 = vadd.f32 0.0, %v4837
      %v4839 = vpop.f32.mrb[0].mxu0
      %4840 = vmatprep.mubr.bf16.mxu0 0
      %4841 = vmatmul.mubr.bf16.gmra.mrb[0].mxu0 %v4767
      %v4842 = vpop.f32.mrb[0].mxu0
      %v4843 = vadd.f32 0.0, %v4842
      %v4844 = vpop.f32.mrb[0].mxu0
      %v4845 = vpop.f32.mrb[0].mxu0
      %v4846 = vadd.f32 0.0, %v4845
      %v4847 = vpop.f32.mrb[0].mxu0
      %4848 = vmatprep.mubr.bf16.mxu0 0
      %4849 = vmatmul.mubr.bf16.gmra.mrb[0].mxu0 %v4770
      %v4850 = vpop.f32.mrb[0].mxu0
      %v4851 = vadd.f32 0.0, %v4850
      %v4852 = vpop.f32.mrb[0].mxu0
      %v4853 = vpop.f32.mrb[0].mxu0
      %v4854 = vadd.f32 0.0, %v4853
      %v4855 = vpop.f32.mrb[0].mxu0
      %4856 = vmatprep.mubr.bf16.mxu0 0
      %4857 = vmatmul.mubr.bf16.gmra.mrb[0].mxu0 %v4773
      %v4858 = vpop.f32.mrb[0].mxu0
      %v4859 = vadd.f32 0.0, %v4858
      %v4860 = vpop.f32.mrb[0].mxu0
      %v4861 = vpop.f32.mrb[0].mxu0
      %v4862 = vadd.f32 0.0, %v4861
      %v4863 = vpop.f32.mrb[0].mxu0
      %4864 = vmatprep.mubr.bf16.mxu0 0
      %4865 = vmatmul.mubr.bf16.gmra.mrb[0].mxu0 %v4776
      %v4866 = vpop.f32.mrb[0].mxu0
      %v4867 = vadd.f32 0.0, %v4866
      %v4868 = vpop.f32.mrb[0].mxu0
      %v4869 = vpop.f32.mrb[0].mxu0
      %v4870 = vadd.f32 0.0, %v4869
      %v4871 = vpop.f32.mrb[0].mxu0
      %4872 = vmatprep.mubr.bf16.mxu0 0
      %4873 = vmatmul.mubr.bf16.gmra.mrb[0].mxu0 %v4779
      %v4874 = vpop.f32.mrb[0].mxu0
      %v4875 = vadd.f32 0.0, %v4874
      %v4876 = vpop.f32.mrb[0].mxu0
      %v4877 = vpop.f32.mrb[0].mxu0
      %v4878 = vadd.f32 0.0, %v4877
      %v4879 = vpop.f32.mrb[0].mxu0
      %4880 = vdwg.mxu0
      %v4881 = vld [vmem:[#allocation4] sm:$0xff]
      %v4882 = vld [vmem:[#allocation4 + $0x8] sm:$0xff]
      %v4883 = vld [vmem:[#allocation4 + $0x10] sm:$0xff]
      %v4884 = vld [vmem:[#allocation4 + $0x18] sm:$0xff]
      %v4885 = vld [vmem:[#allocation4 + $0x20] sm:$0xff]
      %v4886 = vld [vmem:[#allocation4 + $0x28] sm:$0xff]
      %v4887 = vld [vmem:[#allocation4 + $0x30] sm:$0xff]
      %v4888 = vld [vmem:[#allocation4 + $0x38] sm:$0xff]
      %v4889 = vld [vmem:[#allocation4 + $0x40] sm:$0xff]
      %v4890 = vld [vmem:[#allocation4 + $0x48] sm:$0xff]
      %v4891 = vld [vmem:[#allocation4 + $0x50] sm:$0xff]
      %v4892 = vld [vmem:[#allocation4 + $0x58] sm:$0xff]
      %v4893 = vld [vmem:[#allocation4 + $0x60] sm:$0xff]
      %v4894 = vld [vmem:[#allocation4 + $0x68] sm:$0xff]
      %v4895 = vld [vmem:[#allocation4 + $0x70] sm:$0xff]
      %v4896 = vld [vmem:[#allocation4 + $0x78] sm:$0xff]
      %v4897 = vadd.f32 %v4881, %v4819
      %v4898 = vadd.f32 %v4882, %v4822
      %v4899 = vadd.f32 %v4883, %v4827
      %v4900 = vadd.f32 %v4884, %v4830
      %v4901 = vadd.f32 %v4885, %v4835
      %v4902 = vadd.f32 %v4886, %v4838
      %v4903 = vadd.f32 %v4887, %v4843
      %v4904 = vadd.f32 %v4888, %v4846
      %v4905 = vadd.f32 %v4889, %v4851
      %v4906 = vadd.f32 %v4890, %v4854
      %v4907 = vadd.f32 %v4891, %v4859
      %v4908 = vadd.f32 %v4892, %v4862
      %v4909 = vadd.f32 %v4893, %v4867
      %v4910 = vadd.f32 %v4894, %v4870
      %v4911 = vadd.f32 %v4895, %v4875
      %v4912 = vadd.f32 %v4896, %v4878
      %4913 = vst [vmem:[#allocation4] sm:$0xff] %v4897
      %4914 = vst [vmem:[#allocation4 + $0x8] sm:$0xff] %v4898
      %4915 = vst [vmem:[#allocation4 + $0x10] sm:$0xff] %v4899
      %4916 = vst [vmem:[#allocation4 + $0x18] sm:$0xff] %v4900
      %4917 = vst [vmem:[#allocation4 + $0x20] sm:$0xff] %v4901
      %4918 = vst [vmem:[#allocation4 + $0x28] sm:$0xff] %v4902
      %4919 = vst [vmem:[#allocation4 + $0x30] sm:$0xff] %v4903
      %4920 = vst [vmem:[#allocation4 + $0x38] sm:$0xff] %v4904
      %4921 = vst [vmem:[#allocation4 + $0x40] sm:$0xff] %v4905
      %4922 = vst [vmem:[#allocation4 + $0x48] sm:$0xff] %v4906
      %4923 = vst [vmem:[#allocation4 + $0x50] sm:$0xff] %v4907
      %4924 = vst [vmem:[#allocation4 + $0x58] sm:$0xff] %v4908
      %4925 = vst [vmem:[#allocation4 + $0x60] sm:$0xff] %v4909
      %4926 = vst [vmem:[#allocation4 + $0x68] sm:$0xff] %v4910
      %4927 = vst [vmem:[#allocation4 + $0x70] sm:$0xff] %v4911
      %4928 = vst [vmem:[#allocation4 + $0x78] sm:$0xff] %v4912
      %v4929 = vld [vmem:[%s4580] sm:$0xf0]
      %v4930 = vld [vmem:[%s4580 + $0x8] sm:$0xf]
      %v4931 = vld [vmem:[%s4580 + $0x10] sm:$0xf0]
      %v4932 = vld [vmem:[%s4580 + $0x18] sm:$0xf]
      %v4933 = vld [vmem:[%s4580 + $0x20] sm:$0xf0]
      %v4934 = vld [vmem:[%s4580 + $0x28] sm:$0xf]
      %v4935 = vld [vmem:[%s4580 + $0x30] sm:$0xf0]
      %v4936 = vld [vmem:[%s4580 + $0x38] sm:$0xf]
      %v4937 = vld [vmem:[%s4580 + $0x40] sm:$0xf0]
      %v4938 = vld [vmem:[%s4580 + $0x48] sm:$0xf]
      %v4939 = vld [vmem:[%s4580 + $0x50] sm:$0xf0]
      %v4940 = vld [vmem:[%s4580 + $0x58] sm:$0xf]
      %v4941 = vld [vmem:[%s4580 + $0x60] sm:$0xf0]
      %v4942 = vld [vmem:[%s4580 + $0x68] sm:$0xf]
      %v4943 = vld [vmem:[%s4580 + $0x70] sm:$0xf0]
      %v4944 = vld [vmem:[%s4580 + $0x78] sm:$0xf]
      %v4961 = vrot.slane %v4929, 4
      %v4962 = vrot.slane %v4930, 4
      %v4963 = vsel %vm4010, %v4961, %v4962
      %v4964 = vrot.slane %v4931, 4
      %v4965 = vrot.slane %v4932, 4
      %v4966 = vsel %vm4010, %v4964, %v4965
      %v4967 = vrot.slane %v4933, 4
      %v4968 = vrot.slane %v4934, 4
      %v4969 = vsel %vm4010, %v4967, %v4968
      %v4970 = vrot.slane %v4935, 4
      %v4971 = vrot.slane %v4936, 4
      %v4972 = vsel %vm4010, %v4970, %v4971
      %v4973 = vrot.slane %v4937, 4
      %v4974 = vrot.slane %v4938, 4
      %v4975 = vsel %vm4010, %v4973, %v4974
      %v4976 = vrot.slane %v4939, 4
      %v4977 = vrot.slane %v4940, 4
      %v4978 = vsel %vm4010, %v4976, %v4977
      %v4979 = vrot.slane %v4941, 4
      %v4980 = vrot.slane %v4942, 4
      %v4981 = vsel %vm4010, %v4979, %v4980
      %v4982 = vrot.slane %v4943, 4
      %v4983 = vrot.slane %v4944, 4
      %v4984 = vsel %vm4010, %v4982, %v4983
      %s4985 = scalar_lea.vmem %s3, 96
      %v4986 = vld [vmem:[%s4985] sm:$0xf]
      %v4987 = vld [vmem:[%s4985 + $0x4] sm:$0xf]
      %v4988 = vld [vmem:[%s4985 + $0x8] sm:$0xf]
      %v4989 = vld [vmem:[%s4985 + $0xc] sm:$0xf]
      %v4990 = vld [vmem:[%s4985 + $0x10] sm:$0xf]
      %v4991 = vld [vmem:[%s4985 + $0x14] sm:$0x1]
      %v4998 = vunpack.c.l.b16 %v4986
      %v4999 = vunpack.c.l.b16 %v4987
      %v5000 = vunpack.c.l.b16 %v4988
      %v5001 = vunpack.c.l.b16 %v4989
      %v5002 = vunpack.c.l.b16 %v4990
      %v5003 = vunpack.c.l.b16 %v4991
      %v5004 = vpack.c.b16 %v4999, %v4998
      %v5005 = vpack.c.b16 %v5001, %v5000
      %v5006 = vpack.c.b16 %v5003, %v5002
      %v5010 = vsel %vm3836, %v4963, 0
      %v5013 = vsel %vm3836, %v4966, 0
      %v5016 = vsel %vm3836, %v4969, 0
      %v5019 = vsel %vm3836, %v4972, 0
      %v5022 = vsel %vm3836, %v4975, 0
      %v5025 = vsel %vm3836, %v4978, 0
      %v5028 = vsel %vm3836, %v4981, 0
      %v5031 = vsel %vm3836, %v4984, 0
      %v5034 = vsel %vm3861, %v5006, 0
      %5036 = vmatprep.subr.bf16.mxu0 0
      %5037 = vmatpush1.bf16.msra.mxu0 %v5004
      %5038 = vmatprep.subr.bf16.mxu0 0
      %5039 = vmatpush1.bf16.msra.mxu0 %v5005
      %5040 = vmatprep.subr.bf16.mxu0 0
      %5041 = vmatpush1.bf16.msra.mxu0 %v5034
      %5042 = vmatprep.subr.bf16.mxu0 0
      %5043 = vmatpush1.bf16.msra.mxu0 0
      %5044 = vmatprep.subr.bf16.mxu0 0
      %5045 = vmatpush1.bf16.msra.mxu0 0
      %5046 = vmatprep.subr.bf16.mxu0 0
      %5047 = vmatpush1.bf16.msra.mxu0 0
      %5048 = vmatprep.subr.bf16.mxu0 0
      %5049 = vmatpush1.bf16.msra.mxu0 0
      %5050 = vmatprep.subr.bf16.mxu0 0
      %5051 = vmatpush1.bf16.msra.mxu0 0
      %5052 = vmatprep.subr.bf16.mxu0 0
      %5053 = vmatpush1.bf16.msra.mxu0 0
      %5054 = vmatprep.subr.bf16.mxu0 0
      %5055 = vmatpush1.bf16.msra.mxu0 0
      %5056 = vmatprep.subr.bf16.mxu0 0
      %5057 = vmatpush1.bf16.msra.mxu0 0
      %5058 = vmatprep.subr.bf16.mxu0 0
      %5059 = vmatpush1.bf16.msra.mxu0 0
      %5060 = vmatprep.subr.bf16.mxu0 0
      %5061 = vmatpush1.bf16.msra.mxu0 0
      %5062 = vmatprep.subr.bf16.mxu0 0
      %5063 = vmatpush1.bf16.msra.mxu0 0
      %5064 = vmatprep.subr.bf16.mxu0 0
      %5065 = vmatpush1.bf16.msra.mxu0 0
      %5066 = vmatprep.subr.bf16.mxu0 0
      %5067 = vmatpush1.bf16.msra.mxu0 0
      %5068 = vmatprep.mubr.bf16.mxu0 0
      %5069 = vmatmul.mubr.bf16.gmra.mrb[0].mxu0 %v5010
      %v5070 = vpop.f32.mrb[0].mxu0
      %v5071 = vadd.f32 0.0, %v5070
      %v5072 = vpop.f32.mrb[0].mxu0
      %v5073 = vpop.f32.mrb[0].mxu0
      %v5074 = vadd.f32 0.0, %v5073
      %v5075 = vpop.f32.mrb[0].mxu0
      %5076 = vmatprep.mubr.bf16.mxu0 0
      %5077 = vmatmul.mubr.bf16.gmra.mrb[0].mxu0 %v5013
      %v5078 = vpop.f32.mrb[0].mxu0
      %v5079 = vadd.f32 0.0, %v5078
      %v5080 = vpop.f32.mrb[0].mxu0
      %v5081 = vpop.f32.mrb[0].mxu0
      %v5082 = vadd.f32 0.0, %v5081
      %v5083 = vpop.f32.mrb[0].mxu0
      %5084 = vmatprep.mubr.bf16.mxu0 0
      %5085 = vmatmul.mubr.bf16.gmra.mrb[0].mxu0 %v5016
      %v5086 = vpop.f32.mrb[0].mxu0
      %v5087 = vadd.f32 0.0, %v5086
      %v5088 = vpop.f32.mrb[0].mxu0
      %v5089 = vpop.f32.mrb[0].mxu0
      %v5090 = vadd.f32 0.0, %v5089
      %v5091 = vpop.f32.mrb[0].mxu0
      %5092 = vmatprep.mubr.bf16.mxu0 0
      %5093 = vmatmul.mubr.bf16.gmra.mrb[0].mxu0 %v5019
      %v5094 = vpop.f32.mrb[0].mxu0
      %v5095 = vadd.f32 0.0, %v5094
      %v5096 = vpop.f32.mrb[0].mxu0
      %v5097 = vpop.f32.mrb[0].mxu0
      %v5098 = vadd.f32 0.0, %v5097
      %v5099 = vpop.f32.mrb[0].mxu0
      %5100 = vmatprep.mubr.bf16.mxu0 0
      %5101 = vmatmul.mubr.bf16.gmra.mrb[0].mxu0 %v5022
      %v5102 = vpop.f32.mrb[0].mxu0
      %v5103 = vadd.f32 0.0, %v5102
      %v5104 = vpop.f32.mrb[0].mxu0
      %v5105 = vpop.f32.mrb[0].mxu0
      %v5106 = vadd.f32 0.0, %v5105
      %v5107 = vpop.f32.mrb[0].mxu0
      %5108 = vmatprep.mubr.bf16.mxu0 0
      %5109 = vmatmul.mubr.bf16.gmra.mrb[0].mxu0 %v5025
      %v5110 = vpop.f32.mrb[0].mxu0
      %v5111 = vadd.f32 0.0, %v5110
      %v5112 = vpop.f32.mrb[0].mxu0
      %v5113 = vpop.f32.mrb[0].mxu0
      %v5114 = vadd.f32 0.0, %v5113
      %v5115 = vpop.f32.mrb[0].mxu0
      %5116 = vmatprep.mubr.bf16.mxu0 0
      %5117 = vmatmul.mubr.bf16.gmra.mrb[0].mxu0 %v5028
      %v5118 = vpop.f32.mrb[0].mxu0
      %v5119 = vadd.f32 0.0, %v5118
      %v5120 = vpop.f32.mrb[0].mxu0
      %v5121 = vpop.f32.mrb[0].mxu0
      %v5122 = vadd.f32 0.0, %v5121
      %v5123 = vpop.f32.mrb[0].mxu0
      %5124 = vmatprep.mubr.bf16.mxu0 0
      %5125 = vmatmul.mubr.bf16.gmra.mrb[0].mxu0 %v5031
      %v5126 = vpop.f32.mrb[0].mxu0
      %v5127 = vadd.f32 0.0, %v5126
      %v5128 = vpop.f32.mrb[0].mxu0
      %v5129 = vpop.f32.mrb[0].mxu0
      %v5130 = vadd.f32 0.0, %v5129
      %v5131 = vpop.f32.mrb[0].mxu0
      %5132 = vdwg.mxu0
      %v5133 = vld [vmem:[#allocation4] sm:$0xff]
      %v5134 = vld [vmem:[#allocation4 + $0x8] sm:$0xff]
      %v5135 = vld [vmem:[#allocation4 + $0x10] sm:$0xff]
      %v5136 = vld [vmem:[#allocation4 + $0x18] sm:$0xff]
      %v5137 = vld [vmem:[#allocation4 + $0x20] sm:$0xff]
      %v5138 = vld [vmem:[#allocation4 + $0x28] sm:$0xff]
      %v5139 = vld [vmem:[#allocation4 + $0x30] sm:$0xff]
      %v5140 = vld [vmem:[#allocation4 + $0x38] sm:$0xff]
      %v5141 = vld [vmem:[#allocation4 + $0x40] sm:$0xff]
      %v5142 = vld [vmem:[#allocation4 + $0x48] sm:$0xff]
      %v5143 = vld [vmem:[#allocation4 + $0x50] sm:$0xff]
      %v5144 = vld [vmem:[#allocation4 + $0x58] sm:$0xff]
      %v5145 = vld [vmem:[#allocation4 + $0x60] sm:$0xff]
      %v5146 = vld [vmem:[#allocation4 + $0x68] sm:$0xff]
      %v5147 = vld [vmem:[#allocation4 + $0x70] sm:$0xff]
      %v5148 = vld [vmem:[#allocation4 + $0x78] sm:$0xff]
      %v5149 = vadd.f32 %v5133, %v5071
      %v5150 = vadd.f32 %v5134, %v5074
      %v5151 = vadd.f32 %v5135, %v5079
      %v5152 = vadd.f32 %v5136, %v5082
      %v5153 = vadd.f32 %v5137, %v5087
      %v5154 = vadd.f32 %v5138, %v5090
      %v5155 = vadd.f32 %v5139, %v5095
      %v5156 = vadd.f32 %v5140, %v5098
      %v5157 = vadd.f32 %v5141, %v5103
      %v5158 = vadd.f32 %v5142, %v5106
      %v5159 = vadd.f32 %v5143, %v5111
      %v5160 = vadd.f32 %v5144, %v5114
      %v5161 = vadd.f32 %v5145, %v5119
      %v5162 = vadd.f32 %v5146, %v5122
      %v5163 = vadd.f32 %v5147, %v5127
      %v5164 = vadd.f32 %v5148, %v5130
      %5165 = vst [vmem:[#allocation4] sm:$0xff] %v5149
      %5166 = vst [vmem:[#allocation4 + $0x8] sm:$0xff] %v5150
      %5167 = vst [vmem:[#allocation4 + $0x10] sm:$0xff] %v5151
      %5168 = vst [vmem:[#allocation4 + $0x18] sm:$0xff] %v5152
      %5169 = vst [vmem:[#allocation4 + $0x20] sm:$0xff] %v5153
      %5170 = vst [vmem:[#allocation4 + $0x28] sm:$0xff] %v5154
      %5171 = vst [vmem:[#allocation4 + $0x30] sm:$0xff] %v5155
      %5172 = vst [vmem:[#allocation4 + $0x38] sm:$0xff] %v5156
      %5173 = vst [vmem:[#allocation4 + $0x40] sm:$0xff] %v5157
      %5174 = vst [vmem:[#allocation4 + $0x48] sm:$0xff] %v5158
      %5175 = vst [vmem:[#allocation4 + $0x50] sm:$0xff] %v5159
      %5176 = vst [vmem:[#allocation4 + $0x58] sm:$0xff] %v5160
      %5177 = vst [vmem:[#allocation4 + $0x60] sm:$0xff] %v5161
      %5178 = vst [vmem:[#allocation4 + $0x68] sm:$0xff] %v5162
      %5179 = vst [vmem:[#allocation4 + $0x70] sm:$0xff] %v5163
      %5180 = vst [vmem:[#allocation4 + $0x78] sm:$0xff] %v5164
      %v5181 = vld [vmem:[%s4580] sm:$0xf0]
      %v5182 = vld [vmem:[%s4580 + $0x8] sm:$0x1f]
      %v5183 = vld [vmem:[%s4580 + $0x10] sm:$0xf0]
      %v5184 = vld [vmem:[%s4580 + $0x18] sm:$0x1f]
      %v5185 = vld [vmem:[%s4580 + $0x20] sm:$0xf0]
      %v5186 = vld [vmem:[%s4580 + $0x28] sm:$0x1f]
      %v5187 = vld [vmem:[%s4580 + $0x30] sm:$0xf0]
      %v5188 = vld [vmem:[%s4580 + $0x38] sm:$0x1f]
      %v5189 = vld [vmem:[%s4580 + $0x40] sm:$0xf0]
      %v5190 = vld [vmem:[%s4580 + $0x48] sm:$0x1f]
      %v5191 = vld [vmem:[%s4580 + $0x50] sm:$0xf0]
      %v5192 = vld [vmem:[%s4580 + $0x58] sm:$0x1f]
      %v5193 = vld [vmem:[%s4580 + $0x60] sm:$0xf0]
      %v5194 = vld [vmem:[%s4580 + $0x68] sm:$0x1f]
      %v5195 = vld [vmem:[%s4580 + $0x70] sm:$0xf0]
      %v5196 = vld [vmem:[%s4580 + $0x78] sm:$0x1f]
      %v5198 = vshrl.u32 %v5181, 16
      %v5200 = vrot.slane %v5198, 4
      %v5201 = vshll.u32 %v5181, 16
      %v5203 = vrot.slane %v5201, 5
      %v5204 = vor.u32 %v5200, %v5203
      %v5206 = vshrl.u32 %v5182, 16
      %v5208 = vrot.slane %v5206, 4
      %v5209 = vshll.u32 %v5182, 16
      %v5211 = vrot.slane %v5209, 5
      %v5212 = vor.u32 %v5208, %v5211
      %v5213 = vsel %vm4247, %v5204, %v5212
      %v5215 = vshrl.u32 %v5183, 16
      %v5217 = vrot.slane %v5215, 4
      %v5218 = vshll.u32 %v5183, 16
      %v5220 = vrot.slane %v5218, 5
      %v5221 = vor.u32 %v5217, %v5220
      %v5223 = vshrl.u32 %v5184, 16
      %v5225 = vrot.slane %v5223, 4
      %v5226 = vshll.u32 %v5184, 16
      %v5228 = vrot.slane %v5226, 5
      %v5229 = vor.u32 %v5225, %v5228
      %v5230 = vsel %vm4247, %v5221, %v5229
      %v5232 = vshrl.u32 %v5185, 16
      %v5234 = vrot.slane %v5232, 4
      %v5235 = vshll.u32 %v5185, 16
      %v5237 = vrot.slane %v5235, 5
      %v5238 = vor.u32 %v5234, %v5237
      %v5240 = vshrl.u32 %v5186, 16
      %v5242 = vrot.slane %v5240, 4
      %v5243 = vshll.u32 %v5186, 16
      %v5245 = vrot.slane %v5243, 5
      %v5246 = vor.u32 %v5242, %v5245
      %v5247 = vsel %vm4247, %v5238, %v5246
      %v5249 = vshrl.u32 %v5187, 16
      %v5251 = vrot.slane %v5249, 4
      %v5252 = vshll.u32 %v5187, 16
      %v5254 = vrot.slane %v5252, 5
      %v5255 = vor.u32 %v5251, %v5254
      %v5257 = vshrl.u32 %v5188, 16
      %v5259 = vrot.slane %v5257, 4
      %v5260 = vshll.u32 %v5188, 16
      %v5262 = vrot.slane %v5260, 5
      %v5263 = vor.u32 %v5259, %v5262
      %v5264 = vsel %vm4247, %v5255, %v5263
      %v5266 = vshrl.u32 %v5189, 16
      %v5268 = vrot.slane %v5266, 4
      %v5269 = vshll.u32 %v5189, 16
      %v5271 = vrot.slane %v5269, 5
      %v5272 = vor.u32 %v5268, %v5271
      %v5274 = vshrl.u32 %v5190, 16
      %v5276 = vrot.slane %v5274, 4
      %v5277 = vshll.u32 %v5190, 16
      %v5279 = vrot.slane %v5277, 5
      %v5280 = vor.u32 %v5276, %v5279
      %v5281 = vsel %vm4247, %v5272, %v5280
      %v5283 = vshrl.u32 %v5191, 16
      %v5285 = vrot.slane %v5283, 4
      %v5286 = vshll.u32 %v5191, 16
      %v5288 = vrot.slane %v5286, 5
      %v5289 = vor.u32 %v5285, %v5288
      %v5291 = vshrl.u32 %v5192, 16
      %v5293 = vrot.slane %v5291, 4
      %v5294 = vshll.u32 %v5192, 16
      %v5296 = vrot.slane %v5294, 5
      %v5297 = vor.u32 %v5293, %v5296
      %v5298 = vsel %vm4247, %v5289, %v5297
      %v5300 = vshrl.u32 %v5193, 16
      %v5302 = vrot.slane %v5300, 4
      %v5303 = vshll.u32 %v5193, 16
      %v5305 = vrot.slane %v5303, 5
      %v5306 = vor.u32 %v5302, %v5305
      %v5308 = vshrl.u32 %v5194, 16
      %v5310 = vrot.slane %v5308, 4
      %v5311 = vshll.u32 %v5194, 16
      %v5313 = vrot.slane %v5311, 5
      %v5314 = vor.u32 %v5310, %v5313
      %v5315 = vsel %vm4247, %v5306, %v5314
      %v5317 = vshrl.u32 %v5195, 16
      %v5319 = vrot.slane %v5317, 4
      %v5320 = vshll.u32 %v5195, 16
      %v5322 = vrot.slane %v5320, 5
      %v5323 = vor.u32 %v5319, %v5322
      %v5325 = vshrl.u32 %v5196, 16
      %v5327 = vrot.slane %v5325, 4
      %v5328 = vshll.u32 %v5196, 16
      %v5330 = vrot.slane %v5328, 5
      %v5331 = vor.u32 %v5327, %v5330
      %v5332 = vsel %vm4247, %v5323, %v5331
      %s5333 = scalar_lea.vmem %s3, 120
      %v5334 = vld [vmem:[%s5333] sm:$0xf]
      %v5335 = vld [vmem:[%s5333 + $0x4] sm:$0xf]
      %v5336 = vld [vmem:[%s5333 + $0x8] sm:$0xf]
      %v5337 = vld [vmem:[%s5333 + $0xc] sm:$0xf]
      %v5338 = vld [vmem:[%s5333 + $0x10] sm:$0xf]
      %v5339 = vld [vmem:[%s5333 + $0x14] sm:$0x1]
      %v5346 = vunpack.c.l.b16 %v5334
      %v5347 = vunpack.c.l.b16 %v5335
      %v5348 = vunpack.c.l.b16 %v5336
      %v5349 = vunpack.c.l.b16 %v5337
      %v5350 = vunpack.c.l.b16 %v5338
      %v5351 = vunpack.c.l.b16 %v5339
      %v5352 = vpack.c.b16 %v5347, %v5346
      %v5353 = vpack.c.b16 %v5349, %v5348
      %v5354 = vpack.c.b16 %v5351, %v5350
      %v5358 = vsel %vm3836, %v5213, 0
      %v5361 = vsel %vm3836, %v5230, 0
      %v5364 = vsel %vm3836, %v5247, 0
      %v5367 = vsel %vm3836, %v5264, 0
      %v5370 = vsel %vm3836, %v5281, 0
      %v5373 = vsel %vm3836, %v5298, 0
      %v5376 = vsel %vm3836, %v5315, 0
      %v5379 = vsel %vm3836, %v5332, 0
      %v5382 = vsel %vm3861, %v5354, 0
      %5384 = vmatprep.subr.bf16.mxu0 0
      %5385 = vmatpush1.bf16.msra.mxu0 %v5352
      %5386 = vmatprep.subr.bf16.mxu0 0
      %5387 = vmatpush1.bf16.msra.mxu0 %v5353
      %5388 = vmatprep.subr.bf16.mxu0 0
      %5389 = vmatpush1.bf16.msra.mxu0 %v5382
      %5390 = vmatprep.subr.bf16.mxu0 0
      %5391 = vmatpush1.bf16.msra.mxu0 0
      %5392 = vmatprep.subr.bf16.mxu0 0
      %5393 = vmatpush1.bf16.msra.mxu0 0
      %5394 = vmatprep.subr.bf16.mxu0 0
      %5395 = vmatpush1.bf16.msra.mxu0 0
      %5396 = vmatprep.subr.bf16.mxu0 0
      %5397 = vmatpush1.bf16.msra.mxu0 0
      %5398 = vmatprep.subr.bf16.mxu0 0
      %5399 = vmatpush1.bf16.msra.mxu0 0
      %5400 = vmatprep.subr.bf16.mxu0 0
      %5401 = vmatpush1.bf16.msra.mxu0 0
      %5402 = vmatprep.subr.bf16.mxu0 0
      %5403 = vmatpush1.bf16.msra.mxu0 0
      %5404 = vmatprep.subr.bf16.mxu0 0
      %5405 = vmatpush1.bf16.msra.mxu0 0
      %5406 = vmatprep.subr.bf16.mxu0 0
      %5407 = vmatpush1.bf16.msra.mxu0 0
      %5408 = vmatprep.subr.bf16.mxu0 0
      %5409 = vmatpush1.bf16.msra.mxu0 0
      %5410 = vmatprep.subr.bf16.mxu0 0
      %5411 = vmatpush1.bf16.msra.mxu0 0
      %5412 = vmatprep.subr.bf16.mxu0 0
      %5413 = vmatpush1.bf16.msra.mxu0 0
      %5414 = vmatprep.subr.bf16.mxu0 0
      %5415 = vmatpush1.bf16.msra.mxu0 0
      %5416 = vmatprep.mubr.bf16.mxu0 0
      %5417 = vmatmul.mubr.bf16.gmra.mrb[0].mxu0 %v5358
      %v5418 = vpop.f32.mrb[0].mxu0
      %v5419 = vadd.f32 0.0, %v5418
      %v5420 = vpop.f32.mrb[0].mxu0
      %v5421 = vpop.f32.mrb[0].mxu0
      %v5422 = vadd.f32 0.0, %v5421
      %v5423 = vpop.f32.mrb[0].mxu0
      %5424 = vmatprep.mubr.bf16.mxu0 0
      %5425 = vmatmul.mubr.bf16.gmra.mrb[0].mxu0 %v5361
      %v5426 = vpop.f32.mrb[0].mxu0
      %v5427 = vadd.f32 0.0, %v5426
      %v5428 = vpop.f32.mrb[0].mxu0
      %v5429 = vpop.f32.mrb[0].mxu0
      %v5430 = vadd.f32 0.0, %v5429
      %v5431 = vpop.f32.mrb[0].mxu0
      %5432 = vmatprep.mubr.bf16.mxu0 0
      %5433 = vmatmul.mubr.bf16.gmra.mrb[0].mxu0 %v5364
      %v5434 = vpop.f32.mrb[0].mxu0
      %v5435 = vadd.f32 0.0, %v5434
      %v5436 = vpop.f32.mrb[0].mxu0
      %v5437 = vpop.f32.mrb[0].mxu0
      %v5438 = vadd.f32 0.0, %v5437
      %v5439 = vpop.f32.mrb[0].mxu0
      %5440 = vmatprep.mubr.bf16.mxu0 0
      %5441 = vmatmul.mubr.bf16.gmra.mrb[0].mxu0 %v5367
      %v5442 = vpop.f32.mrb[0].mxu0
      %v5443 = vadd.f32 0.0, %v5442
      %v5444 = vpop.f32.mrb[0].mxu0
      %v5445 = vpop.f32.mrb[0].mxu0
      %v5446 = vadd.f32 0.0, %v5445
      %v5447 = vpop.f32.mrb[0].mxu0
      %5448 = vmatprep.mubr.bf16.mxu0 0
      %5449 = vmatmul.mubr.bf16.gmra.mrb[0].mxu0 %v5370
      %v5450 = vpop.f32.mrb[0].mxu0
      %v5451 = vadd.f32 0.0, %v5450
      %v5452 = vpop.f32.mrb[0].mxu0
      %v5453 = vpop.f32.mrb[0].mxu0
      %v5454 = vadd.f32 0.0, %v5453
      %v5455 = vpop.f32.mrb[0].mxu0
      %5456 = vmatprep.mubr.bf16.mxu0 0
      %5457 = vmatmul.mubr.bf16.gmra.mrb[0].mxu0 %v5373
      %v5458 = vpop.f32.mrb[0].mxu0
      %v5459 = vadd.f32 0.0, %v5458
      %v5460 = vpop.f32.mrb[0].mxu0
      %v5461 = vpop.f32.mrb[0].mxu0
      %v5462 = vadd.f32 0.0, %v5461
      %v5463 = vpop.f32.mrb[0].mxu0
      %5464 = vmatprep.mubr.bf16.mxu0 0
      %5465 = vmatmul.mubr.bf16.gmra.mrb[0].mxu0 %v5376
      %v5466 = vpop.f32.mrb[0].mxu0
      %v5467 = vadd.f32 0.0, %v5466
      %v5468 = vpop.f32.mrb[0].mxu0
      %v5469 = vpop.f32.mrb[0].mxu0
      %v5470 = vadd.f32 0.0, %v5469
      %v5471 = vpop.f32.mrb[0].mxu0
      %5472 = vmatprep.mubr.bf16.mxu0 0
      %5473 = vmatmul.mubr.bf16.gmra.mrb[0].mxu0 %v5379
      %v5474 = vpop.f32.mrb[0].mxu0
      %v5475 = vadd.f32 0.0, %v5474
      %v5476 = vpop.f32.mrb[0].mxu0
      %v5477 = vpop.f32.mrb[0].mxu0
      %v5478 = vadd.f32 0.0, %v5477
      %v5479 = vpop.f32.mrb[0].mxu0
      %5480 = vdwg.mxu0
      %v5481 = vld [vmem:[#allocation4] sm:$0xff]
      %v5482 = vld [vmem:[#allocation4 + $0x8] sm:$0xff]
      %v5483 = vld [vmem:[#allocation4 + $0x10] sm:$0xff]
      %v5484 = vld [vmem:[#allocation4 + $0x18] sm:$0xff]
      %v5485 = vld [vmem:[#allocation4 + $0x20] sm:$0xff]
      %v5486 = vld [vmem:[#allocation4 + $0x28] sm:$0xff]
      %v5487 = vld [vmem:[#allocation4 + $0x30] sm:$0xff]
      %v5488 = vld [vmem:[#allocation4 + $0x38] sm:$0xff]
      %v5489 = vld [vmem:[#allocation4 + $0x40] sm:$0xff]
      %v5490 = vld [vmem:[#allocation4 + $0x48] sm:$0xff]
      %v5491 = vld [vmem:[#allocation4 + $0x50] sm:$0xff]
      %v5492 = vld [vmem:[#allocation4 + $0x58] sm:$0xff]
      %v5493 = vld [vmem:[#allocation4 + $0x60] sm:$0xff]
      %v5494 = vld [vmem:[#allocation4 + $0x68] sm:$0xff]
      %v5495 = vld [vmem:[#allocation4 + $0x70] sm:$0xff]
      %v5496 = vld [vmem:[#allocation4 + $0x78] sm:$0xff]
      %v5497 = vadd.f32 %v5481, %v5419
      %v5498 = vadd.f32 %v5482, %v5422
      %v5499 = vadd.f32 %v5483, %v5427
      %v5500 = vadd.f32 %v5484, %v5430
      %v5501 = vadd.f32 %v5485, %v5435
      %v5502 = vadd.f32 %v5486, %v5438
      %v5503 = vadd.f32 %v5487, %v5443
      %v5504 = vadd.f32 %v5488, %v5446
      %v5505 = vadd.f32 %v5489, %v5451
      %v5506 = vadd.f32 %v5490, %v5454
      %v5507 = vadd.f32 %v5491, %v5459
      %v5508 = vadd.f32 %v5492, %v5462
      %v5509 = vadd.f32 %v5493, %v5467
      %v5510 = vadd.f32 %v5494, %v5470
      %v5511 = vadd.f32 %v5495, %v5475
      %v5512 = vadd.f32 %v5496, %v5478
      %5513 = vst [vmem:[#allocation4] sm:$0xff] %v5497
      %5514 = vst [vmem:[#allocation4 + $0x8] sm:$0xff] %v5498
      %5515 = vst [vmem:[#allocation4 + $0x10] sm:$0xff] %v5499
      %5516 = vst [vmem:[#allocation4 + $0x18] sm:$0xff] %v5500
      %5517 = vst [vmem:[#allocation4 + $0x20] sm:$0xff] %v5501
      %5518 = vst [vmem:[#allocation4 + $0x28] sm:$0xff] %v5502
      %5519 = vst [vmem:[#allocation4 + $0x30] sm:$0xff] %v5503
      %5520 = vst [vmem:[#allocation4 + $0x38] sm:$0xff] %v5504
      %5521 = vst [vmem:[#allocation4 + $0x40] sm:$0xff] %v5505
      %5522 = vst [vmem:[#allocation4 + $0x48] sm:$0xff] %v5506
      %5523 = vst [vmem:[#allocation4 + $0x50] sm:$0xff] %v5507
      %5524 = vst [vmem:[#allocation4 + $0x58] sm:$0xff] %v5508
      %5525 = vst [vmem:[#allocation4 + $0x60] sm:$0xff] %v5509
      %5526 = vst [vmem:[#allocation4 + $0x68] sm:$0xff] %v5510
      %5527 = vst [vmem:[#allocation4 + $0x70] sm:$0xff] %v5511
      %5528 = vst [vmem:[#allocation4 + $0x78] sm:$0xff] %v5512
      %s5529 = scalar_lea.vmem [#allocation3], 32
      %v5530 = vld [vmem:[%s5529] sm:$0xf8]
      %v5531 = vld [vmem:[%s5529 + $0x8] sm:$0xf]
      %v5532 = vld [vmem:[%s5529 + $0x10] sm:$0xf8]
      %v5533 = vld [vmem:[%s5529 + $0x18] sm:$0xf]
      %v5534 = vld [vmem:[%s5529 + $0x20] sm:$0xf8]
      %v5535 = vld [vmem:[%s5529 + $0x28] sm:$0xf]
      %v5536 = vld [vmem:[%s5529 + $0x30] sm:$0xf8]
      %v5537 = vld [vmem:[%s5529 + $0x38] sm:$0xf]
      %v5538 = vld [vmem:[%s5529 + $0x40] sm:$0xf8]
      %v5539 = vld [vmem:[%s5529 + $0x48] sm:$0xf]
      %v5540 = vld [vmem:[%s5529 + $0x50] sm:$0xf8]
      %v5541 = vld [vmem:[%s5529 + $0x58] sm:$0xf]
      %v5542 = vld [vmem:[%s5529 + $0x60] sm:$0xf8]
      %v5543 = vld [vmem:[%s5529 + $0x68] sm:$0xf]
      %v5544 = vld [vmem:[%s5529 + $0x70] sm:$0xf8]
      %v5545 = vld [vmem:[%s5529 + $0x78] sm:$0xf]
      %v5547 = vshrl.u32 %v5530, 16
      %v5549 = vrot.slane %v5547, 3
      %v5550 = vshll.u32 %v5530, 16
      %v5552 = vrot.slane %v5550, 4
      %v5553 = vor.u32 %v5549, %v5552
      %v5555 = vshrl.u32 %v5531, 16
      %v5557 = vrot.slane %v5555, 3
      %v5558 = vshll.u32 %v5531, 16
      %v5560 = vrot.slane %v5558, 4
      %v5561 = vor.u32 %v5557, %v5560
      %v5562 = vsel %vm3676, %v5553, %v5561
      %v5564 = vshrl.u32 %v5532, 16
      %v5566 = vrot.slane %v5564, 3
      %v5567 = vshll.u32 %v5532, 16
      %v5569 = vrot.slane %v5567, 4
      %v5570 = vor.u32 %v5566, %v5569
      %v5572 = vshrl.u32 %v5533, 16
      %v5574 = vrot.slane %v5572, 3
      %v5575 = vshll.u32 %v5533, 16
      %v5577 = vrot.slane %v5575, 4
      %v5578 = vor.u32 %v5574, %v5577
      %v5579 = vsel %vm3676, %v5570, %v5578
      %v5581 = vshrl.u32 %v5534, 16
      %v5583 = vrot.slane %v5581, 3
      %v5584 = vshll.u32 %v5534, 16
      %v5586 = vrot.slane %v5584, 4
      %v5587 = vor.u32 %v5583, %v5586
      %v5589 = vshrl.u32 %v5535, 16
      %v5591 = vrot.slane %v5589, 3
      %v5592 = vshll.u32 %v5535, 16
      %v5594 = vrot.slane %v5592, 4
      %v5595 = vor.u32 %v5591, %v5594
      %v5596 = vsel %vm3676, %v5587, %v5595
      %v5598 = vshrl.u32 %v5536, 16
      %v5600 = vrot.slane %v5598, 3
      %v5601 = vshll.u32 %v5536, 16
      %v5603 = vrot.slane %v5601, 4
      %v5604 = vor.u32 %v5600, %v5603
      %v5606 = vshrl.u32 %v5537, 16
      %v5608 = vrot.slane %v5606, 3
      %v5609 = vshll.u32 %v5537, 16
      %v5611 = vrot.slane %v5609, 4
      %v5612 = vor.u32 %v5608, %v5611
      %v5613 = vsel %vm3676, %v5604, %v5612
      %v5615 = vshrl.u32 %v5538, 16
      %v5617 = vrot.slane %v5615, 3
      %v5618 = vshll.u32 %v5538, 16
      %v5620 = vrot.slane %v5618, 4
      %v5621 = vor.u32 %v5617, %v5620
      %v5623 = vshrl.u32 %v5539, 16
      %v5625 = vrot.slane %v5623, 3
      %v5626 = vshll.u32 %v5539, 16
      %v5628 = vrot.slane %v5626, 4
      %v5629 = vor.u32 %v5625, %v5628
      %v5630 = vsel %vm3676, %v5621, %v5629
      %v5632 = vshrl.u32 %v5540, 16
      %v5634 = vrot.slane %v5632, 3
      %v5635 = vshll.u32 %v5540, 16
      %v5637 = vrot.slane %v5635, 4
      %v5638 = vor.u32 %v5634, %v5637
      %v5640 = vshrl.u32 %v5541, 16
      %v5642 = vrot.slane %v5640, 3
      %v5643 = vshll.u32 %v5541, 16
      %v5645 = vrot.slane %v5643, 4
      %v5646 = vor.u32 %v5642, %v5645
      %v5647 = vsel %vm3676, %v5638, %v5646
      %v5649 = vshrl.u32 %v5542, 16
      %v5651 = vrot.slane %v5649, 3
      %v5652 = vshll.u32 %v5542, 16
      %v5654 = vrot.slane %v5652, 4
      %v5655 = vor.u32 %v5651, %v5654
      %v5657 = vshrl.u32 %v5543, 16
      %v5659 = vrot.slane %v5657, 3
      %v5660 = vshll.u32 %v5543, 16
      %v5662 = vrot.slane %v5660, 4
      %v5663 = vor.u32 %v5659, %v5662
      %v5664 = vsel %vm3676, %v5655, %v5663
      %v5666 = vshrl.u32 %v5544, 16
      %v5668 = vrot.slane %v5666, 3
      %v5669 = vshll.u32 %v5544, 16
      %v5671 = vrot.slane %v5669, 4
      %v5672 = vor.u32 %v5668, %v5671
      %v5674 = vshrl.u32 %v5545, 16
      %v5676 = vrot.slane %v5674, 3
      %v5677 = vshll.u32 %v5545, 16
      %v5679 = vrot.slane %v5677, 4
      %v5680 = vor.u32 %v5676, %v5679
      %v5681 = vsel %vm3676, %v5672, %v5680
      %s5682 = scalar_lea.vmem %s3, 144
      %v5683 = vld [vmem:[%s5682] sm:$0xf]
      %v5684 = vld [vmem:[%s5682 + $0x4] sm:$0xf]
      %v5685 = vld [vmem:[%s5682 + $0x8] sm:$0xf]
      %v5686 = vld [vmem:[%s5682 + $0xc] sm:$0xf]
      %v5687 = vld [vmem:[%s5682 + $0x10] sm:$0xf]
      %v5688 = vld [vmem:[%s5682 + $0x14] sm:$0x1]
      %v5695 = vunpack.c.l.b16 %v5683
      %v5696 = vunpack.c.l.b16 %v5684
      %v5697 = vunpack.c.l.b16 %v5685
      %v5698 = vunpack.c.l.b16 %v5686
      %v5699 = vunpack.c.l.b16 %v5687
      %v5700 = vunpack.c.l.b16 %v5688
      %v5701 = vpack.c.b16 %v5696, %v5695
      %v5702 = vpack.c.b16 %v5698, %v5697
      %v5703 = vpack.c.b16 %v5700, %v5699
      %v5707 = vsel %vm3836, %v5562, 0
      %v5710 = vsel %vm3836, %v5579, 0
      %v5713 = vsel %vm3836, %v5596, 0
      %v5716 = vsel %vm3836, %v5613, 0
      %v5719 = vsel %vm3836, %v5630, 0
      %v5722 = vsel %vm3836, %v5647, 0
      %v5725 = vsel %vm3836, %v5664, 0
      %v5728 = vsel %vm3836, %v5681, 0
      %v5731 = vsel %vm3861, %v5703, 0
      %5733 = vmatprep.subr.bf16.mxu0 0
      %5734 = vmatpush1.bf16.msra.mxu0 %v5701
      %5735 = vmatprep.subr.bf16.mxu0 0
      %5736 = vmatpush1.bf16.msra.mxu0 %v5702
      %5737 = vmatprep.subr.bf16.mxu0 0
      %5738 = vmatpush1.bf16.msra.mxu0 %v5731
      %5739 = vmatprep.subr.bf16.mxu0 0
      %5740 = vmatpush1.bf16.msra.mxu0 0
      %5741 = vmatprep.subr.bf16.mxu0 0
      %5742 = vmatpush1.bf16.msra.mxu0 0
      %5743 = vmatprep.subr.bf16.mxu0 0
      %5744 = vmatpush1.bf16.msra.mxu0 0
      %5745 = vmatprep.subr.bf16.mxu0 0
      %5746 = vmatpush1.bf16.msra.mxu0 0
      %5747 = vmatprep.subr.bf16.mxu0 0
      %5748 = vmatpush1.bf16.msra.mxu0 0
      %5749 = vmatprep.subr.bf16.mxu0 0
      %5750 = vmatpush1.bf16.msra.mxu0 0
      %5751 = vmatprep.subr.bf16.mxu0 0
      %5752 = vmatpush1.bf16.msra.mxu0 0
      %5753 = vmatprep.subr.bf16.mxu0 0
      %5754 = vmatpush1.bf16.msra.mxu0 0
      %5755 = vmatprep.subr.bf16.mxu0 0
      %5756 = vmatpush1.bf16.msra.mxu0 0
      %5757 = vmatprep.subr.bf16.mxu0 0
      %5758 = vmatpush1.bf16.msra.mxu0 0
      %5759 = vmatprep.subr.bf16.mxu0 0
      %5760 = vmatpush1.bf16.msra.mxu0 0
      %5761 = vmatprep.subr.bf16.mxu0 0
      %5762 = vmatpush1.bf16.msra.mxu0 0
      %5763 = vmatprep.subr.bf16.mxu0 0
      %5764 = vmatpush1.bf16.msra.mxu0 0
      %5765 = vmatprep.mubr.bf16.mxu0 0
      %5766 = vmatmul.mubr.bf16.gmra.mrb[0].mxu0 %v5707
      %v5767 = vpop.f32.mrb[0].mxu0
      %v5768 = vadd.f32 0.0, %v5767
      %v5769 = vpop.f32.mrb[0].mxu0
      %v5770 = vpop.f32.mrb[0].mxu0
      %v5771 = vadd.f32 0.0, %v5770
      %v5772 = vpop.f32.mrb[0].mxu0
      %5773 = vmatprep.mubr.bf16.mxu0 0
      %5774 = vmatmul.mubr.bf16.gmra.mrb[0].mxu0 %v5710
      %v5775 = vpop.f32.mrb[0].mxu0
      %v5776 = vadd.f32 0.0, %v5775
      %v5777 = vpop.f32.mrb[0].mxu0
      %v5778 = vpop.f32.mrb[0].mxu0
      %v5779 = vadd.f32 0.0, %v5778
      %v5780 = vpop.f32.mrb[0].mxu0
      %5781 = vmatprep.mubr.bf16.mxu0 0
      %5782 = vmatmul.mubr.bf16.gmra.mrb[0].mxu0 %v5713
      %v5783 = vpop.f32.mrb[0].mxu0
      %v5784 = vadd.f32 0.0, %v5783
      %v5785 = vpop.f32.mrb[0].mxu0
      %v5786 = vpop.f32.mrb[0].mxu0
      %v5787 = vadd.f32 0.0, %v5786
      %v5788 = vpop.f32.mrb[0].mxu0
      %5789 = vmatprep.mubr.bf16.mxu0 0
      %5790 = vmatmul.mubr.bf16.gmra.mrb[0].mxu0 %v5716
      %v5791 = vpop.f32.mrb[0].mxu0
      %v5792 = vadd.f32 0.0, %v5791
      %v5793 = vpop.f32.mrb[0].mxu0
      %v5794 = vpop.f32.mrb[0].mxu0
      %v5795 = vadd.f32 0.0, %v5794
      %v5796 = vpop.f32.mrb[0].mxu0
      %5797 = vmatprep.mubr.bf16.mxu0 0
      %5798 = vmatmul.mubr.bf16.gmra.mrb[0].mxu0 %v5719
      %v5799 = vpop.f32.mrb[0].mxu0
      %v5800 = vadd.f32 0.0, %v5799
      %v5801 = vpop.f32.mrb[0].mxu0
      %v5802 = vpop.f32.mrb[0].mxu0
      %v5803 = vadd.f32 0.0, %v5802
      %v5804 = vpop.f32.mrb[0].mxu0
      %5805 = vmatprep.mubr.bf16.mxu0 0
      %5806 = vmatmul.mubr.bf16.gmra.mrb[0].mxu0 %v5722
      %v5807 = vpop.f32.mrb[0].mxu0
      %v5808 = vadd.f32 0.0, %v5807
      %v5809 = vpop.f32.mrb[0].mxu0
      %v5810 = vpop.f32.mrb[0].mxu0
      %v5811 = vadd.f32 0.0, %v5810
      %v5812 = vpop.f32.mrb[0].mxu0
      %5813 = vmatprep.mubr.bf16.mxu0 0
      %5814 = vmatmul.mubr.bf16.gmra.mrb[0].mxu0 %v5725
      %v5815 = vpop.f32.mrb[0].mxu0
      %v5816 = vadd.f32 0.0, %v5815
      %v5817 = vpop.f32.mrb[0].mxu0
      %v5818 = vpop.f32.mrb[0].mxu0
      %v5819 = vadd.f32 0.0, %v5818
      %v5820 = vpop.f32.mrb[0].mxu0
      %5821 = vmatprep.mubr.bf16.mxu0 0
      %5822 = vmatmul.mubr.bf16.gmra.mrb[0].mxu0 %v5728
      %v5823 = vpop.f32.mrb[0].mxu0
      %v5824 = vadd.f32 0.0, %v5823
      %v5825 = vpop.f32.mrb[0].mxu0
      %v5826 = vpop.f32.mrb[0].mxu0
      %v5827 = vadd.f32 0.0, %v5826
      %v5828 = vpop.f32.mrb[0].mxu0
      %5829 = vdwg.mxu0
      %v5830 = vld [vmem:[#allocation4] sm:$0xff]
      %v5831 = vld [vmem:[#allocation4 + $0x8] sm:$0xff]
      %v5832 = vld [vmem:[#allocation4 + $0x10] sm:$0xff]
      %v5833 = vld [vmem:[#allocation4 + $0x18] sm:$0xff]
      %v5834 = vld [vmem:[#allocation4 + $0x20] sm:$0xff]
      %v5835 = vld [vmem:[#allocation4 + $0x28] sm:$0xff]
      %v5836 = vld [vmem:[#allocation4 + $0x30] sm:$0xff]
      %v5837 = vld [vmem:[#allocation4 + $0x38] sm:$0xff]
      %v5838 = vld [vmem:[#allocation4 + $0x40] sm:$0xff]
      %v5839 = vld [vmem:[#allocation4 + $0x48] sm:$0xff]
      %v5840 = vld [vmem:[#allocation4 + $0x50] sm:$0xff]
      %v5841 = vld [vmem:[#allocation4 + $0x58] sm:$0xff]
      %v5842 = vld [vmem:[#allocation4 + $0x60] sm:$0xff]
      %v5843 = vld [vmem:[#allocation4 + $0x68] sm:$0xff]
      %v5844 = vld [vmem:[#allocation4 + $0x70] sm:$0xff]
      %v5845 = vld [vmem:[#allocation4 + $0x78] sm:$0xff]
      %v5846 = vadd.f32 %v5830, %v5768
      %v5847 = vadd.f32 %v5831, %v5771
      %v5848 = vadd.f32 %v5832, %v5776
      %v5849 = vadd.f32 %v5833, %v5779
      %v5850 = vadd.f32 %v5834, %v5784
      %v5851 = vadd.f32 %v5835, %v5787
      %v5852 = vadd.f32 %v5836, %v5792
      %v5853 = vadd.f32 %v5837, %v5795
      %v5854 = vadd.f32 %v5838, %v5800
      %v5855 = vadd.f32 %v5839, %v5803
      %v5856 = vadd.f32 %v5840, %v5808
      %v5857 = vadd.f32 %v5841, %v5811
      %v5858 = vadd.f32 %v5842, %v5816
      %v5859 = vadd.f32 %v5843, %v5819
      %v5860 = vadd.f32 %v5844, %v5824
      %v5861 = vadd.f32 %v5845, %v5827
      %5862 = vst [vmem:[#allocation4] sm:$0xff] %v5846
      %5863 = vst [vmem:[#allocation4 + $0x8] sm:$0xff] %v5847
      %5864 = vst [vmem:[#allocation4 + $0x10] sm:$0xff] %v5848
      %5865 = vst [vmem:[#allocation4 + $0x18] sm:$0xff] %v5849
      %5866 = vst [vmem:[#allocation4 + $0x20] sm:$0xff] %v5850
      %5867 = vst [vmem:[#allocation4 + $0x28] sm:$0xff] %v5851
      %5868 = vst [vmem:[#allocation4 + $0x30] sm:$0xff] %v5852
      %5869 = vst [vmem:[#allocation4 + $0x38] sm:$0xff] %v5853
      %5870 = vst [vmem:[#allocation4 + $0x40] sm:$0xff] %v5854
      %5871 = vst [vmem:[#allocation4 + $0x48] sm:$0xff] %v5855
      %5872 = vst [vmem:[#allocation4 + $0x50] sm:$0xff] %v5856
      %5873 = vst [vmem:[#allocation4 + $0x58] sm:$0xff] %v5857
      %5874 = vst [vmem:[#allocation4 + $0x60] sm:$0xff] %v5858
      %5875 = vst [vmem:[#allocation4 + $0x68] sm:$0xff] %v5859
      %5876 = vst [vmem:[#allocation4 + $0x70] sm:$0xff] %v5860
      %5877 = vst [vmem:[#allocation4 + $0x78] sm:$0xff] %v5861
      %v5878 = vld [vmem:[%s5529] sm:$0xf0]
      %v5879 = vld [vmem:[%s5529 + $0x8] sm:$0xf]
      %v5880 = vld [vmem:[%s5529 + $0x10] sm:$0xf0]
      %v5881 = vld [vmem:[%s5529 + $0x18] sm:$0xf]
      %v5882 = vld [vmem:[%s5529 + $0x20] sm:$0xf0]
      %v5883 = vld [vmem:[%s5529 + $0x28] sm:$0xf]
      %v5884 = vld [vmem:[%s5529 + $0x30] sm:$0xf0]
      %v5885 = vld [vmem:[%s5529 + $0x38] sm:$0xf]
      %v5886 = vld [vmem:[%s5529 + $0x40] sm:$0xf0]
      %v5887 = vld [vmem:[%s5529 + $0x48] sm:$0xf]
      %v5888 = vld [vmem:[%s5529 + $0x50] sm:$0xf0]
      %v5889 = vld [vmem:[%s5529 + $0x58] sm:$0xf]
      %v5890 = vld [vmem:[%s5529 + $0x60] sm:$0xf0]
      %v5891 = vld [vmem:[%s5529 + $0x68] sm:$0xf]
      %v5892 = vld [vmem:[%s5529 + $0x70] sm:$0xf0]
      %v5893 = vld [vmem:[%s5529 + $0x78] sm:$0xf]
      %v5910 = vrot.slane %v5878, 4
      %v5911 = vrot.slane %v5879, 4
      %v5912 = vsel %vm4010, %v5910, %v5911
      %v5913 = vrot.slane %v5880, 4
      %v5914 = vrot.slane %v5881, 4
      %v5915 = vsel %vm4010, %v5913, %v5914
      %v5916 = vrot.slane %v5882, 4
      %v5917 = vrot.slane %v5883, 4
      %v5918 = vsel %vm4010, %v5916, %v5917
      %v5919 = vrot.slane %v5884, 4
      %v5920 = vrot.slane %v5885, 4
      %v5921 = vsel %vm4010, %v5919, %v5920
      %v5922 = vrot.slane %v5886, 4
      %v5923 = vrot.slane %v5887, 4
      %v5924 = vsel %vm4010, %v5922, %v5923
      %v5925 = vrot.slane %v5888, 4
      %v5926 = vrot.slane %v5889, 4
      %v5927 = vsel %vm4010, %v5925, %v5926
      %v5928 = vrot.slane %v5890, 4
      %v5929 = vrot.slane %v5891, 4
      %v5930 = vsel %vm4010, %v5928, %v5929
      %v5931 = vrot.slane %v5892, 4
      %v5932 = vrot.slane %v5893, 4
      %v5933 = vsel %vm4010, %v5931, %v5932
      %s5934 = scalar_lea.vmem %s3, 168
      %v5935 = vld [vmem:[%s5934] sm:$0xf]
      %v5936 = vld [vmem:[%s5934 + $0x4] sm:$0xf]
      %v5937 = vld [vmem:[%s5934 + $0x8] sm:$0xf]
      %v5938 = vld [vmem:[%s5934 + $0xc] sm:$0xf]
      %v5939 = vld [vmem:[%s5934 + $0x10] sm:$0xf]
      %v5940 = vld [vmem:[%s5934 + $0x14] sm:$0x1]
      %v5947 = vunpack.c.l.b16 %v5935
      %v5948 = vunpack.c.l.b16 %v5936
      %v5949 = vunpack.c.l.b16 %v5937
      %v5950 = vunpack.c.l.b16 %v5938
      %v5951 = vunpack.c.l.b16 %v5939
      %v5952 = vunpack.c.l.b16 %v5940
      %v5953 = vpack.c.b16 %v5948, %v5947
      %v5954 = vpack.c.b16 %v5950, %v5949
      %v5955 = vpack.c.b16 %v5952, %v5951
      %v5959 = vsel %vm3836, %v5912, 0
      %v5962 = vsel %vm3836, %v5915, 0
      %v5965 = vsel %vm3836, %v5918, 0
      %v5968 = vsel %vm3836, %v5921, 0
      %v5971 = vsel %vm3836, %v5924, 0
      %v5974 = vsel %vm3836, %v5927, 0
      %v5977 = vsel %vm3836, %v5930, 0
      %v5980 = vsel %vm3836, %v5933, 0
      %v5983 = vsel %vm3861, %v5955, 0
      %5985 = vmatprep.subr.bf16.mxu0 0
      %5986 = vmatpush1.bf16.msra.mxu0 %v5953
      %5987 = vmatprep.subr.bf16.mxu0 0
      %5988 = vmatpush1.bf16.msra.mxu0 %v5954
      %5989 = vmatprep.subr.bf16.mxu0 0
      %5990 = vmatpush1.bf16.msra.mxu0 %v5983
      %5991 = vmatprep.subr.bf16.mxu0 0
      %5992 = vmatpush1.bf16.msra.mxu0 0
      %5993 = vmatprep.subr.bf16.mxu0 0
      %5994 = vmatpush1.bf16.msra.mxu0 0
      %5995 = vmatprep.subr.bf16.mxu0 0
      %5996 = vmatpush1.bf16.msra.mxu0 0
      %5997 = vmatprep.subr.bf16.mxu0 0
      %5998 = vmatpush1.bf16.msra.mxu0 0
      %5999 = vmatprep.subr.bf16.mxu0 0
      %6000 = vmatpush1.bf16.msra.mxu0 0
      %6001 = vmatprep.subr.bf16.mxu0 0
      %6002 = vmatpush1.bf16.msra.mxu0 0
      %6003 = vmatprep.subr.bf16.mxu0 0
      %6004 = vmatpush1.bf16.msra.mxu0 0
      %6005 = vmatprep.subr.bf16.mxu0 0
      %6006 = vmatpush1.bf16.msra.mxu0 0
      %6007 = vmatprep.subr.bf16.mxu0 0
      %6008 = vmatpush1.bf16.msra.mxu0 0
      %6009 = vmatprep.subr.bf16.mxu0 0
      %6010 = vmatpush1.bf16.msra.mxu0 0
      %6011 = vmatprep.subr.bf16.mxu0 0
      %6012 = vmatpush1.bf16.msra.mxu0 0
      %6013 = vmatprep.subr.bf16.mxu0 0
      %6014 = vmatpush1.bf16.msra.mxu0 0
      %6015 = vmatprep.subr.bf16.mxu0 0
      %6016 = vmatpush1.bf16.msra.mxu0 0
      %6017 = vmatprep.mubr.bf16.mxu0 0
      %6018 = vmatmul.mubr.bf16.gmra.mrb[0].mxu0 %v5959
      %v6019 = vpop.f32.mrb[0].mxu0
      %v6020 = vadd.f32 0.0, %v6019
      %v6021 = vpop.f32.mrb[0].mxu0
      %v6022 = vpop.f32.mrb[0].mxu0
      %v6023 = vadd.f32 0.0, %v6022
      %v6024 = vpop.f32.mrb[0].mxu0
      %6025 = vmatprep.mubr.bf16.mxu0 0
      %6026 = vmatmul.mubr.bf16.gmra.mrb[0].mxu0 %v5962
      %v6027 = vpop.f32.mrb[0].mxu0
      %v6028 = vadd.f32 0.0, %v6027
      %v6029 = vpop.f32.mrb[0].mxu0
      %v6030 = vpop.f32.mrb[0].mxu0
      %v6031 = vadd.f32 0.0, %v6030
      %v6032 = vpop.f32.mrb[0].mxu0
      %6033 = vmatprep.mubr.bf16.mxu0 0
      %6034 = vmatmul.mubr.bf16.gmra.mrb[0].mxu0 %v5965
      %v6035 = vpop.f32.mrb[0].mxu0
      %v6036 = vadd.f32 0.0, %v6035
      %v6037 = vpop.f32.mrb[0].mxu0
      %v6038 = vpop.f32.mrb[0].mxu0
      %v6039 = vadd.f32 0.0, %v6038
      %v6040 = vpop.f32.mrb[0].mxu0
      %6041 = vmatprep.mubr.bf16.mxu0 0
      %6042 = vmatmul.mubr.bf16.gmra.mrb[0].mxu0 %v5968
      %v6043 = vpop.f32.mrb[0].mxu0
      %v6044 = vadd.f32 0.0, %v6043
      %v6045 = vpop.f32.mrb[0].mxu0
      %v6046 = vpop.f32.mrb[0].mxu0
      %v6047 = vadd.f32 0.0, %v6046
      %v6048 = vpop.f32.mrb[0].mxu0
      %6049 = vmatprep.mubr.bf16.mxu0 0
      %6050 = vmatmul.mubr.bf16.gmra.mrb[0].mxu0 %v5971
      %v6051 = vpop.f32.mrb[0].mxu0
      %v6052 = vadd.f32 0.0, %v6051
      %v6053 = vpop.f32.mrb[0].mxu0
      %v6054 = vpop.f32.mrb[0].mxu0
      %v6055 = vadd.f32 0.0, %v6054
      %v6056 = vpop.f32.mrb[0].mxu0
      %6057 = vmatprep.mubr.bf16.mxu0 0
      %6058 = vmatmul.mubr.bf16.gmra.mrb[0].mxu0 %v5974
      %v6059 = vpop.f32.mrb[0].mxu0
      %v6060 = vadd.f32 0.0, %v6059
      %v6061 = vpop.f32.mrb[0].mxu0
      %v6062 = vpop.f32.mrb[0].mxu0
      %v6063 = vadd.f32 0.0, %v6062
      %v6064 = vpop.f32.mrb[0].mxu0
      %6065 = vmatprep.mubr.bf16.mxu0 0
      %6066 = vmatmul.mubr.bf16.gmra.mrb[0].mxu0 %v5977
      %v6067 = vpop.f32.mrb[0].mxu0
      %v6068 = vadd.f32 0.0, %v6067
      %v6069 = vpop.f32.mrb[0].mxu0
      %v6070 = vpop.f32.mrb[0].mxu0
      %v6071 = vadd.f32 0.0, %v6070
      %v6072 = vpop.f32.mrb[0].mxu0
      %6073 = vmatprep.mubr.bf16.mxu0 0
      %6074 = vmatmul.mubr.bf16.gmra.mrb[0].mxu0 %v5980
      %v6075 = vpop.f32.mrb[0].mxu0
      %v6076 = vadd.f32 0.0, %v6075
      %v6077 = vpop.f32.mrb[0].mxu0
      %v6078 = vpop.f32.mrb[0].mxu0
      %v6079 = vadd.f32 0.0, %v6078
      %v6080 = vpop.f32.mrb[0].mxu0
      %6081 = vdwg.mxu0
      %v6082 = vld [vmem:[#allocation4] sm:$0xff]
      %v6083 = vld [vmem:[#allocation4 + $0x8] sm:$0xff]
      %v6084 = vld [vmem:[#allocation4 + $0x10] sm:$0xff]
      %v6085 = vld [vmem:[#allocation4 + $0x18] sm:$0xff]
      %v6086 = vld [vmem:[#allocation4 + $0x20] sm:$0xff]
      %v6087 = vld [vmem:[#allocation4 + $0x28] sm:$0xff]
      %v6088 = vld [vmem:[#allocation4 + $0x30] sm:$0xff]
      %v6089 = vld [vmem:[#allocation4 + $0x38] sm:$0xff]
      %v6090 = vld [vmem:[#allocation4 + $0x40] sm:$0xff]
      %v6091 = vld [vmem:[#allocation4 + $0x48] sm:$0xff]
      %v6092 = vld [vmem:[#allocation4 + $0x50] sm:$0xff]
      %v6093 = vld [vmem:[#allocation4 + $0x58] sm:$0xff]
      %v6094 = vld [vmem:[#allocation4 + $0x60] sm:$0xff]
      %v6095 = vld [vmem:[#allocation4 + $0x68] sm:$0xff]
      %v6096 = vld [vmem:[#allocation4 + $0x70] sm:$0xff]
      %v6097 = vld [vmem:[#allocation4 + $0x78] sm:$0xff]
      %v6098 = vadd.f32 %v6082, %v6020
      %v6099 = vadd.f32 %v6083, %v6023
      %v6100 = vadd.f32 %v6084, %v6028
      %v6101 = vadd.f32 %v6085, %v6031
      %v6102 = vadd.f32 %v6086, %v6036
      %v6103 = vadd.f32 %v6087, %v6039
      %v6104 = vadd.f32 %v6088, %v6044
      %v6105 = vadd.f32 %v6089, %v6047
      %v6106 = vadd.f32 %v6090, %v6052
      %v6107 = vadd.f32 %v6091, %v6055
      %v6108 = vadd.f32 %v6092, %v6060
      %v6109 = vadd.f32 %v6093, %v6063
      %v6110 = vadd.f32 %v6094, %v6068
      %v6111 = vadd.f32 %v6095, %v6071
      %v6112 = vadd.f32 %v6096, %v6076
      %v6113 = vadd.f32 %v6097, %v6079
      %6114 = vst [vmem:[#allocation4] sm:$0xff] %v6098
      %6115 = vst [vmem:[#allocation4 + $0x8] sm:$0xff] %v6099
      %6116 = vst [vmem:[#allocation4 + $0x10] sm:$0xff] %v6100
      %6117 = vst [vmem:[#allocation4 + $0x18] sm:$0xff] %v6101
      %6118 = vst [vmem:[#allocation4 + $0x20] sm:$0xff] %v6102
      %6119 = vst [vmem:[#allocation4 + $0x28] sm:$0xff] %v6103
      %6120 = vst [vmem:[#allocation4 + $0x30] sm:$0xff] %v6104
      %6121 = vst [vmem:[#allocation4 + $0x38] sm:$0xff] %v6105
      %6122 = vst [vmem:[#allocation4 + $0x40] sm:$0xff] %v6106
      %6123 = vst [vmem:[#allocation4 + $0x48] sm:$0xff] %v6107
      %6124 = vst [vmem:[#allocation4 + $0x50] sm:$0xff] %v6108
      %6125 = vst [vmem:[#allocation4 + $0x58] sm:$0xff] %v6109
      %6126 = vst [vmem:[#allocation4 + $0x60] sm:$0xff] %v6110
      %6127 = vst [vmem:[#allocation4 + $0x68] sm:$0xff] %v6111
      %6128 = vst [vmem:[#allocation4 + $0x70] sm:$0xff] %v6112
      %6129 = vst [vmem:[#allocation4 + $0x78] sm:$0xff] %v6113
      %v6130 = vld [vmem:[%s5529] sm:$0xf0]
      %v6131 = vld [vmem:[%s5529 + $0x8] sm:$0x1f]
      %v6132 = vld [vmem:[%s5529 + $0x10] sm:$0xf0]
      %v6133 = vld [vmem:[%s5529 + $0x18] sm:$0x1f]
      %v6134 = vld [vmem:[%s5529 + $0x20] sm:$0xf0]
      %v6135 = vld [vmem:[%s5529 + $0x28] sm:$0x1f]
      %v6136 = vld [vmem:[%s5529 + $0x30] sm:$0xf0]
      %v6137 = vld [vmem:[%s5529 + $0x38] sm:$0x1f]
      %v6138 = vld [vmem:[%s5529 + $0x40] sm:$0xf0]
      %v6139 = vld [vmem:[%s5529 + $0x48] sm:$0x1f]
      %v6140 = vld [vmem:[%s5529 + $0x50] sm:$0xf0]
      %v6141 = vld [vmem:[%s5529 + $0x58] sm:$0x1f]
      %v6142 = vld [vmem:[%s5529 + $0x60] sm:$0xf0]
      %v6143 = vld [vmem:[%s5529 + $0x68] sm:$0x1f]
      %v6144 = vld [vmem:[%s5529 + $0x70] sm:$0xf0]
      %v6145 = vld [vmem:[%s5529 + $0x78] sm:$0x1f]
      %v6147 = vshrl.u32 %v6130, 16
      %v6149 = vrot.slane %v6147, 4
      %v6150 = vshll.u32 %v6130, 16
      %v6152 = vrot.slane %v6150, 5
      %v6153 = vor.u32 %v6149, %v6152
      %v6155 = vshrl.u32 %v6131, 16
      %v6157 = vrot.slane %v6155, 4
      %v6158 = vshll.u32 %v6131, 16
      %v6160 = vrot.slane %v6158, 5
      %v6161 = vor.u32 %v6157, %v6160
      %v6162 = vsel %vm4247, %v6153, %v6161
      %v6164 = vshrl.u32 %v6132, 16
      %v6166 = vrot.slane %v6164, 4
      %v6167 = vshll.u32 %v6132, 16
      %v6169 = vrot.slane %v6167, 5
      %v6170 = vor.u32 %v6166, %v6169
      %v6172 = vshrl.u32 %v6133, 16
      %v6174 = vrot.slane %v6172, 4
      %v6175 = vshll.u32 %v6133, 16
      %v6177 = vrot.slane %v6175, 5
      %v6178 = vor.u32 %v6174, %v6177
      %v6179 = vsel %vm4247, %v6170, %v6178
      %v6181 = vshrl.u32 %v6134, 16
      %v6183 = vrot.slane %v6181, 4
      %v6184 = vshll.u32 %v6134, 16
      %v6186 = vrot.slane %v6184, 5
      %v6187 = vor.u32 %v6183, %v6186
      %v6189 = vshrl.u32 %v6135, 16
      %v6191 = vrot.slane %v6189, 4
      %v6192 = vshll.u32 %v6135, 16
      %v6194 = vrot.slane %v6192, 5
      %v6195 = vor.u32 %v6191, %v6194
      %v6196 = vsel %vm4247, %v6187, %v6195
      %v6198 = vshrl.u32 %v6136, 16
      %v6200 = vrot.slane %v6198, 4
      %v6201 = vshll.u32 %v6136, 16
      %v6203 = vrot.slane %v6201, 5
      %v6204 = vor.u32 %v6200, %v6203
      %v6206 = vshrl.u32 %v6137, 16
      %v6208 = vrot.slane %v6206, 4
      %v6209 = vshll.u32 %v6137, 16
      %v6211 = vrot.slane %v6209, 5
      %v6212 = vor.u32 %v6208, %v6211
      %v6213 = vsel %vm4247, %v6204, %v6212
      %v6215 = vshrl.u32 %v6138, 16
      %v6217 = vrot.slane %v6215, 4
      %v6218 = vshll.u32 %v6138, 16
      %v6220 = vrot.slane %v6218, 5
      %v6221 = vor.u32 %v6217, %v6220
      %v6223 = vshrl.u32 %v6139, 16
      %v6225 = vrot.slane %v6223, 4
      %v6226 = vshll.u32 %v6139, 16
      %v6228 = vrot.slane %v6226, 5
      %v6229 = vor.u32 %v6225, %v6228
      %v6230 = vsel %vm4247, %v6221, %v6229
      %v6232 = vshrl.u32 %v6140, 16
      %v6234 = vrot.slane %v6232, 4
      %v6235 = vshll.u32 %v6140, 16
      %v6237 = vrot.slane %v6235, 5
      %v6238 = vor.u32 %v6234, %v6237
      %v6240 = vshrl.u32 %v6141, 16
      %v6242 = vrot.slane %v6240, 4
      %v6243 = vshll.u32 %v6141, 16
      %v6245 = vrot.slane %v6243, 5
      %v6246 = vor.u32 %v6242, %v6245
      %v6247 = vsel %vm4247, %v6238, %v6246
      %v6249 = vshrl.u32 %v6142, 16
      %v6251 = vrot.slane %v6249, 4
      %v6252 = vshll.u32 %v6142, 16
      %v6254 = vrot.slane %v6252, 5
      %v6255 = vor.u32 %v6251, %v6254
      %v6257 = vshrl.u32 %v6143, 16
      %v6259 = vrot.slane %v6257, 4
      %v6260 = vshll.u32 %v6143, 16
      %v6262 = vrot.slane %v6260, 5
      %v6263 = vor.u32 %v6259, %v6262
      %v6264 = vsel %vm4247, %v6255, %v6263
      %v6266 = vshrl.u32 %v6144, 16
      %v6268 = vrot.slane %v6266, 4
      %v6269 = vshll.u32 %v6144, 16
      %v6271 = vrot.slane %v6269, 5
      %v6272 = vor.u32 %v6268, %v6271
      %v6274 = vshrl.u32 %v6145, 16
      %v6276 = vrot.slane %v6274, 4
      %v6277 = vshll.u32 %v6145, 16
      %v6279 = vrot.slane %v6277, 5
      %v6280 = vor.u32 %v6276, %v6279
      %v6281 = vsel %vm4247, %v6272, %v6280
      %s6282 = scalar_lea.vmem %s3, 192
      %v6283 = vld [vmem:[%s6282] sm:$0xf]
      %v6284 = vld [vmem:[%s6282 + $0x4] sm:$0xf]
      %v6285 = vld [vmem:[%s6282 + $0x8] sm:$0xf]
      %v6286 = vld [vmem:[%s6282 + $0xc] sm:$0xf]
      %v6287 = vld [vmem:[%s6282 + $0x10] sm:$0xf]
      %v6288 = vld [vmem:[%s6282 + $0x14] sm:$0x1]
      %v6295 = vunpack.c.l.b16 %v6283
      %v6296 = vunpack.c.l.b16 %v6284
      %v6297 = vunpack.c.l.b16 %v6285
      %v6298 = vunpack.c.l.b16 %v6286
      %v6299 = vunpack.c.l.b16 %v6287
      %v6300 = vunpack.c.l.b16 %v6288
      %v6301 = vpack.c.b16 %v6296, %v6295
      %v6302 = vpack.c.b16 %v6298, %v6297
      %v6303 = vpack.c.b16 %v6300, %v6299
      %v6307 = vsel %vm3836, %v6162, 0
      %v6310 = vsel %vm3836, %v6179, 0
      %v6313 = vsel %vm3836, %v6196, 0
      %v6316 = vsel %vm3836, %v6213, 0
      %v6319 = vsel %vm3836, %v6230, 0
      %v6322 = vsel %vm3836, %v6247, 0
      %v6325 = vsel %vm3836, %v6264, 0
      %v6328 = vsel %vm3836, %v6281, 0
      %v6331 = vsel %vm3861, %v6303, 0
      %6333 = vmatprep.subr.bf16.mxu0 0
      %6334 = vmatpush1.bf16.msra.mxu0 %v6301
      %6335 = vmatprep.subr.bf16.mxu0 0
      %6336 = vmatpush1.bf16.msra.mxu0 %v6302
      %6337 = vmatprep.subr.bf16.mxu0 0
      %6338 = vmatpush1.bf16.msra.mxu0 %v6331
      %6339 = vmatprep.subr.bf16.mxu0 0
      %6340 = vmatpush1.bf16.msra.mxu0 0
      %6341 = vmatprep.subr.bf16.mxu0 0
      %6342 = vmatpush1.bf16.msra.mxu0 0
      %6343 = vmatprep.subr.bf16.mxu0 0
      %6344 = vmatpush1.bf16.msra.mxu0 0
      %6345 = vmatprep.subr.bf16.mxu0 0
      %6346 = vmatpush1.bf16.msra.mxu0 0
      %6347 = vmatprep.subr.bf16.mxu0 0
      %6348 = vmatpush1.bf16.msra.mxu0 0
      %6349 = vmatprep.subr.bf16.mxu0 0
      %6350 = vmatpush1.bf16.msra.mxu0 0
      %6351 = vmatprep.subr.bf16.mxu0 0
      %6352 = vmatpush1.bf16.msra.mxu0 0
      %6353 = vmatprep.subr.bf16.mxu0 0
      %6354 = vmatpush1.bf16.msra.mxu0 0
      %6355 = vmatprep.subr.bf16.mxu0 0
      %6356 = vmatpush1.bf16.msra.mxu0 0
      %6357 = vmatprep.subr.bf16.mxu0 0
      %6358 = vmatpush1.bf16.msra.mxu0 0
      %6359 = vmatprep.subr.bf16.mxu0 0
      %6360 = vmatpush1.bf16.msra.mxu0 0
      %6361 = vmatprep.subr.bf16.mxu0 0
      %6362 = vmatpush1.bf16.msra.mxu0 0
      %6363 = vmatprep.subr.bf16.mxu0 0
      %6364 = vmatpush1.bf16.msra.mxu0 0
      %6365 = vmatprep.mubr.bf16.mxu0 0
      %6366 = vmatmul.mubr.bf16.gmra.mrb[0].mxu0 %v6307
      %v6367 = vpop.f32.mrb[0].mxu0
      %v6368 = vadd.f32 0.0, %v6367
      %v6369 = vpop.f32.mrb[0].mxu0
      %v6370 = vpop.f32.mrb[0].mxu0
      %v6371 = vadd.f32 0.0, %v6370
      %v6372 = vpop.f32.mrb[0].mxu0
      %6373 = vmatprep.mubr.bf16.mxu0 0
      %6374 = vmatmul.mubr.bf16.gmra.mrb[0].mxu0 %v6310
      %v6375 = vpop.f32.mrb[0].mxu0
      %v6376 = vadd.f32 0.0, %v6375
      %v6377 = vpop.f32.mrb[0].mxu0
      %v6378 = vpop.f32.mrb[0].mxu0
      %v6379 = vadd.f32 0.0, %v6378
      %v6380 = vpop.f32.mrb[0].mxu0
      %6381 = vmatprep.mubr.bf16.mxu0 0
      %6382 = vmatmul.mubr.bf16.gmra.mrb[0].mxu0 %v6313
      %v6383 = vpop.f32.mrb[0].mxu0
      %v6384 = vadd.f32 0.0, %v6383
      %v6385 = vpop.f32.mrb[0].mxu0
      %v6386 = vpop.f32.mrb[0].mxu0
      %v6387 = vadd.f32 0.0, %v6386
      %v6388 = vpop.f32.mrb[0].mxu0
      %6389 = vmatprep.mubr.bf16.mxu0 0
      %6390 = vmatmul.mubr.bf16.gmra.mrb[0].mxu0 %v6316
      %v6391 = vpop.f32.mrb[0].mxu0
      %v6392 = vadd.f32 0.0, %v6391
      %v6393 = vpop.f32.mrb[0].mxu0
      %v6394 = vpop.f32.mrb[0].mxu0
      %v6395 = vadd.f32 0.0, %v6394
      %v6396 = vpop.f32.mrb[0].mxu0
      %6397 = vmatprep.mubr.bf16.mxu0 0
      %6398 = vmatmul.mubr.bf16.gmra.mrb[0].mxu0 %v6319
      %v6399 = vpop.f32.mrb[0].mxu0
      %v6400 = vadd.f32 0.0, %v6399
      %v6401 = vpop.f32.mrb[0].mxu0
      %v6402 = vpop.f32.mrb[0].mxu0
      %v6403 = vadd.f32 0.0, %v6402
      %v6404 = vpop.f32.mrb[0].mxu0
      %6405 = vmatprep.mubr.bf16.mxu0 0
      %6406 = vmatmul.mubr.bf16.gmra.mrb[0].mxu0 %v6322
      %v6407 = vpop.f32.mrb[0].mxu0
      %v6408 = vadd.f32 0.0, %v6407
      %v6409 = vpop.f32.mrb[0].mxu0
      %v6410 = vpop.f32.mrb[0].mxu0
      %v6411 = vadd.f32 0.0, %v6410
      %v6412 = vpop.f32.mrb[0].mxu0
      %6413 = vmatprep.mubr.bf16.mxu0 0
      %6414 = vmatmul.mubr.bf16.gmra.mrb[0].mxu0 %v6325
      %v6415 = vpop.f32.mrb[0].mxu0
      %v6416 = vadd.f32 0.0, %v6415
      %v6417 = vpop.f32.mrb[0].mxu0
      %v6418 = vpop.f32.mrb[0].mxu0
      %v6419 = vadd.f32 0.0, %v6418
      %v6420 = vpop.f32.mrb[0].mxu0
      %6421 = vmatprep.mubr.bf16.mxu0 0
      %6422 = vmatmul.mubr.bf16.gmra.mrb[0].mxu0 %v6328
      %v6423 = vpop.f32.mrb[0].mxu0
      %v6424 = vadd.f32 0.0, %v6423
      %v6425 = vpop.f32.mrb[0].mxu0
      %v6426 = vpop.f32.mrb[0].mxu0
      %v6427 = vadd.f32 0.0, %v6426
      %v6428 = vpop.f32.mrb[0].mxu0
      %6429 = vdwg.mxu0
      %v6430 = vld [vmem:[#allocation4] sm:$0xff]
      %v6431 = vld [vmem:[#allocation4 + $0x8] sm:$0xff]
      %v6432 = vld [vmem:[#allocation4 + $0x10] sm:$0xff]
      %v6433 = vld [vmem:[#allocation4 + $0x18] sm:$0xff]
      %v6434 = vld [vmem:[#allocation4 + $0x20] sm:$0xff]
      %v6435 = vld [vmem:[#allocation4 + $0x28] sm:$0xff]
      %v6436 = vld [vmem:[#allocation4 + $0x30] sm:$0xff]
      %v6437 = vld [vmem:[#allocation4 + $0x38] sm:$0xff]
      %v6438 = vld [vmem:[#allocation4 + $0x40] sm:$0xff]
      %v6439 = vld [vmem:[#allocation4 + $0x48] sm:$0xff]
      %v6440 = vld [vmem:[#allocation4 + $0x50] sm:$0xff]
      %v6441 = vld [vmem:[#allocation4 + $0x58] sm:$0xff]
      %v6442 = vld [vmem:[#allocation4 + $0x60] sm:$0xff]
      %v6443 = vld [vmem:[#allocation4 + $0x68] sm:$0xff]
      %v6444 = vld [vmem:[#allocation4 + $0x70] sm:$0xff]
      %v6445 = vld [vmem:[#allocation4 + $0x78] sm:$0xff]
      %v6446 = vadd.f32 %v6430, %v6368
      %v6447 = vadd.f32 %v6431, %v6371
      %v6448 = vadd.f32 %v6432, %v6376
      %v6449 = vadd.f32 %v6433, %v6379
      %v6450 = vadd.f32 %v6434, %v6384
      %v6451 = vadd.f32 %v6435, %v6387
      %v6452 = vadd.f32 %v6436, %v6392
      %v6453 = vadd.f32 %v6437, %v6395
      %v6454 = vadd.f32 %v6438, %v6400
      %v6455 = vadd.f32 %v6439, %v6403
      %v6456 = vadd.f32 %v6440, %v6408
      %v6457 = vadd.f32 %v6441, %v6411
      %v6458 = vadd.f32 %v6442, %v6416
      %v6459 = vadd.f32 %v6443, %v6419
      %v6460 = vadd.f32 %v6444, %v6424
      %v6461 = vadd.f32 %v6445, %v6427
      %6462 = vst [vmem:[#allocation4] sm:$0xff] %v6446
      %6463 = vst [vmem:[#allocation4 + $0x8] sm:$0xff] %v6447
      %6464 = vst [vmem:[#allocation4 + $0x10] sm:$0xff] %v6448
      %6465 = vst [vmem:[#allocation4 + $0x18] sm:$0xff] %v6449
      %6466 = vst [vmem:[#allocation4 + $0x20] sm:$0xff] %v6450
      %6467 = vst [vmem:[#allocation4 + $0x28] sm:$0xff] %v6451
      %6468 = vst [vmem:[#allocation4 + $0x30] sm:$0xff] %v6452
      %6469 = vst [vmem:[#allocation4 + $0x38] sm:$0xff] %v6453
      %6470 = vst [vmem:[#allocation4 + $0x40] sm:$0xff] %v6454
      %6471 = vst [vmem:[#allocation4 + $0x48] sm:$0xff] %v6455
      %6472 = vst [vmem:[#allocation4 + $0x50] sm:$0xff] %v6456
      %6473 = vst [vmem:[#allocation4 + $0x58] sm:$0xff] %v6457
      %6474 = vst [vmem:[#allocation4 + $0x60] sm:$0xff] %v6458
      %6475 = vst [vmem:[#allocation4 + $0x68] sm:$0xff] %v6459
      %6476 = vst [vmem:[#allocation4 + $0x70] sm:$0xff] %v6460
      %6477 = vst [vmem:[#allocation4 + $0x78] sm:$0xff] %v6461
      %v6478 = vld [vmem:[#allocation4] sm:$0xff]
      %v6479 = vld [vmem:[#allocation4 + $0x8] sm:$0xff]
      %v6480 = vld [vmem:[#allocation4 + $0x10] sm:$0xff]
      %v6481 = vld [vmem:[#allocation4 + $0x18] sm:$0xff]
      %v6482 = vld [vmem:[#allocation4 + $0x20] sm:$0xff]
      %v6483 = vld [vmem:[#allocation4 + $0x28] sm:$0xff]
      %v6484 = vld [vmem:[#allocation4 + $0x30] sm:$0xff]
      %v6485 = vld [vmem:[#allocation4 + $0x38] sm:$0xff]
      %v6486 = vld [vmem:[#allocation4 + $0x40] sm:$0xff]
      %v6487 = vld [vmem:[#allocation4 + $0x48] sm:$0xff]
      %v6488 = vld [vmem:[#allocation4 + $0x50] sm:$0xff]
      %v6489 = vld [vmem:[#allocation4 + $0x58] sm:$0xff]
      %v6490 = vld [vmem:[#allocation4 + $0x60] sm:$0xff]
      %v6491 = vld [vmem:[#allocation4 + $0x68] sm:$0xff]
      %v6492 = vld [vmem:[#allocation4 + $0x70] sm:$0xff]
      %v6493 = vld [vmem:[#allocation4 + $0x78] sm:$0xff]
      %v6494 = vld [vmem:[%s4] sm:$0x1]
      %v6496 = vlaneseq
      %v6497 = vshrl.u32 %v6496, 7
      %v6498 = vsub.s32 0, %v6497
      %v6499 = vrot.slane %v6494, %v6498
      %v6501 = vadd.f32 %v6478, %v6499
      %v6502 = vadd.f32 %v6479, %v6499
      %v6503 = vadd.f32 %v6480, %v6499
      %v6504 = vadd.f32 %v6481, %v6499
      %v6505 = vadd.f32 %v6482, %v6499
      %v6506 = vadd.f32 %v6483, %v6499
      %v6507 = vadd.f32 %v6484, %v6499
      %v6508 = vadd.f32 %v6485, %v6499
      %v6509 = vadd.f32 %v6486, %v6499
      %v6510 = vadd.f32 %v6487, %v6499
      %v6511 = vadd.f32 %v6488, %v6499
      %v6512 = vadd.f32 %v6489, %v6499
      %v6513 = vadd.f32 %v6490, %v6499
      %v6514 = vadd.f32 %v6491, %v6499
      %v6515 = vadd.f32 %v6492, %v6499
      %v6516 = vadd.f32 %v6493, %v6499
      %6517 = vst [vmem:[%s295] sm:$0xff] %v6501
      %6518 = vst [vmem:[%s295 + $0x8] sm:$0xff] %v6502
      %6519 = vst [vmem:[%s295 + $0x10] sm:$0xff] %v6503
      %6520 = vst [vmem:[%s295 + $0x18] sm:$0xff] %v6504
      %6521 = vst [vmem:[%s295 + $0x20] sm:$0xff] %v6505
      %6522 = vst [vmem:[%s295 + $0x28] sm:$0xff] %v6506
      %6523 = vst [vmem:[%s295 + $0x30] sm:$0xff] %v6507
      %6524 = vst [vmem:[%s295 + $0x38] sm:$0xff] %v6508
      %6525 = vst [vmem:[%s295 + $0x40] sm:$0xff] %v6509
      %6526 = vst [vmem:[%s295 + $0x48] sm:$0xff] %v6510
      %6527 = vst [vmem:[%s295 + $0x50] sm:$0xff] %v6511
      %6528 = vst [vmem:[%s295 + $0x58] sm:$0xff] %v6512
      %6529 = vst [vmem:[%s295 + $0x60] sm:$0xff] %v6513
      %6530 = vst [vmem:[%s295 + $0x68] sm:$0xff] %v6514
      %6531 = vst [vmem:[%s295 + $0x70] sm:$0xff] %v6515
      %6532 = vst [vmem:[%s295 + $0x78] sm:$0xff] %v6516
      // Predicated region
      $region49: #{_lambda_.2} parent=39 // pred_check
        %p6533 = pneg %p3645
      $region50: #{_lambda_.2} parent=39 // pred_check_branch
        %6535 = sbr.rel (%p6533) target = $region52
      $region51: #{_lambda_.2} parent=39 // pred_region
        %6536 = vst [vmem:[%s299] sm:$0x1] 0.0
      $region52: #{_lambda_.2} parent=39 // pred_fallthru
        _
      %v6537 = vld [vmem:[%s299] sm:$0x1]
      %v6538 = vadd.f32 %v6501, %v6502
      %v6539 = vadd.f32 %v6538, %v6503
      %v6540 = vadd.f32 %v6539, %v6504
      %v6541 = vadd.f32 %v6540, %v6505
      %v6542 = vadd.f32 %v6541, %v6506
      %v6543 = vadd.f32 %v6542, %v6507
      %v6544 = vadd.f32 %v6543, %v6508
      %v6545 = vadd.f32 %v6544, %v6509
      %v6546 = vadd.f32 %v6545, %v6510
      %v6547 = vadd.f32 %v6546, %v6511
      %v6548 = vadd.f32 %v6547, %v6512
      %v6549 = vadd.f32 %v6548, %v6513
      %v6550 = vadd.f32 %v6549, %v6514
      %v6551 = vadd.f32 %v6550, %v6515
      %v6552 = vadd.f32 %v6551, %v6516
      %v6553 = vrot.slane %v6552, 4
      %v6554 = vadd.f32 %v6552, %v6553
      %v6555 = vrot.slane %v6554, 2
      %v6556 = vadd.f32 %v6554, %v6555
      %v6557 = vrot.slane %v6556, 1
      %v6558 = vadd.f32 %v6556, %v6557
      %v6559 = vadd.f32 %v6537, %v6558
      %6560 = vst [vmem:[%s299] sm:$0x1] %v6559
      %s6561 = smul.u32 8, %s23
      %p6562 = scmp.lt.s32.totalorder %s22, 1
      %s6563 = scalar_select %p6562, %s22, 1
      %p6564 = scmp.lt.s32.totalorder %s6561, 15
      %s6565 = scalar_select %p6564, %s6561, 15
      %s6566 = smul.addr %s6565, 2
      %s6567 = smul.addr %s6563, 32
      %s6568 = sadd.s32 %s6566, %s6567
      %s6569 = smul.addr %s6568, 8
      %s6570 = scalar_lea.vmem %s5, %s6569
      %p6571 = scmp.lt.s32.totalorder %s22, 1
      %s6572 = scalar_select %p6571, %s22, 1
      %s6573 = scalar_lea.vmem %s6, %s6572
      // Predicated region
      $region53: #{_lambda_.2} parent=39 // pred_check
        %p6574 = pneg %p162
      $region54: #{_lambda_.2} parent=39 // pred_check_branch
        %6576 = sbr.rel (%p6574) target = $region56
      $region55: #{_lambda_.2} parent=39 // pred_region
        %s6577 = smul.u32 8, %s23
      $region56: #{_lambda_.2} parent=39 // pred_fallthru
        _
      // Predicated region
      $region57: #{_lambda_.2} parent=39 // pred_check
        %p6578 = pneg %p188
      $region58: #{_lambda_.2} parent=39 // pred_check_branch
        %6580 = sbr.rel (%p6578) target = $region60
      $region59: #{_lambda_.2} parent=39 // pred_region
        _
      $region60: #{_lambda_.2} parent=39 // pred_fallthru
        _
    $region40: #{_lambda_.2} parent=5 // pred_fallthru
      _
    %p6581 = scmp.le.s32.totalorder 2, %s13
    // Predicated region
    $region61: #{_lambda_.2} parent=5 // pred_check
      %p6582 = pneg %p6581
    $region62: #{_lambda_.2} parent=5 // pred_check_branch
      %6584 = sbr.rel (%p6582) target = $region64
    $region63: #{_lambda_.2} parent=5 // pred_region
      %s6585 = ssub.s32 %s13, 2
      // Predicated region
      $region65: #{_lambda_.2} parent=63 // pred_check
        %p6586 = pneg %p168
      $region66: #{_lambda_.2} parent=63 // pred_check_branch
        %6588 = sbr.rel (%p6586) target = $region68
      $region67: #{_lambda_.2} parent=63 // pred_region
        %s6589 = smul.u32 8, %s25
        %p6590 = scmp.lt.s32.totalorder %s24, 1
        %s6591 = scalar_select %p6590, %s24, 1
        %p6592 = scmp.lt.s32.totalorder %s6589, 15
        %s6593 = scalar_select %p6592, %s6589, 15
        %s6594 = smul.addr %s6593, 2
        %s6595 = smul.addr %s6591, 32
        %s6596 = sadd.s32 %s6594, %s6595
        %s6597 = smul.addr %s6596, 8
        %s6598 = scalar_lea.vmem %s5, %s6597
      $region68: #{_lambda_.2} parent=63 // pred_fallthru
        _
      // Predicated region
      $region69: #{_lambda_.2} parent=63 // pred_check
        %p6599 = pneg %p194
      $region70: #{_lambda_.2} parent=63 // pred_check_branch
        %6601 = sbr.rel (%p6599) target = $region72
      $region71: #{_lambda_.2} parent=63 // pred_region
        %p6602 = scmp.lt.s32.totalorder %s24, 1
        %s6603 = scalar_select %p6602, %s24, 1
        %s6604 = scalar_lea.vmem %s6, %s6603
      $region72: #{_lambda_.2} parent=63 // pred_fallthru
        _
    $region64: #{_lambda_.2} parent=5 // pred_fallthru
      _
  $region6: #{_lambda_.2} parent=0 // loop_footer
    %s17 = sadd.s32 1, %s13
  $region7: #{_lambda_.2} parent=0 // loop_footer_branch
    %12 = sbr.rel target = $region3
  $region8: #{_lambda_.2} parent=0 // loop_exit
    _

</llo_original>
